<compile_context>
chip_gen: v5e
topology: v5e:2x2
jax: 0.10.0
libtpu: 0.0.40
codegen_flags: <defaults>
</compile_context>

<pallas_src>
import jax
import jax.numpy as jnp
from jax import lax
from jax.experimental import pallas as pl


# ----------------------------------------------------------------------------
# Pallas kernels (each call is a single grid step; whole operands fit VMEM)
# ----------------------------------------------------------------------------
def _matmul_nt_kernel(x_ref, w_ref, o_ref):
    """o = x @ w.T with x: (M, K), w: (N, K) in PyTorch (out, in) layout."""
    o_ref[...] = lax.dot_general(
        x_ref[...], w_ref[...],
        dimension_numbers=(((1,), (1,)), ((), ())),
        preferred_element_type=jnp.float32)


def _matmul_nt_bias_kernel(x_ref, w_ref, b_ref, o_ref):
    """o = x @ w.T + b with b: (1, N)."""
    o_ref[...] = lax.dot_general(
        x_ref[...], w_ref[...],
        dimension_numbers=(((1,), (1,)), ((), ())),
        preferred_element_type=jnp.float32) + b_ref[...]


def pallas_matmul_nt(x, w, b=None):
    """x: (M, K) f32, w: (N, K) f32 (PyTorch layout, no transpose), b: (1, N)."""
    M, _ = x.shape
    N = w.shape[0]
    out_shape = jax.ShapeDtypeStruct((M, N), jnp.float32)
    if b is None:
        return pl.pallas_call(_matmul_nt_kernel, out_shape=out_shape)(x, w)
    return pl.pallas_call(_matmul_nt_bias_kernel, out_shape=out_shape)(x, w, b)


def _window_attn_kernel(q_ref, k_ref, v_ref, o_ref):
    """Batched window attention over all (batch, window, head) groups at once.

    q: (G, Nq, D) with the qk scale already folded in, k/v: (G, Nk, D).
    Single grid step: the whole problem is a few tens of KB, so per-step grid
    overhead would dominate wall time.
    """
    q = q_ref[...]
    k = k_ref[...]
    v = v_ref[...]
    s = jnp.einsum('gqd,gkd->gqk', q, k, preferred_element_type=jnp.float32)
    s = s - jnp.max(s, axis=-1, keepdims=True)
    p = jnp.exp(s)
    denom = jnp.sum(p, axis=-1, keepdims=True)
    p = p * pl.reciprocal(denom, approx=True)          # divide on the EUP slot
    o_ref[...] = jnp.einsum('gqk,gkd->gqd', p, v,
                            preferred_element_type=jnp.float32)


def pallas_window_attention(q, k, v):
    """q: (G, Nq, D), k/v: (G, Nk, D) -> (G, Nq, D), all f32, one grid step."""
    G, Nq, D = q.shape
    return pl.pallas_call(
        _window_attn_kernel,
        out_shape=jax.ShapeDtypeStruct((G, Nq, D), jnp.float32),
    )(q, k, v)


# ----------------------------------------------------------------------------
# Window (un)packing helpers — pure layout work, done in XLA on tiny arrays
# ----------------------------------------------------------------------------
def _pack_windows(x_tok, B, Hc, Wc, h_win, w_win, heads, head_dim):
    """(B, Hc*Wc, heads*head_dim) -> (B*nU*nV*heads, h_win*w_win, head_dim)."""
    nU, nV = Hc // h_win, Wc // w_win
    x = x_tok.reshape(B, nU, h_win, nV, w_win, heads, head_dim)
    x = x.transpose(0, 1, 3, 5, 2, 4, 6)               # b u v d h w c
    return x.reshape(B * nU * nV * heads, h_win * w_win, head_dim)


def _unpack_windows(o, B, nU, nV, heads, h_win, w_win, head_dim):
    """Inverse of _pack_windows -> (B, (nU*h_win)*(nV*w_win), heads*head_dim)."""
    o = o.reshape(B, nU, nV, heads, h_win, w_win, head_dim)
    o = o.transpose(0, 1, 4, 2, 5, 3, 6)               # b u h v w d c
    return o.reshape(B, nU * h_win * nV * w_win, heads * head_dim)


def _spatial_attention_core(q_tok, k_tok, v_tok, B, Hc, Wc, Hq, Wq,
                            num_heads, split_size, pool_kernel):
    """Both split-axis branches of one Spatial_Attention (pre-output-proj).

    q_tok: (B, Hq*Wq, C) with scale folded in; k_tok/v_tok: (B, Hc*Wc, C).
    Returns (B, Hq*Wq, C).  shift_flag=False path (mask=None), no padding.
    """
    C = q_tok.shape[-1]
    Ch = C // 2
    hb = num_heads // 2
    hd = Ch // hb
    pk = pool_kernel

    packed_q, packed_k, packed_v, meta = [], [], [], []
    for idx in range(2):
        if idx == 0:
            h_sp, w_sp = split_size[0], split_size[1]
        else:
            h_sp, w_sp = split_size[1], split_size[0]
        sl = slice(idx * Ch, (idx + 1) * Ch)
        packed_q.append(_pack_windows(q_tok[..., sl], B, Hq, Wq,
                                      h_sp * pk, w_sp * pk, hb, hd))
        packed_k.append(_pack_windows(k_tok[..., sl], B, Hc, Wc,
                                      h_sp, w_sp, hb, hd))
        packed_v.append(_pack_windows(v_tok[..., sl], B, Hc, Wc,
                                      h_sp, w_sp, hb, hd))
        meta.append((Hc // h_sp, Wc // w_sp, h_sp * pk, w_sp * pk))

    sizes = [pq.shape[0] for pq in packed_q]
    # Both branches have identical (Nq, D): run them in ONE pallas_call.
    out = pallas_window_attention(jnp.concatenate(packed_q, axis=0),
                                  jnp.concatenate(packed_k, axis=0),
                                  jnp.concatenate(packed_v, axis=0))

    branch_outs, off = [], 0
    for idx in range(2):
        nU, nV, hq, wq = meta[idx]
        ob = out[off:off + sizes[idx]]
        off += sizes[idx]
        branch_outs.append(_unpack_windows(ob, B, nU, nV, hb, hq, wq, hd))
    return jnp.concatenate(branch_outs, axis=-1)


# ----------------------------------------------------------------------------
# DSMHSA forward (Pallas path)
# ----------------------------------------------------------------------------
def dsmhsa_forward_pallas(x, H, W, params, cfg):
    B, L, Cin = x.shape
    assert L == H * W, 'input size error.'
    # The reference module rearranges with h=W, w=W (square grid assumption).
    assert H == W, 'DSMHSA reference assumes H == W'

    hr, lr = params['hr'], params['lr']
    d_hr = hr['q_w'].shape[0]
    d_lr = lr['q_w'].shape[0]
    pk_hr, pk_lr = cfg['pool_kernel']
    split_size = cfg['split_size']
    scale_hr = float(d_hr // cfg['hr_heads']) ** (-0.5)
    scale_lr = float(d_lr // cfg['lr_heads']) ** (-0.5)

    # ---- one fused, lane-dense (N = 192) projection over the un-pooled
    #      tokens: [hr_q | hr_kv | lr_q], qk scale folded into the q weights.
    w_fused = jnp.concatenate([hr['q_w'] * scale_hr, hr['kv_w'],
                               lr['q_w'] * scale_lr], axis=0)          # (192, Cin)
    xf = x.reshape(B * L, Cin)
    y = pallas_matmul_nt(xf, w_fused).reshape(B, L, -1)
    hr_q = y[..., :d_hr]
    hr_k = y[..., d_hr:2 * d_hr]
    hr_v = y[..., 2 * d_hr:3 * d_hr]
    lr_q = y[..., 3 * d_hr:]

    # ---- low-res path: 2x2 average pool, then fused kv projection (N = 192).
    Hp, Wp = H // pk_lr, W // pk_lr
    xp = x.reshape(B, Hp, pk_lr, Wp, pk_lr, Cin).mean(axis=(2, 4))
    ykv = pallas_matmul_nt(xp.reshape(B * Hp * Wp, Cin), lr['kv_w'])
    ykv = ykv.reshape(B, Hp * Wp, 2 * d_lr)
    lr_k = ykv[..., :d_lr]
    lr_v = ykv[..., d_lr:]

    # ---- window attention: one single-step pallas_call per resolution path.
    att_hr = _spatial_attention_core(hr_q, hr_k, hr_v, B, H, W, H, W,
                                     cfg['hr_heads'], split_size, pk_hr)
    att_lr = _spatial_attention_core(lr_q, lr_k, lr_v, B, Hp, Wp, H, W,
                                     cfg['lr_heads'], split_size, pk_lr)

    # ---- hr/lr output projections fused into one block-diagonal matmul whose
    #      output is directly the concatenated (B, L, 128) feature map.
    C_cat = d_hr + d_lr
    w_proj = jnp.zeros((C_cat, C_cat), jnp.float32)
    w_proj = w_proj.at[:d_hr, :d_hr].set(hr['proj_w'])
    w_proj = w_proj.at[d_hr:, d_hr:].set(lr['proj_w'])
    b_proj = jnp.concatenate([hr['proj_b'], lr['proj_b']])[None, :]
    att_cat = jnp.concatenate([att_hr, att_lr], axis=-1).reshape(B * L, C_cat)
    y_cat = pallas_matmul_nt(att_cat, w_proj, b_proj)                  # (B*L, 128)

    # ---- 3x3 conv (stride 1, pad 1) as im2col matmul, oriented so the kernel
    #      output minor dim is B*H*W = 128 (lane-dense) rather than C_out = 32.
    y_img = y_cat.reshape(B, H, W, C_cat)
    y_pad = jnp.pad(y_img, ((0, 0), (1, 1), (1, 1), (0, 0)))
    pats = jnp.stack([y_pad[:, kh:kh + H, kw:kw + W, :]
                      for kh in range(3) for kw in range(3)], axis=-1)  # (B,H,W,C,9)
    pats = pats.reshape(B * H * W, C_cat * 9)                 # K order = (ci, kh, kw)
    w_conv = params['conv_w'].reshape(params['conv_w'].shape[0], -1)    # (C_out, C*9)
    out_t = pallas_matmul_nt(w_conv, pats)                              # (C_out, B*H*W)
    out = out_t.T.reshape(B, H * W, -1) + params['conv_b']
    # attn_drop / proj_drop are nn.Dropout(p=0.0) -> identity (not modeled).
    return out


# ----------------------------------------------------------------------------
# Pure-JAX reference (direct translation of the PyTorch module, for checking)
# ----------------------------------------------------------------------------
def _ref_window_attention(k_img, v_img, q_img, h_sp, w_sp, heads, pool_kernel):
    B, Ch, Hc, Wc = k_img.shape
    nU, nV = Hc // h_sp, Wc // w_sp
    hd = Ch // heads
    scale = hd ** (-0.5)

    def vid2win(t, hh, ww):
        Bx = t.shape[0]
        t = t.reshape(Bx, heads, hd, nU, hh, nV, ww)
        t = t.transpose(0, 3, 5, 1, 4, 6, 2)                  # b u v d h w c
        return t.reshape(Bx * nU * nV, heads, hh * ww, hd)

    q = vid2win(q_img, h_sp * pool_kernel, w_sp * pool_kernel)
    k = vid2win(k_img, h_sp, w_sp)
    v = vid2win(v_img, h_sp, w_sp)
    attn = jnp.einsum('bdqc,bdkc->bdqk', q, k) * scale
    attn = jax.nn.softmax(attn, axis=-1)
    o = jnp.einsum('bdqk,bdkc->bdqc', attn, v)
    hq, wq = h_sp * pool_kernel, w_sp * pool_kernel
    o = o.reshape(B, nU, nV, heads, hq, wq, hd)
    o = o.transpose(0, 3, 6, 1, 4, 2, 5)                      # b d c u h v w
    return o.reshape(B, heads * hd, nU * hq, nV * wq)


def _ref_spatial_attention(x, H, W, p, num_heads, split_size, pool_kernel):
    B, L, _ = x.shape
    C = p['q_w'].shape[0]
    Hq, Wq = H, W
    q = x @ p['q_w'].T
    if pool_kernel > 1:
        xi = x.reshape(B, H, W, -1).transpose(0, 3, 1, 2)
        Ci = xi.shape[1]
        xi = xi.reshape(B, Ci, H // pool_kernel, pool_kernel,
                        W // pool_kernel, pool_kernel).mean(axis=(3, 5))
        H, W = H // pool_kernel, W // pool_kernel
        x = xi.transpose(0, 2, 3, 1).reshape(B, H * W, Ci)
    kv = x @ p['kv_w'].T
    kv = kv.reshape(B, H, W, 2, C).transpose(3, 0, 4, 1, 2)   # n b c h w
    k_img, v_img = kv[0], kv[1]
    q_img = q.reshape(B, Hq, Wq, C).transpose(0, 3, 1, 2)
    Ch = C // 2
    x1 = _ref_window_attention(k_img[:, :Ch], v_img[:, :Ch], q_img[:, :Ch],
                               split_size[0], split_size[1],
                               num_heads // 2, pool_kernel)
    x2 = _ref_window_attention(k_img[:, Ch:], v_img[:, Ch:], q_img[:, Ch:],
                               split_size[1], split_size[0],
                               num_heads // 2, pool_kernel)
    att = jnp.concatenate([x1, x2], axis=1)                   # (B, C, Hq, Wq)
    att = att.reshape(B, C, Hq * Wq).transpose(0, 2, 1)
    return att @ p['proj_w'].T + p['proj_b']


def dsmhsa_forward_reference(x, H, W, params, cfg):
    B, _, _ = x.shape
    y1 = _ref_spatial_attention(x, H, W, params['hr'], cfg['hr_heads'],
                                cfg['split_size'], cfg['pool_kernel'][0])
    y2 = _ref_spatial_attention(x, H, W, params['lr'], cfg['lr_heads'],
                                cfg['split_size'], cfg['pool_kernel'][1])
    y = jnp.concatenate([y1, y2], axis=-1)
    y = y.reshape(B, W, W, y.shape[-1]).transpose(0, 3, 1, 2)  # h=W, w=W (ref quirk)
    y = lax.conv_general_dilated(y, params['conv_w'], (1, 1), ((1, 1), (1, 1)),
                                 dimension_numbers=('NCHW', 'OIHW', 'NCHW'))
    y = y + params['conv_b'][None, :, None, None]
    return y.reshape(B, y.shape[1], -1).transpose(0, 2, 1)


# ----------------------------------------------------------------------------
# Main
# ----------------------------------------------------------------------------
if __name__ == "__main__":
    B, H, W = 2, 8, 8
    dim = 32                       # DSMHSA input/output channels
    dim_heads = 8
    dim_groups = [32, 96]          # sums to 128 (proj conv is 128 -> dim)
    split_size = [2, 4]
    pool_kernel = [1, 2]

    key = jax.random.PRNGKey(0)
    keys = jax.random.split(key, 12)

    def nrm(k, shape, s=0.05):
        return jax.random.normal(k, shape, jnp.float32) * s

    params = {
        'hr': {'q_w':    nrm(keys[0], (dim_groups[0], dim)),
               'kv_w':   nrm(keys[1], (2 * dim_groups[0], dim)),
               'proj_w': nrm(keys[2], (dim_groups[0], dim_groups[0])),
               'proj_b': nrm(keys[3], (dim_groups[0],))},
        'lr': {'q_w':    nrm(keys[4], (dim_groups[1], dim)),
               'kv_w':   nrm(keys[5], (2 * dim_groups[1], dim)),
               'proj_w': nrm(keys[6], (dim_groups[1], dim_groups[1])),
               'proj_b': nrm(keys[7], (dim_groups[1],))},
        'conv_w': nrm(keys[8], (dim, dim_groups[0] + dim_groups[1], 3, 3)),
        'conv_b': nrm(keys[9], (dim,)),
    }
    cfg = dict(split_size=split_size, pool_kernel=pool_kernel,
               hr_heads=dim_groups[0] // dim_heads,
               lr_heads=dim_groups[1] // dim_heads)

    x = jax.random.normal(keys[10], (B, H * W, dim), jnp.float32)

    fwd = jax.jit(lambda xx, pp: dsmhsa_forward_pallas(xx, H, W, pp, cfg))
    out = jax.block_until_ready(fwd(x, params))

    ref = dsmhsa_forward_reference(x, H, W, params, cfg)

    assert out.shape == (B, H * W, dim)
    assert bool(jnp.all(jnp.isfinite(out)))
    max_err = float(jnp.max(jnp.abs(out - ref)))
    assert max_err < 2e-3, f"max abs err vs reference: {max_err}"
    print("KERNEL_OK")
</pallas_src>

<mosaic_0001>
module attributes {stable_mosaic.version = 11 : i64} {
  func.func @_matmul_nt_kernel(%arg0: memref<128x32xf32, #tpu.memory_space<vmem>>, %arg1: memref<192x32xf32, #tpu.memory_space<vmem>>, %arg2: memref<128x192xf32, #tpu.memory_space<vmem>>) attributes {dimension_semantics = [], scalar_prefetch = 0 : i64, scratch_operands = 0 : i64, tpu.core_type = #tpu.core_type<tc>} {
    %c0 = arith.constant 0 : index
    %c0_0 = arith.constant 0 : index
    %0 = vector.load %arg0[%c0, %c0_0] : memref<128x32xf32, #tpu.memory_space<vmem>>, vector<128x32xf32>
    %c0_1 = arith.constant 0 : index
    %c0_2 = arith.constant 0 : index
    %1 = vector.load %arg1[%c0_1, %c0_2] : memref<192x32xf32, #tpu.memory_space<vmem>>, vector<192x32xf32>
    %cst = arith.constant dense<0.000000e+00> : vector<128x192xf32>
    %2 = tpu.matmul %0, %1, %cst {dimension_numbers = #tpu.dot_dimension_numbers<[1], [1], [0], [0], [0, 0, 1, 0], [], []>} : vector<128x32xf32>, vector<192x32xf32>, vector<128x192xf32> -> vector<128x192xf32>
    %c0_3 = arith.constant 0 : index
    %c0_4 = arith.constant 0 : index
    %3 = vector.load %arg2[%c0_3, %c0_4] : memref<128x192xf32, #tpu.memory_space<vmem>>, vector<128x192xf32>
    tpu.vector_store %arg2[%c0_3, %c0_4], %2 {strides = array<i32>} : memref<128x192xf32, #tpu.memory_space<vmem>>, vector<128x192xf32>,
    return
  }
}

module attributes {stable_mosaic.version = 11 : i64} {
  func.func @_window_attn_kernel(%arg0: memref<64x8x8xf32, #tpu.memory_space<vmem>>, %arg1: memref<64x8x8xf32, #tpu.memory_space<vmem>>, %arg2: memref<64x8x8xf32, #tpu.memory_space<vmem>>, %arg3: memref<64x8x8xf32, #tpu.memory_space<vmem>>) attributes {dimension_semantics = [], scalar_prefetch = 0 : i64, scratch_operands = 0 : i64, tpu.core_type = #tpu.core_type<tc>} {
    %c0 = arith.constant 0 : index
    %c0_0 = arith.constant 0 : index
    %c0_1 = arith.constant 0 : index
    %0 = vector.load %arg0[%c0, %c0_0, %c0_1] : memref<64x8x8xf32, #tpu.memory_space<vmem>>, vector<64x8x8xf32>
    %c0_2 = arith.constant 0 : index
    %c0_3 = arith.constant 0 : index
    %c0_4 = arith.constant 0 : index
    %1 = vector.load %arg1[%c0_2, %c0_3, %c0_4] : memref<64x8x8xf32, #tpu.memory_space<vmem>>, vector<64x8x8xf32>
    %c0_5 = arith.constant 0 : index
    %c0_6 = arith.constant 0 : index
    %c0_7 = arith.constant 0 : index
    %2 = vector.load %arg2[%c0_5, %c0_6, %c0_7] : memref<64x8x8xf32, #tpu.memory_space<vmem>>, vector<64x8x8xf32>
    "tpu.trace_start"() <{level = 10 : i32, message = "gqd,gkd->gqk"}> : () -> ()
    %cst = arith.constant dense<0.000000e+00> : vector<64x8x8xf32>
    %3 = tpu.matmul %0, %1, %cst {dimension_numbers = #tpu.dot_dimension_numbers<[2], [2], [1], [1], [0, 0, 0, 1, 1, 1], [0], [0]>} : vector<64x8x8xf32>, vector<64x8x8xf32>, vector<64x8x8xf32> -> vector<64x8x8xf32>
    "tpu.trace_stop"() : () -> ()
    %cst_8 = arith.constant dense<0xFF800000> : vector<64x8xf32>
    %4 = vector.multi_reduction <maximumf>, %3, %cst_8 [2] : vector<64x8x8xf32> to vector<64x8xf32>
    %5 = vector.shape_cast %4 : vector<64x8xf32> to vector<64x8x1xf32>
    %6 = vector.broadcast %5 : vector<64x8x1xf32> to vector<64x8x8xf32>
    %7 = arith.subf %3, %6 : vector<64x8x8xf32>
    %8 = math.exp %7 : vector<64x8x8xf32>
    %cst_9 = arith.constant dense<0.000000e+00> : vector<64x8xf32>
    %9 = vector.multi_reduction <add>, %8, %cst_9 [2] : vector<64x8x8xf32> to vector<64x8xf32>
    %10 = vector.shape_cast %9 : vector<64x8xf32> to vector<64x8x1xf32>
    %11 = tpu.reciprocal %10 {approx = true} : vector<64x8x1xf32> -> vector<64x8x1xf32>
    %12 = vector.broadcast %11 : vector<64x8x1xf32> to vector<64x8x8xf32>
    %13 = arith.mulf %8, %12 : vector<64x8x8xf32>
    "tpu.trace_start"() <{level = 10 : i32, message = "gqk,gkd->gqd"}> : () -> ()
    %cst_10 = arith.constant dense<0.000000e+00> : vector<64x8x8xf32>
    %14 = tpu.matmul %13, %2, %cst_10 {dimension_numbers = #tpu.dot_dimension_numbers<[2], [1], [1], [2], [0, 0, 0, 1, 1, 2], [0], [0]>} : vector<64x8x8xf32>, vector<64x8x8xf32>, vector<64x8x8xf32> -> vector<64x8x8xf32>
    "tpu.trace_stop"() : () -> ()
    %c0_11 = arith.constant 0 : index
    %c0_12 = arith.constant 0 : index
    %c0_13 = arith.constant 0 : index
    %15 = vector.load %arg3[%c0_11, %c0_12, %c0_13] : memref<64x8x8xf32, #tpu.memory_space<vmem>>, vector<64x8x8xf32>
    tpu.vector_store %arg3[%c0_11, %c0_12, %c0_13], %14 {strides = array<i32>} : memref<64x8x8xf32, #tpu.memory_space<vmem>>, vector<64x8x8xf32>,
    return
  }
}

module attributes {stable_mosaic.version = 11 : i64} {
  func.func @_matmul_nt_kernel(%arg0: memref<32x32xf32, #tpu.memory_space<vmem>>, %arg1: memref<192x32xf32, #tpu.memory_space<vmem>>, %arg2: memref<32x192xf32, #tpu.memory_space<vmem>>) attributes {dimension_semantics = [], scalar_prefetch = 0 : i64, scratch_operands = 0 : i64, tpu.core_type = #tpu.core_type<tc>} {
    %c0 = arith.constant 0 : index
    %c0_0 = arith.constant 0 : index
    %0 = vector.load %arg0[%c0, %c0_0] : memref<32x32xf32, #tpu.memory_space<vmem>>, vector<32x32xf32>
    %c0_1 = arith.constant 0 : index
    %c0_2 = arith.constant 0 : index
    %1 = vector.load %arg1[%c0_1, %c0_2] : memref<192x32xf32, #tpu.memory_space<vmem>>, vector<192x32xf32>
    %cst = arith.constant dense<0.000000e+00> : vector<32x192xf32>
    %2 = tpu.matmul %0, %1, %cst {dimension_numbers = #tpu.dot_dimension_numbers<[1], [1], [0], [0], [0, 0, 1, 0], [], []>} : vector<32x32xf32>, vector<192x32xf32>, vector<32x192xf32> -> vector<32x192xf32>
    %c0_3 = arith.constant 0 : index
    %c0_4 = arith.constant 0 : index
    %3 = vector.load %arg2[%c0_3, %c0_4] : memref<32x192xf32, #tpu.memory_space<vmem>>, vector<32x192xf32>
    tpu.vector_store %arg2[%c0_3, %c0_4], %2 {strides = array<i32>} : memref<32x192xf32, #tpu.memory_space<vmem>>, vector<32x192xf32>,
    return
  }
}

module attributes {stable_mosaic.version = 11 : i64} {
  func.func @_window_attn_kernel(%arg0: memref<48x32x8xf32, #tpu.memory_space<vmem>>, %arg1: memref<48x8x8xf32, #tpu.memory_space<vmem>>, %arg2: memref<48x8x8xf32, #tpu.memory_space<vmem>>, %arg3: memref<48x32x8xf32, #tpu.memory_space<vmem>>) attributes {dimension_semantics = [], scalar_prefetch = 0 : i64, scratch_operands = 0 : i64, tpu.core_type = #tpu.core_type<tc>} {
    %c0 = arith.constant 0 : index
    %c0_0 = arith.constant 0 : index
    %c0_1 = arith.constant 0 : index
    %0 = vector.load %arg0[%c0, %c0_0, %c0_1] : memref<48x32x8xf32, #tpu.memory_space<vmem>>, vector<48x32x8xf32>
    %c0_2 = arith.constant 0 : index
    %c0_3 = arith.constant 0 : index
    %c0_4 = arith.constant 0 : index
    %1 = vector.load %arg1[%c0_2, %c0_3, %c0_4] : memref<48x8x8xf32, #tpu.memory_space<vmem>>, vector<48x8x8xf32>
    %c0_5 = arith.constant 0 : index
    %c0_6 = arith.constant 0 : index
    %c0_7 = arith.constant 0 : index
    %2 = vector.load %arg2[%c0_5, %c0_6, %c0_7] : memref<48x8x8xf32, #tpu.memory_space<vmem>>, vector<48x8x8xf32>
    "tpu.trace_start"() <{level = 10 : i32, message = "gqd,gkd->gqk"}> : () -> ()
    %cst = arith.constant dense<0.000000e+00> : vector<48x32x8xf32>
    %3 = tpu.matmul %0, %1, %cst {dimension_numbers = #tpu.dot_dimension_numbers<[2], [2], [1], [1], [0, 0, 0, 1, 1, 1], [0], [0]>} : vector<48x32x8xf32>, vector<48x8x8xf32>, vector<48x32x8xf32> -> vector<48x32x8xf32>
    "tpu.trace_stop"() : () -> ()
    %cst_8 = arith.constant dense<0xFF800000> : vector<48x32xf32>
    %4 = vector.multi_reduction <maximumf>, %3, %cst_8 [2] : vector<48x32x8xf32> to vector<48x32xf32>
    %5 = vector.shape_cast %4 : vector<48x32xf32> to vector<48x32x1xf32>
    %6 = vector.broadcast %5 : vector<48x32x1xf32> to vector<48x32x8xf32>
    %7 = arith.subf %3, %6 : vector<48x32x8xf32>
    %8 = math.exp %7 : vector<48x32x8xf32>
    %cst_9 = arith.constant dense<0.000000e+00> : vector<48x32xf32>
    %9 = vector.multi_reduction <add>, %8, %cst_9 [2] : vector<48x32x8xf32> to vector<48x32xf32>
    %10 = vector.shape_cast %9 : vector<48x32xf32> to vector<48x32x1xf32>
    %11 = tpu.reciprocal %10 {approx = true} : vector<48x32x1xf32> -> vector<48x32x1xf32>
    %12 = vector.broadcast %11 : vector<48x32x1xf32> to vector<48x32x8xf32>
    %13 = arith.mulf %8, %12 : vector<48x32x8xf32>
    "tpu.trace_start"() <{level = 10 : i32, message = "gqk,gkd->gqd"}> : () -> ()
    %cst_10 = arith.constant dense<0.000000e+00> : vector<48x32x8xf32>
    %14 = tpu.matmul %13, %2, %cst_10 {dimension_numbers = #tpu.dot_dimension_numbers<[2], [1], [1], [2], [0, 0, 0, 1, 1, 2], [0], [0]>} : vector<48x32x8xf32>, vector<48x8x8xf32>, vector<48x32x8xf32> -> vector<48x32x8xf32>
    "tpu.trace_stop"() : () -> ()
    %c0_11 = arith.constant 0 : index
    %c0_12 = arith.constant 0 : index
    %c0_13 = arith.constant 0 : index
    %15 = vector.load %arg3[%c0_11, %c0_12, %c0_13] : memref<48x32x8xf32, #tpu.memory_space<vmem>>, vector<48x32x8xf32>
    tpu.vector_store %arg3[%c0_11, %c0_12, %c0_13], %14 {strides = array<i32>} : memref<48x32x8xf32, #tpu.memory_space<vmem>>, vector<48x32x8xf32>,
    return
  }
}

module attributes {stable_mosaic.version = 11 : i64} {
  func.func @_matmul_nt_bias_kernel(%arg0: memref<128x128xf32, #tpu.memory_space<vmem>>, %arg1: memref<128x128xf32, #tpu.memory_space<vmem>>, %arg2: memref<1x128xf32, #tpu.memory_space<vmem>>, %arg3: memref<128x128xf32, #tpu.memory_space<vmem>>) attributes {dimension_semantics = [], scalar_prefetch = 0 : i64, scratch_operands = 0 : i64, tpu.core_type = #tpu.core_type<tc>} {
    %c0 = arith.constant 0 : index
    %c0_0 = arith.constant 0 : index
    %0 = vector.load %arg0[%c0, %c0_0] : memref<128x128xf32, #tpu.memory_space<vmem>>, vector<128x128xf32>
    %c0_1 = arith.constant 0 : index
    %c0_2 = arith.constant 0 : index
    %1 = vector.load %arg1[%c0_1, %c0_2] : memref<128x128xf32, #tpu.memory_space<vmem>>, vector<128x128xf32>
    %cst = arith.constant dense<0.000000e+00> : vector<128x128xf32>
    %2 = tpu.matmul %0, %1, %cst {dimension_numbers = #tpu.dot_dimension_numbers<[1], [1], [0], [0], [0, 0, 1, 0], [], []>} : vector<128x128xf32>, vector<128x128xf32>, vector<128x128xf32> -> vector<128x128xf32>
    %c0_3 = arith.constant 0 : index
    %c0_4 = arith.constant 0 : index
    %3 = vector.load %arg2[%c0_3, %c0_4] : memref<1x128xf32, #tpu.memory_space<vmem>>, vector<1x128xf32>
    %4 = vector.broadcast %3 : vector<1x128xf32> to vector<128x128xf32>
    %5 = arith.addf %2, %4 : vector<128x128xf32>
    %c0_5 = arith.constant 0 : index
    %c0_6 = arith.constant 0 : index
    %6 = vector.load %arg3[%c0_5, %c0_6] : memref<128x128xf32, #tpu.memory_space<vmem>>, vector<128x128xf32>
    tpu.vector_store %arg3[%c0_5, %c0_6], %5 {strides = array<i32>} : memref<128x128xf32, #tpu.memory_space<vmem>>, vector<128x128xf32>,
    return
  }
}

module attributes {stable_mosaic.version = 11 : i64} {
  func.func @_matmul_nt_kernel(%arg0: memref<32x1152xf32, #tpu.memory_space<vmem>>, %arg1: memref<128x1152xf32, #tpu.memory_space<vmem>>, %arg2: memref<32x128xf32, #tpu.memory_space<vmem>>) attributes {dimension_semantics = [], scalar_prefetch = 0 : i64, scratch_operands = 0 : i64, tpu.core_type = #tpu.core_type<tc>} {
    %c0 = arith.constant 0 : index
    %c0_0 = arith.constant 0 : index
    %0 = vector.load %arg0[%c0, %c0_0] : memref<32x1152xf32, #tpu.memory_space<vmem>>, vector<32x1152xf32>
    %c0_1 = arith.constant 0 : index
    %c0_2 = arith.constant 0 : index
    %1 = vector.load %arg1[%c0_1, %c0_2] : memref<128x1152xf32, #tpu.memory_space<vmem>>, vector<128x1152xf32>
    %cst = arith.constant dense<0.000000e+00> : vector<32x128xf32>
    %2 = tpu.matmul %0, %1, %cst {dimension_numbers = #tpu.dot_dimension_numbers<[1], [1], [0], [0], [0, 0, 1, 0], [], []>} : vector<32x1152xf32>, vector<128x1152xf32>, vector<32x128xf32> -> vector<32x128xf32>
    %c0_3 = arith.constant 0 : index
    %c0_4 = arith.constant 0 : index
    %3 = vector.load %arg2[%c0_3, %c0_4] : memref<32x128xf32, #tpu.memory_space<vmem>>, vector<32x128xf32>
    tpu.vector_store %arg2[%c0_3, %c0_4], %2 {strides = array<i32>} : memref<32x128xf32, #tpu.memory_space<vmem>>, vector<32x128xf32>,
    return
  }
}

</mosaic_0001>

<llo_original>
// kernel: _lambda_.6
$region0: #{_lambda_.6}
  #allocation0 [shape = 'u32[]', space=smem, size = 0x4, offset = 0x4, fixed_abs, tag = 'smem constant byte address 0x4 - core index']
  #allocation1 [shape = 'u32[72,128]{1,0:T(1,128)}', space=vmem, size = 0x9000, scoped, tag = 'internal scratch']
  %s0 = inlined_call_operand.vmem [shape: f32[128,32], index: 0, kind: input, shape index: {}]
  %s1 = inlined_call_operand.vmem [shape: f32[192,32], index: 1, kind: input, shape index: {}]
  %s2 = inlined_call_operand.vmem [shape: f32[128,192], index: 2, kind: output, shape index: {}]
  %s3 = sld [smem:[#allocation0]]
  $region18: #{_lambda_.6} parent=0
    _
  %s5 = ssub.s32 1, %s3
  %s6 = scalar_select 0, %s5, %s3
  // Predicated region
  $region2: #{_lambda_.6} parent=0 // pred_check
    _
  $region3: #{_lambda_.6} parent=0 // pred_check_branch
    %8 = sbr.rel (0) target = $region5
  $region4: #{_lambda_.6} parent=0 // pred_region
    _
  $region5: #{_lambda_.6} parent=0 // pred_fallthru
    _
  // Predicated region
  $region6: #{_lambda_.6} parent=0 // pred_check
    _
  $region7: #{_lambda_.6} parent=0 // pred_check_branch
    %10 = sbr.rel (0) target = $region9
  $region8: #{_lambda_.6} parent=0 // pred_region
    _
  $region9: #{_lambda_.6} parent=0 // pred_fallthru
    _
  %v11 = vld [vmem:[%s0] sm:$0xff]
  %v12 = vld [vmem:[%s0 + $0x8] sm:$0xff]
  %v13 = vld [vmem:[%s0 + $0x10] sm:$0xff]
  %v14 = vld [vmem:[%s0 + $0x18] sm:$0xff]
  %v15 = vld [vmem:[%s0 + $0x20] sm:$0xff]
  %v16 = vld [vmem:[%s0 + $0x28] sm:$0xff]
  %v17 = vld [vmem:[%s0 + $0x30] sm:$0xff]
  %v18 = vld [vmem:[%s0 + $0x38] sm:$0xff]
  %v19 = vld [vmem:[%s0 + $0x40] sm:$0xff]
  %v20 = vld [vmem:[%s0 + $0x48] sm:$0xff]
  %v21 = vld [vmem:[%s0 + $0x50] sm:$0xff]
  %v22 = vld [vmem:[%s0 + $0x58] sm:$0xff]
  %v23 = vld [vmem:[%s0 + $0x60] sm:$0xff]
  %v24 = vld [vmem:[%s0 + $0x68] sm:$0xff]
  %v25 = vld [vmem:[%s0 + $0x70] sm:$0xff]
  %v26 = vld [vmem:[%s0 + $0x78] sm:$0xff]
  %v27 = vld [vmem:[%s1] sm:$0xff]
  %v28 = vld [vmem:[%s1 + $0x8] sm:$0xff]
  %v29 = vld [vmem:[%s1 + $0x10] sm:$0xff]
  %v30 = vld [vmem:[%s1 + $0x18] sm:$0xff]
  %v31 = vld [vmem:[%s1 + $0x20] sm:$0xff]
  %v32 = vld [vmem:[%s1 + $0x28] sm:$0xff]
  %v33 = vld [vmem:[%s1 + $0x30] sm:$0xff]
  %v34 = vld [vmem:[%s1 + $0x38] sm:$0xff]
  %v35 = vld [vmem:[%s1 + $0x40] sm:$0xff]
  %v36 = vld [vmem:[%s1 + $0x48] sm:$0xff]
  %v37 = vld [vmem:[%s1 + $0x50] sm:$0xff]
  %v38 = vld [vmem:[%s1 + $0x58] sm:$0xff]
  %v39 = vld [vmem:[%s1 + $0x60] sm:$0xff]
  %v40 = vld [vmem:[%s1 + $0x68] sm:$0xff]
  %v41 = vld [vmem:[%s1 + $0x70] sm:$0xff]
  %v42 = vld [vmem:[%s1 + $0x78] sm:$0xff]
  %v43 = vld [vmem:[%s1 + $0x80] sm:$0xff]
  %v44 = vld [vmem:[%s1 + $0x88] sm:$0xff]
  %v45 = vld [vmem:[%s1 + $0x90] sm:$0xff]
  %v46 = vld [vmem:[%s1 + $0x98] sm:$0xff]
  %v47 = vld [vmem:[%s1 + $0xa0] sm:$0xff]
  %v48 = vld [vmem:[%s1 + $0xa8] sm:$0xff]
  %v49 = vld [vmem:[%s1 + $0xb0] sm:$0xff]
  %v50 = vld [vmem:[%s1 + $0xb8] sm:$0xff]
  %vm51 = vcmask 261120
  %v53 = vsel %vm51, %v11, 0
  %v56 = vsel %vm51, %v12, 0
  %v59 = vsel %vm51, %v13, 0
  %v62 = vsel %vm51, %v14, 0
  %v65 = vsel %vm51, %v15, 0
  %v68 = vsel %vm51, %v16, 0
  %v71 = vsel %vm51, %v17, 0
  %v74 = vsel %vm51, %v18, 0
  %v77 = vsel %vm51, %v19, 0
  %v80 = vsel %vm51, %v20, 0
  %v83 = vsel %vm51, %v21, 0
  %v86 = vsel %vm51, %v22, 0
  %v89 = vsel %vm51, %v23, 0
  %v92 = vsel %vm51, %v24, 0
  %v95 = vsel %vm51, %v25, 0
  %v98 = vsel %vm51, %v26, 0
  %v101 = vsel %vm51, %v27, 0
  %v104 = vsel %vm51, %v28, 0
  %v107 = vsel %vm51, %v29, 0
  %v110 = vsel %vm51, %v30, 0
  %v113 = vsel %vm51, %v31, 0
  %v116 = vsel %vm51, %v32, 0
  %v119 = vsel %vm51, %v33, 0
  %v122 = vsel %vm51, %v34, 0
  %v125 = vsel %vm51, %v35, 0
  %v128 = vsel %vm51, %v36, 0
  %v131 = vsel %vm51, %v37, 0
  %v134 = vsel %vm51, %v38, 0
  %v137 = vsel %vm51, %v39, 0
  %v140 = vsel %vm51, %v40, 0
  %v143 = vsel %vm51, %v41, 0
  %v146 = vsel %vm51, %v42, 0
  %v149 = vsel %vm51, %v43, 0
  %v152 = vsel %vm51, %v44, 0
  %v155 = vsel %vm51, %v45, 0
  %v158 = vsel %vm51, %v46, 0
  %v161 = vsel %vm51, %v47, 0
  %v164 = vsel %vm51, %v48, 0
  %v167 = vsel %vm51, %v49, 0
  %v170 = vsel %vm51, %v50, 0
  %172 = vmatpush.xpose.msra.mxu0 %v146
  %173 = vmatpush.xpose.msra.mxu0 %v143
  %174 = vmatpush.xpose.msra.mxu0 %v140
  %175 = vmatpush.xpose.msra.mxu0 %v137
  %176 = vmatpush.xpose.msra.mxu0 %v134
  %177 = vmatpush.xpose.msra.mxu0 %v131
  %178 = vmatpush.xpose.msra.mxu0 %v128
  %179 = vmatpush.xpose.msra.mxu0 %v125
  %180 = vmatpush.xpose.msra.mxu0 %v122
  %181 = vmatpush.xpose.msra.mxu0 %v119
  %182 = vmatpush.xpose.msra.mxu0 %v116
  %183 = vmatpush.xpose.msra.mxu0 %v113
  %184 = vmatpush.xpose.msra.mxu0 %v110
  %185 = vmatpush.xpose.msra.mxu0 %v107
  %186 = vmatpush.xpose.msra.mxu0 %v104
  %187 = vmatpush.xpose.msra.mxu0 %v101
  %188 = vmatmul.f32.gmra.mxu0 %v53
  %v189 = vpop.f32.mrf.mxu0
  %v190 = vadd.f32 0.0, %v189
  %191 = vmatmul.f32.gmra.mxu0 %v56
  %v192 = vpop.f32.mrf.mxu0
  %v193 = vadd.f32 0.0, %v192
  %194 = vmatmul.f32.gmra.mxu0 %v59
  %v195 = vpop.f32.mrf.mxu0
  %v196 = vadd.f32 0.0, %v195
  %197 = vmatmul.f32.gmra.mxu0 %v62
  %v198 = vpop.f32.mrf.mxu0
  %v199 = vadd.f32 0.0, %v198
  %200 = vmatmul.f32.gmra.mxu0 %v65
  %v201 = vpop.f32.mrf.mxu0
  %v202 = vadd.f32 0.0, %v201
  %203 = vmatmul.f32.gmra.mxu0 %v68
  %v204 = vpop.f32.mrf.mxu0
  %v205 = vadd.f32 0.0, %v204
  %206 = vmatmul.f32.gmra.mxu0 %v71
  %v207 = vpop.f32.mrf.mxu0
  %v208 = vadd.f32 0.0, %v207
  %209 = vmatmul.f32.gmra.mxu0 %v74
  %v210 = vpop.f32.mrf.mxu0
  %v211 = vadd.f32 0.0, %v210
  %212 = vmatmul.f32.gmra.mxu0 %v77
  %v213 = vpop.f32.mrf.mxu0
  %v214 = vadd.f32 0.0, %v213
  %215 = vmatmul.f32.gmra.mxu0 %v80
  %v216 = vpop.f32.mrf.mxu0
  %v217 = vadd.f32 0.0, %v216
  %218 = vmatmul.f32.gmra.mxu0 %v83
  %v219 = vpop.f32.mrf.mxu0
  %v220 = vadd.f32 0.0, %v219
  %221 = vmatmul.f32.gmra.mxu0 %v86
  %v222 = vpop.f32.mrf.mxu0
  %v223 = vadd.f32 0.0, %v222
  %224 = vmatmul.f32.gmra.mxu0 %v89
  %v225 = vpop.f32.mrf.mxu0
  %v226 = vadd.f32 0.0, %v225
  %227 = vmatmul.f32.gmra.mxu0 %v92
  %v228 = vpop.f32.mrf.mxu0
  %v229 = vadd.f32 0.0, %v228
  %230 = vmatmul.f32.gmra.mxu0 %v95
  %v231 = vpop.f32.mrf.mxu0
  %v232 = vadd.f32 0.0, %v231
  %233 = vmatmul.f32.gmra.mxu0 %v98
  %v234 = vpop.f32.mrf.mxu0
  %v235 = vadd.f32 0.0, %v234
  %236 = vdwg.mxu0
  %237 = vmatpush.xpose.msra.mxu0 0.0
  %238 = vmatpush.xpose.msra.mxu0 0.0
  %239 = vmatpush.xpose.msra.mxu0 0.0
  %240 = vmatpush.xpose.msra.mxu0 0.0
  %241 = vmatpush.xpose.msra.mxu0 0.0
  %242 = vmatpush.xpose.msra.mxu0 0.0
  %243 = vmatpush.xpose.msra.mxu0 0.0
  %244 = vmatpush.xpose.msra.mxu0 0.0
  %245 = vmatpush.xpose.msra.mxu0 %v170
  %246 = vmatpush.xpose.msra.mxu0 %v167
  %247 = vmatpush.xpose.msra.mxu0 %v164
  %248 = vmatpush.xpose.msra.mxu0 %v161
  %249 = vmatpush.xpose.msra.mxu0 %v158
  %250 = vmatpush.xpose.msra.mxu0 %v155
  %251 = vmatpush.xpose.msra.mxu0 %v152
  %252 = vmatpush.xpose.msra.mxu0 %v149
  %253 = vmatmul.f32.gmra.mxu0 %v53
  %v254 = vpop.f32.mrf.mxu0
  %v255 = vadd.f32 0.0, %v254
  %256 = vmatmul.f32.gmra.mxu0 %v56
  %v257 = vpop.f32.mrf.mxu0
  %v258 = vadd.f32 0.0, %v257
  %259 = vmatmul.f32.gmra.mxu0 %v59
  %v260 = vpop.f32.mrf.mxu0
  %v261 = vadd.f32 0.0, %v260
  %262 = vmatmul.f32.gmra.mxu0 %v62
  %v263 = vpop.f32.mrf.mxu0
  %v264 = vadd.f32 0.0, %v263
  %265 = vmatmul.f32.gmra.mxu0 %v65
  %v266 = vpop.f32.mrf.mxu0
  %v267 = vadd.f32 0.0, %v266
  %268 = vmatmul.f32.gmra.mxu0 %v68
  %v269 = vpop.f32.mrf.mxu0
  %v270 = vadd.f32 0.0, %v269
  %271 = vmatmul.f32.gmra.mxu0 %v71
  %v272 = vpop.f32.mrf.mxu0
  %v273 = vadd.f32 0.0, %v272
  %274 = vmatmul.f32.gmra.mxu0 %v74
  %v275 = vpop.f32.mrf.mxu0
  %v276 = vadd.f32 0.0, %v275
  %277 = vmatmul.f32.gmra.mxu0 %v77
  %v278 = vpop.f32.mrf.mxu0
  %v279 = vadd.f32 0.0, %v278
  %280 = vmatmul.f32.gmra.mxu0 %v80
  %v281 = vpop.f32.mrf.mxu0
  %v282 = vadd.f32 0.0, %v281
  %283 = vmatmul.f32.gmra.mxu0 %v83
  %v284 = vpop.f32.mrf.mxu0
  %v285 = vadd.f32 0.0, %v284
  %286 = vmatmul.f32.gmra.mxu0 %v86
  %v287 = vpop.f32.mrf.mxu0
  %v288 = vadd.f32 0.0, %v287
  %289 = vmatmul.f32.gmra.mxu0 %v89
  %v290 = vpop.f32.mrf.mxu0
  %v291 = vadd.f32 0.0, %v290
  %292 = vmatmul.f32.gmra.mxu0 %v92
  %v293 = vpop.f32.mrf.mxu0
  %v294 = vadd.f32 0.0, %v293
  %295 = vmatmul.f32.gmra.mxu0 %v95
  %v296 = vpop.f32.mrf.mxu0
  %v297 = vadd.f32 0.0, %v296
  %298 = vmatmul.f32.gmra.mxu0 %v98
  %v299 = vpop.f32.mrf.mxu0
  %v300 = vadd.f32 0.0, %v299
  %301 = vdwg.mxu0
  %302 = vst [vmem:[%s2] sm:$0xff] %v190
  %vm303 = vcmask 523264
  %304 = vst.msk [vmem:[%s2 + $0x8] sm:$0xff] %vm303, %v255
  %305 = vst [vmem:[%s2 + $0x10] sm:$0xff] %v193
  %306 = vst.msk [vmem:[%s2 + $0x18] sm:$0xff] %vm303, %v258
  %307 = vst [vmem:[%s2 + $0x20] sm:$0xff] %v196
  %308 = vst.msk [vmem:[%s2 + $0x28] sm:$0xff] %vm303, %v261
  %309 = vst [vmem:[%s2 + $0x30] sm:$0xff] %v199
  %310 = vst.msk [vmem:[%s2 + $0x38] sm:$0xff] %vm303, %v264
  %311 = vst [vmem:[%s2 + $0x40] sm:$0xff] %v202
  %312 = vst.msk [vmem:[%s2 + $0x48] sm:$0xff] %vm303, %v267
  %313 = vst [vmem:[%s2 + $0x50] sm:$0xff] %v205
  %314 = vst.msk [vmem:[%s2 + $0x58] sm:$0xff] %vm303, %v270
  %315 = vst [vmem:[%s2 + $0x60] sm:$0xff] %v208
  %316 = vst.msk [vmem:[%s2 + $0x68] sm:$0xff] %vm303, %v273
  %317 = vst [vmem:[%s2 + $0x70] sm:$0xff] %v211
  %318 = vst.msk [vmem:[%s2 + $0x78] sm:$0xff] %vm303, %v276
  %319 = vst [vmem:[%s2 + $0x80] sm:$0xff] %v214
  %320 = vst.msk [vmem:[%s2 + $0x88] sm:$0xff] %vm303, %v279
  %321 = vst [vmem:[%s2 + $0x90] sm:$0xff] %v217
  %322 = vst.msk [vmem:[%s2 + $0x98] sm:$0xff] %vm303, %v282
  %323 = vst [vmem:[%s2 + $0xa0] sm:$0xff] %v220
  %324 = vst.msk [vmem:[%s2 + $0xa8] sm:$0xff] %vm303, %v285
  %325 = vst [vmem:[%s2 + $0xb0] sm:$0xff] %v223
  %326 = vst.msk [vmem:[%s2 + $0xb8] sm:$0xff] %vm303, %v288
  %327 = vst [vmem:[%s2 + $0xc0] sm:$0xff] %v226
  %328 = vst.msk [vmem:[%s2 + $0xc8] sm:$0xff] %vm303, %v291
  %329 = vst [vmem:[%s2 + $0xd0] sm:$0xff] %v229
  %330 = vst.msk [vmem:[%s2 + $0xd8] sm:$0xff] %vm303, %v294
  %331 = vst [vmem:[%s2 + $0xe0] sm:$0xff] %v232
  %332 = vst.msk [vmem:[%s2 + $0xe8] sm:$0xff] %vm303, %v297
  %333 = vst [vmem:[%s2 + $0xf0] sm:$0xff] %v235
  %334 = vst.msk [vmem:[%s2 + $0xf8] sm:$0xff] %vm303, %v300
  // Predicated region
  $region10: #{_lambda_.6} parent=0 // pred_check
    _
  $region11: #{_lambda_.6} parent=0 // pred_check_branch
    %336 = sbr.rel (0) target = $region13
  $region12: #{_lambda_.6} parent=0 // pred_region
    _
  $region13: #{_lambda_.6} parent=0 // pred_fallthru
    _
  // Predicated region
  $region14: #{_lambda_.6} parent=0 // pred_check
    _
  $region15: #{_lambda_.6} parent=0 // pred_check_branch
    %338 = sbr.rel (0) target = $region17
  $region16: #{_lambda_.6} parent=0 // pred_region
    _
  $region17: #{_lambda_.6} parent=0 // pred_fallthru
    _

// kernel: _lambda_.7
$region0: #{_lambda_.7}
  #allocation0 [shape = 'u32[]', space=smem, size = 0x4, offset = 0x4, fixed_abs, tag = 'smem constant byte address 0x4 - core index']
  #allocation1 [shape = 'u32[72,128]{1,0:T(1,128)}', space=vmem, size = 0x9000, scoped, tag = 'internal scratch']
  %s0 = inlined_call_operand.vmem [shape: f32[32,32], index: 0, kind: input, shape index: {}]
  %s1 = inlined_call_operand.vmem [shape: f32[192,32], index: 1, kind: input, shape index: {}]
  %s2 = inlined_call_operand.vmem [shape: f32[32,192], index: 2, kind: output, shape index: {}]
  %s3 = sld [smem:[#allocation0]]
  $region18: #{_lambda_.7} parent=0
    _
  %s5 = ssub.s32 1, %s3
  %s6 = scalar_select 0, %s5, %s3
  // Predicated region
  $region2: #{_lambda_.7} parent=0 // pred_check
    _
  $region3: #{_lambda_.7} parent=0 // pred_check_branch
    %8 = sbr.rel (0) target = $region5
  $region4: #{_lambda_.7} parent=0 // pred_region
    _
  $region5: #{_lambda_.7} parent=0 // pred_fallthru
    _
  // Predicated region
  $region6: #{_lambda_.7} parent=0 // pred_check
    _
  $region7: #{_lambda_.7} parent=0 // pred_check_branch
    %10 = sbr.rel (0) target = $region9
  $region8: #{_lambda_.7} parent=0 // pred_region
    _
  $region9: #{_lambda_.7} parent=0 // pred_fallthru
    _
  %v11 = vld [vmem:[%s0] sm:$0xff]
  %v12 = vld [vmem:[%s0 + $0x8] sm:$0xff]
  %v13 = vld [vmem:[%s0 + $0x10] sm:$0xff]
  %v14 = vld [vmem:[%s0 + $0x18] sm:$0xff]
  %v15 = vld [vmem:[%s1] sm:$0xff]
  %v16 = vld [vmem:[%s1 + $0x8] sm:$0xff]
  %v17 = vld [vmem:[%s1 + $0x10] sm:$0xff]
  %v18 = vld [vmem:[%s1 + $0x18] sm:$0xff]
  %v19 = vld [vmem:[%s1 + $0x20] sm:$0xff]
  %v20 = vld [vmem:[%s1 + $0x28] sm:$0xff]
  %v21 = vld [vmem:[%s1 + $0x30] sm:$0xff]
  %v22 = vld [vmem:[%s1 + $0x38] sm:$0xff]
  %v23 = vld [vmem:[%s1 + $0x40] sm:$0xff]
  %v24 = vld [vmem:[%s1 + $0x48] sm:$0xff]
  %v25 = vld [vmem:[%s1 + $0x50] sm:$0xff]
  %v26 = vld [vmem:[%s1 + $0x58] sm:$0xff]
  %v27 = vld [vmem:[%s1 + $0x60] sm:$0xff]
  %v28 = vld [vmem:[%s1 + $0x68] sm:$0xff]
  %v29 = vld [vmem:[%s1 + $0x70] sm:$0xff]
  %v30 = vld [vmem:[%s1 + $0x78] sm:$0xff]
  %v31 = vld [vmem:[%s1 + $0x80] sm:$0xff]
  %v32 = vld [vmem:[%s1 + $0x88] sm:$0xff]
  %v33 = vld [vmem:[%s1 + $0x90] sm:$0xff]
  %v34 = vld [vmem:[%s1 + $0x98] sm:$0xff]
  %v35 = vld [vmem:[%s1 + $0xa0] sm:$0xff]
  %v36 = vld [vmem:[%s1 + $0xa8] sm:$0xff]
  %v37 = vld [vmem:[%s1 + $0xb0] sm:$0xff]
  %v38 = vld [vmem:[%s1 + $0xb8] sm:$0xff]
  %vm39 = vcmask 261120
  %v41 = vsel %vm39, %v11, 0
  %v44 = vsel %vm39, %v12, 0
  %v47 = vsel %vm39, %v13, 0
  %v50 = vsel %vm39, %v14, 0
  %v53 = vsel %vm39, %v15, 0
  %v56 = vsel %vm39, %v16, 0
  %v59 = vsel %vm39, %v17, 0
  %v62 = vsel %vm39, %v18, 0
  %v65 = vsel %vm39, %v19, 0
  %v68 = vsel %vm39, %v20, 0
  %v71 = vsel %vm39, %v21, 0
  %v74 = vsel %vm39, %v22, 0
  %v77 = vsel %vm39, %v23, 0
  %v80 = vsel %vm39, %v24, 0
  %v83 = vsel %vm39, %v25, 0
  %v86 = vsel %vm39, %v26, 0
  %v89 = vsel %vm39, %v27, 0
  %v92 = vsel %vm39, %v28, 0
  %v95 = vsel %vm39, %v29, 0
  %v98 = vsel %vm39, %v30, 0
  %v101 = vsel %vm39, %v31, 0
  %v104 = vsel %vm39, %v32, 0
  %v107 = vsel %vm39, %v33, 0
  %v110 = vsel %vm39, %v34, 0
  %v113 = vsel %vm39, %v35, 0
  %v116 = vsel %vm39, %v36, 0
  %v119 = vsel %vm39, %v37, 0
  %v122 = vsel %vm39, %v38, 0
  %124 = vmatpush.xpose.msra.mxu0 %v98
  %125 = vmatpush.xpose.msra.mxu0 %v95
  %126 = vmatpush.xpose.msra.mxu0 %v92
  %127 = vmatpush.xpose.msra.mxu0 %v89
  %128 = vmatpush.xpose.msra.mxu0 %v86
  %129 = vmatpush.xpose.msra.mxu0 %v83
  %130 = vmatpush.xpose.msra.mxu0 %v80
  %131 = vmatpush.xpose.msra.mxu0 %v77
  %132 = vmatpush.xpose.msra.mxu0 %v74
  %133 = vmatpush.xpose.msra.mxu0 %v71
  %134 = vmatpush.xpose.msra.mxu0 %v68
  %135 = vmatpush.xpose.msra.mxu0 %v65
  %136 = vmatpush.xpose.msra.mxu0 %v62
  %137 = vmatpush.xpose.msra.mxu0 %v59
  %138 = vmatpush.xpose.msra.mxu0 %v56
  %139 = vmatpush.xpose.msra.mxu0 %v53
  %140 = vmatmul.f32.gmra.mxu0 %v41
  %v141 = vpop.f32.mrf.mxu0
  %v142 = vadd.f32 0.0, %v141
  %143 = vmatmul.f32.gmra.mxu0 %v44
  %v144 = vpop.f32.mrf.mxu0
  %v145 = vadd.f32 0.0, %v144
  %146 = vmatmul.f32.gmra.mxu0 %v47
  %v147 = vpop.f32.mrf.mxu0
  %v148 = vadd.f32 0.0, %v147
  %149 = vmatmul.f32.gmra.mxu0 %v50
  %v150 = vpop.f32.mrf.mxu0
  %v151 = vadd.f32 0.0, %v150
  %152 = vdwg.mxu0
  %153 = vmatpush.xpose.msra.mxu0 0.0
  %154 = vmatpush.xpose.msra.mxu0 0.0
  %155 = vmatpush.xpose.msra.mxu0 0.0
  %156 = vmatpush.xpose.msra.mxu0 0.0
  %157 = vmatpush.xpose.msra.mxu0 0.0
  %158 = vmatpush.xpose.msra.mxu0 0.0
  %159 = vmatpush.xpose.msra.mxu0 0.0
  %160 = vmatpush.xpose.msra.mxu0 0.0
  %161 = vmatpush.xpose.msra.mxu0 %v122
  %162 = vmatpush.xpose.msra.mxu0 %v119
  %163 = vmatpush.xpose.msra.mxu0 %v116
  %164 = vmatpush.xpose.msra.mxu0 %v113
  %165 = vmatpush.xpose.msra.mxu0 %v110
  %166 = vmatpush.xpose.msra.mxu0 %v107
  %167 = vmatpush.xpose.msra.mxu0 %v104
  %168 = vmatpush.xpose.msra.mxu0 %v101
  %169 = vmatmul.f32.gmra.mxu0 %v41
  %v170 = vpop.f32.mrf.mxu0
  %v171 = vadd.f32 0.0, %v170
  %172 = vmatmul.f32.gmra.mxu0 %v44
  %v173 = vpop.f32.mrf.mxu0
  %v174 = vadd.f32 0.0, %v173
  %175 = vmatmul.f32.gmra.mxu0 %v47
  %v176 = vpop.f32.mrf.mxu0
  %v177 = vadd.f32 0.0, %v176
  %178 = vmatmul.f32.gmra.mxu0 %v50
  %v179 = vpop.f32.mrf.mxu0
  %v180 = vadd.f32 0.0, %v179
  %181 = vdwg.mxu0
  %182 = vst [vmem:[%s2] sm:$0xff] %v142
  %vm183 = vcmask 523264
  %184 = vst.msk [vmem:[%s2 + $0x8] sm:$0xff] %vm183, %v171
  %185 = vst [vmem:[%s2 + $0x10] sm:$0xff] %v145
  %186 = vst.msk [vmem:[%s2 + $0x18] sm:$0xff] %vm183, %v174
  %187 = vst [vmem:[%s2 + $0x20] sm:$0xff] %v148
  %188 = vst.msk [vmem:[%s2 + $0x28] sm:$0xff] %vm183, %v177
  %189 = vst [vmem:[%s2 + $0x30] sm:$0xff] %v151
  %190 = vst.msk [vmem:[%s2 + $0x38] sm:$0xff] %vm183, %v180
  // Predicated region
  $region10: #{_lambda_.7} parent=0 // pred_check
    _
  $region11: #{_lambda_.7} parent=0 // pred_check_branch
    %192 = sbr.rel (0) target = $region13
  $region12: #{_lambda_.7} parent=0 // pred_region
    _
  $region13: #{_lambda_.7} parent=0 // pred_fallthru
    _
  // Predicated region
  $region14: #{_lambda_.7} parent=0 // pred_check
    _
  $region15: #{_lambda_.7} parent=0 // pred_check_branch
    %194 = sbr.rel (0) target = $region17
  $region16: #{_lambda_.7} parent=0 // pred_region
    _
  $region17: #{_lambda_.7} parent=0 // pred_fallthru
    _

// kernel: _lambda_.8
$region0: #{_lambda_.8}
  #allocation0 [shape = 'u32[]', space=smem, size = 0x4, offset = 0x4, fixed_abs, tag = 'smem constant byte address 0x4 - core index']
  #allocation1 [shape = 'u32[72,128]{1,0:T(1,128)}', space=vmem, size = 0x9000, scoped, tag = 'internal scratch']
  %s0 = inlined_call_operand.vmem [shape: f32[64,8,8], index: 0, kind: input, shape index: {}]
  %s1 = inlined_call_operand.vmem [shape: f32[64,8,8], index: 1, kind: input, shape index: {}]
  %s2 = inlined_call_operand.vmem [shape: f32[64,8,8], index: 2, kind: input, shape index: {}]
  %s3 = inlined_call_operand.vmem [shape: f32[64,8,8], index: 3, kind: output, shape index: {}]
  %s4 = sld [smem:[#allocation0]]
  $region22: #{_lambda_.8} parent=0
    _
  %s6 = ssub.s32 1, %s4
  %s7 = scalar_select 0, %s6, %s4
  // Predicated region
  $region2: #{_lambda_.8} parent=0 // pred_check
    _
  $region3: #{_lambda_.8} parent=0 // pred_check_branch
    %9 = sbr.rel (0) target = $region5
  $region4: #{_lambda_.8} parent=0 // pred_region
    _
  $region5: #{_lambda_.8} parent=0 // pred_fallthru
    _
  // Predicated region
  $region6: #{_lambda_.8} parent=0 // pred_check
    _
  $region7: #{_lambda_.8} parent=0 // pred_check_branch
    %11 = sbr.rel (0) target = $region9
  $region8: #{_lambda_.8} parent=0 // pred_region
    _
  $region9: #{_lambda_.8} parent=0 // pred_fallthru
    _
  // Predicated region
  $region10: #{_lambda_.8} parent=0 // pred_check
    _
  $region11: #{_lambda_.8} parent=0 // pred_check_branch
    %13 = sbr.rel (0) target = $region13
  $region12: #{_lambda_.8} parent=0 // pred_region
    _
  $region13: #{_lambda_.8} parent=0 // pred_fallthru
    _
  %v14 = vld [vmem:[%s0] sm:$0xff]
  %v15 = vld [vmem:[%s0 + $0x8] sm:$0xff]
  %v16 = vld [vmem:[%s0 + $0x10] sm:$0xff]
  %v17 = vld [vmem:[%s0 + $0x18] sm:$0xff]
  %v18 = vld [vmem:[%s0 + $0x20] sm:$0xff]
  %v19 = vld [vmem:[%s0 + $0x28] sm:$0xff]
  %v20 = vld [vmem:[%s0 + $0x30] sm:$0xff]
  %v21 = vld [vmem:[%s0 + $0x38] sm:$0xff]
  %v22 = vld [vmem:[%s0 + $0x40] sm:$0xff]
  %v23 = vld [vmem:[%s0 + $0x48] sm:$0xff]
  %v24 = vld [vmem:[%s0 + $0x50] sm:$0xff]
  %v25 = vld [vmem:[%s0 + $0x58] sm:$0xff]
  %v26 = vld [vmem:[%s0 + $0x60] sm:$0xff]
  %v27 = vld [vmem:[%s0 + $0x68] sm:$0xff]
  %v28 = vld [vmem:[%s0 + $0x70] sm:$0xff]
  %v29 = vld [vmem:[%s0 + $0x78] sm:$0xff]
  %v30 = vld [vmem:[%s0 + $0x80] sm:$0xff]
  %v31 = vld [vmem:[%s0 + $0x88] sm:$0xff]
  %v32 = vld [vmem:[%s0 + $0x90] sm:$0xff]
  %v33 = vld [vmem:[%s0 + $0x98] sm:$0xff]
  %v34 = vld [vmem:[%s0 + $0xa0] sm:$0xff]
  %v35 = vld [vmem:[%s0 + $0xa8] sm:$0xff]
  %v36 = vld [vmem:[%s0 + $0xb0] sm:$0xff]
  %v37 = vld [vmem:[%s0 + $0xb8] sm:$0xff]
  %v38 = vld [vmem:[%s0 + $0xc0] sm:$0xff]
  %v39 = vld [vmem:[%s0 + $0xc8] sm:$0xff]
  %v40 = vld [vmem:[%s0 + $0xd0] sm:$0xff]
  %v41 = vld [vmem:[%s0 + $0xd8] sm:$0xff]
  %v42 = vld [vmem:[%s0 + $0xe0] sm:$0xff]
  %v43 = vld [vmem:[%s0 + $0xe8] sm:$0xff]
  %v44 = vld [vmem:[%s0 + $0xf0] sm:$0xff]
  %v45 = vld [vmem:[%s0 + $0xf8] sm:$0xff]
  %v46 = vld [vmem:[%s0 + $0x100] sm:$0xff]
  %v47 = vld [vmem:[%s0 + $0x108] sm:$0xff]
  %v48 = vld [vmem:[%s0 + $0x110] sm:$0xff]
  %v49 = vld [vmem:[%s0 + $0x118] sm:$0xff]
  %v50 = vld [vmem:[%s0 + $0x120] sm:$0xff]
  %v51 = vld [vmem:[%s0 + $0x128] sm:$0xff]
  %v52 = vld [vmem:[%s0 + $0x130] sm:$0xff]
  %v53 = vld [vmem:[%s0 + $0x138] sm:$0xff]
  %v54 = vld [vmem:[%s0 + $0x140] sm:$0xff]
  %v55 = vld [vmem:[%s0 + $0x148] sm:$0xff]
  %v56 = vld [vmem:[%s0 + $0x150] sm:$0xff]
  %v57 = vld [vmem:[%s0 + $0x158] sm:$0xff]
  %v58 = vld [vmem:[%s0 + $0x160] sm:$0xff]
  %v59 = vld [vmem:[%s0 + $0x168] sm:$0xff]
  %v60 = vld [vmem:[%s0 + $0x170] sm:$0xff]
  %v61 = vld [vmem:[%s0 + $0x178] sm:$0xff]
  %v62 = vld [vmem:[%s0 + $0x180] sm:$0xff]
  %v63 = vld [vmem:[%s0 + $0x188] sm:$0xff]
  %v64 = vld [vmem:[%s0 + $0x190] sm:$0xff]
  %v65 = vld [vmem:[%s0 + $0x198] sm:$0xff]
  %v66 = vld [vmem:[%s0 + $0x1a0] sm:$0xff]
  %v67 = vld [vmem:[%s0 + $0x1a8] sm:$0xff]
  %v68 = vld [vmem:[%s0 + $0x1b0] sm:$0xff]
  %v69 = vld [vmem:[%s0 + $0x1b8] sm:$0xff]
  %v70 = vld [vmem:[%s0 + $0x1c0] sm:$0xff]
  %v71 = vld [vmem:[%s0 + $0x1c8] sm:$0xff]
  %v72 = vld [vmem:[%s0 + $0x1d0] sm:$0xff]
  %v73 = vld [vmem:[%s0 + $0x1d8] sm:$0xff]
  %v74 = vld [vmem:[%s0 + $0x1e0] sm:$0xff]
  %v75 = vld [vmem:[%s0 + $0x1e8] sm:$0xff]
  %v76 = vld [vmem:[%s0 + $0x1f0] sm:$0xff]
  %v77 = vld [vmem:[%s0 + $0x1f8] sm:$0xff]
  %v78 = vld [vmem:[%s1] sm:$0xff]
  %v79 = vld [vmem:[%s1 + $0x8] sm:$0xff]
  %v80 = vld [vmem:[%s1 + $0x10] sm:$0xff]
  %v81 = vld [vmem:[%s1 + $0x18] sm:$0xff]
  %v82 = vld [vmem:[%s1 + $0x20] sm:$0xff]
  %v83 = vld [vmem:[%s1 + $0x28] sm:$0xff]
  %v84 = vld [vmem:[%s1 + $0x30] sm:$0xff]
  %v85 = vld [vmem:[%s1 + $0x38] sm:$0xff]
  %v86 = vld [vmem:[%s1 + $0x40] sm:$0xff]
  %v87 = vld [vmem:[%s1 + $0x48] sm:$0xff]
  %v88 = vld [vmem:[%s1 + $0x50] sm:$0xff]
  %v89 = vld [vmem:[%s1 + $0x58] sm:$0xff]
  %v90 = vld [vmem:[%s1 + $0x60] sm:$0xff]
  %v91 = vld [vmem:[%s1 + $0x68] sm:$0xff]
  %v92 = vld [vmem:[%s1 + $0x70] sm:$0xff]
  %v93 = vld [vmem:[%s1 + $0x78] sm:$0xff]
  %v94 = vld [vmem:[%s1 + $0x80] sm:$0xff]
  %v95 = vld [vmem:[%s1 + $0x88] sm:$0xff]
  %v96 = vld [vmem:[%s1 + $0x90] sm:$0xff]
  %v97 = vld [vmem:[%s1 + $0x98] sm:$0xff]
  %v98 = vld [vmem:[%s1 + $0xa0] sm:$0xff]
  %v99 = vld [vmem:[%s1 + $0xa8] sm:$0xff]
  %v100 = vld [vmem:[%s1 + $0xb0] sm:$0xff]
  %v101 = vld [vmem:[%s1 + $0xb8] sm:$0xff]
  %v102 = vld [vmem:[%s1 + $0xc0] sm:$0xff]
  %v103 = vld [vmem:[%s1 + $0xc8] sm:$0xff]
  %v104 = vld [vmem:[%s1 + $0xd0] sm:$0xff]
  %v105 = vld [vmem:[%s1 + $0xd8] sm:$0xff]
  %v106 = vld [vmem:[%s1 + $0xe0] sm:$0xff]
  %v107 = vld [vmem:[%s1 + $0xe8] sm:$0xff]
  %v108 = vld [vmem:[%s1 + $0xf0] sm:$0xff]
  %v109 = vld [vmem:[%s1 + $0xf8] sm:$0xff]
  %v110 = vld [vmem:[%s1 + $0x100] sm:$0xff]
  %v111 = vld [vmem:[%s1 + $0x108] sm:$0xff]
  %v112 = vld [vmem:[%s1 + $0x110] sm:$0xff]
  %v113 = vld [vmem:[%s1 + $0x118] sm:$0xff]
  %v114 = vld [vmem:[%s1 + $0x120] sm:$0xff]
  %v115 = vld [vmem:[%s1 + $0x128] sm:$0xff]
  %v116 = vld [vmem:[%s1 + $0x130] sm:$0xff]
  %v117 = vld [vmem:[%s1 + $0x138] sm:$0xff]
  %v118 = vld [vmem:[%s1 + $0x140] sm:$0xff]
  %v119 = vld [vmem:[%s1 + $0x148] sm:$0xff]
  %v120 = vld [vmem:[%s1 + $0x150] sm:$0xff]
  %v121 = vld [vmem:[%s1 + $0x158] sm:$0xff]
  %v122 = vld [vmem:[%s1 + $0x160] sm:$0xff]
  %v123 = vld [vmem:[%s1 + $0x168] sm:$0xff]
  %v124 = vld [vmem:[%s1 + $0x170] sm:$0xff]
  %v125 = vld [vmem:[%s1 + $0x178] sm:$0xff]
  %v126 = vld [vmem:[%s1 + $0x180] sm:$0xff]
  %v127 = vld [vmem:[%s1 + $0x188] sm:$0xff]
  %v128 = vld [vmem:[%s1 + $0x190] sm:$0xff]
  %v129 = vld [vmem:[%s1 + $0x198] sm:$0xff]
  %v130 = vld [vmem:[%s1 + $0x1a0] sm:$0xff]
  %v131 = vld [vmem:[%s1 + $0x1a8] sm:$0xff]
  %v132 = vld [vmem:[%s1 + $0x1b0] sm:$0xff]
  %v133 = vld [vmem:[%s1 + $0x1b8] sm:$0xff]
  %v134 = vld [vmem:[%s1 + $0x1c0] sm:$0xff]
  %v135 = vld [vmem:[%s1 + $0x1c8] sm:$0xff]
  %v136 = vld [vmem:[%s1 + $0x1d0] sm:$0xff]
  %v137 = vld [vmem:[%s1 + $0x1d8] sm:$0xff]
  %v138 = vld [vmem:[%s1 + $0x1e0] sm:$0xff]
  %v139 = vld [vmem:[%s1 + $0x1e8] sm:$0xff]
  %v140 = vld [vmem:[%s1 + $0x1f0] sm:$0xff]
  %v141 = vld [vmem:[%s1 + $0x1f8] sm:$0xff]
  %v142 = vld [vmem:[%s2] sm:$0xff]
  %v143 = vld [vmem:[%s2 + $0x8] sm:$0xff]
  %v144 = vld [vmem:[%s2 + $0x10] sm:$0xff]
  %v145 = vld [vmem:[%s2 + $0x18] sm:$0xff]
  %v146 = vld [vmem:[%s2 + $0x20] sm:$0xff]
  %v147 = vld [vmem:[%s2 + $0x28] sm:$0xff]
  %v148 = vld [vmem:[%s2 + $0x30] sm:$0xff]
  %v149 = vld [vmem:[%s2 + $0x38] sm:$0xff]
  %v150 = vld [vmem:[%s2 + $0x40] sm:$0xff]
  %v151 = vld [vmem:[%s2 + $0x48] sm:$0xff]
  %v152 = vld [vmem:[%s2 + $0x50] sm:$0xff]
  %v153 = vld [vmem:[%s2 + $0x58] sm:$0xff]
  %v154 = vld [vmem:[%s2 + $0x60] sm:$0xff]
  %v155 = vld [vmem:[%s2 + $0x68] sm:$0xff]
  %v156 = vld [vmem:[%s2 + $0x70] sm:$0xff]
  %v157 = vld [vmem:[%s2 + $0x78] sm:$0xff]
  %v158 = vld [vmem:[%s2 + $0x80] sm:$0xff]
  %v159 = vld [vmem:[%s2 + $0x88] sm:$0xff]
  %v160 = vld [vmem:[%s2 + $0x90] sm:$0xff]
  %v161 = vld [vmem:[%s2 + $0x98] sm:$0xff]
  %v162 = vld [vmem:[%s2 + $0xa0] sm:$0xff]
  %v163 = vld [vmem:[%s2 + $0xa8] sm:$0xff]
  %v164 = vld [vmem:[%s2 + $0xb0] sm:$0xff]
  %v165 = vld [vmem:[%s2 + $0xb8] sm:$0xff]
  %v166 = vld [vmem:[%s2 + $0xc0] sm:$0xff]
  %v167 = vld [vmem:[%s2 + $0xc8] sm:$0xff]
  %v168 = vld [vmem:[%s2 + $0xd0] sm:$0xff]
  %v169 = vld [vmem:[%s2 + $0xd8] sm:$0xff]
  %v170 = vld [vmem:[%s2 + $0xe0] sm:$0xff]
  %v171 = vld [vmem:[%s2 + $0xe8] sm:$0xff]
  %v172 = vld [vmem:[%s2 + $0xf0] sm:$0xff]
  %v173 = vld [vmem:[%s2 + $0xf8] sm:$0xff]
  %v174 = vld [vmem:[%s2 + $0x100] sm:$0xff]
  %v175 = vld [vmem:[%s2 + $0x108] sm:$0xff]
  %v176 = vld [vmem:[%s2 + $0x110] sm:$0xff]
  %v177 = vld [vmem:[%s2 + $0x118] sm:$0xff]
  %v178 = vld [vmem:[%s2 + $0x120] sm:$0xff]
  %v179 = vld [vmem:[%s2 + $0x128] sm:$0xff]
  %v180 = vld [vmem:[%s2 + $0x130] sm:$0xff]
  %v181 = vld [vmem:[%s2 + $0x138] sm:$0xff]
  %v182 = vld [vmem:[%s2 + $0x140] sm:$0xff]
  %v183 = vld [vmem:[%s2 + $0x148] sm:$0xff]
  %v184 = vld [vmem:[%s2 + $0x150] sm:$0xff]
  %v185 = vld [vmem:[%s2 + $0x158] sm:$0xff]
  %v186 = vld [vmem:[%s2 + $0x160] sm:$0xff]
  %v187 = vld [vmem:[%s2 + $0x168] sm:$0xff]
  %v188 = vld [vmem:[%s2 + $0x170] sm:$0xff]
  %v189 = vld [vmem:[%s2 + $0x178] sm:$0xff]
  %v190 = vld [vmem:[%s2 + $0x180] sm:$0xff]
  %v191 = vld [vmem:[%s2 + $0x188] sm:$0xff]
  %v192 = vld [vmem:[%s2 + $0x190] sm:$0xff]
  %v193 = vld [vmem:[%s2 + $0x198] sm:$0xff]
  %v194 = vld [vmem:[%s2 + $0x1a0] sm:$0xff]
  %v195 = vld [vmem:[%s2 + $0x1a8] sm:$0xff]
  %v196 = vld [vmem:[%s2 + $0x1b0] sm:$0xff]
  %v197 = vld [vmem:[%s2 + $0x1b8] sm:$0xff]
  %v198 = vld [vmem:[%s2 + $0x1c0] sm:$0xff]
  %v199 = vld [vmem:[%s2 + $0x1c8] sm:$0xff]
  %v200 = vld [vmem:[%s2 + $0x1d0] sm:$0xff]
  %v201 = vld [vmem:[%s2 + $0x1d8] sm:$0xff]
  %v202 = vld [vmem:[%s2 + $0x1e0] sm:$0xff]
  %v203 = vld [vmem:[%s2 + $0x1e8] sm:$0xff]
  %v204 = vld [vmem:[%s2 + $0x1f0] sm:$0xff]
  %v205 = vld [vmem:[%s2 + $0x1f8] sm:$0xff]
  %vm206 = vcmask 64512
  %v208 = vsel %vm206, %v14, 0
  %v211 = vsel %vm206, %v78, 0
  %213 = vmatpush.xpose.msra.mxu0 0.0
  %214 = vmatpush.xpose.msra.mxu0 0.0
  %215 = vmatpush.xpose.msra.mxu0 0.0
  %216 = vmatpush.xpose.msra.mxu0 0.0
  %217 = vmatpush.xpose.msra.mxu0 0.0
  %218 = vmatpush.xpose.msra.mxu0 0.0
  %219 = vmatpush.xpose.msra.mxu0 0.0
  %220 = vmatpush.xpose.msra.mxu0 0.0
  %221 = vmatpush.xpose.msra.mxu0 0.0
  %222 = vmatpush.xpose.msra.mxu0 0.0
  %223 = vmatpush.xpose.msra.mxu0 0.0
  %224 = vmatpush.xpose.msra.mxu0 0.0
  %225 = vmatpush.xpose.msra.mxu0 0.0
  %226 = vmatpush.xpose.msra.mxu0 0.0
  %227 = vmatpush.xpose.msra.mxu0 0.0
  %228 = vmatpush.xpose.msra.mxu0 %v211
  %229 = vmatmul.f32.gmra.mxu0 %v208
  %v230 = vpop.f32.mrf.mxu0
  %v231 = vadd.f32 0.0, %v230
  %232 = vdwg.mxu0
  %v234 = vsel %vm206, %v15, 0
  %v237 = vsel %vm206, %v79, 0
  %239 = vmatpush.xpose.msra.mxu0 0.0
  %240 = vmatpush.xpose.msra.mxu0 0.0
  %241 = vmatpush.xpose.msra.mxu0 0.0
  %242 = vmatpush.xpose.msra.mxu0 0.0
  %243 = vmatpush.xpose.msra.mxu0 0.0
  %244 = vmatpush.xpose.msra.mxu0 0.0
  %245 = vmatpush.xpose.msra.mxu0 0.0
  %246 = vmatpush.xpose.msra.mxu0 0.0
  %247 = vmatpush.xpose.msra.mxu0 0.0
  %248 = vmatpush.xpose.msra.mxu0 0.0
  %249 = vmatpush.xpose.msra.mxu0 0.0
  %250 = vmatpush.xpose.msra.mxu0 0.0
  %251 = vmatpush.xpose.msra.mxu0 0.0
  %252 = vmatpush.xpose.msra.mxu0 0.0
  %253 = vmatpush.xpose.msra.mxu0 0.0
  %254 = vmatpush.xpose.msra.mxu0 %v237
  %255 = vmatmul.f32.gmra.mxu0 %v234
  %v256 = vpop.f32.mrf.mxu0
  %v257 = vadd.f32 0.0, %v256
  %258 = vdwg.mxu0
  %v260 = vsel %vm206, %v16, 0
  %v263 = vsel %vm206, %v80, 0
  %265 = vmatpush.xpose.msra.mxu0 0.0
  %266 = vmatpush.xpose.msra.mxu0 0.0
  %267 = vmatpush.xpose.msra.mxu0 0.0
  %268 = vmatpush.xpose.msra.mxu0 0.0
  %269 = vmatpush.xpose.msra.mxu0 0.0
  %270 = vmatpush.xpose.msra.mxu0 0.0
  %271 = vmatpush.xpose.msra.mxu0 0.0
  %272 = vmatpush.xpose.msra.mxu0 0.0
  %273 = vmatpush.xpose.msra.mxu0 0.0
  %274 = vmatpush.xpose.msra.mxu0 0.0
  %275 = vmatpush.xpose.msra.mxu0 0.0
  %276 = vmatpush.xpose.msra.mxu0 0.0
  %277 = vmatpush.xpose.msra.mxu0 0.0
  %278 = vmatpush.xpose.msra.mxu0 0.0
  %279 = vmatpush.xpose.msra.mxu0 0.0
  %280 = vmatpush.xpose.msra.mxu0 %v263
  %281 = vmatmul.f32.gmra.mxu0 %v260
  %v282 = vpop.f32.mrf.mxu0
  %v283 = vadd.f32 0.0, %v282
  %284 = vdwg.mxu0
  %v286 = vsel %vm206, %v17, 0
  %v289 = vsel %vm206, %v81, 0
  %291 = vmatpush.xpose.msra.mxu0 0.0
  %292 = vmatpush.xpose.msra.mxu0 0.0
  %293 = vmatpush.xpose.msra.mxu0 0.0
  %294 = vmatpush.xpose.msra.mxu0 0.0
  %295 = vmatpush.xpose.msra.mxu0 0.0
  %296 = vmatpush.xpose.msra.mxu0 0.0
  %297 = vmatpush.xpose.msra.mxu0 0.0
  %298 = vmatpush.xpose.msra.mxu0 0.0
  %299 = vmatpush.xpose.msra.mxu0 0.0
  %300 = vmatpush.xpose.msra.mxu0 0.0
  %301 = vmatpush.xpose.msra.mxu0 0.0
  %302 = vmatpush.xpose.msra.mxu0 0.0
  %303 = vmatpush.xpose.msra.mxu0 0.0
  %304 = vmatpush.xpose.msra.mxu0 0.0
  %305 = vmatpush.xpose.msra.mxu0 0.0
  %306 = vmatpush.xpose.msra.mxu0 %v289
  %307 = vmatmul.f32.gmra.mxu0 %v286
  %v308 = vpop.f32.mrf.mxu0
  %v309 = vadd.f32 0.0, %v308
  %310 = vdwg.mxu0
  %v312 = vsel %vm206, %v18, 0
  %v315 = vsel %vm206, %v82, 0
  %317 = vmatpush.xpose.msra.mxu0 0.0
  %318 = vmatpush.xpose.msra.mxu0 0.0
  %319 = vmatpush.xpose.msra.mxu0 0.0
  %320 = vmatpush.xpose.msra.mxu0 0.0
  %321 = vmatpush.xpose.msra.mxu0 0.0
  %322 = vmatpush.xpose.msra.mxu0 0.0
  %323 = vmatpush.xpose.msra.mxu0 0.0
  %324 = vmatpush.xpose.msra.mxu0 0.0
  %325 = vmatpush.xpose.msra.mxu0 0.0
  %326 = vmatpush.xpose.msra.mxu0 0.0
  %327 = vmatpush.xpose.msra.mxu0 0.0
  %328 = vmatpush.xpose.msra.mxu0 0.0
  %329 = vmatpush.xpose.msra.mxu0 0.0
  %330 = vmatpush.xpose.msra.mxu0 0.0
  %331 = vmatpush.xpose.msra.mxu0 0.0
  %332 = vmatpush.xpose.msra.mxu0 %v315
  %333 = vmatmul.f32.gmra.mxu0 %v312
  %v334 = vpop.f32.mrf.mxu0
  %v335 = vadd.f32 0.0, %v334
  %336 = vdwg.mxu0
  %v338 = vsel %vm206, %v19, 0
  %v341 = vsel %vm206, %v83, 0
  %343 = vmatpush.xpose.msra.mxu0 0.0
  %344 = vmatpush.xpose.msra.mxu0 0.0
  %345 = vmatpush.xpose.msra.mxu0 0.0
  %346 = vmatpush.xpose.msra.mxu0 0.0
  %347 = vmatpush.xpose.msra.mxu0 0.0
  %348 = vmatpush.xpose.msra.mxu0 0.0
  %349 = vmatpush.xpose.msra.mxu0 0.0
  %350 = vmatpush.xpose.msra.mxu0 0.0
  %351 = vmatpush.xpose.msra.mxu0 0.0
  %352 = vmatpush.xpose.msra.mxu0 0.0
  %353 = vmatpush.xpose.msra.mxu0 0.0
  %354 = vmatpush.xpose.msra.mxu0 0.0
  %355 = vmatpush.xpose.msra.mxu0 0.0
  %356 = vmatpush.xpose.msra.mxu0 0.0
  %357 = vmatpush.xpose.msra.mxu0 0.0
  %358 = vmatpush.xpose.msra.mxu0 %v341
  %359 = vmatmul.f32.gmra.mxu0 %v338
  %v360 = vpop.f32.mrf.mxu0
  %v361 = vadd.f32 0.0, %v360
  %362 = vdwg.mxu0
  %v364 = vsel %vm206, %v20, 0
  %v367 = vsel %vm206, %v84, 0
  %369 = vmatpush.xpose.msra.mxu0 0.0
  %370 = vmatpush.xpose.msra.mxu0 0.0
  %371 = vmatpush.xpose.msra.mxu0 0.0
  %372 = vmatpush.xpose.msra.mxu0 0.0
  %373 = vmatpush.xpose.msra.mxu0 0.0
  %374 = vmatpush.xpose.msra.mxu0 0.0
  %375 = vmatpush.xpose.msra.mxu0 0.0
  %376 = vmatpush.xpose.msra.mxu0 0.0
  %377 = vmatpush.xpose.msra.mxu0 0.0
  %378 = vmatpush.xpose.msra.mxu0 0.0
  %379 = vmatpush.xpose.msra.mxu0 0.0
  %380 = vmatpush.xpose.msra.mxu0 0.0
  %381 = vmatpush.xpose.msra.mxu0 0.0
  %382 = vmatpush.xpose.msra.mxu0 0.0
  %383 = vmatpush.xpose.msra.mxu0 0.0
  %384 = vmatpush.xpose.msra.mxu0 %v367
  %385 = vmatmul.f32.gmra.mxu0 %v364
  %v386 = vpop.f32.mrf.mxu0
  %v387 = vadd.f32 0.0, %v386
  %388 = vdwg.mxu0
  %v390 = vsel %vm206, %v21, 0
  %v393 = vsel %vm206, %v85, 0
  %395 = vmatpush.xpose.msra.mxu0 0.0
  %396 = vmatpush.xpose.msra.mxu0 0.0
  %397 = vmatpush.xpose.msra.mxu0 0.0
  %398 = vmatpush.xpose.msra.mxu0 0.0
  %399 = vmatpush.xpose.msra.mxu0 0.0
  %400 = vmatpush.xpose.msra.mxu0 0.0
  %401 = vmatpush.xpose.msra.mxu0 0.0
  %402 = vmatpush.xpose.msra.mxu0 0.0
  %403 = vmatpush.xpose.msra.mxu0 0.0
  %404 = vmatpush.xpose.msra.mxu0 0.0
  %405 = vmatpush.xpose.msra.mxu0 0.0
  %406 = vmatpush.xpose.msra.mxu0 0.0
  %407 = vmatpush.xpose.msra.mxu0 0.0
  %408 = vmatpush.xpose.msra.mxu0 0.0
  %409 = vmatpush.xpose.msra.mxu0 0.0
  %410 = vmatpush.xpose.msra.mxu0 %v393
  %411 = vmatmul.f32.gmra.mxu0 %v390
  %v412 = vpop.f32.mrf.mxu0
  %v413 = vadd.f32 0.0, %v412
  %414 = vdwg.mxu0
  %v416 = vsel %vm206, %v22, 0
  %v419 = vsel %vm206, %v86, 0
  %421 = vmatpush.xpose.msra.mxu0 0.0
  %422 = vmatpush.xpose.msra.mxu0 0.0
  %423 = vmatpush.xpose.msra.mxu0 0.0
  %424 = vmatpush.xpose.msra.mxu0 0.0
  %425 = vmatpush.xpose.msra.mxu0 0.0
  %426 = vmatpush.xpose.msra.mxu0 0.0
  %427 = vmatpush.xpose.msra.mxu0 0.0
  %428 = vmatpush.xpose.msra.mxu0 0.0
  %429 = vmatpush.xpose.msra.mxu0 0.0
  %430 = vmatpush.xpose.msra.mxu0 0.0
  %431 = vmatpush.xpose.msra.mxu0 0.0
  %432 = vmatpush.xpose.msra.mxu0 0.0
  %433 = vmatpush.xpose.msra.mxu0 0.0
  %434 = vmatpush.xpose.msra.mxu0 0.0
  %435 = vmatpush.xpose.msra.mxu0 0.0
  %436 = vmatpush.xpose.msra.mxu0 %v419
  %437 = vmatmul.f32.gmra.mxu0 %v416
  %v438 = vpop.f32.mrf.mxu0
  %v439 = vadd.f32 0.0, %v438
  %440 = vdwg.mxu0
  %v442 = vsel %vm206, %v23, 0
  %v445 = vsel %vm206, %v87, 0
  %447 = vmatpush.xpose.msra.mxu0 0.0
  %448 = vmatpush.xpose.msra.mxu0 0.0
  %449 = vmatpush.xpose.msra.mxu0 0.0
  %450 = vmatpush.xpose.msra.mxu0 0.0
  %451 = vmatpush.xpose.msra.mxu0 0.0
  %452 = vmatpush.xpose.msra.mxu0 0.0
  %453 = vmatpush.xpose.msra.mxu0 0.0
  %454 = vmatpush.xpose.msra.mxu0 0.0
  %455 = vmatpush.xpose.msra.mxu0 0.0
  %456 = vmatpush.xpose.msra.mxu0 0.0
  %457 = vmatpush.xpose.msra.mxu0 0.0
  %458 = vmatpush.xpose.msra.mxu0 0.0
  %459 = vmatpush.xpose.msra.mxu0 0.0
  %460 = vmatpush.xpose.msra.mxu0 0.0
  %461 = vmatpush.xpose.msra.mxu0 0.0
  %462 = vmatpush.xpose.msra.mxu0 %v445
  %463 = vmatmul.f32.gmra.mxu0 %v442
  %v464 = vpop.f32.mrf.mxu0
  %v465 = vadd.f32 0.0, %v464
  %466 = vdwg.mxu0
  %v468 = vsel %vm206, %v24, 0
  %v471 = vsel %vm206, %v88, 0
  %473 = vmatpush.xpose.msra.mxu0 0.0
  %474 = vmatpush.xpose.msra.mxu0 0.0
  %475 = vmatpush.xpose.msra.mxu0 0.0
  %476 = vmatpush.xpose.msra.mxu0 0.0
  %477 = vmatpush.xpose.msra.mxu0 0.0
  %478 = vmatpush.xpose.msra.mxu0 0.0
  %479 = vmatpush.xpose.msra.mxu0 0.0
  %480 = vmatpush.xpose.msra.mxu0 0.0
  %481 = vmatpush.xpose.msra.mxu0 0.0
  %482 = vmatpush.xpose.msra.mxu0 0.0
  %483 = vmatpush.xpose.msra.mxu0 0.0
  %484 = vmatpush.xpose.msra.mxu0 0.0
  %485 = vmatpush.xpose.msra.mxu0 0.0
  %486 = vmatpush.xpose.msra.mxu0 0.0
  %487 = vmatpush.xpose.msra.mxu0 0.0
  %488 = vmatpush.xpose.msra.mxu0 %v471
  %489 = vmatmul.f32.gmra.mxu0 %v468
  %v490 = vpop.f32.mrf.mxu0
  %v491 = vadd.f32 0.0, %v490
  %492 = vdwg.mxu0
  %v494 = vsel %vm206, %v25, 0
  %v497 = vsel %vm206, %v89, 0
  %499 = vmatpush.xpose.msra.mxu0 0.0
  %500 = vmatpush.xpose.msra.mxu0 0.0
  %501 = vmatpush.xpose.msra.mxu0 0.0
  %502 = vmatpush.xpose.msra.mxu0 0.0
  %503 = vmatpush.xpose.msra.mxu0 0.0
  %504 = vmatpush.xpose.msra.mxu0 0.0
  %505 = vmatpush.xpose.msra.mxu0 0.0
  %506 = vmatpush.xpose.msra.mxu0 0.0
  %507 = vmatpush.xpose.msra.mxu0 0.0
  %508 = vmatpush.xpose.msra.mxu0 0.0
  %509 = vmatpush.xpose.msra.mxu0 0.0
  %510 = vmatpush.xpose.msra.mxu0 0.0
  %511 = vmatpush.xpose.msra.mxu0 0.0
  %512 = vmatpush.xpose.msra.mxu0 0.0
  %513 = vmatpush.xpose.msra.mxu0 0.0
  %514 = vmatpush.xpose.msra.mxu0 %v497
  %515 = vmatmul.f32.gmra.mxu0 %v494
  %v516 = vpop.f32.mrf.mxu0
  %v517 = vadd.f32 0.0, %v516
  %518 = vdwg.mxu0
  %v520 = vsel %vm206, %v26, 0
  %v523 = vsel %vm206, %v90, 0
  %525 = vmatpush.xpose.msra.mxu0 0.0
  %526 = vmatpush.xpose.msra.mxu0 0.0
  %527 = vmatpush.xpose.msra.mxu0 0.0
  %528 = vmatpush.xpose.msra.mxu0 0.0
  %529 = vmatpush.xpose.msra.mxu0 0.0
  %530 = vmatpush.xpose.msra.mxu0 0.0
  %531 = vmatpush.xpose.msra.mxu0 0.0
  %532 = vmatpush.xpose.msra.mxu0 0.0
  %533 = vmatpush.xpose.msra.mxu0 0.0
  %534 = vmatpush.xpose.msra.mxu0 0.0
  %535 = vmatpush.xpose.msra.mxu0 0.0
  %536 = vmatpush.xpose.msra.mxu0 0.0
  %537 = vmatpush.xpose.msra.mxu0 0.0
  %538 = vmatpush.xpose.msra.mxu0 0.0
  %539 = vmatpush.xpose.msra.mxu0 0.0
  %540 = vmatpush.xpose.msra.mxu0 %v523
  %541 = vmatmul.f32.gmra.mxu0 %v520
  %v542 = vpop.f32.mrf.mxu0
  %v543 = vadd.f32 0.0, %v542
  %544 = vdwg.mxu0
  %v546 = vsel %vm206, %v27, 0
  %v549 = vsel %vm206, %v91, 0
  %551 = vmatpush.xpose.msra.mxu0 0.0
  %552 = vmatpush.xpose.msra.mxu0 0.0
  %553 = vmatpush.xpose.msra.mxu0 0.0
  %554 = vmatpush.xpose.msra.mxu0 0.0
  %555 = vmatpush.xpose.msra.mxu0 0.0
  %556 = vmatpush.xpose.msra.mxu0 0.0
  %557 = vmatpush.xpose.msra.mxu0 0.0
  %558 = vmatpush.xpose.msra.mxu0 0.0
  %559 = vmatpush.xpose.msra.mxu0 0.0
  %560 = vmatpush.xpose.msra.mxu0 0.0
  %561 = vmatpush.xpose.msra.mxu0 0.0
  %562 = vmatpush.xpose.msra.mxu0 0.0
  %563 = vmatpush.xpose.msra.mxu0 0.0
  %564 = vmatpush.xpose.msra.mxu0 0.0
  %565 = vmatpush.xpose.msra.mxu0 0.0
  %566 = vmatpush.xpose.msra.mxu0 %v549
  %567 = vmatmul.f32.gmra.mxu0 %v546
  %v568 = vpop.f32.mrf.mxu0
  %v569 = vadd.f32 0.0, %v568
  %570 = vdwg.mxu0
  %v572 = vsel %vm206, %v28, 0
  %v575 = vsel %vm206, %v92, 0
  %577 = vmatpush.xpose.msra.mxu0 0.0
  %578 = vmatpush.xpose.msra.mxu0 0.0
  %579 = vmatpush.xpose.msra.mxu0 0.0
  %580 = vmatpush.xpose.msra.mxu0 0.0
  %581 = vmatpush.xpose.msra.mxu0 0.0
  %582 = vmatpush.xpose.msra.mxu0 0.0
  %583 = vmatpush.xpose.msra.mxu0 0.0
  %584 = vmatpush.xpose.msra.mxu0 0.0
  %585 = vmatpush.xpose.msra.mxu0 0.0
  %586 = vmatpush.xpose.msra.mxu0 0.0
  %587 = vmatpush.xpose.msra.mxu0 0.0
  %588 = vmatpush.xpose.msra.mxu0 0.0
  %589 = vmatpush.xpose.msra.mxu0 0.0
  %590 = vmatpush.xpose.msra.mxu0 0.0
  %591 = vmatpush.xpose.msra.mxu0 0.0
  %592 = vmatpush.xpose.msra.mxu0 %v575
  %593 = vmatmul.f32.gmra.mxu0 %v572
  %v594 = vpop.f32.mrf.mxu0
  %v595 = vadd.f32 0.0, %v594
  %596 = vdwg.mxu0
  %v598 = vsel %vm206, %v29, 0
  %v601 = vsel %vm206, %v93, 0
  %603 = vmatpush.xpose.msra.mxu0 0.0
  %604 = vmatpush.xpose.msra.mxu0 0.0
  %605 = vmatpush.xpose.msra.mxu0 0.0
  %606 = vmatpush.xpose.msra.mxu0 0.0
  %607 = vmatpush.xpose.msra.mxu0 0.0
  %608 = vmatpush.xpose.msra.mxu0 0.0
  %609 = vmatpush.xpose.msra.mxu0 0.0
  %610 = vmatpush.xpose.msra.mxu0 0.0
  %611 = vmatpush.xpose.msra.mxu0 0.0
  %612 = vmatpush.xpose.msra.mxu0 0.0
  %613 = vmatpush.xpose.msra.mxu0 0.0
  %614 = vmatpush.xpose.msra.mxu0 0.0
  %615 = vmatpush.xpose.msra.mxu0 0.0
  %616 = vmatpush.xpose.msra.mxu0 0.0
  %617 = vmatpush.xpose.msra.mxu0 0.0
  %618 = vmatpush.xpose.msra.mxu0 %v601
  %619 = vmatmul.f32.gmra.mxu0 %v598
  %v620 = vpop.f32.mrf.mxu0
  %v621 = vadd.f32 0.0, %v620
  %622 = vdwg.mxu0
  %v624 = vsel %vm206, %v30, 0
  %v627 = vsel %vm206, %v94, 0
  %629 = vmatpush.xpose.msra.mxu0 0.0
  %630 = vmatpush.xpose.msra.mxu0 0.0
  %631 = vmatpush.xpose.msra.mxu0 0.0
  %632 = vmatpush.xpose.msra.mxu0 0.0
  %633 = vmatpush.xpose.msra.mxu0 0.0
  %634 = vmatpush.xpose.msra.mxu0 0.0
  %635 = vmatpush.xpose.msra.mxu0 0.0
  %636 = vmatpush.xpose.msra.mxu0 0.0
  %637 = vmatpush.xpose.msra.mxu0 0.0
  %638 = vmatpush.xpose.msra.mxu0 0.0
  %639 = vmatpush.xpose.msra.mxu0 0.0
  %640 = vmatpush.xpose.msra.mxu0 0.0
  %641 = vmatpush.xpose.msra.mxu0 0.0
  %642 = vmatpush.xpose.msra.mxu0 0.0
  %643 = vmatpush.xpose.msra.mxu0 0.0
  %644 = vmatpush.xpose.msra.mxu0 %v627
  %645 = vmatmul.f32.gmra.mxu0 %v624
  %v646 = vpop.f32.mrf.mxu0
  %v647 = vadd.f32 0.0, %v646
  %648 = vdwg.mxu0
  %v650 = vsel %vm206, %v31, 0
  %v653 = vsel %vm206, %v95, 0
  %655 = vmatpush.xpose.msra.mxu0 0.0
  %656 = vmatpush.xpose.msra.mxu0 0.0
  %657 = vmatpush.xpose.msra.mxu0 0.0
  %658 = vmatpush.xpose.msra.mxu0 0.0
  %659 = vmatpush.xpose.msra.mxu0 0.0
  %660 = vmatpush.xpose.msra.mxu0 0.0
  %661 = vmatpush.xpose.msra.mxu0 0.0
  %662 = vmatpush.xpose.msra.mxu0 0.0
  %663 = vmatpush.xpose.msra.mxu0 0.0
  %664 = vmatpush.xpose.msra.mxu0 0.0
  %665 = vmatpush.xpose.msra.mxu0 0.0
  %666 = vmatpush.xpose.msra.mxu0 0.0
  %667 = vmatpush.xpose.msra.mxu0 0.0
  %668 = vmatpush.xpose.msra.mxu0 0.0
  %669 = vmatpush.xpose.msra.mxu0 0.0
  %670 = vmatpush.xpose.msra.mxu0 %v653
  %671 = vmatmul.f32.gmra.mxu0 %v650
  %v672 = vpop.f32.mrf.mxu0
  %v673 = vadd.f32 0.0, %v672
  %674 = vdwg.mxu0
  %v676 = vsel %vm206, %v32, 0
  %v679 = vsel %vm206, %v96, 0
  %681 = vmatpush.xpose.msra.mxu0 0.0
  %682 = vmatpush.xpose.msra.mxu0 0.0
  %683 = vmatpush.xpose.msra.mxu0 0.0
  %684 = vmatpush.xpose.msra.mxu0 0.0
  %685 = vmatpush.xpose.msra.mxu0 0.0
  %686 = vmatpush.xpose.msra.mxu0 0.0
  %687 = vmatpush.xpose.msra.mxu0 0.0
  %688 = vmatpush.xpose.msra.mxu0 0.0
  %689 = vmatpush.xpose.msra.mxu0 0.0
  %690 = vmatpush.xpose.msra.mxu0 0.0
  %691 = vmatpush.xpose.msra.mxu0 0.0
  %692 = vmatpush.xpose.msra.mxu0 0.0
  %693 = vmatpush.xpose.msra.mxu0 0.0
  %694 = vmatpush.xpose.msra.mxu0 0.0
  %695 = vmatpush.xpose.msra.mxu0 0.0
  %696 = vmatpush.xpose.msra.mxu0 %v679
  %697 = vmatmul.f32.gmra.mxu0 %v676
  %v698 = vpop.f32.mrf.mxu0
  %v699 = vadd.f32 0.0, %v698
  %700 = vdwg.mxu0
  %v702 = vsel %vm206, %v33, 0
  %v705 = vsel %vm206, %v97, 0
  %707 = vmatpush.xpose.msra.mxu0 0.0
  %708 = vmatpush.xpose.msra.mxu0 0.0
  %709 = vmatpush.xpose.msra.mxu0 0.0
  %710 = vmatpush.xpose.msra.mxu0 0.0
  %711 = vmatpush.xpose.msra.mxu0 0.0
  %712 = vmatpush.xpose.msra.mxu0 0.0
  %713 = vmatpush.xpose.msra.mxu0 0.0
  %714 = vmatpush.xpose.msra.mxu0 0.0
  %715 = vmatpush.xpose.msra.mxu0 0.0
  %716 = vmatpush.xpose.msra.mxu0 0.0
  %717 = vmatpush.xpose.msra.mxu0 0.0
  %718 = vmatpush.xpose.msra.mxu0 0.0
  %719 = vmatpush.xpose.msra.mxu0 0.0
  %720 = vmatpush.xpose.msra.mxu0 0.0
  %721 = vmatpush.xpose.msra.mxu0 0.0
  %722 = vmatpush.xpose.msra.mxu0 %v705
  %723 = vmatmul.f32.gmra.mxu0 %v702
  %v724 = vpop.f32.mrf.mxu0
  %v725 = vadd.f32 0.0, %v724
  %726 = vdwg.mxu0
  %v728 = vsel %vm206, %v34, 0
  %v731 = vsel %vm206, %v98, 0
  %733 = vmatpush.xpose.msra.mxu0 0.0
  %734 = vmatpush.xpose.msra.mxu0 0.0
  %735 = vmatpush.xpose.msra.mxu0 0.0
  %736 = vmatpush.xpose.msra.mxu0 0.0
  %737 = vmatpush.xpose.msra.mxu0 0.0
  %738 = vmatpush.xpose.msra.mxu0 0.0
  %739 = vmatpush.xpose.msra.mxu0 0.0
  %740 = vmatpush.xpose.msra.mxu0 0.0
  %741 = vmatpush.xpose.msra.mxu0 0.0
  %742 = vmatpush.xpose.msra.mxu0 0.0
  %743 = vmatpush.xpose.msra.mxu0 0.0
  %744 = vmatpush.xpose.msra.mxu0 0.0
  %745 = vmatpush.xpose.msra.mxu0 0.0
  %746 = vmatpush.xpose.msra.mxu0 0.0
  %747 = vmatpush.xpose.msra.mxu0 0.0
  %748 = vmatpush.xpose.msra.mxu0 %v731
  %749 = vmatmul.f32.gmra.mxu0 %v728
  %v750 = vpop.f32.mrf.mxu0
  %v751 = vadd.f32 0.0, %v750
  %752 = vdwg.mxu0
  %v754 = vsel %vm206, %v35, 0
  %v757 = vsel %vm206, %v99, 0
  %759 = vmatpush.xpose.msra.mxu0 0.0
  %760 = vmatpush.xpose.msra.mxu0 0.0
  %761 = vmatpush.xpose.msra.mxu0 0.0
  %762 = vmatpush.xpose.msra.mxu0 0.0
  %763 = vmatpush.xpose.msra.mxu0 0.0
  %764 = vmatpush.xpose.msra.mxu0 0.0
  %765 = vmatpush.xpose.msra.mxu0 0.0
  %766 = vmatpush.xpose.msra.mxu0 0.0
  %767 = vmatpush.xpose.msra.mxu0 0.0
  %768 = vmatpush.xpose.msra.mxu0 0.0
  %769 = vmatpush.xpose.msra.mxu0 0.0
  %770 = vmatpush.xpose.msra.mxu0 0.0
  %771 = vmatpush.xpose.msra.mxu0 0.0
  %772 = vmatpush.xpose.msra.mxu0 0.0
  %773 = vmatpush.xpose.msra.mxu0 0.0
  %774 = vmatpush.xpose.msra.mxu0 %v757
  %775 = vmatmul.f32.gmra.mxu0 %v754
  %v776 = vpop.f32.mrf.mxu0
  %v777 = vadd.f32 0.0, %v776
  %778 = vdwg.mxu0
  %v780 = vsel %vm206, %v36, 0
  %v783 = vsel %vm206, %v100, 0
  %785 = vmatpush.xpose.msra.mxu0 0.0
  %786 = vmatpush.xpose.msra.mxu0 0.0
  %787 = vmatpush.xpose.msra.mxu0 0.0
  %788 = vmatpush.xpose.msra.mxu0 0.0
  %789 = vmatpush.xpose.msra.mxu0 0.0
  %790 = vmatpush.xpose.msra.mxu0 0.0
  %791 = vmatpush.xpose.msra.mxu0 0.0
  %792 = vmatpush.xpose.msra.mxu0 0.0
  %793 = vmatpush.xpose.msra.mxu0 0.0
  %794 = vmatpush.xpose.msra.mxu0 0.0
  %795 = vmatpush.xpose.msra.mxu0 0.0
  %796 = vmatpush.xpose.msra.mxu0 0.0
  %797 = vmatpush.xpose.msra.mxu0 0.0
  %798 = vmatpush.xpose.msra.mxu0 0.0
  %799 = vmatpush.xpose.msra.mxu0 0.0
  %800 = vmatpush.xpose.msra.mxu0 %v783
  %801 = vmatmul.f32.gmra.mxu0 %v780
  %v802 = vpop.f32.mrf.mxu0
  %v803 = vadd.f32 0.0, %v802
  %804 = vdwg.mxu0
  %v806 = vsel %vm206, %v37, 0
  %v809 = vsel %vm206, %v101, 0
  %811 = vmatpush.xpose.msra.mxu0 0.0
  %812 = vmatpush.xpose.msra.mxu0 0.0
  %813 = vmatpush.xpose.msra.mxu0 0.0
  %814 = vmatpush.xpose.msra.mxu0 0.0
  %815 = vmatpush.xpose.msra.mxu0 0.0
  %816 = vmatpush.xpose.msra.mxu0 0.0
  %817 = vmatpush.xpose.msra.mxu0 0.0
  %818 = vmatpush.xpose.msra.mxu0 0.0
  %819 = vmatpush.xpose.msra.mxu0 0.0
  %820 = vmatpush.xpose.msra.mxu0 0.0
  %821 = vmatpush.xpose.msra.mxu0 0.0
  %822 = vmatpush.xpose.msra.mxu0 0.0
  %823 = vmatpush.xpose.msra.mxu0 0.0
  %824 = vmatpush.xpose.msra.mxu0 0.0
  %825 = vmatpush.xpose.msra.mxu0 0.0
  %826 = vmatpush.xpose.msra.mxu0 %v809
  %827 = vmatmul.f32.gmra.mxu0 %v806
  %v828 = vpop.f32.mrf.mxu0
  %v829 = vadd.f32 0.0, %v828
  %830 = vdwg.mxu0
  %v832 = vsel %vm206, %v38, 0
  %v835 = vsel %vm206, %v102, 0
  %837 = vmatpush.xpose.msra.mxu0 0.0
  %838 = vmatpush.xpose.msra.mxu0 0.0
  %839 = vmatpush.xpose.msra.mxu0 0.0
  %840 = vmatpush.xpose.msra.mxu0 0.0
  %841 = vmatpush.xpose.msra.mxu0 0.0
  %842 = vmatpush.xpose.msra.mxu0 0.0
  %843 = vmatpush.xpose.msra.mxu0 0.0
  %844 = vmatpush.xpose.msra.mxu0 0.0
  %845 = vmatpush.xpose.msra.mxu0 0.0
  %846 = vmatpush.xpose.msra.mxu0 0.0
  %847 = vmatpush.xpose.msra.mxu0 0.0
  %848 = vmatpush.xpose.msra.mxu0 0.0
  %849 = vmatpush.xpose.msra.mxu0 0.0
  %850 = vmatpush.xpose.msra.mxu0 0.0
  %851 = vmatpush.xpose.msra.mxu0 0.0
  %852 = vmatpush.xpose.msra.mxu0 %v835
  %853 = vmatmul.f32.gmra.mxu0 %v832
  %v854 = vpop.f32.mrf.mxu0
  %v855 = vadd.f32 0.0, %v854
  %856 = vdwg.mxu0
  %v858 = vsel %vm206, %v39, 0
  %v861 = vsel %vm206, %v103, 0
  %863 = vmatpush.xpose.msra.mxu0 0.0
  %864 = vmatpush.xpose.msra.mxu0 0.0
  %865 = vmatpush.xpose.msra.mxu0 0.0
  %866 = vmatpush.xpose.msra.mxu0 0.0
  %867 = vmatpush.xpose.msra.mxu0 0.0
  %868 = vmatpush.xpose.msra.mxu0 0.0
  %869 = vmatpush.xpose.msra.mxu0 0.0
  %870 = vmatpush.xpose.msra.mxu0 0.0
  %871 = vmatpush.xpose.msra.mxu0 0.0
  %872 = vmatpush.xpose.msra.mxu0 0.0
  %873 = vmatpush.xpose.msra.mxu0 0.0
  %874 = vmatpush.xpose.msra.mxu0 0.0
  %875 = vmatpush.xpose.msra.mxu0 0.0
  %876 = vmatpush.xpose.msra.mxu0 0.0
  %877 = vmatpush.xpose.msra.mxu0 0.0
  %878 = vmatpush.xpose.msra.mxu0 %v861
  %879 = vmatmul.f32.gmra.mxu0 %v858
  %v880 = vpop.f32.mrf.mxu0
  %v881 = vadd.f32 0.0, %v880
  %882 = vdwg.mxu0
  %v884 = vsel %vm206, %v40, 0
  %v887 = vsel %vm206, %v104, 0
  %889 = vmatpush.xpose.msra.mxu0 0.0
  %890 = vmatpush.xpose.msra.mxu0 0.0
  %891 = vmatpush.xpose.msra.mxu0 0.0
  %892 = vmatpush.xpose.msra.mxu0 0.0
  %893 = vmatpush.xpose.msra.mxu0 0.0
  %894 = vmatpush.xpose.msra.mxu0 0.0
  %895 = vmatpush.xpose.msra.mxu0 0.0
  %896 = vmatpush.xpose.msra.mxu0 0.0
  %897 = vmatpush.xpose.msra.mxu0 0.0
  %898 = vmatpush.xpose.msra.mxu0 0.0
  %899 = vmatpush.xpose.msra.mxu0 0.0
  %900 = vmatpush.xpose.msra.mxu0 0.0
  %901 = vmatpush.xpose.msra.mxu0 0.0
  %902 = vmatpush.xpose.msra.mxu0 0.0
  %903 = vmatpush.xpose.msra.mxu0 0.0
  %904 = vmatpush.xpose.msra.mxu0 %v887
  %905 = vmatmul.f32.gmra.mxu0 %v884
  %v906 = vpop.f32.mrf.mxu0
  %v907 = vadd.f32 0.0, %v906
  %908 = vdwg.mxu0
  %v910 = vsel %vm206, %v41, 0
  %v913 = vsel %vm206, %v105, 0
  %915 = vmatpush.xpose.msra.mxu0 0.0
  %916 = vmatpush.xpose.msra.mxu0 0.0
  %917 = vmatpush.xpose.msra.mxu0 0.0
  %918 = vmatpush.xpose.msra.mxu0 0.0
  %919 = vmatpush.xpose.msra.mxu0 0.0
  %920 = vmatpush.xpose.msra.mxu0 0.0
  %921 = vmatpush.xpose.msra.mxu0 0.0
  %922 = vmatpush.xpose.msra.mxu0 0.0
  %923 = vmatpush.xpose.msra.mxu0 0.0
  %924 = vmatpush.xpose.msra.mxu0 0.0
  %925 = vmatpush.xpose.msra.mxu0 0.0
  %926 = vmatpush.xpose.msra.mxu0 0.0
  %927 = vmatpush.xpose.msra.mxu0 0.0
  %928 = vmatpush.xpose.msra.mxu0 0.0
  %929 = vmatpush.xpose.msra.mxu0 0.0
  %930 = vmatpush.xpose.msra.mxu0 %v913
  %931 = vmatmul.f32.gmra.mxu0 %v910
  %v932 = vpop.f32.mrf.mxu0
  %v933 = vadd.f32 0.0, %v932
  %934 = vdwg.mxu0
  %v936 = vsel %vm206, %v42, 0
  %v939 = vsel %vm206, %v106, 0
  %941 = vmatpush.xpose.msra.mxu0 0.0
  %942 = vmatpush.xpose.msra.mxu0 0.0
  %943 = vmatpush.xpose.msra.mxu0 0.0
  %944 = vmatpush.xpose.msra.mxu0 0.0
  %945 = vmatpush.xpose.msra.mxu0 0.0
  %946 = vmatpush.xpose.msra.mxu0 0.0
  %947 = vmatpush.xpose.msra.mxu0 0.0
  %948 = vmatpush.xpose.msra.mxu0 0.0
  %949 = vmatpush.xpose.msra.mxu0 0.0
  %950 = vmatpush.xpose.msra.mxu0 0.0
  %951 = vmatpush.xpose.msra.mxu0 0.0
  %952 = vmatpush.xpose.msra.mxu0 0.0
  %953 = vmatpush.xpose.msra.mxu0 0.0
  %954 = vmatpush.xpose.msra.mxu0 0.0
  %955 = vmatpush.xpose.msra.mxu0 0.0
  %956 = vmatpush.xpose.msra.mxu0 %v939
  %957 = vmatmul.f32.gmra.mxu0 %v936
  %v958 = vpop.f32.mrf.mxu0
  %v959 = vadd.f32 0.0, %v958
  %960 = vdwg.mxu0
  %v962 = vsel %vm206, %v43, 0
  %v965 = vsel %vm206, %v107, 0
  %967 = vmatpush.xpose.msra.mxu0 0.0
  %968 = vmatpush.xpose.msra.mxu0 0.0
  %969 = vmatpush.xpose.msra.mxu0 0.0
  %970 = vmatpush.xpose.msra.mxu0 0.0
  %971 = vmatpush.xpose.msra.mxu0 0.0
  %972 = vmatpush.xpose.msra.mxu0 0.0
  %973 = vmatpush.xpose.msra.mxu0 0.0
  %974 = vmatpush.xpose.msra.mxu0 0.0
  %975 = vmatpush.xpose.msra.mxu0 0.0
  %976 = vmatpush.xpose.msra.mxu0 0.0
  %977 = vmatpush.xpose.msra.mxu0 0.0
  %978 = vmatpush.xpose.msra.mxu0 0.0
  %979 = vmatpush.xpose.msra.mxu0 0.0
  %980 = vmatpush.xpose.msra.mxu0 0.0
  %981 = vmatpush.xpose.msra.mxu0 0.0
  %982 = vmatpush.xpose.msra.mxu0 %v965
  %983 = vmatmul.f32.gmra.mxu0 %v962
  %v984 = vpop.f32.mrf.mxu0
  %v985 = vadd.f32 0.0, %v984
  %986 = vdwg.mxu0
  %v988 = vsel %vm206, %v44, 0
  %v991 = vsel %vm206, %v108, 0
  %993 = vmatpush.xpose.msra.mxu0 0.0
  %994 = vmatpush.xpose.msra.mxu0 0.0
  %995 = vmatpush.xpose.msra.mxu0 0.0
  %996 = vmatpush.xpose.msra.mxu0 0.0
  %997 = vmatpush.xpose.msra.mxu0 0.0
  %998 = vmatpush.xpose.msra.mxu0 0.0
  %999 = vmatpush.xpose.msra.mxu0 0.0
  %1000 = vmatpush.xpose.msra.mxu0 0.0
  %1001 = vmatpush.xpose.msra.mxu0 0.0
  %1002 = vmatpush.xpose.msra.mxu0 0.0
  %1003 = vmatpush.xpose.msra.mxu0 0.0
  %1004 = vmatpush.xpose.msra.mxu0 0.0
  %1005 = vmatpush.xpose.msra.mxu0 0.0
  %1006 = vmatpush.xpose.msra.mxu0 0.0
  %1007 = vmatpush.xpose.msra.mxu0 0.0
  %1008 = vmatpush.xpose.msra.mxu0 %v991
  %1009 = vmatmul.f32.gmra.mxu0 %v988
  %v1010 = vpop.f32.mrf.mxu0
  %v1011 = vadd.f32 0.0, %v1010
  %1012 = vdwg.mxu0
  %v1014 = vsel %vm206, %v45, 0
  %v1017 = vsel %vm206, %v109, 0
  %1019 = vmatpush.xpose.msra.mxu0 0.0
  %1020 = vmatpush.xpose.msra.mxu0 0.0
  %1021 = vmatpush.xpose.msra.mxu0 0.0
  %1022 = vmatpush.xpose.msra.mxu0 0.0
  %1023 = vmatpush.xpose.msra.mxu0 0.0
  %1024 = vmatpush.xpose.msra.mxu0 0.0
  %1025 = vmatpush.xpose.msra.mxu0 0.0
  %1026 = vmatpush.xpose.msra.mxu0 0.0
  %1027 = vmatpush.xpose.msra.mxu0 0.0
  %1028 = vmatpush.xpose.msra.mxu0 0.0
  %1029 = vmatpush.xpose.msra.mxu0 0.0
  %1030 = vmatpush.xpose.msra.mxu0 0.0
  %1031 = vmatpush.xpose.msra.mxu0 0.0
  %1032 = vmatpush.xpose.msra.mxu0 0.0
  %1033 = vmatpush.xpose.msra.mxu0 0.0
  %1034 = vmatpush.xpose.msra.mxu0 %v1017
  %1035 = vmatmul.f32.gmra.mxu0 %v1014
  %v1036 = vpop.f32.mrf.mxu0
  %v1037 = vadd.f32 0.0, %v1036
  %1038 = vdwg.mxu0
  %v1040 = vsel %vm206, %v46, 0
  %v1043 = vsel %vm206, %v110, 0
  %1045 = vmatpush.xpose.msra.mxu0 0.0
  %1046 = vmatpush.xpose.msra.mxu0 0.0
  %1047 = vmatpush.xpose.msra.mxu0 0.0
  %1048 = vmatpush.xpose.msra.mxu0 0.0
  %1049 = vmatpush.xpose.msra.mxu0 0.0
  %1050 = vmatpush.xpose.msra.mxu0 0.0
  %1051 = vmatpush.xpose.msra.mxu0 0.0
  %1052 = vmatpush.xpose.msra.mxu0 0.0
  %1053 = vmatpush.xpose.msra.mxu0 0.0
  %1054 = vmatpush.xpose.msra.mxu0 0.0
  %1055 = vmatpush.xpose.msra.mxu0 0.0
  %1056 = vmatpush.xpose.msra.mxu0 0.0
  %1057 = vmatpush.xpose.msra.mxu0 0.0
  %1058 = vmatpush.xpose.msra.mxu0 0.0
  %1059 = vmatpush.xpose.msra.mxu0 0.0
  %1060 = vmatpush.xpose.msra.mxu0 %v1043
  %1061 = vmatmul.f32.gmra.mxu0 %v1040
  %v1062 = vpop.f32.mrf.mxu0
  %v1063 = vadd.f32 0.0, %v1062
  %1064 = vdwg.mxu0
  %v1066 = vsel %vm206, %v47, 0
  %v1069 = vsel %vm206, %v111, 0
  %1071 = vmatpush.xpose.msra.mxu0 0.0
  %1072 = vmatpush.xpose.msra.mxu0 0.0
  %1073 = vmatpush.xpose.msra.mxu0 0.0
  %1074 = vmatpush.xpose.msra.mxu0 0.0
  %1075 = vmatpush.xpose.msra.mxu0 0.0
  %1076 = vmatpush.xpose.msra.mxu0 0.0
  %1077 = vmatpush.xpose.msra.mxu0 0.0
  %1078 = vmatpush.xpose.msra.mxu0 0.0
  %1079 = vmatpush.xpose.msra.mxu0 0.0
  %1080 = vmatpush.xpose.msra.mxu0 0.0
  %1081 = vmatpush.xpose.msra.mxu0 0.0
  %1082 = vmatpush.xpose.msra.mxu0 0.0
  %1083 = vmatpush.xpose.msra.mxu0 0.0
  %1084 = vmatpush.xpose.msra.mxu0 0.0
  %1085 = vmatpush.xpose.msra.mxu0 0.0
  %1086 = vmatpush.xpose.msra.mxu0 %v1069
  %1087 = vmatmul.f32.gmra.mxu0 %v1066
  %v1088 = vpop.f32.mrf.mxu0
  %v1089 = vadd.f32 0.0, %v1088
  %1090 = vdwg.mxu0
  %v1092 = vsel %vm206, %v48, 0
  %v1095 = vsel %vm206, %v112, 0
  %1097 = vmatpush.xpose.msra.mxu0 0.0
  %1098 = vmatpush.xpose.msra.mxu0 0.0
  %1099 = vmatpush.xpose.msra.mxu0 0.0
  %1100 = vmatpush.xpose.msra.mxu0 0.0
  %1101 = vmatpush.xpose.msra.mxu0 0.0
  %1102 = vmatpush.xpose.msra.mxu0 0.0
  %1103 = vmatpush.xpose.msra.mxu0 0.0
  %1104 = vmatpush.xpose.msra.mxu0 0.0
  %1105 = vmatpush.xpose.msra.mxu0 0.0
  %1106 = vmatpush.xpose.msra.mxu0 0.0
  %1107 = vmatpush.xpose.msra.mxu0 0.0
  %1108 = vmatpush.xpose.msra.mxu0 0.0
  %1109 = vmatpush.xpose.msra.mxu0 0.0
  %1110 = vmatpush.xpose.msra.mxu0 0.0
  %1111 = vmatpush.xpose.msra.mxu0 0.0
  %1112 = vmatpush.xpose.msra.mxu0 %v1095
  %1113 = vmatmul.f32.gmra.mxu0 %v1092
  %v1114 = vpop.f32.mrf.mxu0
  %v1115 = vadd.f32 0.0, %v1114
  %1116 = vdwg.mxu0
  %v1118 = vsel %vm206, %v49, 0
  %v1121 = vsel %vm206, %v113, 0
  %1123 = vmatpush.xpose.msra.mxu0 0.0
  %1124 = vmatpush.xpose.msra.mxu0 0.0
  %1125 = vmatpush.xpose.msra.mxu0 0.0
  %1126 = vmatpush.xpose.msra.mxu0 0.0
  %1127 = vmatpush.xpose.msra.mxu0 0.0
  %1128 = vmatpush.xpose.msra.mxu0 0.0
  %1129 = vmatpush.xpose.msra.mxu0 0.0
  %1130 = vmatpush.xpose.msra.mxu0 0.0
  %1131 = vmatpush.xpose.msra.mxu0 0.0
  %1132 = vmatpush.xpose.msra.mxu0 0.0
  %1133 = vmatpush.xpose.msra.mxu0 0.0
  %1134 = vmatpush.xpose.msra.mxu0 0.0
  %1135 = vmatpush.xpose.msra.mxu0 0.0
  %1136 = vmatpush.xpose.msra.mxu0 0.0
  %1137 = vmatpush.xpose.msra.mxu0 0.0
  %1138 = vmatpush.xpose.msra.mxu0 %v1121
  %1139 = vmatmul.f32.gmra.mxu0 %v1118
  %v1140 = vpop.f32.mrf.mxu0
  %v1141 = vadd.f32 0.0, %v1140
  %1142 = vdwg.mxu0
  %v1144 = vsel %vm206, %v50, 0
  %v1147 = vsel %vm206, %v114, 0
  %1149 = vmatpush.xpose.msra.mxu0 0.0
  %1150 = vmatpush.xpose.msra.mxu0 0.0
  %1151 = vmatpush.xpose.msra.mxu0 0.0
  %1152 = vmatpush.xpose.msra.mxu0 0.0
  %1153 = vmatpush.xpose.msra.mxu0 0.0
  %1154 = vmatpush.xpose.msra.mxu0 0.0
  %1155 = vmatpush.xpose.msra.mxu0 0.0
  %1156 = vmatpush.xpose.msra.mxu0 0.0
  %1157 = vmatpush.xpose.msra.mxu0 0.0
  %1158 = vmatpush.xpose.msra.mxu0 0.0
  %1159 = vmatpush.xpose.msra.mxu0 0.0
  %1160 = vmatpush.xpose.msra.mxu0 0.0
  %1161 = vmatpush.xpose.msra.mxu0 0.0
  %1162 = vmatpush.xpose.msra.mxu0 0.0
  %1163 = vmatpush.xpose.msra.mxu0 0.0
  %1164 = vmatpush.xpose.msra.mxu0 %v1147
  %1165 = vmatmul.f32.gmra.mxu0 %v1144
  %v1166 = vpop.f32.mrf.mxu0
  %v1167 = vadd.f32 0.0, %v1166
  %1168 = vdwg.mxu0
  %v1170 = vsel %vm206, %v51, 0
  %v1173 = vsel %vm206, %v115, 0
  %1175 = vmatpush.xpose.msra.mxu0 0.0
  %1176 = vmatpush.xpose.msra.mxu0 0.0
  %1177 = vmatpush.xpose.msra.mxu0 0.0
  %1178 = vmatpush.xpose.msra.mxu0 0.0
  %1179 = vmatpush.xpose.msra.mxu0 0.0
  %1180 = vmatpush.xpose.msra.mxu0 0.0
  %1181 = vmatpush.xpose.msra.mxu0 0.0
  %1182 = vmatpush.xpose.msra.mxu0 0.0
  %1183 = vmatpush.xpose.msra.mxu0 0.0
  %1184 = vmatpush.xpose.msra.mxu0 0.0
  %1185 = vmatpush.xpose.msra.mxu0 0.0
  %1186 = vmatpush.xpose.msra.mxu0 0.0
  %1187 = vmatpush.xpose.msra.mxu0 0.0
  %1188 = vmatpush.xpose.msra.mxu0 0.0
  %1189 = vmatpush.xpose.msra.mxu0 0.0
  %1190 = vmatpush.xpose.msra.mxu0 %v1173
  %1191 = vmatmul.f32.gmra.mxu0 %v1170
  %v1192 = vpop.f32.mrf.mxu0
  %v1193 = vadd.f32 0.0, %v1192
  %1194 = vdwg.mxu0
  %v1196 = vsel %vm206, %v52, 0
  %v1199 = vsel %vm206, %v116, 0
  %1201 = vmatpush.xpose.msra.mxu0 0.0
  %1202 = vmatpush.xpose.msra.mxu0 0.0
  %1203 = vmatpush.xpose.msra.mxu0 0.0
  %1204 = vmatpush.xpose.msra.mxu0 0.0
  %1205 = vmatpush.xpose.msra.mxu0 0.0
  %1206 = vmatpush.xpose.msra.mxu0 0.0
  %1207 = vmatpush.xpose.msra.mxu0 0.0
  %1208 = vmatpush.xpose.msra.mxu0 0.0
  %1209 = vmatpush.xpose.msra.mxu0 0.0
  %1210 = vmatpush.xpose.msra.mxu0 0.0
  %1211 = vmatpush.xpose.msra.mxu0 0.0
  %1212 = vmatpush.xpose.msra.mxu0 0.0
  %1213 = vmatpush.xpose.msra.mxu0 0.0
  %1214 = vmatpush.xpose.msra.mxu0 0.0
  %1215 = vmatpush.xpose.msra.mxu0 0.0
  %1216 = vmatpush.xpose.msra.mxu0 %v1199
  %1217 = vmatmul.f32.gmra.mxu0 %v1196
  %v1218 = vpop.f32.mrf.mxu0
  %v1219 = vadd.f32 0.0, %v1218
  %1220 = vdwg.mxu0
  %v1222 = vsel %vm206, %v53, 0
  %v1225 = vsel %vm206, %v117, 0
  %1227 = vmatpush.xpose.msra.mxu0 0.0
  %1228 = vmatpush.xpose.msra.mxu0 0.0
  %1229 = vmatpush.xpose.msra.mxu0 0.0
  %1230 = vmatpush.xpose.msra.mxu0 0.0
  %1231 = vmatpush.xpose.msra.mxu0 0.0
  %1232 = vmatpush.xpose.msra.mxu0 0.0
  %1233 = vmatpush.xpose.msra.mxu0 0.0
  %1234 = vmatpush.xpose.msra.mxu0 0.0
  %1235 = vmatpush.xpose.msra.mxu0 0.0
  %1236 = vmatpush.xpose.msra.mxu0 0.0
  %1237 = vmatpush.xpose.msra.mxu0 0.0
  %1238 = vmatpush.xpose.msra.mxu0 0.0
  %1239 = vmatpush.xpose.msra.mxu0 0.0
  %1240 = vmatpush.xpose.msra.mxu0 0.0
  %1241 = vmatpush.xpose.msra.mxu0 0.0
  %1242 = vmatpush.xpose.msra.mxu0 %v1225
  %1243 = vmatmul.f32.gmra.mxu0 %v1222
  %v1244 = vpop.f32.mrf.mxu0
  %v1245 = vadd.f32 0.0, %v1244
  %1246 = vdwg.mxu0
  %v1248 = vsel %vm206, %v54, 0
  %v1251 = vsel %vm206, %v118, 0
  %1253 = vmatpush.xpose.msra.mxu0 0.0
  %1254 = vmatpush.xpose.msra.mxu0 0.0
  %1255 = vmatpush.xpose.msra.mxu0 0.0
  %1256 = vmatpush.xpose.msra.mxu0 0.0
  %1257 = vmatpush.xpose.msra.mxu0 0.0
  %1258 = vmatpush.xpose.msra.mxu0 0.0
  %1259 = vmatpush.xpose.msra.mxu0 0.0
  %1260 = vmatpush.xpose.msra.mxu0 0.0
  %1261 = vmatpush.xpose.msra.mxu0 0.0
  %1262 = vmatpush.xpose.msra.mxu0 0.0
  %1263 = vmatpush.xpose.msra.mxu0 0.0
  %1264 = vmatpush.xpose.msra.mxu0 0.0
  %1265 = vmatpush.xpose.msra.mxu0 0.0
  %1266 = vmatpush.xpose.msra.mxu0 0.0
  %1267 = vmatpush.xpose.msra.mxu0 0.0
  %1268 = vmatpush.xpose.msra.mxu0 %v1251
  %1269 = vmatmul.f32.gmra.mxu0 %v1248
  %v1270 = vpop.f32.mrf.mxu0
  %v1271 = vadd.f32 0.0, %v1270
  %1272 = vdwg.mxu0
  %v1274 = vsel %vm206, %v55, 0
  %v1277 = vsel %vm206, %v119, 0
  %1279 = vmatpush.xpose.msra.mxu0 0.0
  %1280 = vmatpush.xpose.msra.mxu0 0.0
  %1281 = vmatpush.xpose.msra.mxu0 0.0
  %1282 = vmatpush.xpose.msra.mxu0 0.0
  %1283 = vmatpush.xpose.msra.mxu0 0.0
  %1284 = vmatpush.xpose.msra.mxu0 0.0
  %1285 = vmatpush.xpose.msra.mxu0 0.0
  %1286 = vmatpush.xpose.msra.mxu0 0.0
  %1287 = vmatpush.xpose.msra.mxu0 0.0
  %1288 = vmatpush.xpose.msra.mxu0 0.0
  %1289 = vmatpush.xpose.msra.mxu0 0.0
  %1290 = vmatpush.xpose.msra.mxu0 0.0
  %1291 = vmatpush.xpose.msra.mxu0 0.0
  %1292 = vmatpush.xpose.msra.mxu0 0.0
  %1293 = vmatpush.xpose.msra.mxu0 0.0
  %1294 = vmatpush.xpose.msra.mxu0 %v1277
  %1295 = vmatmul.f32.gmra.mxu0 %v1274
  %v1296 = vpop.f32.mrf.mxu0
  %v1297 = vadd.f32 0.0, %v1296
  %1298 = vdwg.mxu0
  %v1300 = vsel %vm206, %v56, 0
  %v1303 = vsel %vm206, %v120, 0
  %1305 = vmatpush.xpose.msra.mxu0 0.0
  %1306 = vmatpush.xpose.msra.mxu0 0.0
  %1307 = vmatpush.xpose.msra.mxu0 0.0
  %1308 = vmatpush.xpose.msra.mxu0 0.0
  %1309 = vmatpush.xpose.msra.mxu0 0.0
  %1310 = vmatpush.xpose.msra.mxu0 0.0
  %1311 = vmatpush.xpose.msra.mxu0 0.0
  %1312 = vmatpush.xpose.msra.mxu0 0.0
  %1313 = vmatpush.xpose.msra.mxu0 0.0
  %1314 = vmatpush.xpose.msra.mxu0 0.0
  %1315 = vmatpush.xpose.msra.mxu0 0.0
  %1316 = vmatpush.xpose.msra.mxu0 0.0
  %1317 = vmatpush.xpose.msra.mxu0 0.0
  %1318 = vmatpush.xpose.msra.mxu0 0.0
  %1319 = vmatpush.xpose.msra.mxu0 0.0
  %1320 = vmatpush.xpose.msra.mxu0 %v1303
  %1321 = vmatmul.f32.gmra.mxu0 %v1300
  %v1322 = vpop.f32.mrf.mxu0
  %v1323 = vadd.f32 0.0, %v1322
  %1324 = vdwg.mxu0
  %v1326 = vsel %vm206, %v57, 0
  %v1329 = vsel %vm206, %v121, 0
  %1331 = vmatpush.xpose.msra.mxu0 0.0
  %1332 = vmatpush.xpose.msra.mxu0 0.0
  %1333 = vmatpush.xpose.msra.mxu0 0.0
  %1334 = vmatpush.xpose.msra.mxu0 0.0
  %1335 = vmatpush.xpose.msra.mxu0 0.0
  %1336 = vmatpush.xpose.msra.mxu0 0.0
  %1337 = vmatpush.xpose.msra.mxu0 0.0
  %1338 = vmatpush.xpose.msra.mxu0 0.0
  %1339 = vmatpush.xpose.msra.mxu0 0.0
  %1340 = vmatpush.xpose.msra.mxu0 0.0
  %1341 = vmatpush.xpose.msra.mxu0 0.0
  %1342 = vmatpush.xpose.msra.mxu0 0.0
  %1343 = vmatpush.xpose.msra.mxu0 0.0
  %1344 = vmatpush.xpose.msra.mxu0 0.0
  %1345 = vmatpush.xpose.msra.mxu0 0.0
  %1346 = vmatpush.xpose.msra.mxu0 %v1329
  %1347 = vmatmul.f32.gmra.mxu0 %v1326
  %v1348 = vpop.f32.mrf.mxu0
  %v1349 = vadd.f32 0.0, %v1348
  %1350 = vdwg.mxu0
  %v1352 = vsel %vm206, %v58, 0
  %v1355 = vsel %vm206, %v122, 0
  %1357 = vmatpush.xpose.msra.mxu0 0.0
  %1358 = vmatpush.xpose.msra.mxu0 0.0
  %1359 = vmatpush.xpose.msra.mxu0 0.0
  %1360 = vmatpush.xpose.msra.mxu0 0.0
  %1361 = vmatpush.xpose.msra.mxu0 0.0
  %1362 = vmatpush.xpose.msra.mxu0 0.0
  %1363 = vmatpush.xpose.msra.mxu0 0.0
  %1364 = vmatpush.xpose.msra.mxu0 0.0
  %1365 = vmatpush.xpose.msra.mxu0 0.0
  %1366 = vmatpush.xpose.msra.mxu0 0.0
  %1367 = vmatpush.xpose.msra.mxu0 0.0
  %1368 = vmatpush.xpose.msra.mxu0 0.0
  %1369 = vmatpush.xpose.msra.mxu0 0.0
  %1370 = vmatpush.xpose.msra.mxu0 0.0
  %1371 = vmatpush.xpose.msra.mxu0 0.0
  %1372 = vmatpush.xpose.msra.mxu0 %v1355
  %1373 = vmatmul.f32.gmra.mxu0 %v1352
  %v1374 = vpop.f32.mrf.mxu0
  %v1375 = vadd.f32 0.0, %v1374
  %1376 = vdwg.mxu0
  %v1378 = vsel %vm206, %v59, 0
  %v1381 = vsel %vm206, %v123, 0
  %1383 = vmatpush.xpose.msra.mxu0 0.0
  %1384 = vmatpush.xpose.msra.mxu0 0.0
  %1385 = vmatpush.xpose.msra.mxu0 0.0
  %1386 = vmatpush.xpose.msra.mxu0 0.0
  %1387 = vmatpush.xpose.msra.mxu0 0.0
  %1388 = vmatpush.xpose.msra.mxu0 0.0
  %1389 = vmatpush.xpose.msra.mxu0 0.0
  %1390 = vmatpush.xpose.msra.mxu0 0.0
  %1391 = vmatpush.xpose.msra.mxu0 0.0
  %1392 = vmatpush.xpose.msra.mxu0 0.0
  %1393 = vmatpush.xpose.msra.mxu0 0.0
  %1394 = vmatpush.xpose.msra.mxu0 0.0
  %1395 = vmatpush.xpose.msra.mxu0 0.0
  %1396 = vmatpush.xpose.msra.mxu0 0.0
  %1397 = vmatpush.xpose.msra.mxu0 0.0
  %1398 = vmatpush.xpose.msra.mxu0 %v1381
  %1399 = vmatmul.f32.gmra.mxu0 %v1378
  %v1400 = vpop.f32.mrf.mxu0
  %v1401 = vadd.f32 0.0, %v1400
  %1402 = vdwg.mxu0
  %v1404 = vsel %vm206, %v60, 0
  %v1407 = vsel %vm206, %v124, 0
  %1409 = vmatpush.xpose.msra.mxu0 0.0
  %1410 = vmatpush.xpose.msra.mxu0 0.0
  %1411 = vmatpush.xpose.msra.mxu0 0.0
  %1412 = vmatpush.xpose.msra.mxu0 0.0
  %1413 = vmatpush.xpose.msra.mxu0 0.0
  %1414 = vmatpush.xpose.msra.mxu0 0.0
  %1415 = vmatpush.xpose.msra.mxu0 0.0
  %1416 = vmatpush.xpose.msra.mxu0 0.0
  %1417 = vmatpush.xpose.msra.mxu0 0.0
  %1418 = vmatpush.xpose.msra.mxu0 0.0
  %1419 = vmatpush.xpose.msra.mxu0 0.0
  %1420 = vmatpush.xpose.msra.mxu0 0.0
  %1421 = vmatpush.xpose.msra.mxu0 0.0
  %1422 = vmatpush.xpose.msra.mxu0 0.0
  %1423 = vmatpush.xpose.msra.mxu0 0.0
  %1424 = vmatpush.xpose.msra.mxu0 %v1407
  %1425 = vmatmul.f32.gmra.mxu0 %v1404
  %v1426 = vpop.f32.mrf.mxu0
  %v1427 = vadd.f32 0.0, %v1426
  %1428 = vdwg.mxu0
  %v1430 = vsel %vm206, %v61, 0
  %v1433 = vsel %vm206, %v125, 0
  %1435 = vmatpush.xpose.msra.mxu0 0.0
  %1436 = vmatpush.xpose.msra.mxu0 0.0
  %1437 = vmatpush.xpose.msra.mxu0 0.0
  %1438 = vmatpush.xpose.msra.mxu0 0.0
  %1439 = vmatpush.xpose.msra.mxu0 0.0
  %1440 = vmatpush.xpose.msra.mxu0 0.0
  %1441 = vmatpush.xpose.msra.mxu0 0.0
  %1442 = vmatpush.xpose.msra.mxu0 0.0
  %1443 = vmatpush.xpose.msra.mxu0 0.0
  %1444 = vmatpush.xpose.msra.mxu0 0.0
  %1445 = vmatpush.xpose.msra.mxu0 0.0
  %1446 = vmatpush.xpose.msra.mxu0 0.0
  %1447 = vmatpush.xpose.msra.mxu0 0.0
  %1448 = vmatpush.xpose.msra.mxu0 0.0
  %1449 = vmatpush.xpose.msra.mxu0 0.0
  %1450 = vmatpush.xpose.msra.mxu0 %v1433
  %1451 = vmatmul.f32.gmra.mxu0 %v1430
  %v1452 = vpop.f32.mrf.mxu0
  %v1453 = vadd.f32 0.0, %v1452
  %1454 = vdwg.mxu0
  %v1456 = vsel %vm206, %v62, 0
  %v1459 = vsel %vm206, %v126, 0
  %1461 = vmatpush.xpose.msra.mxu0 0.0
  %1462 = vmatpush.xpose.msra.mxu0 0.0
  %1463 = vmatpush.xpose.msra.mxu0 0.0
  %1464 = vmatpush.xpose.msra.mxu0 0.0
  %1465 = vmatpush.xpose.msra.mxu0 0.0
  %1466 = vmatpush.xpose.msra.mxu0 0.0
  %1467 = vmatpush.xpose.msra.mxu0 0.0
  %1468 = vmatpush.xpose.msra.mxu0 0.0
  %1469 = vmatpush.xpose.msra.mxu0 0.0
  %1470 = vmatpush.xpose.msra.mxu0 0.0
  %1471 = vmatpush.xpose.msra.mxu0 0.0
  %1472 = vmatpush.xpose.msra.mxu0 0.0
  %1473 = vmatpush.xpose.msra.mxu0 0.0
  %1474 = vmatpush.xpose.msra.mxu0 0.0
  %1475 = vmatpush.xpose.msra.mxu0 0.0
  %1476 = vmatpush.xpose.msra.mxu0 %v1459
  %1477 = vmatmul.f32.gmra.mxu0 %v1456
  %v1478 = vpop.f32.mrf.mxu0
  %v1479 = vadd.f32 0.0, %v1478
  %1480 = vdwg.mxu0
  %v1482 = vsel %vm206, %v63, 0
  %v1485 = vsel %vm206, %v127, 0
  %1487 = vmatpush.xpose.msra.mxu0 0.0
  %1488 = vmatpush.xpose.msra.mxu0 0.0
  %1489 = vmatpush.xpose.msra.mxu0 0.0
  %1490 = vmatpush.xpose.msra.mxu0 0.0
  %1491 = vmatpush.xpose.msra.mxu0 0.0
  %1492 = vmatpush.xpose.msra.mxu0 0.0
  %1493 = vmatpush.xpose.msra.mxu0 0.0
  %1494 = vmatpush.xpose.msra.mxu0 0.0
  %1495 = vmatpush.xpose.msra.mxu0 0.0
  %1496 = vmatpush.xpose.msra.mxu0 0.0
  %1497 = vmatpush.xpose.msra.mxu0 0.0
  %1498 = vmatpush.xpose.msra.mxu0 0.0
  %1499 = vmatpush.xpose.msra.mxu0 0.0
  %1500 = vmatpush.xpose.msra.mxu0 0.0
  %1501 = vmatpush.xpose.msra.mxu0 0.0
  %1502 = vmatpush.xpose.msra.mxu0 %v1485
  %1503 = vmatmul.f32.gmra.mxu0 %v1482
  %v1504 = vpop.f32.mrf.mxu0
  %v1505 = vadd.f32 0.0, %v1504
  %1506 = vdwg.mxu0
  %v1508 = vsel %vm206, %v64, 0
  %v1511 = vsel %vm206, %v128, 0
  %1513 = vmatpush.xpose.msra.mxu0 0.0
  %1514 = vmatpush.xpose.msra.mxu0 0.0
  %1515 = vmatpush.xpose.msra.mxu0 0.0
  %1516 = vmatpush.xpose.msra.mxu0 0.0
  %1517 = vmatpush.xpose.msra.mxu0 0.0
  %1518 = vmatpush.xpose.msra.mxu0 0.0
  %1519 = vmatpush.xpose.msra.mxu0 0.0
  %1520 = vmatpush.xpose.msra.mxu0 0.0
  %1521 = vmatpush.xpose.msra.mxu0 0.0
  %1522 = vmatpush.xpose.msra.mxu0 0.0
  %1523 = vmatpush.xpose.msra.mxu0 0.0
  %1524 = vmatpush.xpose.msra.mxu0 0.0
  %1525 = vmatpush.xpose.msra.mxu0 0.0
  %1526 = vmatpush.xpose.msra.mxu0 0.0
  %1527 = vmatpush.xpose.msra.mxu0 0.0
  %1528 = vmatpush.xpose.msra.mxu0 %v1511
  %1529 = vmatmul.f32.gmra.mxu0 %v1508
  %v1530 = vpop.f32.mrf.mxu0
  %v1531 = vadd.f32 0.0, %v1530
  %1532 = vdwg.mxu0
  %v1534 = vsel %vm206, %v65, 0
  %v1537 = vsel %vm206, %v129, 0
  %1539 = vmatpush.xpose.msra.mxu0 0.0
  %1540 = vmatpush.xpose.msra.mxu0 0.0
  %1541 = vmatpush.xpose.msra.mxu0 0.0
  %1542 = vmatpush.xpose.msra.mxu0 0.0
  %1543 = vmatpush.xpose.msra.mxu0 0.0
  %1544 = vmatpush.xpose.msra.mxu0 0.0
  %1545 = vmatpush.xpose.msra.mxu0 0.0
  %1546 = vmatpush.xpose.msra.mxu0 0.0
  %1547 = vmatpush.xpose.msra.mxu0 0.0
  %1548 = vmatpush.xpose.msra.mxu0 0.0
  %1549 = vmatpush.xpose.msra.mxu0 0.0
  %1550 = vmatpush.xpose.msra.mxu0 0.0
  %1551 = vmatpush.xpose.msra.mxu0 0.0
  %1552 = vmatpush.xpose.msra.mxu0 0.0
  %1553 = vmatpush.xpose.msra.mxu0 0.0
  %1554 = vmatpush.xpose.msra.mxu0 %v1537
  %1555 = vmatmul.f32.gmra.mxu0 %v1534
  %v1556 = vpop.f32.mrf.mxu0
  %v1557 = vadd.f32 0.0, %v1556
  %1558 = vdwg.mxu0
  %v1560 = vsel %vm206, %v66, 0
  %v1563 = vsel %vm206, %v130, 0
  %1565 = vmatpush.xpose.msra.mxu0 0.0
  %1566 = vmatpush.xpose.msra.mxu0 0.0
  %1567 = vmatpush.xpose.msra.mxu0 0.0
  %1568 = vmatpush.xpose.msra.mxu0 0.0
  %1569 = vmatpush.xpose.msra.mxu0 0.0
  %1570 = vmatpush.xpose.msra.mxu0 0.0
  %1571 = vmatpush.xpose.msra.mxu0 0.0
  %1572 = vmatpush.xpose.msra.mxu0 0.0
  %1573 = vmatpush.xpose.msra.mxu0 0.0
  %1574 = vmatpush.xpose.msra.mxu0 0.0
  %1575 = vmatpush.xpose.msra.mxu0 0.0
  %1576 = vmatpush.xpose.msra.mxu0 0.0
  %1577 = vmatpush.xpose.msra.mxu0 0.0
  %1578 = vmatpush.xpose.msra.mxu0 0.0
  %1579 = vmatpush.xpose.msra.mxu0 0.0
  %1580 = vmatpush.xpose.msra.mxu0 %v1563
  %1581 = vmatmul.f32.gmra.mxu0 %v1560
  %v1582 = vpop.f32.mrf.mxu0
  %v1583 = vadd.f32 0.0, %v1582
  %1584 = vdwg.mxu0
  %v1586 = vsel %vm206, %v67, 0
  %v1589 = vsel %vm206, %v131, 0
  %1591 = vmatpush.xpose.msra.mxu0 0.0
  %1592 = vmatpush.xpose.msra.mxu0 0.0
  %1593 = vmatpush.xpose.msra.mxu0 0.0
  %1594 = vmatpush.xpose.msra.mxu0 0.0
  %1595 = vmatpush.xpose.msra.mxu0 0.0
  %1596 = vmatpush.xpose.msra.mxu0 0.0
  %1597 = vmatpush.xpose.msra.mxu0 0.0
  %1598 = vmatpush.xpose.msra.mxu0 0.0
  %1599 = vmatpush.xpose.msra.mxu0 0.0
  %1600 = vmatpush.xpose.msra.mxu0 0.0
  %1601 = vmatpush.xpose.msra.mxu0 0.0
  %1602 = vmatpush.xpose.msra.mxu0 0.0
  %1603 = vmatpush.xpose.msra.mxu0 0.0
  %1604 = vmatpush.xpose.msra.mxu0 0.0
  %1605 = vmatpush.xpose.msra.mxu0 0.0
  %1606 = vmatpush.xpose.msra.mxu0 %v1589
  %1607 = vmatmul.f32.gmra.mxu0 %v1586
  %v1608 = vpop.f32.mrf.mxu0
  %v1609 = vadd.f32 0.0, %v1608
  %1610 = vdwg.mxu0
  %v1612 = vsel %vm206, %v68, 0
  %v1615 = vsel %vm206, %v132, 0
  %1617 = vmatpush.xpose.msra.mxu0 0.0
  %1618 = vmatpush.xpose.msra.mxu0 0.0
  %1619 = vmatpush.xpose.msra.mxu0 0.0
  %1620 = vmatpush.xpose.msra.mxu0 0.0
  %1621 = vmatpush.xpose.msra.mxu0 0.0
  %1622 = vmatpush.xpose.msra.mxu0 0.0
  %1623 = vmatpush.xpose.msra.mxu0 0.0
  %1624 = vmatpush.xpose.msra.mxu0 0.0
  %1625 = vmatpush.xpose.msra.mxu0 0.0
  %1626 = vmatpush.xpose.msra.mxu0 0.0
  %1627 = vmatpush.xpose.msra.mxu0 0.0
  %1628 = vmatpush.xpose.msra.mxu0 0.0
  %1629 = vmatpush.xpose.msra.mxu0 0.0
  %1630 = vmatpush.xpose.msra.mxu0 0.0
  %1631 = vmatpush.xpose.msra.mxu0 0.0
  %1632 = vmatpush.xpose.msra.mxu0 %v1615
  %1633 = vmatmul.f32.gmra.mxu0 %v1612
  %v1634 = vpop.f32.mrf.mxu0
  %v1635 = vadd.f32 0.0, %v1634
  %1636 = vdwg.mxu0
  %v1638 = vsel %vm206, %v69, 0
  %v1641 = vsel %vm206, %v133, 0
  %1643 = vmatpush.xpose.msra.mxu0 0.0
  %1644 = vmatpush.xpose.msra.mxu0 0.0
  %1645 = vmatpush.xpose.msra.mxu0 0.0
  %1646 = vmatpush.xpose.msra.mxu0 0.0
  %1647 = vmatpush.xpose.msra.mxu0 0.0
  %1648 = vmatpush.xpose.msra.mxu0 0.0
  %1649 = vmatpush.xpose.msra.mxu0 0.0
  %1650 = vmatpush.xpose.msra.mxu0 0.0
  %1651 = vmatpush.xpose.msra.mxu0 0.0
  %1652 = vmatpush.xpose.msra.mxu0 0.0
  %1653 = vmatpush.xpose.msra.mxu0 0.0
  %1654 = vmatpush.xpose.msra.mxu0 0.0
  %1655 = vmatpush.xpose.msra.mxu0 0.0
  %1656 = vmatpush.xpose.msra.mxu0 0.0
  %1657 = vmatpush.xpose.msra.mxu0 0.0
  %1658 = vmatpush.xpose.msra.mxu0 %v1641
  %1659 = vmatmul.f32.gmra.mxu0 %v1638
  %v1660 = vpop.f32.mrf.mxu0
  %v1661 = vadd.f32 0.0, %v1660
  %1662 = vdwg.mxu0
  %v1664 = vsel %vm206, %v70, 0
  %v1667 = vsel %vm206, %v134, 0
  %1669 = vmatpush.xpose.msra.mxu0 0.0
  %1670 = vmatpush.xpose.msra.mxu0 0.0
  %1671 = vmatpush.xpose.msra.mxu0 0.0
  %1672 = vmatpush.xpose.msra.mxu0 0.0
  %1673 = vmatpush.xpose.msra.mxu0 0.0
  %1674 = vmatpush.xpose.msra.mxu0 0.0
  %1675 = vmatpush.xpose.msra.mxu0 0.0
  %1676 = vmatpush.xpose.msra.mxu0 0.0
  %1677 = vmatpush.xpose.msra.mxu0 0.0
  %1678 = vmatpush.xpose.msra.mxu0 0.0
  %1679 = vmatpush.xpose.msra.mxu0 0.0
  %1680 = vmatpush.xpose.msra.mxu0 0.0
  %1681 = vmatpush.xpose.msra.mxu0 0.0
  %1682 = vmatpush.xpose.msra.mxu0 0.0
  %1683 = vmatpush.xpose.msra.mxu0 0.0
  %1684 = vmatpush.xpose.msra.mxu0 %v1667
  %1685 = vmatmul.f32.gmra.mxu0 %v1664
  %v1686 = vpop.f32.mrf.mxu0
  %v1687 = vadd.f32 0.0, %v1686
  %1688 = vdwg.mxu0
  %v1690 = vsel %vm206, %v71, 0
  %v1693 = vsel %vm206, %v135, 0
  %1695 = vmatpush.xpose.msra.mxu0 0.0
  %1696 = vmatpush.xpose.msra.mxu0 0.0
  %1697 = vmatpush.xpose.msra.mxu0 0.0
  %1698 = vmatpush.xpose.msra.mxu0 0.0
  %1699 = vmatpush.xpose.msra.mxu0 0.0
  %1700 = vmatpush.xpose.msra.mxu0 0.0
  %1701 = vmatpush.xpose.msra.mxu0 0.0
  %1702 = vmatpush.xpose.msra.mxu0 0.0
  %1703 = vmatpush.xpose.msra.mxu0 0.0
  %1704 = vmatpush.xpose.msra.mxu0 0.0
  %1705 = vmatpush.xpose.msra.mxu0 0.0
  %1706 = vmatpush.xpose.msra.mxu0 0.0
  %1707 = vmatpush.xpose.msra.mxu0 0.0
  %1708 = vmatpush.xpose.msra.mxu0 0.0
  %1709 = vmatpush.xpose.msra.mxu0 0.0
  %1710 = vmatpush.xpose.msra.mxu0 %v1693
  %1711 = vmatmul.f32.gmra.mxu0 %v1690
  %v1712 = vpop.f32.mrf.mxu0
  %v1713 = vadd.f32 0.0, %v1712
  %1714 = vdwg.mxu0
  %v1716 = vsel %vm206, %v72, 0
  %v1719 = vsel %vm206, %v136, 0
  %1721 = vmatpush.xpose.msra.mxu0 0.0
  %1722 = vmatpush.xpose.msra.mxu0 0.0
  %1723 = vmatpush.xpose.msra.mxu0 0.0
  %1724 = vmatpush.xpose.msra.mxu0 0.0
  %1725 = vmatpush.xpose.msra.mxu0 0.0
  %1726 = vmatpush.xpose.msra.mxu0 0.0
  %1727 = vmatpush.xpose.msra.mxu0 0.0
  %1728 = vmatpush.xpose.msra.mxu0 0.0
  %1729 = vmatpush.xpose.msra.mxu0 0.0
  %1730 = vmatpush.xpose.msra.mxu0 0.0
  %1731 = vmatpush.xpose.msra.mxu0 0.0
  %1732 = vmatpush.xpose.msra.mxu0 0.0
  %1733 = vmatpush.xpose.msra.mxu0 0.0
  %1734 = vmatpush.xpose.msra.mxu0 0.0
  %1735 = vmatpush.xpose.msra.mxu0 0.0
  %1736 = vmatpush.xpose.msra.mxu0 %v1719
  %1737 = vmatmul.f32.gmra.mxu0 %v1716
  %v1738 = vpop.f32.mrf.mxu0
  %v1739 = vadd.f32 0.0, %v1738
  %1740 = vdwg.mxu0
  %v1742 = vsel %vm206, %v73, 0
  %v1745 = vsel %vm206, %v137, 0
  %1747 = vmatpush.xpose.msra.mxu0 0.0
  %1748 = vmatpush.xpose.msra.mxu0 0.0
  %1749 = vmatpush.xpose.msra.mxu0 0.0
  %1750 = vmatpush.xpose.msra.mxu0 0.0
  %1751 = vmatpush.xpose.msra.mxu0 0.0
  %1752 = vmatpush.xpose.msra.mxu0 0.0
  %1753 = vmatpush.xpose.msra.mxu0 0.0
  %1754 = vmatpush.xpose.msra.mxu0 0.0
  %1755 = vmatpush.xpose.msra.mxu0 0.0
  %1756 = vmatpush.xpose.msra.mxu0 0.0
  %1757 = vmatpush.xpose.msra.mxu0 0.0
  %1758 = vmatpush.xpose.msra.mxu0 0.0
  %1759 = vmatpush.xpose.msra.mxu0 0.0
  %1760 = vmatpush.xpose.msra.mxu0 0.0
  %1761 = vmatpush.xpose.msra.mxu0 0.0
  %1762 = vmatpush.xpose.msra.mxu0 %v1745
  %1763 = vmatmul.f32.gmra.mxu0 %v1742
  %v1764 = vpop.f32.mrf.mxu0
  %v1765 = vadd.f32 0.0, %v1764
  %1766 = vdwg.mxu0
  %v1768 = vsel %vm206, %v74, 0
  %v1771 = vsel %vm206, %v138, 0
  %1773 = vmatpush.xpose.msra.mxu0 0.0
  %1774 = vmatpush.xpose.msra.mxu0 0.0
  %1775 = vmatpush.xpose.msra.mxu0 0.0
  %1776 = vmatpush.xpose.msra.mxu0 0.0
  %1777 = vmatpush.xpose.msra.mxu0 0.0
  %1778 = vmatpush.xpose.msra.mxu0 0.0
  %1779 = vmatpush.xpose.msra.mxu0 0.0
  %1780 = vmatpush.xpose.msra.mxu0 0.0
  %1781 = vmatpush.xpose.msra.mxu0 0.0
  %1782 = vmatpush.xpose.msra.mxu0 0.0
  %1783 = vmatpush.xpose.msra.mxu0 0.0
  %1784 = vmatpush.xpose.msra.mxu0 0.0
  %1785 = vmatpush.xpose.msra.mxu0 0.0
  %1786 = vmatpush.xpose.msra.mxu0 0.0
  %1787 = vmatpush.xpose.msra.mxu0 0.0
  %1788 = vmatpush.xpose.msra.mxu0 %v1771
  %1789 = vmatmul.f32.gmra.mxu0 %v1768
  %v1790 = vpop.f32.mrf.mxu0
  %v1791 = vadd.f32 0.0, %v1790
  %1792 = vdwg.mxu0
  %v1794 = vsel %vm206, %v75, 0
  %v1797 = vsel %vm206, %v139, 0
  %1799 = vmatpush.xpose.msra.mxu0 0.0
  %1800 = vmatpush.xpose.msra.mxu0 0.0
  %1801 = vmatpush.xpose.msra.mxu0 0.0
  %1802 = vmatpush.xpose.msra.mxu0 0.0
  %1803 = vmatpush.xpose.msra.mxu0 0.0
  %1804 = vmatpush.xpose.msra.mxu0 0.0
  %1805 = vmatpush.xpose.msra.mxu0 0.0
  %1806 = vmatpush.xpose.msra.mxu0 0.0
  %1807 = vmatpush.xpose.msra.mxu0 0.0
  %1808 = vmatpush.xpose.msra.mxu0 0.0
  %1809 = vmatpush.xpose.msra.mxu0 0.0
  %1810 = vmatpush.xpose.msra.mxu0 0.0
  %1811 = vmatpush.xpose.msra.mxu0 0.0
  %1812 = vmatpush.xpose.msra.mxu0 0.0
  %1813 = vmatpush.xpose.msra.mxu0 0.0
  %1814 = vmatpush.xpose.msra.mxu0 %v1797
  %1815 = vmatmul.f32.gmra.mxu0 %v1794
  %v1816 = vpop.f32.mrf.mxu0
  %v1817 = vadd.f32 0.0, %v1816
  %1818 = vdwg.mxu0
  %v1820 = vsel %vm206, %v76, 0
  %v1823 = vsel %vm206, %v140, 0
  %1825 = vmatpush.xpose.msra.mxu0 0.0
  %1826 = vmatpush.xpose.msra.mxu0 0.0
  %1827 = vmatpush.xpose.msra.mxu0 0.0
  %1828 = vmatpush.xpose.msra.mxu0 0.0
  %1829 = vmatpush.xpose.msra.mxu0 0.0
  %1830 = vmatpush.xpose.msra.mxu0 0.0
  %1831 = vmatpush.xpose.msra.mxu0 0.0
  %1832 = vmatpush.xpose.msra.mxu0 0.0
  %1833 = vmatpush.xpose.msra.mxu0 0.0
  %1834 = vmatpush.xpose.msra.mxu0 0.0
  %1835 = vmatpush.xpose.msra.mxu0 0.0
  %1836 = vmatpush.xpose.msra.mxu0 0.0
  %1837 = vmatpush.xpose.msra.mxu0 0.0
  %1838 = vmatpush.xpose.msra.mxu0 0.0
  %1839 = vmatpush.xpose.msra.mxu0 0.0
  %1840 = vmatpush.xpose.msra.mxu0 %v1823
  %1841 = vmatmul.f32.gmra.mxu0 %v1820
  %v1842 = vpop.f32.mrf.mxu0
  %v1843 = vadd.f32 0.0, %v1842
  %1844 = vdwg.mxu0
  %v1846 = vsel %vm206, %v77, 0
  %v1849 = vsel %vm206, %v141, 0
  %1851 = vmatpush.xpose.msra.mxu0 0.0
  %1852 = vmatpush.xpose.msra.mxu0 0.0
  %1853 = vmatpush.xpose.msra.mxu0 0.0
  %1854 = vmatpush.xpose.msra.mxu0 0.0
  %1855 = vmatpush.xpose.msra.mxu0 0.0
  %1856 = vmatpush.xpose.msra.mxu0 0.0
  %1857 = vmatpush.xpose.msra.mxu0 0.0
  %1858 = vmatpush.xpose.msra.mxu0 0.0
  %1859 = vmatpush.xpose.msra.mxu0 0.0
  %1860 = vmatpush.xpose.msra.mxu0 0.0
  %1861 = vmatpush.xpose.msra.mxu0 0.0
  %1862 = vmatpush.xpose.msra.mxu0 0.0
  %1863 = vmatpush.xpose.msra.mxu0 0.0
  %1864 = vmatpush.xpose.msra.mxu0 0.0
  %1865 = vmatpush.xpose.msra.mxu0 0.0
  %1866 = vmatpush.xpose.msra.mxu0 %v1849
  %1867 = vmatmul.f32.gmra.mxu0 %v1846
  %v1868 = vpop.f32.mrf.mxu0
  %v1869 = vadd.f32 0.0, %v1868
  %1870 = vdwg.mxu0
  %v1871 = vsel %vm206, %v231, -inf
  %1872 = vmax.xlane.f32.xlu0 %v1871
  %v1873 = vpop.xlane.xlu0 %1872
  %v1874 = vsel %vm206, %v257, -inf
  %1875 = vmax.xlane.f32.xlu0 %v1874
  %v1876 = vpop.xlane.xlu0 %1875
  %v1877 = vsel %vm206, %v283, -inf
  %1878 = vmax.xlane.f32.xlu0 %v1877
  %v1879 = vpop.xlane.xlu0 %1878
  %v1880 = vsel %vm206, %v309, -inf
  %1881 = vmax.xlane.f32.xlu0 %v1880
  %v1882 = vpop.xlane.xlu0 %1881
  %v1883 = vsel %vm206, %v335, -inf
  %1884 = vmax.xlane.f32.xlu0 %v1883
  %v1885 = vpop.xlane.xlu0 %1884
  %v1886 = vsel %vm206, %v361, -inf
  %1887 = vmax.xlane.f32.xlu0 %v1886
  %v1888 = vpop.xlane.xlu0 %1887
  %v1889 = vsel %vm206, %v387, -inf
  %1890 = vmax.xlane.f32.xlu0 %v1889
  %v1891 = vpop.xlane.xlu0 %1890
  %v1892 = vsel %vm206, %v413, -inf
  %1893 = vmax.xlane.f32.xlu0 %v1892
  %v1894 = vpop.xlane.xlu0 %1893
  %v1895 = vsel %vm206, %v439, -inf
  %1896 = vmax.xlane.f32.xlu0 %v1895
  %v1897 = vpop.xlane.xlu0 %1896
  %v1898 = vsel %vm206, %v465, -inf
  %1899 = vmax.xlane.f32.xlu0 %v1898
  %v1900 = vpop.xlane.xlu0 %1899
  %v1901 = vsel %vm206, %v491, -inf
  %1902 = vmax.xlane.f32.xlu0 %v1901
  %v1903 = vpop.xlane.xlu0 %1902
  %v1904 = vsel %vm206, %v517, -inf
  %1905 = vmax.xlane.f32.xlu0 %v1904
  %v1906 = vpop.xlane.xlu0 %1905
  %v1907 = vsel %vm206, %v543, -inf
  %1908 = vmax.xlane.f32.xlu0 %v1907
  %v1909 = vpop.xlane.xlu0 %1908
  %v1910 = vsel %vm206, %v569, -inf
  %1911 = vmax.xlane.f32.xlu0 %v1910
  %v1912 = vpop.xlane.xlu0 %1911
  %v1913 = vsel %vm206, %v595, -inf
  %1914 = vmax.xlane.f32.xlu0 %v1913
  %v1915 = vpop.xlane.xlu0 %1914
  %v1916 = vsel %vm206, %v621, -inf
  %1917 = vmax.xlane.f32.xlu0 %v1916
  %v1918 = vpop.xlane.xlu0 %1917
  %v1919 = vsel %vm206, %v647, -inf
  %1920 = vmax.xlane.f32.xlu0 %v1919
  %v1921 = vpop.xlane.xlu0 %1920
  %v1922 = vsel %vm206, %v673, -inf
  %1923 = vmax.xlane.f32.xlu0 %v1922
  %v1924 = vpop.xlane.xlu0 %1923
  %v1925 = vsel %vm206, %v699, -inf
  %1926 = vmax.xlane.f32.xlu0 %v1925
  %v1927 = vpop.xlane.xlu0 %1926
  %v1928 = vsel %vm206, %v725, -inf
  %1929 = vmax.xlane.f32.xlu0 %v1928
  %v1930 = vpop.xlane.xlu0 %1929
  %v1931 = vsel %vm206, %v751, -inf
  %1932 = vmax.xlane.f32.xlu0 %v1931
  %v1933 = vpop.xlane.xlu0 %1932
  %v1934 = vsel %vm206, %v777, -inf
  %1935 = vmax.xlane.f32.xlu0 %v1934
  %v1936 = vpop.xlane.xlu0 %1935
  %v1937 = vsel %vm206, %v803, -inf
  %1938 = vmax.xlane.f32.xlu0 %v1937
  %v1939 = vpop.xlane.xlu0 %1938
  %v1940 = vsel %vm206, %v829, -inf
  %1941 = vmax.xlane.f32.xlu0 %v1940
  %v1942 = vpop.xlane.xlu0 %1941
  %v1943 = vsel %vm206, %v855, -inf
  %1944 = vmax.xlane.f32.xlu0 %v1943
  %v1945 = vpop.xlane.xlu0 %1944
  %v1946 = vsel %vm206, %v881, -inf
  %1947 = vmax.xlane.f32.xlu0 %v1946
  %v1948 = vpop.xlane.xlu0 %1947
  %v1949 = vsel %vm206, %v907, -inf
  %1950 = vmax.xlane.f32.xlu0 %v1949
  %v1951 = vpop.xlane.xlu0 %1950
  %v1952 = vsel %vm206, %v933, -inf
  %1953 = vmax.xlane.f32.xlu0 %v1952
  %v1954 = vpop.xlane.xlu0 %1953
  %v1955 = vsel %vm206, %v959, -inf
  %1956 = vmax.xlane.f32.xlu0 %v1955
  %v1957 = vpop.xlane.xlu0 %1956
  %v1958 = vsel %vm206, %v985, -inf
  %1959 = vmax.xlane.f32.xlu0 %v1958
  %v1960 = vpop.xlane.xlu0 %1959
  %v1961 = vsel %vm206, %v1011, -inf
  %1962 = vmax.xlane.f32.xlu0 %v1961
  %v1963 = vpop.xlane.xlu0 %1962
  %v1964 = vsel %vm206, %v1037, -inf
  %1965 = vmax.xlane.f32.xlu0 %v1964
  %v1966 = vpop.xlane.xlu0 %1965
  %v1967 = vsel %vm206, %v1063, -inf
  %1968 = vmax.xlane.f32.xlu0 %v1967
  %v1969 = vpop.xlane.xlu0 %1968
  %v1970 = vsel %vm206, %v1089, -inf
  %1971 = vmax.xlane.f32.xlu0 %v1970
  %v1972 = vpop.xlane.xlu0 %1971
  %v1973 = vsel %vm206, %v1115, -inf
  %1974 = vmax.xlane.f32.xlu0 %v1973
  %v1975 = vpop.xlane.xlu0 %1974
  %v1976 = vsel %vm206, %v1141, -inf
  %1977 = vmax.xlane.f32.xlu0 %v1976
  %v1978 = vpop.xlane.xlu0 %1977
  %v1979 = vsel %vm206, %v1167, -inf
  %1980 = vmax.xlane.f32.xlu0 %v1979
  %v1981 = vpop.xlane.xlu0 %1980
  %v1982 = vsel %vm206, %v1193, -inf
  %1983 = vmax.xlane.f32.xlu0 %v1982
  %v1984 = vpop.xlane.xlu0 %1983
  %v1985 = vsel %vm206, %v1219, -inf
  %1986 = vmax.xlane.f32.xlu0 %v1985
  %v1987 = vpop.xlane.xlu0 %1986
  %v1988 = vsel %vm206, %v1245, -inf
  %1989 = vmax.xlane.f32.xlu0 %v1988
  %v1990 = vpop.xlane.xlu0 %1989
  %v1991 = vsel %vm206, %v1271, -inf
  %1992 = vmax.xlane.f32.xlu0 %v1991
  %v1993 = vpop.xlane.xlu0 %1992
  %v1994 = vsel %vm206, %v1297, -inf
  %1995 = vmax.xlane.f32.xlu0 %v1994
  %v1996 = vpop.xlane.xlu0 %1995
  %v1997 = vsel %vm206, %v1323, -inf
  %1998 = vmax.xlane.f32.xlu0 %v1997
  %v1999 = vpop.xlane.xlu0 %1998
  %v2000 = vsel %vm206, %v1349, -inf
  %2001 = vmax.xlane.f32.xlu0 %v2000
  %v2002 = vpop.xlane.xlu0 %2001
  %v2003 = vsel %vm206, %v1375, -inf
  %2004 = vmax.xlane.f32.xlu0 %v2003
  %v2005 = vpop.xlane.xlu0 %2004
  %v2006 = vsel %vm206, %v1401, -inf
  %2007 = vmax.xlane.f32.xlu0 %v2006
  %v2008 = vpop.xlane.xlu0 %2007
  %v2009 = vsel %vm206, %v1427, -inf
  %2010 = vmax.xlane.f32.xlu0 %v2009
  %v2011 = vpop.xlane.xlu0 %2010
  %v2012 = vsel %vm206, %v1453, -inf
  %2013 = vmax.xlane.f32.xlu0 %v2012
  %v2014 = vpop.xlane.xlu0 %2013
  %v2015 = vsel %vm206, %v1479, -inf
  %2016 = vmax.xlane.f32.xlu0 %v2015
  %v2017 = vpop.xlane.xlu0 %2016
  %v2018 = vsel %vm206, %v1505, -inf
  %2019 = vmax.xlane.f32.xlu0 %v2018
  %v2020 = vpop.xlane.xlu0 %2019
  %v2021 = vsel %vm206, %v1531, -inf
  %2022 = vmax.xlane.f32.xlu0 %v2021
  %v2023 = vpop.xlane.xlu0 %2022
  %v2024 = vsel %vm206, %v1557, -inf
  %2025 = vmax.xlane.f32.xlu0 %v2024
  %v2026 = vpop.xlane.xlu0 %2025
  %v2027 = vsel %vm206, %v1583, -inf
  %2028 = vmax.xlane.f32.xlu0 %v2027
  %v2029 = vpop.xlane.xlu0 %2028
  %v2030 = vsel %vm206, %v1609, -inf
  %2031 = vmax.xlane.f32.xlu0 %v2030
  %v2032 = vpop.xlane.xlu0 %2031
  %v2033 = vsel %vm206, %v1635, -inf
  %2034 = vmax.xlane.f32.xlu0 %v2033
  %v2035 = vpop.xlane.xlu0 %2034
  %v2036 = vsel %vm206, %v1661, -inf
  %2037 = vmax.xlane.f32.xlu0 %v2036
  %v2038 = vpop.xlane.xlu0 %2037
  %v2039 = vsel %vm206, %v1687, -inf
  %2040 = vmax.xlane.f32.xlu0 %v2039
  %v2041 = vpop.xlane.xlu0 %2040
  %v2042 = vsel %vm206, %v1713, -inf
  %2043 = vmax.xlane.f32.xlu0 %v2042
  %v2044 = vpop.xlane.xlu0 %2043
  %v2045 = vsel %vm206, %v1739, -inf
  %2046 = vmax.xlane.f32.xlu0 %v2045
  %v2047 = vpop.xlane.xlu0 %2046
  %v2048 = vsel %vm206, %v1765, -inf
  %2049 = vmax.xlane.f32.xlu0 %v2048
  %v2050 = vpop.xlane.xlu0 %2049
  %v2051 = vsel %vm206, %v1791, -inf
  %2052 = vmax.xlane.f32.xlu0 %v2051
  %v2053 = vpop.xlane.xlu0 %2052
  %v2054 = vsel %vm206, %v1817, -inf
  %2055 = vmax.xlane.f32.xlu0 %v2054
  %v2056 = vpop.xlane.xlu0 %2055
  %v2057 = vsel %vm206, %v1843, -inf
  %2058 = vmax.xlane.f32.xlu0 %v2057
  %v2059 = vpop.xlane.xlu0 %2058
  %v2060 = vsel %vm206, %v1869, -inf
  %2061 = vmax.xlane.f32.xlu0 %v2060
  %v2062 = vpop.xlane.xlu0 %2061
  %v2063 = vsub.f32 %v231, %v1873
  %v2064 = vsub.f32 %v257, %v1876
  %v2065 = vsub.f32 %v283, %v1879
  %v2066 = vsub.f32 %v309, %v1882
  %v2067 = vsub.f32 %v335, %v1885
  %v2068 = vsub.f32 %v361, %v1888
  %v2069 = vsub.f32 %v387, %v1891
  %v2070 = vsub.f32 %v413, %v1894
  %v2071 = vsub.f32 %v439, %v1897
  %v2072 = vsub.f32 %v465, %v1900
  %v2073 = vsub.f32 %v491, %v1903
  %v2074 = vsub.f32 %v517, %v1906
  %v2075 = vsub.f32 %v543, %v1909
  %v2076 = vsub.f32 %v569, %v1912
  %v2077 = vsub.f32 %v595, %v1915
  %v2078 = vsub.f32 %v621, %v1918
  %v2079 = vsub.f32 %v647, %v1921
  %v2080 = vsub.f32 %v673, %v1924
  %v2081 = vsub.f32 %v699, %v1927
  %v2082 = vsub.f32 %v725, %v1930
  %v2083 = vsub.f32 %v751, %v1933
  %v2084 = vsub.f32 %v777, %v1936
  %v2085 = vsub.f32 %v803, %v1939
  %v2086 = vsub.f32 %v829, %v1942
  %v2087 = vsub.f32 %v855, %v1945
  %v2088 = vsub.f32 %v881, %v1948
  %v2089 = vsub.f32 %v907, %v1951
  %v2090 = vsub.f32 %v933, %v1954
  %v2091 = vsub.f32 %v959, %v1957
  %v2092 = vsub.f32 %v985, %v1960
  %v2093 = vsub.f32 %v1011, %v1963
  %v2094 = vsub.f32 %v1037, %v1966
  %v2095 = vsub.f32 %v1063, %v1969
  %v2096 = vsub.f32 %v1089, %v1972
  %v2097 = vsub.f32 %v1115, %v1975
  %v2098 = vsub.f32 %v1141, %v1978
  %v2099 = vsub.f32 %v1167, %v1981
  %v2100 = vsub.f32 %v1193, %v1984
  %v2101 = vsub.f32 %v1219, %v1987
  %v2102 = vsub.f32 %v1245, %v1990
  %v2103 = vsub.f32 %v1271, %v1993
  %v2104 = vsub.f32 %v1297, %v1996
  %v2105 = vsub.f32 %v1323, %v1999
  %v2106 = vsub.f32 %v1349, %v2002
  %v2107 = vsub.f32 %v1375, %v2005
  %v2108 = vsub.f32 %v1401, %v2008
  %v2109 = vsub.f32 %v1427, %v2011
  %v2110 = vsub.f32 %v1453, %v2014
  %v2111 = vsub.f32 %v1479, %v2017
  %v2112 = vsub.f32 %v1505, %v2020
  %v2113 = vsub.f32 %v1531, %v2023
  %v2114 = vsub.f32 %v1557, %v2026
  %v2115 = vsub.f32 %v1583, %v2029
  %v2116 = vsub.f32 %v1609, %v2032
  %v2117 = vsub.f32 %v1635, %v2035
  %v2118 = vsub.f32 %v1661, %v2038
  %v2119 = vsub.f32 %v1687, %v2041
  %v2120 = vsub.f32 %v1713, %v2044
  %v2121 = vsub.f32 %v1739, %v2047
  %v2122 = vsub.f32 %v1765, %v2050
  %v2123 = vsub.f32 %v1791, %v2053
  %v2124 = vsub.f32 %v1817, %v2056
  %v2125 = vsub.f32 %v1843, %v2059
  %v2126 = vsub.f32 %v1869, %v2062
  %v2127 = vmul.f32 %v2063, 1.442695
  %v2128 = vpow.pop %v2127
  %v2129 = vmul.f32 %v2064, 1.442695
  %v2130 = vpow.pop %v2129
  %v2131 = vmul.f32 %v2065, 1.442695
  %v2132 = vpow.pop %v2131
  %v2133 = vmul.f32 %v2066, 1.442695
  %v2134 = vpow.pop %v2133
  %v2135 = vmul.f32 %v2067, 1.442695
  %v2136 = vpow.pop %v2135
  %v2137 = vmul.f32 %v2068, 1.442695
  %v2138 = vpow.pop %v2137
  %v2139 = vmul.f32 %v2069, 1.442695
  %v2140 = vpow.pop %v2139
  %v2141 = vmul.f32 %v2070, 1.442695
  %v2142 = vpow.pop %v2141
  %v2143 = vmul.f32 %v2071, 1.442695
  %v2144 = vpow.pop %v2143
  %v2145 = vmul.f32 %v2072, 1.442695
  %v2146 = vpow.pop %v2145
  %v2147 = vmul.f32 %v2073, 1.442695
  %v2148 = vpow.pop %v2147
  %v2149 = vmul.f32 %v2074, 1.442695
  %v2150 = vpow.pop %v2149
  %v2151 = vmul.f32 %v2075, 1.442695
  %v2152 = vpow.pop %v2151
  %v2153 = vmul.f32 %v2076, 1.442695
  %v2154 = vpow.pop %v2153
  %v2155 = vmul.f32 %v2077, 1.442695
  %v2156 = vpow.pop %v2155
  %v2157 = vmul.f32 %v2078, 1.442695
  %v2158 = vpow.pop %v2157
  %v2159 = vmul.f32 %v2079, 1.442695
  %v2160 = vpow.pop %v2159
  %v2161 = vmul.f32 %v2080, 1.442695
  %v2162 = vpow.pop %v2161
  %v2163 = vmul.f32 %v2081, 1.442695
  %v2164 = vpow.pop %v2163
  %v2165 = vmul.f32 %v2082, 1.442695
  %v2166 = vpow.pop %v2165
  %v2167 = vmul.f32 %v2083, 1.442695
  %v2168 = vpow.pop %v2167
  %v2169 = vmul.f32 %v2084, 1.442695
  %v2170 = vpow.pop %v2169
  %v2171 = vmul.f32 %v2085, 1.442695
  %v2172 = vpow.pop %v2171
  %v2173 = vmul.f32 %v2086, 1.442695
  %v2174 = vpow.pop %v2173
  %v2175 = vmul.f32 %v2087, 1.442695
  %v2176 = vpow.pop %v2175
  %v2177 = vmul.f32 %v2088, 1.442695
  %v2178 = vpow.pop %v2177
  %v2179 = vmul.f32 %v2089, 1.442695
  %v2180 = vpow.pop %v2179
  %v2181 = vmul.f32 %v2090, 1.442695
  %v2182 = vpow.pop %v2181
  %v2183 = vmul.f32 %v2091, 1.442695
  %v2184 = vpow.pop %v2183
  %v2185 = vmul.f32 %v2092, 1.442695
  %v2186 = vpow.pop %v2185
  %v2187 = vmul.f32 %v2093, 1.442695
  %v2188 = vpow.pop %v2187
  %v2189 = vmul.f32 %v2094, 1.442695
  %v2190 = vpow.pop %v2189
  %v2191 = vmul.f32 %v2095, 1.442695
  %v2192 = vpow.pop %v2191
  %v2193 = vmul.f32 %v2096, 1.442695
  %v2194 = vpow.pop %v2193
  %v2195 = vmul.f32 %v2097, 1.442695
  %v2196 = vpow.pop %v2195
  %v2197 = vmul.f32 %v2098, 1.442695
  %v2198 = vpow.pop %v2197
  %v2199 = vmul.f32 %v2099, 1.442695
  %v2200 = vpow.pop %v2199
  %v2201 = vmul.f32 %v2100, 1.442695
  %v2202 = vpow.pop %v2201
  %v2203 = vmul.f32 %v2101, 1.442695
  %v2204 = vpow.pop %v2203
  %v2205 = vmul.f32 %v2102, 1.442695
  %v2206 = vpow.pop %v2205
  %v2207 = vmul.f32 %v2103, 1.442695
  %v2208 = vpow.pop %v2207
  %v2209 = vmul.f32 %v2104, 1.442695
  %v2210 = vpow.pop %v2209
  %v2211 = vmul.f32 %v2105, 1.442695
  %v2212 = vpow.pop %v2211
  %v2213 = vmul.f32 %v2106, 1.442695
  %v2214 = vpow.pop %v2213
  %v2215 = vmul.f32 %v2107, 1.442695
  %v2216 = vpow.pop %v2215
  %v2217 = vmul.f32 %v2108, 1.442695
  %v2218 = vpow.pop %v2217
  %v2219 = vmul.f32 %v2109, 1.442695
  %v2220 = vpow.pop %v2219
  %v2221 = vmul.f32 %v2110, 1.442695
  %v2222 = vpow.pop %v2221
  %v2223 = vmul.f32 %v2111, 1.442695
  %v2224 = vpow.pop %v2223
  %v2225 = vmul.f32 %v2112, 1.442695
  %v2226 = vpow.pop %v2225
  %v2227 = vmul.f32 %v2113, 1.442695
  %v2228 = vpow.pop %v2227
  %v2229 = vmul.f32 %v2114, 1.442695
  %v2230 = vpow.pop %v2229
  %v2231 = vmul.f32 %v2115, 1.442695
  %v2232 = vpow.pop %v2231
  %v2233 = vmul.f32 %v2116, 1.442695
  %v2234 = vpow.pop %v2233
  %v2235 = vmul.f32 %v2117, 1.442695
  %v2236 = vpow.pop %v2235
  %v2237 = vmul.f32 %v2118, 1.442695
  %v2238 = vpow.pop %v2237
  %v2239 = vmul.f32 %v2119, 1.442695
  %v2240 = vpow.pop %v2239
  %v2241 = vmul.f32 %v2120, 1.442695
  %v2242 = vpow.pop %v2241
  %v2243 = vmul.f32 %v2121, 1.442695
  %v2244 = vpow.pop %v2243
  %v2245 = vmul.f32 %v2122, 1.442695
  %v2246 = vpow.pop %v2245
  %v2247 = vmul.f32 %v2123, 1.442695
  %v2248 = vpow.pop %v2247
  %v2249 = vmul.f32 %v2124, 1.442695
  %v2250 = vpow.pop %v2249
  %v2251 = vmul.f32 %v2125, 1.442695
  %v2252 = vpow.pop %v2251
  %v2253 = vmul.f32 %v2126, 1.442695
  %v2254 = vpow.pop %v2253
  %v2255 = vsel %vm206, %v2128, 0.0
  %2256 = vadd.xlane.f32.xlu0 %v2255
  %v2257 = vpop.xlane.xlu0 %2256
  %v2258 = vsel %vm206, %v2130, 0.0
  %2259 = vadd.xlane.f32.xlu0 %v2258
  %v2260 = vpop.xlane.xlu0 %2259
  %v2261 = vsel %vm206, %v2132, 0.0
  %2262 = vadd.xlane.f32.xlu0 %v2261
  %v2263 = vpop.xlane.xlu0 %2262
  %v2264 = vsel %vm206, %v2134, 0.0
  %2265 = vadd.xlane.f32.xlu0 %v2264
  %v2266 = vpop.xlane.xlu0 %2265
  %v2267 = vsel %vm206, %v2136, 0.0
  %2268 = vadd.xlane.f32.xlu0 %v2267
  %v2269 = vpop.xlane.xlu0 %2268
  %v2270 = vsel %vm206, %v2138, 0.0
  %2271 = vadd.xlane.f32.xlu0 %v2270
  %v2272 = vpop.xlane.xlu0 %2271
  %v2273 = vsel %vm206, %v2140, 0.0
  %2274 = vadd.xlane.f32.xlu0 %v2273
  %v2275 = vpop.xlane.xlu0 %2274
  %v2276 = vsel %vm206, %v2142, 0.0
  %2277 = vadd.xlane.f32.xlu0 %v2276
  %v2278 = vpop.xlane.xlu0 %2277
  %v2279 = vsel %vm206, %v2144, 0.0
  %2280 = vadd.xlane.f32.xlu0 %v2279
  %v2281 = vpop.xlane.xlu0 %2280
  %v2282 = vsel %vm206, %v2146, 0.0
  %2283 = vadd.xlane.f32.xlu0 %v2282
  %v2284 = vpop.xlane.xlu0 %2283
  %v2285 = vsel %vm206, %v2148, 0.0
  %2286 = vadd.xlane.f32.xlu0 %v2285
  %v2287 = vpop.xlane.xlu0 %2286
  %v2288 = vsel %vm206, %v2150, 0.0
  %2289 = vadd.xlane.f32.xlu0 %v2288
  %v2290 = vpop.xlane.xlu0 %2289
  %v2291 = vsel %vm206, %v2152, 0.0
  %2292 = vadd.xlane.f32.xlu0 %v2291
  %v2293 = vpop.xlane.xlu0 %2292
  %v2294 = vsel %vm206, %v2154, 0.0
  %2295 = vadd.xlane.f32.xlu0 %v2294
  %v2296 = vpop.xlane.xlu0 %2295
  %v2297 = vsel %vm206, %v2156, 0.0
  %2298 = vadd.xlane.f32.xlu0 %v2297
  %v2299 = vpop.xlane.xlu0 %2298
  %v2300 = vsel %vm206, %v2158, 0.0
  %2301 = vadd.xlane.f32.xlu0 %v2300
  %v2302 = vpop.xlane.xlu0 %2301
  %v2303 = vsel %vm206, %v2160, 0.0
  %2304 = vadd.xlane.f32.xlu0 %v2303
  %v2305 = vpop.xlane.xlu0 %2304
  %v2306 = vsel %vm206, %v2162, 0.0
  %2307 = vadd.xlane.f32.xlu0 %v2306
  %v2308 = vpop.xlane.xlu0 %2307
  %v2309 = vsel %vm206, %v2164, 0.0
  %2310 = vadd.xlane.f32.xlu0 %v2309
  %v2311 = vpop.xlane.xlu0 %2310
  %v2312 = vsel %vm206, %v2166, 0.0
  %2313 = vadd.xlane.f32.xlu0 %v2312
  %v2314 = vpop.xlane.xlu0 %2313
  %v2315 = vsel %vm206, %v2168, 0.0
  %2316 = vadd.xlane.f32.xlu0 %v2315
  %v2317 = vpop.xlane.xlu0 %2316
  %v2318 = vsel %vm206, %v2170, 0.0
  %2319 = vadd.xlane.f32.xlu0 %v2318
  %v2320 = vpop.xlane.xlu0 %2319
  %v2321 = vsel %vm206, %v2172, 0.0
  %2322 = vadd.xlane.f32.xlu0 %v2321
  %v2323 = vpop.xlane.xlu0 %2322
  %v2324 = vsel %vm206, %v2174, 0.0
  %2325 = vadd.xlane.f32.xlu0 %v2324
  %v2326 = vpop.xlane.xlu0 %2325
  %v2327 = vsel %vm206, %v2176, 0.0
  %2328 = vadd.xlane.f32.xlu0 %v2327
  %v2329 = vpop.xlane.xlu0 %2328
  %v2330 = vsel %vm206, %v2178, 0.0
  %2331 = vadd.xlane.f32.xlu0 %v2330
  %v2332 = vpop.xlane.xlu0 %2331
  %v2333 = vsel %vm206, %v2180, 0.0
  %2334 = vadd.xlane.f32.xlu0 %v2333
  %v2335 = vpop.xlane.xlu0 %2334
  %v2336 = vsel %vm206, %v2182, 0.0
  %2337 = vadd.xlane.f32.xlu0 %v2336
  %v2338 = vpop.xlane.xlu0 %2337
  %v2339 = vsel %vm206, %v2184, 0.0
  %2340 = vadd.xlane.f32.xlu0 %v2339
  %v2341 = vpop.xlane.xlu0 %2340
  %v2342 = vsel %vm206, %v2186, 0.0
  %2343 = vadd.xlane.f32.xlu0 %v2342
  %v2344 = vpop.xlane.xlu0 %2343
  %v2345 = vsel %vm206, %v2188, 0.0
  %2346 = vadd.xlane.f32.xlu0 %v2345
  %v2347 = vpop.xlane.xlu0 %2346
  %v2348 = vsel %vm206, %v2190, 0.0
  %2349 = vadd.xlane.f32.xlu0 %v2348
  %v2350 = vpop.xlane.xlu0 %2349
  %v2351 = vsel %vm206, %v2192, 0.0
  %2352 = vadd.xlane.f32.xlu0 %v2351
  %v2353 = vpop.xlane.xlu0 %2352
  %v2354 = vsel %vm206, %v2194, 0.0
  %2355 = vadd.xlane.f32.xlu0 %v2354
  %v2356 = vpop.xlane.xlu0 %2355
  %v2357 = vsel %vm206, %v2196, 0.0
  %2358 = vadd.xlane.f32.xlu0 %v2357
  %v2359 = vpop.xlane.xlu0 %2358
  %v2360 = vsel %vm206, %v2198, 0.0
  %2361 = vadd.xlane.f32.xlu0 %v2360
  %v2362 = vpop.xlane.xlu0 %2361
  %v2363 = vsel %vm206, %v2200, 0.0
  %2364 = vadd.xlane.f32.xlu0 %v2363
  %v2365 = vpop.xlane.xlu0 %2364
  %v2366 = vsel %vm206, %v2202, 0.0
  %2367 = vadd.xlane.f32.xlu0 %v2366
  %v2368 = vpop.xlane.xlu0 %2367
  %v2369 = vsel %vm206, %v2204, 0.0
  %2370 = vadd.xlane.f32.xlu0 %v2369
  %v2371 = vpop.xlane.xlu0 %2370
  %v2372 = vsel %vm206, %v2206, 0.0
  %2373 = vadd.xlane.f32.xlu0 %v2372
  %v2374 = vpop.xlane.xlu0 %2373
  %v2375 = vsel %vm206, %v2208, 0.0
  %2376 = vadd.xlane.f32.xlu0 %v2375
  %v2377 = vpop.xlane.xlu0 %2376
  %v2378 = vsel %vm206, %v2210, 0.0
  %2379 = vadd.xlane.f32.xlu0 %v2378
  %v2380 = vpop.xlane.xlu0 %2379
  %v2381 = vsel %vm206, %v2212, 0.0
  %2382 = vadd.xlane.f32.xlu0 %v2381
  %v2383 = vpop.xlane.xlu0 %2382
  %v2384 = vsel %vm206, %v2214, 0.0
  %2385 = vadd.xlane.f32.xlu0 %v2384
  %v2386 = vpop.xlane.xlu0 %2385
  %v2387 = vsel %vm206, %v2216, 0.0
  %2388 = vadd.xlane.f32.xlu0 %v2387
  %v2389 = vpop.xlane.xlu0 %2388
  %v2390 = vsel %vm206, %v2218, 0.0
  %2391 = vadd.xlane.f32.xlu0 %v2390
  %v2392 = vpop.xlane.xlu0 %2391
  %v2393 = vsel %vm206, %v2220, 0.0
  %2394 = vadd.xlane.f32.xlu0 %v2393
  %v2395 = vpop.xlane.xlu0 %2394
  %v2396 = vsel %vm206, %v2222, 0.0
  %2397 = vadd.xlane.f32.xlu0 %v2396
  %v2398 = vpop.xlane.xlu0 %2397
  %v2399 = vsel %vm206, %v2224, 0.0
  %2400 = vadd.xlane.f32.xlu0 %v2399
  %v2401 = vpop.xlane.xlu0 %2400
  %v2402 = vsel %vm206, %v2226, 0.0
  %2403 = vadd.xlane.f32.xlu0 %v2402
  %v2404 = vpop.xlane.xlu0 %2403
  %v2405 = vsel %vm206, %v2228, 0.0
  %2406 = vadd.xlane.f32.xlu0 %v2405
  %v2407 = vpop.xlane.xlu0 %2406
  %v2408 = vsel %vm206, %v2230, 0.0
  %2409 = vadd.xlane.f32.xlu0 %v2408
  %v2410 = vpop.xlane.xlu0 %2409
  %v2411 = vsel %vm206, %v2232, 0.0
  %2412 = vadd.xlane.f32.xlu0 %v2411
  %v2413 = vpop.xlane.xlu0 %2412
  %v2414 = vsel %vm206, %v2234, 0.0
  %2415 = vadd.xlane.f32.xlu0 %v2414
  %v2416 = vpop.xlane.xlu0 %2415
  %v2417 = vsel %vm206, %v2236, 0.0
  %2418 = vadd.xlane.f32.xlu0 %v2417
  %v2419 = vpop.xlane.xlu0 %2418
  %v2420 = vsel %vm206, %v2238, 0.0
  %2421 = vadd.xlane.f32.xlu0 %v2420
  %v2422 = vpop.xlane.xlu0 %2421
  %v2423 = vsel %vm206, %v2240, 0.0
  %2424 = vadd.xlane.f32.xlu0 %v2423
  %v2425 = vpop.xlane.xlu0 %2424
  %v2426 = vsel %vm206, %v2242, 0.0
  %2427 = vadd.xlane.f32.xlu0 %v2426
  %v2428 = vpop.xlane.xlu0 %2427
  %v2429 = vsel %vm206, %v2244, 0.0
  %2430 = vadd.xlane.f32.xlu0 %v2429
  %v2431 = vpop.xlane.xlu0 %2430
  %v2432 = vsel %vm206, %v2246, 0.0
  %2433 = vadd.xlane.f32.xlu0 %v2432
  %v2434 = vpop.xlane.xlu0 %2433
  %v2435 = vsel %vm206, %v2248, 0.0
  %2436 = vadd.xlane.f32.xlu0 %v2435
  %v2437 = vpop.xlane.xlu0 %2436
  %v2438 = vsel %vm206, %v2250, 0.0
  %2439 = vadd.xlane.f32.xlu0 %v2438
  %v2440 = vpop.xlane.xlu0 %2439
  %v2441 = vsel %vm206, %v2252, 0.0
  %2442 = vadd.xlane.f32.xlu0 %v2441
  %v2443 = vpop.xlane.xlu0 %2442
  %v2444 = vsel %vm206, %v2254, 0.0
  %2445 = vadd.xlane.f32.xlu0 %v2444
  %v2446 = vpop.xlane.xlu0 %2445
  %v2447 = vrcp.pop %v2257
  %v2448 = vrcp.pop %v2260
  %v2449 = vrcp.pop %v2263
  %v2450 = vrcp.pop %v2266
  %v2451 = vrcp.pop %v2269
  %v2452 = vrcp.pop %v2272
  %v2453 = vrcp.pop %v2275
  %v2454 = vrcp.pop %v2278
  %v2455 = vrcp.pop %v2281
  %v2456 = vrcp.pop %v2284
  %v2457 = vrcp.pop %v2287
  %v2458 = vrcp.pop %v2290
  %v2459 = vrcp.pop %v2293
  %v2460 = vrcp.pop %v2296
  %v2461 = vrcp.pop %v2299
  %v2462 = vrcp.pop %v2302
  %v2463 = vrcp.pop %v2305
  %v2464 = vrcp.pop %v2308
  %v2465 = vrcp.pop %v2311
  %v2466 = vrcp.pop %v2314
  %v2467 = vrcp.pop %v2317
  %v2468 = vrcp.pop %v2320
  %v2469 = vrcp.pop %v2323
  %v2470 = vrcp.pop %v2326
  %v2471 = vrcp.pop %v2329
  %v2472 = vrcp.pop %v2332
  %v2473 = vrcp.pop %v2335
  %v2474 = vrcp.pop %v2338
  %v2475 = vrcp.pop %v2341
  %v2476 = vrcp.pop %v2344
  %v2477 = vrcp.pop %v2347
  %v2478 = vrcp.pop %v2350
  %v2479 = vrcp.pop %v2353
  %v2480 = vrcp.pop %v2356
  %v2481 = vrcp.pop %v2359
  %v2482 = vrcp.pop %v2362
  %v2483 = vrcp.pop %v2365
  %v2484 = vrcp.pop %v2368
  %v2485 = vrcp.pop %v2371
  %v2486 = vrcp.pop %v2374
  %v2487 = vrcp.pop %v2377
  %v2488 = vrcp.pop %v2380
  %v2489 = vrcp.pop %v2383
  %v2490 = vrcp.pop %v2386
  %v2491 = vrcp.pop %v2389
  %v2492 = vrcp.pop %v2392
  %v2493 = vrcp.pop %v2395
  %v2494 = vrcp.pop %v2398
  %v2495 = vrcp.pop %v2401
  %v2496 = vrcp.pop %v2404
  %v2497 = vrcp.pop %v2407
  %v2498 = vrcp.pop %v2410
  %v2499 = vrcp.pop %v2413
  %v2500 = vrcp.pop %v2416
  %v2501 = vrcp.pop %v2419
  %v2502 = vrcp.pop %v2422
  %v2503 = vrcp.pop %v2425
  %v2504 = vrcp.pop %v2428
  %v2505 = vrcp.pop %v2431
  %v2506 = vrcp.pop %v2434
  %v2507 = vrcp.pop %v2437
  %v2508 = vrcp.pop %v2440
  %v2509 = vrcp.pop %v2443
  %v2510 = vrcp.pop %v2446
  %v2511 = vmul.f32 %v2128, %v2447
  %v2512 = vmul.f32 %v2130, %v2448
  %v2513 = vmul.f32 %v2132, %v2449
  %v2514 = vmul.f32 %v2134, %v2450
  %v2515 = vmul.f32 %v2136, %v2451
  %v2516 = vmul.f32 %v2138, %v2452
  %v2517 = vmul.f32 %v2140, %v2453
  %v2518 = vmul.f32 %v2142, %v2454
  %v2519 = vmul.f32 %v2144, %v2455
  %v2520 = vmul.f32 %v2146, %v2456
  %v2521 = vmul.f32 %v2148, %v2457
  %v2522 = vmul.f32 %v2150, %v2458
  %v2523 = vmul.f32 %v2152, %v2459
  %v2524 = vmul.f32 %v2154, %v2460
  %v2525 = vmul.f32 %v2156, %v2461
  %v2526 = vmul.f32 %v2158, %v2462
  %v2527 = vmul.f32 %v2160, %v2463
  %v2528 = vmul.f32 %v2162, %v2464
  %v2529 = vmul.f32 %v2164, %v2465
  %v2530 = vmul.f32 %v2166, %v2466
  %v2531 = vmul.f32 %v2168, %v2467
  %v2532 = vmul.f32 %v2170, %v2468
  %v2533 = vmul.f32 %v2172, %v2469
  %v2534 = vmul.f32 %v2174, %v2470
  %v2535 = vmul.f32 %v2176, %v2471
  %v2536 = vmul.f32 %v2178, %v2472
  %v2537 = vmul.f32 %v2180, %v2473
  %v2538 = vmul.f32 %v2182, %v2474
  %v2539 = vmul.f32 %v2184, %v2475
  %v2540 = vmul.f32 %v2186, %v2476
  %v2541 = vmul.f32 %v2188, %v2477
  %v2542 = vmul.f32 %v2190, %v2478
  %v2543 = vmul.f32 %v2192, %v2479
  %v2544 = vmul.f32 %v2194, %v2480
  %v2545 = vmul.f32 %v2196, %v2481
  %v2546 = vmul.f32 %v2198, %v2482
  %v2547 = vmul.f32 %v2200, %v2483
  %v2548 = vmul.f32 %v2202, %v2484
  %v2549 = vmul.f32 %v2204, %v2485
  %v2550 = vmul.f32 %v2206, %v2486
  %v2551 = vmul.f32 %v2208, %v2487
  %v2552 = vmul.f32 %v2210, %v2488
  %v2553 = vmul.f32 %v2212, %v2489
  %v2554 = vmul.f32 %v2214, %v2490
  %v2555 = vmul.f32 %v2216, %v2491
  %v2556 = vmul.f32 %v2218, %v2492
  %v2557 = vmul.f32 %v2220, %v2493
  %v2558 = vmul.f32 %v2222, %v2494
  %v2559 = vmul.f32 %v2224, %v2495
  %v2560 = vmul.f32 %v2226, %v2496
  %v2561 = vmul.f32 %v2228, %v2497
  %v2562 = vmul.f32 %v2230, %v2498
  %v2563 = vmul.f32 %v2232, %v2499
  %v2564 = vmul.f32 %v2234, %v2500
  %v2565 = vmul.f32 %v2236, %v2501
  %v2566 = vmul.f32 %v2238, %v2502
  %v2567 = vmul.f32 %v2240, %v2503
  %v2568 = vmul.f32 %v2242, %v2504
  %v2569 = vmul.f32 %v2244, %v2505
  %v2570 = vmul.f32 %v2246, %v2506
  %v2571 = vmul.f32 %v2248, %v2507
  %v2572 = vmul.f32 %v2250, %v2508
  %v2573 = vmul.f32 %v2252, %v2509
  %v2574 = vmul.f32 %v2254, %v2510
  %v2576 = vsel %vm206, %v2511, 0
  %2578 = vmatpush.msra.mxu0 0.0
  %2579 = vmatpush.msra.mxu0 0.0
  %2580 = vmatpush.msra.mxu0 0.0
  %2581 = vmatpush.msra.mxu0 0.0
  %2582 = vmatpush.msra.mxu0 0.0
  %2583 = vmatpush.msra.mxu0 0.0
  %2584 = vmatpush.msra.mxu0 0.0
  %2585 = vmatpush.msra.mxu0 0.0
  %2586 = vmatpush.msra.mxu0 0.0
  %2587 = vmatpush.msra.mxu0 0.0
  %2588 = vmatpush.msra.mxu0 0.0
  %2589 = vmatpush.msra.mxu0 0.0
  %2590 = vmatpush.msra.mxu0 0.0
  %2591 = vmatpush.msra.mxu0 0.0
  %2592 = vmatpush.msra.mxu0 0.0
  %2593 = vmatpush.msra.mxu0 %v142
  %2594 = vmatmul.f32.gmra.mxu0 %v2576
  %v2595 = vpop.f32.mrf.mxu0
  %v2596 = vadd.f32 0.0, %v2595
  %2597 = vdwg.mxu0
  %v2599 = vsel %vm206, %v2512, 0
  %2601 = vmatpush.msra.mxu0 0.0
  %2602 = vmatpush.msra.mxu0 0.0
  %2603 = vmatpush.msra.mxu0 0.0
  %2604 = vmatpush.msra.mxu0 0.0
  %2605 = vmatpush.msra.mxu0 0.0
  %2606 = vmatpush.msra.mxu0 0.0
  %2607 = vmatpush.msra.mxu0 0.0
  %2608 = vmatpush.msra.mxu0 0.0
  %2609 = vmatpush.msra.mxu0 0.0
  %2610 = vmatpush.msra.mxu0 0.0
  %2611 = vmatpush.msra.mxu0 0.0
  %2612 = vmatpush.msra.mxu0 0.0
  %2613 = vmatpush.msra.mxu0 0.0
  %2614 = vmatpush.msra.mxu0 0.0
  %2615 = vmatpush.msra.mxu0 0.0
  %2616 = vmatpush.msra.mxu0 %v143
  %2617 = vmatmul.f32.gmra.mxu0 %v2599
  %v2618 = vpop.f32.mrf.mxu0
  %v2619 = vadd.f32 0.0, %v2618
  %2620 = vdwg.mxu0
  %v2622 = vsel %vm206, %v2513, 0
  %2624 = vmatpush.msra.mxu0 0.0
  %2625 = vmatpush.msra.mxu0 0.0
  %2626 = vmatpush.msra.mxu0 0.0
  %2627 = vmatpush.msra.mxu0 0.0
  %2628 = vmatpush.msra.mxu0 0.0
  %2629 = vmatpush.msra.mxu0 0.0
  %2630 = vmatpush.msra.mxu0 0.0
  %2631 = vmatpush.msra.mxu0 0.0
  %2632 = vmatpush.msra.mxu0 0.0
  %2633 = vmatpush.msra.mxu0 0.0
  %2634 = vmatpush.msra.mxu0 0.0
  %2635 = vmatpush.msra.mxu0 0.0
  %2636 = vmatpush.msra.mxu0 0.0
  %2637 = vmatpush.msra.mxu0 0.0
  %2638 = vmatpush.msra.mxu0 0.0
  %2639 = vmatpush.msra.mxu0 %v144
  %2640 = vmatmul.f32.gmra.mxu0 %v2622
  %v2641 = vpop.f32.mrf.mxu0
  %v2642 = vadd.f32 0.0, %v2641
  %2643 = vdwg.mxu0
  %v2645 = vsel %vm206, %v2514, 0
  %2647 = vmatpush.msra.mxu0 0.0
  %2648 = vmatpush.msra.mxu0 0.0
  %2649 = vmatpush.msra.mxu0 0.0
  %2650 = vmatpush.msra.mxu0 0.0
  %2651 = vmatpush.msra.mxu0 0.0
  %2652 = vmatpush.msra.mxu0 0.0
  %2653 = vmatpush.msra.mxu0 0.0
  %2654 = vmatpush.msra.mxu0 0.0
  %2655 = vmatpush.msra.mxu0 0.0
  %2656 = vmatpush.msra.mxu0 0.0
  %2657 = vmatpush.msra.mxu0 0.0
  %2658 = vmatpush.msra.mxu0 0.0
  %2659 = vmatpush.msra.mxu0 0.0
  %2660 = vmatpush.msra.mxu0 0.0
  %2661 = vmatpush.msra.mxu0 0.0
  %2662 = vmatpush.msra.mxu0 %v145
  %2663 = vmatmul.f32.gmra.mxu0 %v2645
  %v2664 = vpop.f32.mrf.mxu0
  %v2665 = vadd.f32 0.0, %v2664
  %2666 = vdwg.mxu0
  %v2668 = vsel %vm206, %v2515, 0
  %2670 = vmatpush.msra.mxu0 0.0
  %2671 = vmatpush.msra.mxu0 0.0
  %2672 = vmatpush.msra.mxu0 0.0
  %2673 = vmatpush.msra.mxu0 0.0
  %2674 = vmatpush.msra.mxu0 0.0
  %2675 = vmatpush.msra.mxu0 0.0
  %2676 = vmatpush.msra.mxu0 0.0
  %2677 = vmatpush.msra.mxu0 0.0
  %2678 = vmatpush.msra.mxu0 0.0
  %2679 = vmatpush.msra.mxu0 0.0
  %2680 = vmatpush.msra.mxu0 0.0
  %2681 = vmatpush.msra.mxu0 0.0
  %2682 = vmatpush.msra.mxu0 0.0
  %2683 = vmatpush.msra.mxu0 0.0
  %2684 = vmatpush.msra.mxu0 0.0
  %2685 = vmatpush.msra.mxu0 %v146
  %2686 = vmatmul.f32.gmra.mxu0 %v2668
  %v2687 = vpop.f32.mrf.mxu0
  %v2688 = vadd.f32 0.0, %v2687
  %2689 = vdwg.mxu0
  %v2691 = vsel %vm206, %v2516, 0
  %2693 = vmatpush.msra.mxu0 0.0
  %2694 = vmatpush.msra.mxu0 0.0
  %2695 = vmatpush.msra.mxu0 0.0
  %2696 = vmatpush.msra.mxu0 0.0
  %2697 = vmatpush.msra.mxu0 0.0
  %2698 = vmatpush.msra.mxu0 0.0
  %2699 = vmatpush.msra.mxu0 0.0
  %2700 = vmatpush.msra.mxu0 0.0
  %2701 = vmatpush.msra.mxu0 0.0
  %2702 = vmatpush.msra.mxu0 0.0
  %2703 = vmatpush.msra.mxu0 0.0
  %2704 = vmatpush.msra.mxu0 0.0
  %2705 = vmatpush.msra.mxu0 0.0
  %2706 = vmatpush.msra.mxu0 0.0
  %2707 = vmatpush.msra.mxu0 0.0
  %2708 = vmatpush.msra.mxu0 %v147
  %2709 = vmatmul.f32.gmra.mxu0 %v2691
  %v2710 = vpop.f32.mrf.mxu0
  %v2711 = vadd.f32 0.0, %v2710
  %2712 = vdwg.mxu0
  %v2714 = vsel %vm206, %v2517, 0
  %2716 = vmatpush.msra.mxu0 0.0
  %2717 = vmatpush.msra.mxu0 0.0
  %2718 = vmatpush.msra.mxu0 0.0
  %2719 = vmatpush.msra.mxu0 0.0
  %2720 = vmatpush.msra.mxu0 0.0
  %2721 = vmatpush.msra.mxu0 0.0
  %2722 = vmatpush.msra.mxu0 0.0
  %2723 = vmatpush.msra.mxu0 0.0
  %2724 = vmatpush.msra.mxu0 0.0
  %2725 = vmatpush.msra.mxu0 0.0
  %2726 = vmatpush.msra.mxu0 0.0
  %2727 = vmatpush.msra.mxu0 0.0
  %2728 = vmatpush.msra.mxu0 0.0
  %2729 = vmatpush.msra.mxu0 0.0
  %2730 = vmatpush.msra.mxu0 0.0
  %2731 = vmatpush.msra.mxu0 %v148
  %2732 = vmatmul.f32.gmra.mxu0 %v2714
  %v2733 = vpop.f32.mrf.mxu0
  %v2734 = vadd.f32 0.0, %v2733
  %2735 = vdwg.mxu0
  %v2737 = vsel %vm206, %v2518, 0
  %2739 = vmatpush.msra.mxu0 0.0
  %2740 = vmatpush.msra.mxu0 0.0
  %2741 = vmatpush.msra.mxu0 0.0
  %2742 = vmatpush.msra.mxu0 0.0
  %2743 = vmatpush.msra.mxu0 0.0
  %2744 = vmatpush.msra.mxu0 0.0
  %2745 = vmatpush.msra.mxu0 0.0
  %2746 = vmatpush.msra.mxu0 0.0
  %2747 = vmatpush.msra.mxu0 0.0
  %2748 = vmatpush.msra.mxu0 0.0
  %2749 = vmatpush.msra.mxu0 0.0
  %2750 = vmatpush.msra.mxu0 0.0
  %2751 = vmatpush.msra.mxu0 0.0
  %2752 = vmatpush.msra.mxu0 0.0
  %2753 = vmatpush.msra.mxu0 0.0
  %2754 = vmatpush.msra.mxu0 %v149
  %2755 = vmatmul.f32.gmra.mxu0 %v2737
  %v2756 = vpop.f32.mrf.mxu0
  %v2757 = vadd.f32 0.0, %v2756
  %2758 = vdwg.mxu0
  %v2760 = vsel %vm206, %v2519, 0
  %2762 = vmatpush.msra.mxu0 0.0
  %2763 = vmatpush.msra.mxu0 0.0
  %2764 = vmatpush.msra.mxu0 0.0
  %2765 = vmatpush.msra.mxu0 0.0
  %2766 = vmatpush.msra.mxu0 0.0
  %2767 = vmatpush.msra.mxu0 0.0
  %2768 = vmatpush.msra.mxu0 0.0
  %2769 = vmatpush.msra.mxu0 0.0
  %2770 = vmatpush.msra.mxu0 0.0
  %2771 = vmatpush.msra.mxu0 0.0
  %2772 = vmatpush.msra.mxu0 0.0
  %2773 = vmatpush.msra.mxu0 0.0
  %2774 = vmatpush.msra.mxu0 0.0
  %2775 = vmatpush.msra.mxu0 0.0
  %2776 = vmatpush.msra.mxu0 0.0
  %2777 = vmatpush.msra.mxu0 %v150
  %2778 = vmatmul.f32.gmra.mxu0 %v2760
  %v2779 = vpop.f32.mrf.mxu0
  %v2780 = vadd.f32 0.0, %v2779
  %2781 = vdwg.mxu0
  %v2783 = vsel %vm206, %v2520, 0
  %2785 = vmatpush.msra.mxu0 0.0
  %2786 = vmatpush.msra.mxu0 0.0
  %2787 = vmatpush.msra.mxu0 0.0
  %2788 = vmatpush.msra.mxu0 0.0
  %2789 = vmatpush.msra.mxu0 0.0
  %2790 = vmatpush.msra.mxu0 0.0
  %2791 = vmatpush.msra.mxu0 0.0
  %2792 = vmatpush.msra.mxu0 0.0
  %2793 = vmatpush.msra.mxu0 0.0
  %2794 = vmatpush.msra.mxu0 0.0
  %2795 = vmatpush.msra.mxu0 0.0
  %2796 = vmatpush.msra.mxu0 0.0
  %2797 = vmatpush.msra.mxu0 0.0
  %2798 = vmatpush.msra.mxu0 0.0
  %2799 = vmatpush.msra.mxu0 0.0
  %2800 = vmatpush.msra.mxu0 %v151
  %2801 = vmatmul.f32.gmra.mxu0 %v2783
  %v2802 = vpop.f32.mrf.mxu0
  %v2803 = vadd.f32 0.0, %v2802
  %2804 = vdwg.mxu0
  %v2806 = vsel %vm206, %v2521, 0
  %2808 = vmatpush.msra.mxu0 0.0
  %2809 = vmatpush.msra.mxu0 0.0
  %2810 = vmatpush.msra.mxu0 0.0
  %2811 = vmatpush.msra.mxu0 0.0
  %2812 = vmatpush.msra.mxu0 0.0
  %2813 = vmatpush.msra.mxu0 0.0
  %2814 = vmatpush.msra.mxu0 0.0
  %2815 = vmatpush.msra.mxu0 0.0
  %2816 = vmatpush.msra.mxu0 0.0
  %2817 = vmatpush.msra.mxu0 0.0
  %2818 = vmatpush.msra.mxu0 0.0
  %2819 = vmatpush.msra.mxu0 0.0
  %2820 = vmatpush.msra.mxu0 0.0
  %2821 = vmatpush.msra.mxu0 0.0
  %2822 = vmatpush.msra.mxu0 0.0
  %2823 = vmatpush.msra.mxu0 %v152
  %2824 = vmatmul.f32.gmra.mxu0 %v2806
  %v2825 = vpop.f32.mrf.mxu0
  %v2826 = vadd.f32 0.0, %v2825
  %2827 = vdwg.mxu0
  %v2829 = vsel %vm206, %v2522, 0
  %2831 = vmatpush.msra.mxu0 0.0
  %2832 = vmatpush.msra.mxu0 0.0
  %2833 = vmatpush.msra.mxu0 0.0
  %2834 = vmatpush.msra.mxu0 0.0
  %2835 = vmatpush.msra.mxu0 0.0
  %2836 = vmatpush.msra.mxu0 0.0
  %2837 = vmatpush.msra.mxu0 0.0
  %2838 = vmatpush.msra.mxu0 0.0
  %2839 = vmatpush.msra.mxu0 0.0
  %2840 = vmatpush.msra.mxu0 0.0
  %2841 = vmatpush.msra.mxu0 0.0
  %2842 = vmatpush.msra.mxu0 0.0
  %2843 = vmatpush.msra.mxu0 0.0
  %2844 = vmatpush.msra.mxu0 0.0
  %2845 = vmatpush.msra.mxu0 0.0
  %2846 = vmatpush.msra.mxu0 %v153
  %2847 = vmatmul.f32.gmra.mxu0 %v2829
  %v2848 = vpop.f32.mrf.mxu0
  %v2849 = vadd.f32 0.0, %v2848
  %2850 = vdwg.mxu0
  %v2852 = vsel %vm206, %v2523, 0
  %2854 = vmatpush.msra.mxu0 0.0
  %2855 = vmatpush.msra.mxu0 0.0
  %2856 = vmatpush.msra.mxu0 0.0
  %2857 = vmatpush.msra.mxu0 0.0
  %2858 = vmatpush.msra.mxu0 0.0
  %2859 = vmatpush.msra.mxu0 0.0
  %2860 = vmatpush.msra.mxu0 0.0
  %2861 = vmatpush.msra.mxu0 0.0
  %2862 = vmatpush.msra.mxu0 0.0
  %2863 = vmatpush.msra.mxu0 0.0
  %2864 = vmatpush.msra.mxu0 0.0
  %2865 = vmatpush.msra.mxu0 0.0
  %2866 = vmatpush.msra.mxu0 0.0
  %2867 = vmatpush.msra.mxu0 0.0
  %2868 = vmatpush.msra.mxu0 0.0
  %2869 = vmatpush.msra.mxu0 %v154
  %2870 = vmatmul.f32.gmra.mxu0 %v2852
  %v2871 = vpop.f32.mrf.mxu0
  %v2872 = vadd.f32 0.0, %v2871
  %2873 = vdwg.mxu0
  %v2875 = vsel %vm206, %v2524, 0
  %2877 = vmatpush.msra.mxu0 0.0
  %2878 = vmatpush.msra.mxu0 0.0
  %2879 = vmatpush.msra.mxu0 0.0
  %2880 = vmatpush.msra.mxu0 0.0
  %2881 = vmatpush.msra.mxu0 0.0
  %2882 = vmatpush.msra.mxu0 0.0
  %2883 = vmatpush.msra.mxu0 0.0
  %2884 = vmatpush.msra.mxu0 0.0
  %2885 = vmatpush.msra.mxu0 0.0
  %2886 = vmatpush.msra.mxu0 0.0
  %2887 = vmatpush.msra.mxu0 0.0
  %2888 = vmatpush.msra.mxu0 0.0
  %2889 = vmatpush.msra.mxu0 0.0
  %2890 = vmatpush.msra.mxu0 0.0
  %2891 = vmatpush.msra.mxu0 0.0
  %2892 = vmatpush.msra.mxu0 %v155
  %2893 = vmatmul.f32.gmra.mxu0 %v2875
  %v2894 = vpop.f32.mrf.mxu0
  %v2895 = vadd.f32 0.0, %v2894
  %2896 = vdwg.mxu0
  %v2898 = vsel %vm206, %v2525, 0
  %2900 = vmatpush.msra.mxu0 0.0
  %2901 = vmatpush.msra.mxu0 0.0
  %2902 = vmatpush.msra.mxu0 0.0
  %2903 = vmatpush.msra.mxu0 0.0
  %2904 = vmatpush.msra.mxu0 0.0
  %2905 = vmatpush.msra.mxu0 0.0
  %2906 = vmatpush.msra.mxu0 0.0
  %2907 = vmatpush.msra.mxu0 0.0
  %2908 = vmatpush.msra.mxu0 0.0
  %2909 = vmatpush.msra.mxu0 0.0
  %2910 = vmatpush.msra.mxu0 0.0
  %2911 = vmatpush.msra.mxu0 0.0
  %2912 = vmatpush.msra.mxu0 0.0
  %2913 = vmatpush.msra.mxu0 0.0
  %2914 = vmatpush.msra.mxu0 0.0
  %2915 = vmatpush.msra.mxu0 %v156
  %2916 = vmatmul.f32.gmra.mxu0 %v2898
  %v2917 = vpop.f32.mrf.mxu0
  %v2918 = vadd.f32 0.0, %v2917
  %2919 = vdwg.mxu0
  %v2921 = vsel %vm206, %v2526, 0
  %2923 = vmatpush.msra.mxu0 0.0
  %2924 = vmatpush.msra.mxu0 0.0
  %2925 = vmatpush.msra.mxu0 0.0
  %2926 = vmatpush.msra.mxu0 0.0
  %2927 = vmatpush.msra.mxu0 0.0
  %2928 = vmatpush.msra.mxu0 0.0
  %2929 = vmatpush.msra.mxu0 0.0
  %2930 = vmatpush.msra.mxu0 0.0
  %2931 = vmatpush.msra.mxu0 0.0
  %2932 = vmatpush.msra.mxu0 0.0
  %2933 = vmatpush.msra.mxu0 0.0
  %2934 = vmatpush.msra.mxu0 0.0
  %2935 = vmatpush.msra.mxu0 0.0
  %2936 = vmatpush.msra.mxu0 0.0
  %2937 = vmatpush.msra.mxu0 0.0
  %2938 = vmatpush.msra.mxu0 %v157
  %2939 = vmatmul.f32.gmra.mxu0 %v2921
  %v2940 = vpop.f32.mrf.mxu0
  %v2941 = vadd.f32 0.0, %v2940
  %2942 = vdwg.mxu0
  %v2944 = vsel %vm206, %v2527, 0
  %2946 = vmatpush.msra.mxu0 0.0
  %2947 = vmatpush.msra.mxu0 0.0
  %2948 = vmatpush.msra.mxu0 0.0
  %2949 = vmatpush.msra.mxu0 0.0
  %2950 = vmatpush.msra.mxu0 0.0
  %2951 = vmatpush.msra.mxu0 0.0
  %2952 = vmatpush.msra.mxu0 0.0
  %2953 = vmatpush.msra.mxu0 0.0
  %2954 = vmatpush.msra.mxu0 0.0
  %2955 = vmatpush.msra.mxu0 0.0
  %2956 = vmatpush.msra.mxu0 0.0
  %2957 = vmatpush.msra.mxu0 0.0
  %2958 = vmatpush.msra.mxu0 0.0
  %2959 = vmatpush.msra.mxu0 0.0
  %2960 = vmatpush.msra.mxu0 0.0
  %2961 = vmatpush.msra.mxu0 %v158
  %2962 = vmatmul.f32.gmra.mxu0 %v2944
  %v2963 = vpop.f32.mrf.mxu0
  %v2964 = vadd.f32 0.0, %v2963
  %2965 = vdwg.mxu0
  %v2967 = vsel %vm206, %v2528, 0
  %2969 = vmatpush.msra.mxu0 0.0
  %2970 = vmatpush.msra.mxu0 0.0
  %2971 = vmatpush.msra.mxu0 0.0
  %2972 = vmatpush.msra.mxu0 0.0
  %2973 = vmatpush.msra.mxu0 0.0
  %2974 = vmatpush.msra.mxu0 0.0
  %2975 = vmatpush.msra.mxu0 0.0
  %2976 = vmatpush.msra.mxu0 0.0
  %2977 = vmatpush.msra.mxu0 0.0
  %2978 = vmatpush.msra.mxu0 0.0
  %2979 = vmatpush.msra.mxu0 0.0
  %2980 = vmatpush.msra.mxu0 0.0
  %2981 = vmatpush.msra.mxu0 0.0
  %2982 = vmatpush.msra.mxu0 0.0
  %2983 = vmatpush.msra.mxu0 0.0
  %2984 = vmatpush.msra.mxu0 %v159
  %2985 = vmatmul.f32.gmra.mxu0 %v2967
  %v2986 = vpop.f32.mrf.mxu0
  %v2987 = vadd.f32 0.0, %v2986
  %2988 = vdwg.mxu0
  %v2990 = vsel %vm206, %v2529, 0
  %2992 = vmatpush.msra.mxu0 0.0
  %2993 = vmatpush.msra.mxu0 0.0
  %2994 = vmatpush.msra.mxu0 0.0
  %2995 = vmatpush.msra.mxu0 0.0
  %2996 = vmatpush.msra.mxu0 0.0
  %2997 = vmatpush.msra.mxu0 0.0
  %2998 = vmatpush.msra.mxu0 0.0
  %2999 = vmatpush.msra.mxu0 0.0
  %3000 = vmatpush.msra.mxu0 0.0
  %3001 = vmatpush.msra.mxu0 0.0
  %3002 = vmatpush.msra.mxu0 0.0
  %3003 = vmatpush.msra.mxu0 0.0
  %3004 = vmatpush.msra.mxu0 0.0
  %3005 = vmatpush.msra.mxu0 0.0
  %3006 = vmatpush.msra.mxu0 0.0
  %3007 = vmatpush.msra.mxu0 %v160
  %3008 = vmatmul.f32.gmra.mxu0 %v2990
  %v3009 = vpop.f32.mrf.mxu0
  %v3010 = vadd.f32 0.0, %v3009
  %3011 = vdwg.mxu0
  %v3013 = vsel %vm206, %v2530, 0
  %3015 = vmatpush.msra.mxu0 0.0
  %3016 = vmatpush.msra.mxu0 0.0
  %3017 = vmatpush.msra.mxu0 0.0
  %3018 = vmatpush.msra.mxu0 0.0
  %3019 = vmatpush.msra.mxu0 0.0
  %3020 = vmatpush.msra.mxu0 0.0
  %3021 = vmatpush.msra.mxu0 0.0
  %3022 = vmatpush.msra.mxu0 0.0
  %3023 = vmatpush.msra.mxu0 0.0
  %3024 = vmatpush.msra.mxu0 0.0
  %3025 = vmatpush.msra.mxu0 0.0
  %3026 = vmatpush.msra.mxu0 0.0
  %3027 = vmatpush.msra.mxu0 0.0
  %3028 = vmatpush.msra.mxu0 0.0
  %3029 = vmatpush.msra.mxu0 0.0
  %3030 = vmatpush.msra.mxu0 %v161
  %3031 = vmatmul.f32.gmra.mxu0 %v3013
  %v3032 = vpop.f32.mrf.mxu0
  %v3033 = vadd.f32 0.0, %v3032
  %3034 = vdwg.mxu0
  %v3036 = vsel %vm206, %v2531, 0
  %3038 = vmatpush.msra.mxu0 0.0
  %3039 = vmatpush.msra.mxu0 0.0
  %3040 = vmatpush.msra.mxu0 0.0
  %3041 = vmatpush.msra.mxu0 0.0
  %3042 = vmatpush.msra.mxu0 0.0
  %3043 = vmatpush.msra.mxu0 0.0
  %3044 = vmatpush.msra.mxu0 0.0
  %3045 = vmatpush.msra.mxu0 0.0
  %3046 = vmatpush.msra.mxu0 0.0
  %3047 = vmatpush.msra.mxu0 0.0
  %3048 = vmatpush.msra.mxu0 0.0
  %3049 = vmatpush.msra.mxu0 0.0
  %3050 = vmatpush.msra.mxu0 0.0
  %3051 = vmatpush.msra.mxu0 0.0
  %3052 = vmatpush.msra.mxu0 0.0
  %3053 = vmatpush.msra.mxu0 %v162
  %3054 = vmatmul.f32.gmra.mxu0 %v3036
  %v3055 = vpop.f32.mrf.mxu0
  %v3056 = vadd.f32 0.0, %v3055
  %3057 = vdwg.mxu0
  %v3059 = vsel %vm206, %v2532, 0
  %3061 = vmatpush.msra.mxu0 0.0
  %3062 = vmatpush.msra.mxu0 0.0
  %3063 = vmatpush.msra.mxu0 0.0
  %3064 = vmatpush.msra.mxu0 0.0
  %3065 = vmatpush.msra.mxu0 0.0
  %3066 = vmatpush.msra.mxu0 0.0
  %3067 = vmatpush.msra.mxu0 0.0
  %3068 = vmatpush.msra.mxu0 0.0
  %3069 = vmatpush.msra.mxu0 0.0
  %3070 = vmatpush.msra.mxu0 0.0
  %3071 = vmatpush.msra.mxu0 0.0
  %3072 = vmatpush.msra.mxu0 0.0
  %3073 = vmatpush.msra.mxu0 0.0
  %3074 = vmatpush.msra.mxu0 0.0
  %3075 = vmatpush.msra.mxu0 0.0
  %3076 = vmatpush.msra.mxu0 %v163
  %3077 = vmatmul.f32.gmra.mxu0 %v3059
  %v3078 = vpop.f32.mrf.mxu0
  %v3079 = vadd.f32 0.0, %v3078
  %3080 = vdwg.mxu0
  %v3082 = vsel %vm206, %v2533, 0
  %3084 = vmatpush.msra.mxu0 0.0
  %3085 = vmatpush.msra.mxu0 0.0
  %3086 = vmatpush.msra.mxu0 0.0
  %3087 = vmatpush.msra.mxu0 0.0
  %3088 = vmatpush.msra.mxu0 0.0
  %3089 = vmatpush.msra.mxu0 0.0
  %3090 = vmatpush.msra.mxu0 0.0
  %3091 = vmatpush.msra.mxu0 0.0
  %3092 = vmatpush.msra.mxu0 0.0
  %3093 = vmatpush.msra.mxu0 0.0
  %3094 = vmatpush.msra.mxu0 0.0
  %3095 = vmatpush.msra.mxu0 0.0
  %3096 = vmatpush.msra.mxu0 0.0
  %3097 = vmatpush.msra.mxu0 0.0
  %3098 = vmatpush.msra.mxu0 0.0
  %3099 = vmatpush.msra.mxu0 %v164
  %3100 = vmatmul.f32.gmra.mxu0 %v3082
  %v3101 = vpop.f32.mrf.mxu0
  %v3102 = vadd.f32 0.0, %v3101
  %3103 = vdwg.mxu0
  %v3105 = vsel %vm206, %v2534, 0
  %3107 = vmatpush.msra.mxu0 0.0
  %3108 = vmatpush.msra.mxu0 0.0
  %3109 = vmatpush.msra.mxu0 0.0
  %3110 = vmatpush.msra.mxu0 0.0
  %3111 = vmatpush.msra.mxu0 0.0
  %3112 = vmatpush.msra.mxu0 0.0
  %3113 = vmatpush.msra.mxu0 0.0
  %3114 = vmatpush.msra.mxu0 0.0
  %3115 = vmatpush.msra.mxu0 0.0
  %3116 = vmatpush.msra.mxu0 0.0
  %3117 = vmatpush.msra.mxu0 0.0
  %3118 = vmatpush.msra.mxu0 0.0
  %3119 = vmatpush.msra.mxu0 0.0
  %3120 = vmatpush.msra.mxu0 0.0
  %3121 = vmatpush.msra.mxu0 0.0
  %3122 = vmatpush.msra.mxu0 %v165
  %3123 = vmatmul.f32.gmra.mxu0 %v3105
  %v3124 = vpop.f32.mrf.mxu0
  %v3125 = vadd.f32 0.0, %v3124
  %3126 = vdwg.mxu0
  %v3128 = vsel %vm206, %v2535, 0
  %3130 = vmatpush.msra.mxu0 0.0
  %3131 = vmatpush.msra.mxu0 0.0
  %3132 = vmatpush.msra.mxu0 0.0
  %3133 = vmatpush.msra.mxu0 0.0
  %3134 = vmatpush.msra.mxu0 0.0
  %3135 = vmatpush.msra.mxu0 0.0
  %3136 = vmatpush.msra.mxu0 0.0
  %3137 = vmatpush.msra.mxu0 0.0
  %3138 = vmatpush.msra.mxu0 0.0
  %3139 = vmatpush.msra.mxu0 0.0
  %3140 = vmatpush.msra.mxu0 0.0
  %3141 = vmatpush.msra.mxu0 0.0
  %3142 = vmatpush.msra.mxu0 0.0
  %3143 = vmatpush.msra.mxu0 0.0
  %3144 = vmatpush.msra.mxu0 0.0
  %3145 = vmatpush.msra.mxu0 %v166
  %3146 = vmatmul.f32.gmra.mxu0 %v3128
  %v3147 = vpop.f32.mrf.mxu0
  %v3148 = vadd.f32 0.0, %v3147
  %3149 = vdwg.mxu0
  %v3151 = vsel %vm206, %v2536, 0
  %3153 = vmatpush.msra.mxu0 0.0
  %3154 = vmatpush.msra.mxu0 0.0
  %3155 = vmatpush.msra.mxu0 0.0
  %3156 = vmatpush.msra.mxu0 0.0
  %3157 = vmatpush.msra.mxu0 0.0
  %3158 = vmatpush.msra.mxu0 0.0
  %3159 = vmatpush.msra.mxu0 0.0
  %3160 = vmatpush.msra.mxu0 0.0
  %3161 = vmatpush.msra.mxu0 0.0
  %3162 = vmatpush.msra.mxu0 0.0
  %3163 = vmatpush.msra.mxu0 0.0
  %3164 = vmatpush.msra.mxu0 0.0
  %3165 = vmatpush.msra.mxu0 0.0
  %3166 = vmatpush.msra.mxu0 0.0
  %3167 = vmatpush.msra.mxu0 0.0
  %3168 = vmatpush.msra.mxu0 %v167
  %3169 = vmatmul.f32.gmra.mxu0 %v3151
  %v3170 = vpop.f32.mrf.mxu0
  %v3171 = vadd.f32 0.0, %v3170
  %3172 = vdwg.mxu0
  %v3174 = vsel %vm206, %v2537, 0
  %3176 = vmatpush.msra.mxu0 0.0
  %3177 = vmatpush.msra.mxu0 0.0
  %3178 = vmatpush.msra.mxu0 0.0
  %3179 = vmatpush.msra.mxu0 0.0
  %3180 = vmatpush.msra.mxu0 0.0
  %3181 = vmatpush.msra.mxu0 0.0
  %3182 = vmatpush.msra.mxu0 0.0
  %3183 = vmatpush.msra.mxu0 0.0
  %3184 = vmatpush.msra.mxu0 0.0
  %3185 = vmatpush.msra.mxu0 0.0
  %3186 = vmatpush.msra.mxu0 0.0
  %3187 = vmatpush.msra.mxu0 0.0
  %3188 = vmatpush.msra.mxu0 0.0
  %3189 = vmatpush.msra.mxu0 0.0
  %3190 = vmatpush.msra.mxu0 0.0
  %3191 = vmatpush.msra.mxu0 %v168
  %3192 = vmatmul.f32.gmra.mxu0 %v3174
  %v3193 = vpop.f32.mrf.mxu0
  %v3194 = vadd.f32 0.0, %v3193
  %3195 = vdwg.mxu0
  %v3197 = vsel %vm206, %v2538, 0
  %3199 = vmatpush.msra.mxu0 0.0
  %3200 = vmatpush.msra.mxu0 0.0
  %3201 = vmatpush.msra.mxu0 0.0
  %3202 = vmatpush.msra.mxu0 0.0
  %3203 = vmatpush.msra.mxu0 0.0
  %3204 = vmatpush.msra.mxu0 0.0
  %3205 = vmatpush.msra.mxu0 0.0
  %3206 = vmatpush.msra.mxu0 0.0
  %3207 = vmatpush.msra.mxu0 0.0
  %3208 = vmatpush.msra.mxu0 0.0
  %3209 = vmatpush.msra.mxu0 0.0
  %3210 = vmatpush.msra.mxu0 0.0
  %3211 = vmatpush.msra.mxu0 0.0
  %3212 = vmatpush.msra.mxu0 0.0
  %3213 = vmatpush.msra.mxu0 0.0
  %3214 = vmatpush.msra.mxu0 %v169
  %3215 = vmatmul.f32.gmra.mxu0 %v3197
  %v3216 = vpop.f32.mrf.mxu0
  %v3217 = vadd.f32 0.0, %v3216
  %3218 = vdwg.mxu0
  %v3220 = vsel %vm206, %v2539, 0
  %3222 = vmatpush.msra.mxu0 0.0
  %3223 = vmatpush.msra.mxu0 0.0
  %3224 = vmatpush.msra.mxu0 0.0
  %3225 = vmatpush.msra.mxu0 0.0
  %3226 = vmatpush.msra.mxu0 0.0
  %3227 = vmatpush.msra.mxu0 0.0
  %3228 = vmatpush.msra.mxu0 0.0
  %3229 = vmatpush.msra.mxu0 0.0
  %3230 = vmatpush.msra.mxu0 0.0
  %3231 = vmatpush.msra.mxu0 0.0
  %3232 = vmatpush.msra.mxu0 0.0
  %3233 = vmatpush.msra.mxu0 0.0
  %3234 = vmatpush.msra.mxu0 0.0
  %3235 = vmatpush.msra.mxu0 0.0
  %3236 = vmatpush.msra.mxu0 0.0
  %3237 = vmatpush.msra.mxu0 %v170
  %3238 = vmatmul.f32.gmra.mxu0 %v3220
  %v3239 = vpop.f32.mrf.mxu0
  %v3240 = vadd.f32 0.0, %v3239
  %3241 = vdwg.mxu0
  %v3243 = vsel %vm206, %v2540, 0
  %3245 = vmatpush.msra.mxu0 0.0
  %3246 = vmatpush.msra.mxu0 0.0
  %3247 = vmatpush.msra.mxu0 0.0
  %3248 = vmatpush.msra.mxu0 0.0
  %3249 = vmatpush.msra.mxu0 0.0
  %3250 = vmatpush.msra.mxu0 0.0
  %3251 = vmatpush.msra.mxu0 0.0
  %3252 = vmatpush.msra.mxu0 0.0
  %3253 = vmatpush.msra.mxu0 0.0
  %3254 = vmatpush.msra.mxu0 0.0
  %3255 = vmatpush.msra.mxu0 0.0
  %3256 = vmatpush.msra.mxu0 0.0
  %3257 = vmatpush.msra.mxu0 0.0
  %3258 = vmatpush.msra.mxu0 0.0
  %3259 = vmatpush.msra.mxu0 0.0
  %3260 = vmatpush.msra.mxu0 %v171
  %3261 = vmatmul.f32.gmra.mxu0 %v3243
  %v3262 = vpop.f32.mrf.mxu0
  %v3263 = vadd.f32 0.0, %v3262
  %3264 = vdwg.mxu0
  %v3266 = vsel %vm206, %v2541, 0
  %3268 = vmatpush.msra.mxu0 0.0
  %3269 = vmatpush.msra.mxu0 0.0
  %3270 = vmatpush.msra.mxu0 0.0
  %3271 = vmatpush.msra.mxu0 0.0
  %3272 = vmatpush.msra.mxu0 0.0
  %3273 = vmatpush.msra.mxu0 0.0
  %3274 = vmatpush.msra.mxu0 0.0
  %3275 = vmatpush.msra.mxu0 0.0
  %3276 = vmatpush.msra.mxu0 0.0
  %3277 = vmatpush.msra.mxu0 0.0
  %3278 = vmatpush.msra.mxu0 0.0
  %3279 = vmatpush.msra.mxu0 0.0
  %3280 = vmatpush.msra.mxu0 0.0
  %3281 = vmatpush.msra.mxu0 0.0
  %3282 = vmatpush.msra.mxu0 0.0
  %3283 = vmatpush.msra.mxu0 %v172
  %3284 = vmatmul.f32.gmra.mxu0 %v3266
  %v3285 = vpop.f32.mrf.mxu0
  %v3286 = vadd.f32 0.0, %v3285
  %3287 = vdwg.mxu0
  %v3289 = vsel %vm206, %v2542, 0
  %3291 = vmatpush.msra.mxu0 0.0
  %3292 = vmatpush.msra.mxu0 0.0
  %3293 = vmatpush.msra.mxu0 0.0
  %3294 = vmatpush.msra.mxu0 0.0
  %3295 = vmatpush.msra.mxu0 0.0
  %3296 = vmatpush.msra.mxu0 0.0
  %3297 = vmatpush.msra.mxu0 0.0
  %3298 = vmatpush.msra.mxu0 0.0
  %3299 = vmatpush.msra.mxu0 0.0
  %3300 = vmatpush.msra.mxu0 0.0
  %3301 = vmatpush.msra.mxu0 0.0
  %3302 = vmatpush.msra.mxu0 0.0
  %3303 = vmatpush.msra.mxu0 0.0
  %3304 = vmatpush.msra.mxu0 0.0
  %3305 = vmatpush.msra.mxu0 0.0
  %3306 = vmatpush.msra.mxu0 %v173
  %3307 = vmatmul.f32.gmra.mxu0 %v3289
  %v3308 = vpop.f32.mrf.mxu0
  %v3309 = vadd.f32 0.0, %v3308
  %3310 = vdwg.mxu0
  %v3312 = vsel %vm206, %v2543, 0
  %3314 = vmatpush.msra.mxu0 0.0
  %3315 = vmatpush.msra.mxu0 0.0
  %3316 = vmatpush.msra.mxu0 0.0
  %3317 = vmatpush.msra.mxu0 0.0
  %3318 = vmatpush.msra.mxu0 0.0
  %3319 = vmatpush.msra.mxu0 0.0
  %3320 = vmatpush.msra.mxu0 0.0
  %3321 = vmatpush.msra.mxu0 0.0
  %3322 = vmatpush.msra.mxu0 0.0
  %3323 = vmatpush.msra.mxu0 0.0
  %3324 = vmatpush.msra.mxu0 0.0
  %3325 = vmatpush.msra.mxu0 0.0
  %3326 = vmatpush.msra.mxu0 0.0
  %3327 = vmatpush.msra.mxu0 0.0
  %3328 = vmatpush.msra.mxu0 0.0
  %3329 = vmatpush.msra.mxu0 %v174
  %3330 = vmatmul.f32.gmra.mxu0 %v3312
  %v3331 = vpop.f32.mrf.mxu0
  %v3332 = vadd.f32 0.0, %v3331
  %3333 = vdwg.mxu0
  %v3335 = vsel %vm206, %v2544, 0
  %3337 = vmatpush.msra.mxu0 0.0
  %3338 = vmatpush.msra.mxu0 0.0
  %3339 = vmatpush.msra.mxu0 0.0
  %3340 = vmatpush.msra.mxu0 0.0
  %3341 = vmatpush.msra.mxu0 0.0
  %3342 = vmatpush.msra.mxu0 0.0
  %3343 = vmatpush.msra.mxu0 0.0
  %3344 = vmatpush.msra.mxu0 0.0
  %3345 = vmatpush.msra.mxu0 0.0
  %3346 = vmatpush.msra.mxu0 0.0
  %3347 = vmatpush.msra.mxu0 0.0
  %3348 = vmatpush.msra.mxu0 0.0
  %3349 = vmatpush.msra.mxu0 0.0
  %3350 = vmatpush.msra.mxu0 0.0
  %3351 = vmatpush.msra.mxu0 0.0
  %3352 = vmatpush.msra.mxu0 %v175
  %3353 = vmatmul.f32.gmra.mxu0 %v3335
  %v3354 = vpop.f32.mrf.mxu0
  %v3355 = vadd.f32 0.0, %v3354
  %3356 = vdwg.mxu0
  %v3358 = vsel %vm206, %v2545, 0
  %3360 = vmatpush.msra.mxu0 0.0
  %3361 = vmatpush.msra.mxu0 0.0
  %3362 = vmatpush.msra.mxu0 0.0
  %3363 = vmatpush.msra.mxu0 0.0
  %3364 = vmatpush.msra.mxu0 0.0
  %3365 = vmatpush.msra.mxu0 0.0
  %3366 = vmatpush.msra.mxu0 0.0
  %3367 = vmatpush.msra.mxu0 0.0
  %3368 = vmatpush.msra.mxu0 0.0
  %3369 = vmatpush.msra.mxu0 0.0
  %3370 = vmatpush.msra.mxu0 0.0
  %3371 = vmatpush.msra.mxu0 0.0
  %3372 = vmatpush.msra.mxu0 0.0
  %3373 = vmatpush.msra.mxu0 0.0
  %3374 = vmatpush.msra.mxu0 0.0
  %3375 = vmatpush.msra.mxu0 %v176
  %3376 = vmatmul.f32.gmra.mxu0 %v3358
  %v3377 = vpop.f32.mrf.mxu0
  %v3378 = vadd.f32 0.0, %v3377
  %3379 = vdwg.mxu0
  %v3381 = vsel %vm206, %v2546, 0
  %3383 = vmatpush.msra.mxu0 0.0
  %3384 = vmatpush.msra.mxu0 0.0
  %3385 = vmatpush.msra.mxu0 0.0
  %3386 = vmatpush.msra.mxu0 0.0
  %3387 = vmatpush.msra.mxu0 0.0
  %3388 = vmatpush.msra.mxu0 0.0
  %3389 = vmatpush.msra.mxu0 0.0
  %3390 = vmatpush.msra.mxu0 0.0
  %3391 = vmatpush.msra.mxu0 0.0
  %3392 = vmatpush.msra.mxu0 0.0
  %3393 = vmatpush.msra.mxu0 0.0
  %3394 = vmatpush.msra.mxu0 0.0
  %3395 = vmatpush.msra.mxu0 0.0
  %3396 = vmatpush.msra.mxu0 0.0
  %3397 = vmatpush.msra.mxu0 0.0
  %3398 = vmatpush.msra.mxu0 %v177
  %3399 = vmatmul.f32.gmra.mxu0 %v3381
  %v3400 = vpop.f32.mrf.mxu0
  %v3401 = vadd.f32 0.0, %v3400
  %3402 = vdwg.mxu0
  %v3404 = vsel %vm206, %v2547, 0
  %3406 = vmatpush.msra.mxu0 0.0
  %3407 = vmatpush.msra.mxu0 0.0
  %3408 = vmatpush.msra.mxu0 0.0
  %3409 = vmatpush.msra.mxu0 0.0
  %3410 = vmatpush.msra.mxu0 0.0
  %3411 = vmatpush.msra.mxu0 0.0
  %3412 = vmatpush.msra.mxu0 0.0
  %3413 = vmatpush.msra.mxu0 0.0
  %3414 = vmatpush.msra.mxu0 0.0
  %3415 = vmatpush.msra.mxu0 0.0
  %3416 = vmatpush.msra.mxu0 0.0
  %3417 = vmatpush.msra.mxu0 0.0
  %3418 = vmatpush.msra.mxu0 0.0
  %3419 = vmatpush.msra.mxu0 0.0
  %3420 = vmatpush.msra.mxu0 0.0
  %3421 = vmatpush.msra.mxu0 %v178
  %3422 = vmatmul.f32.gmra.mxu0 %v3404
  %v3423 = vpop.f32.mrf.mxu0
  %v3424 = vadd.f32 0.0, %v3423
  %3425 = vdwg.mxu0
  %v3427 = vsel %vm206, %v2548, 0
  %3429 = vmatpush.msra.mxu0 0.0
  %3430 = vmatpush.msra.mxu0 0.0
  %3431 = vmatpush.msra.mxu0 0.0
  %3432 = vmatpush.msra.mxu0 0.0
  %3433 = vmatpush.msra.mxu0 0.0
  %3434 = vmatpush.msra.mxu0 0.0
  %3435 = vmatpush.msra.mxu0 0.0
  %3436 = vmatpush.msra.mxu0 0.0
  %3437 = vmatpush.msra.mxu0 0.0
  %3438 = vmatpush.msra.mxu0 0.0
  %3439 = vmatpush.msra.mxu0 0.0
  %3440 = vmatpush.msra.mxu0 0.0
  %3441 = vmatpush.msra.mxu0 0.0
  %3442 = vmatpush.msra.mxu0 0.0
  %3443 = vmatpush.msra.mxu0 0.0
  %3444 = vmatpush.msra.mxu0 %v179
  %3445 = vmatmul.f32.gmra.mxu0 %v3427
  %v3446 = vpop.f32.mrf.mxu0
  %v3447 = vadd.f32 0.0, %v3446
  %3448 = vdwg.mxu0
  %v3450 = vsel %vm206, %v2549, 0
  %3452 = vmatpush.msra.mxu0 0.0
  %3453 = vmatpush.msra.mxu0 0.0
  %3454 = vmatpush.msra.mxu0 0.0
  %3455 = vmatpush.msra.mxu0 0.0
  %3456 = vmatpush.msra.mxu0 0.0
  %3457 = vmatpush.msra.mxu0 0.0
  %3458 = vmatpush.msra.mxu0 0.0
  %3459 = vmatpush.msra.mxu0 0.0
  %3460 = vmatpush.msra.mxu0 0.0
  %3461 = vmatpush.msra.mxu0 0.0
  %3462 = vmatpush.msra.mxu0 0.0
  %3463 = vmatpush.msra.mxu0 0.0
  %3464 = vmatpush.msra.mxu0 0.0
  %3465 = vmatpush.msra.mxu0 0.0
  %3466 = vmatpush.msra.mxu0 0.0
  %3467 = vmatpush.msra.mxu0 %v180
  %3468 = vmatmul.f32.gmra.mxu0 %v3450
  %v3469 = vpop.f32.mrf.mxu0
  %v3470 = vadd.f32 0.0, %v3469
  %3471 = vdwg.mxu0
  %v3473 = vsel %vm206, %v2550, 0
  %3475 = vmatpush.msra.mxu0 0.0
  %3476 = vmatpush.msra.mxu0 0.0
  %3477 = vmatpush.msra.mxu0 0.0
  %3478 = vmatpush.msra.mxu0 0.0
  %3479 = vmatpush.msra.mxu0 0.0
  %3480 = vmatpush.msra.mxu0 0.0
  %3481 = vmatpush.msra.mxu0 0.0
  %3482 = vmatpush.msra.mxu0 0.0
  %3483 = vmatpush.msra.mxu0 0.0
  %3484 = vmatpush.msra.mxu0 0.0
  %3485 = vmatpush.msra.mxu0 0.0
  %3486 = vmatpush.msra.mxu0 0.0
  %3487 = vmatpush.msra.mxu0 0.0
  %3488 = vmatpush.msra.mxu0 0.0
  %3489 = vmatpush.msra.mxu0 0.0
  %3490 = vmatpush.msra.mxu0 %v181
  %3491 = vmatmul.f32.gmra.mxu0 %v3473
  %v3492 = vpop.f32.mrf.mxu0
  %v3493 = vadd.f32 0.0, %v3492
  %3494 = vdwg.mxu0
  %v3496 = vsel %vm206, %v2551, 0
  %3498 = vmatpush.msra.mxu0 0.0
  %3499 = vmatpush.msra.mxu0 0.0
  %3500 = vmatpush.msra.mxu0 0.0
  %3501 = vmatpush.msra.mxu0 0.0
  %3502 = vmatpush.msra.mxu0 0.0
  %3503 = vmatpush.msra.mxu0 0.0
  %3504 = vmatpush.msra.mxu0 0.0
  %3505 = vmatpush.msra.mxu0 0.0
  %3506 = vmatpush.msra.mxu0 0.0
  %3507 = vmatpush.msra.mxu0 0.0
  %3508 = vmatpush.msra.mxu0 0.0
  %3509 = vmatpush.msra.mxu0 0.0
  %3510 = vmatpush.msra.mxu0 0.0
  %3511 = vmatpush.msra.mxu0 0.0
  %3512 = vmatpush.msra.mxu0 0.0
  %3513 = vmatpush.msra.mxu0 %v182
  %3514 = vmatmul.f32.gmra.mxu0 %v3496
  %v3515 = vpop.f32.mrf.mxu0
  %v3516 = vadd.f32 0.0, %v3515
  %3517 = vdwg.mxu0
  %v3519 = vsel %vm206, %v2552, 0
  %3521 = vmatpush.msra.mxu0 0.0
  %3522 = vmatpush.msra.mxu0 0.0
  %3523 = vmatpush.msra.mxu0 0.0
  %3524 = vmatpush.msra.mxu0 0.0
  %3525 = vmatpush.msra.mxu0 0.0
  %3526 = vmatpush.msra.mxu0 0.0
  %3527 = vmatpush.msra.mxu0 0.0
  %3528 = vmatpush.msra.mxu0 0.0
  %3529 = vmatpush.msra.mxu0 0.0
  %3530 = vmatpush.msra.mxu0 0.0
  %3531 = vmatpush.msra.mxu0 0.0
  %3532 = vmatpush.msra.mxu0 0.0
  %3533 = vmatpush.msra.mxu0 0.0
  %3534 = vmatpush.msra.mxu0 0.0
  %3535 = vmatpush.msra.mxu0 0.0
  %3536 = vmatpush.msra.mxu0 %v183
  %3537 = vmatmul.f32.gmra.mxu0 %v3519
  %v3538 = vpop.f32.mrf.mxu0
  %v3539 = vadd.f32 0.0, %v3538
  %3540 = vdwg.mxu0
  %v3542 = vsel %vm206, %v2553, 0
  %3544 = vmatpush.msra.mxu0 0.0
  %3545 = vmatpush.msra.mxu0 0.0
  %3546 = vmatpush.msra.mxu0 0.0
  %3547 = vmatpush.msra.mxu0 0.0
  %3548 = vmatpush.msra.mxu0 0.0
  %3549 = vmatpush.msra.mxu0 0.0
  %3550 = vmatpush.msra.mxu0 0.0
  %3551 = vmatpush.msra.mxu0 0.0
  %3552 = vmatpush.msra.mxu0 0.0
  %3553 = vmatpush.msra.mxu0 0.0
  %3554 = vmatpush.msra.mxu0 0.0
  %3555 = vmatpush.msra.mxu0 0.0
  %3556 = vmatpush.msra.mxu0 0.0
  %3557 = vmatpush.msra.mxu0 0.0
  %3558 = vmatpush.msra.mxu0 0.0
  %3559 = vmatpush.msra.mxu0 %v184
  %3560 = vmatmul.f32.gmra.mxu0 %v3542
  %v3561 = vpop.f32.mrf.mxu0
  %v3562 = vadd.f32 0.0, %v3561
  %3563 = vdwg.mxu0
  %v3565 = vsel %vm206, %v2554, 0
  %3567 = vmatpush.msra.mxu0 0.0
  %3568 = vmatpush.msra.mxu0 0.0
  %3569 = vmatpush.msra.mxu0 0.0
  %3570 = vmatpush.msra.mxu0 0.0
  %3571 = vmatpush.msra.mxu0 0.0
  %3572 = vmatpush.msra.mxu0 0.0
  %3573 = vmatpush.msra.mxu0 0.0
  %3574 = vmatpush.msra.mxu0 0.0
  %3575 = vmatpush.msra.mxu0 0.0
  %3576 = vmatpush.msra.mxu0 0.0
  %3577 = vmatpush.msra.mxu0 0.0
  %3578 = vmatpush.msra.mxu0 0.0
  %3579 = vmatpush.msra.mxu0 0.0
  %3580 = vmatpush.msra.mxu0 0.0
  %3581 = vmatpush.msra.mxu0 0.0
  %3582 = vmatpush.msra.mxu0 %v185
  %3583 = vmatmul.f32.gmra.mxu0 %v3565
  %v3584 = vpop.f32.mrf.mxu0
  %v3585 = vadd.f32 0.0, %v3584
  %3586 = vdwg.mxu0
  %v3588 = vsel %vm206, %v2555, 0
  %3590 = vmatpush.msra.mxu0 0.0
  %3591 = vmatpush.msra.mxu0 0.0
  %3592 = vmatpush.msra.mxu0 0.0
  %3593 = vmatpush.msra.mxu0 0.0
  %3594 = vmatpush.msra.mxu0 0.0
  %3595 = vmatpush.msra.mxu0 0.0
  %3596 = vmatpush.msra.mxu0 0.0
  %3597 = vmatpush.msra.mxu0 0.0
  %3598 = vmatpush.msra.mxu0 0.0
  %3599 = vmatpush.msra.mxu0 0.0
  %3600 = vmatpush.msra.mxu0 0.0
  %3601 = vmatpush.msra.mxu0 0.0
  %3602 = vmatpush.msra.mxu0 0.0
  %3603 = vmatpush.msra.mxu0 0.0
  %3604 = vmatpush.msra.mxu0 0.0
  %3605 = vmatpush.msra.mxu0 %v186
  %3606 = vmatmul.f32.gmra.mxu0 %v3588
  %v3607 = vpop.f32.mrf.mxu0
  %v3608 = vadd.f32 0.0, %v3607
  %3609 = vdwg.mxu0
  %v3611 = vsel %vm206, %v2556, 0
  %3613 = vmatpush.msra.mxu0 0.0
  %3614 = vmatpush.msra.mxu0 0.0
  %3615 = vmatpush.msra.mxu0 0.0
  %3616 = vmatpush.msra.mxu0 0.0
  %3617 = vmatpush.msra.mxu0 0.0
  %3618 = vmatpush.msra.mxu0 0.0
  %3619 = vmatpush.msra.mxu0 0.0
  %3620 = vmatpush.msra.mxu0 0.0
  %3621 = vmatpush.msra.mxu0 0.0
  %3622 = vmatpush.msra.mxu0 0.0
  %3623 = vmatpush.msra.mxu0 0.0
  %3624 = vmatpush.msra.mxu0 0.0
  %3625 = vmatpush.msra.mxu0 0.0
  %3626 = vmatpush.msra.mxu0 0.0
  %3627 = vmatpush.msra.mxu0 0.0
  %3628 = vmatpush.msra.mxu0 %v187
  %3629 = vmatmul.f32.gmra.mxu0 %v3611
  %v3630 = vpop.f32.mrf.mxu0
  %v3631 = vadd.f32 0.0, %v3630
  %3632 = vdwg.mxu0
  %v3634 = vsel %vm206, %v2557, 0
  %3636 = vmatpush.msra.mxu0 0.0
  %3637 = vmatpush.msra.mxu0 0.0
  %3638 = vmatpush.msra.mxu0 0.0
  %3639 = vmatpush.msra.mxu0 0.0
  %3640 = vmatpush.msra.mxu0 0.0
  %3641 = vmatpush.msra.mxu0 0.0
  %3642 = vmatpush.msra.mxu0 0.0
  %3643 = vmatpush.msra.mxu0 0.0
  %3644 = vmatpush.msra.mxu0 0.0
  %3645 = vmatpush.msra.mxu0 0.0
  %3646 = vmatpush.msra.mxu0 0.0
  %3647 = vmatpush.msra.mxu0 0.0
  %3648 = vmatpush.msra.mxu0 0.0
  %3649 = vmatpush.msra.mxu0 0.0
  %3650 = vmatpush.msra.mxu0 0.0
  %3651 = vmatpush.msra.mxu0 %v188
  %3652 = vmatmul.f32.gmra.mxu0 %v3634
  %v3653 = vpop.f32.mrf.mxu0
  %v3654 = vadd.f32 0.0, %v3653
  %3655 = vdwg.mxu0
  %v3657 = vsel %vm206, %v2558, 0
  %3659 = vmatpush.msra.mxu0 0.0
  %3660 = vmatpush.msra.mxu0 0.0
  %3661 = vmatpush.msra.mxu0 0.0
  %3662 = vmatpush.msra.mxu0 0.0
  %3663 = vmatpush.msra.mxu0 0.0
  %3664 = vmatpush.msra.mxu0 0.0
  %3665 = vmatpush.msra.mxu0 0.0
  %3666 = vmatpush.msra.mxu0 0.0
  %3667 = vmatpush.msra.mxu0 0.0
  %3668 = vmatpush.msra.mxu0 0.0
  %3669 = vmatpush.msra.mxu0 0.0
  %3670 = vmatpush.msra.mxu0 0.0
  %3671 = vmatpush.msra.mxu0 0.0
  %3672 = vmatpush.msra.mxu0 0.0
  %3673 = vmatpush.msra.mxu0 0.0
  %3674 = vmatpush.msra.mxu0 %v189
  %3675 = vmatmul.f32.gmra.mxu0 %v3657
  %v3676 = vpop.f32.mrf.mxu0
  %v3677 = vadd.f32 0.0, %v3676
  %3678 = vdwg.mxu0
  %v3680 = vsel %vm206, %v2559, 0
  %3682 = vmatpush.msra.mxu0 0.0
  %3683 = vmatpush.msra.mxu0 0.0
  %3684 = vmatpush.msra.mxu0 0.0
  %3685 = vmatpush.msra.mxu0 0.0
  %3686 = vmatpush.msra.mxu0 0.0
  %3687 = vmatpush.msra.mxu0 0.0
  %3688 = vmatpush.msra.mxu0 0.0
  %3689 = vmatpush.msra.mxu0 0.0
  %3690 = vmatpush.msra.mxu0 0.0
  %3691 = vmatpush.msra.mxu0 0.0
  %3692 = vmatpush.msra.mxu0 0.0
  %3693 = vmatpush.msra.mxu0 0.0
  %3694 = vmatpush.msra.mxu0 0.0
  %3695 = vmatpush.msra.mxu0 0.0
  %3696 = vmatpush.msra.mxu0 0.0
  %3697 = vmatpush.msra.mxu0 %v190
  %3698 = vmatmul.f32.gmra.mxu0 %v3680
  %v3699 = vpop.f32.mrf.mxu0
  %v3700 = vadd.f32 0.0, %v3699
  %3701 = vdwg.mxu0
  %v3703 = vsel %vm206, %v2560, 0
  %3705 = vmatpush.msra.mxu0 0.0
  %3706 = vmatpush.msra.mxu0 0.0
  %3707 = vmatpush.msra.mxu0 0.0
  %3708 = vmatpush.msra.mxu0 0.0
  %3709 = vmatpush.msra.mxu0 0.0
  %3710 = vmatpush.msra.mxu0 0.0
  %3711 = vmatpush.msra.mxu0 0.0
  %3712 = vmatpush.msra.mxu0 0.0
  %3713 = vmatpush.msra.mxu0 0.0
  %3714 = vmatpush.msra.mxu0 0.0
  %3715 = vmatpush.msra.mxu0 0.0
  %3716 = vmatpush.msra.mxu0 0.0
  %3717 = vmatpush.msra.mxu0 0.0
  %3718 = vmatpush.msra.mxu0 0.0
  %3719 = vmatpush.msra.mxu0 0.0
  %3720 = vmatpush.msra.mxu0 %v191
  %3721 = vmatmul.f32.gmra.mxu0 %v3703
  %v3722 = vpop.f32.mrf.mxu0
  %v3723 = vadd.f32 0.0, %v3722
  %3724 = vdwg.mxu0
  %v3726 = vsel %vm206, %v2561, 0
  %3728 = vmatpush.msra.mxu0 0.0
  %3729 = vmatpush.msra.mxu0 0.0
  %3730 = vmatpush.msra.mxu0 0.0
  %3731 = vmatpush.msra.mxu0 0.0
  %3732 = vmatpush.msra.mxu0 0.0
  %3733 = vmatpush.msra.mxu0 0.0
  %3734 = vmatpush.msra.mxu0 0.0
  %3735 = vmatpush.msra.mxu0 0.0
  %3736 = vmatpush.msra.mxu0 0.0
  %3737 = vmatpush.msra.mxu0 0.0
  %3738 = vmatpush.msra.mxu0 0.0
  %3739 = vmatpush.msra.mxu0 0.0
  %3740 = vmatpush.msra.mxu0 0.0
  %3741 = vmatpush.msra.mxu0 0.0
  %3742 = vmatpush.msra.mxu0 0.0
  %3743 = vmatpush.msra.mxu0 %v192
  %3744 = vmatmul.f32.gmra.mxu0 %v3726
  %v3745 = vpop.f32.mrf.mxu0
  %v3746 = vadd.f32 0.0, %v3745
  %3747 = vdwg.mxu0
  %v3749 = vsel %vm206, %v2562, 0
  %3751 = vmatpush.msra.mxu0 0.0
  %3752 = vmatpush.msra.mxu0 0.0
  %3753 = vmatpush.msra.mxu0 0.0
  %3754 = vmatpush.msra.mxu0 0.0
  %3755 = vmatpush.msra.mxu0 0.0
  %3756 = vmatpush.msra.mxu0 0.0
  %3757 = vmatpush.msra.mxu0 0.0
  %3758 = vmatpush.msra.mxu0 0.0
  %3759 = vmatpush.msra.mxu0 0.0
  %3760 = vmatpush.msra.mxu0 0.0
  %3761 = vmatpush.msra.mxu0 0.0
  %3762 = vmatpush.msra.mxu0 0.0
  %3763 = vmatpush.msra.mxu0 0.0
  %3764 = vmatpush.msra.mxu0 0.0
  %3765 = vmatpush.msra.mxu0 0.0
  %3766 = vmatpush.msra.mxu0 %v193
  %3767 = vmatmul.f32.gmra.mxu0 %v3749
  %v3768 = vpop.f32.mrf.mxu0
  %v3769 = vadd.f32 0.0, %v3768
  %3770 = vdwg.mxu0
  %v3772 = vsel %vm206, %v2563, 0
  %3774 = vmatpush.msra.mxu0 0.0
  %3775 = vmatpush.msra.mxu0 0.0
  %3776 = vmatpush.msra.mxu0 0.0
  %3777 = vmatpush.msra.mxu0 0.0
  %3778 = vmatpush.msra.mxu0 0.0
  %3779 = vmatpush.msra.mxu0 0.0
  %3780 = vmatpush.msra.mxu0 0.0
  %3781 = vmatpush.msra.mxu0 0.0
  %3782 = vmatpush.msra.mxu0 0.0
  %3783 = vmatpush.msra.mxu0 0.0
  %3784 = vmatpush.msra.mxu0 0.0
  %3785 = vmatpush.msra.mxu0 0.0
  %3786 = vmatpush.msra.mxu0 0.0
  %3787 = vmatpush.msra.mxu0 0.0
  %3788 = vmatpush.msra.mxu0 0.0
  %3789 = vmatpush.msra.mxu0 %v194
  %3790 = vmatmul.f32.gmra.mxu0 %v3772
  %v3791 = vpop.f32.mrf.mxu0
  %v3792 = vadd.f32 0.0, %v3791
  %3793 = vdwg.mxu0
  %v3795 = vsel %vm206, %v2564, 0
  %3797 = vmatpush.msra.mxu0 0.0
  %3798 = vmatpush.msra.mxu0 0.0
  %3799 = vmatpush.msra.mxu0 0.0
  %3800 = vmatpush.msra.mxu0 0.0
  %3801 = vmatpush.msra.mxu0 0.0
  %3802 = vmatpush.msra.mxu0 0.0
  %3803 = vmatpush.msra.mxu0 0.0
  %3804 = vmatpush.msra.mxu0 0.0
  %3805 = vmatpush.msra.mxu0 0.0
  %3806 = vmatpush.msra.mxu0 0.0
  %3807 = vmatpush.msra.mxu0 0.0
  %3808 = vmatpush.msra.mxu0 0.0
  %3809 = vmatpush.msra.mxu0 0.0
  %3810 = vmatpush.msra.mxu0 0.0
  %3811 = vmatpush.msra.mxu0 0.0
  %3812 = vmatpush.msra.mxu0 %v195
  %3813 = vmatmul.f32.gmra.mxu0 %v3795
  %v3814 = vpop.f32.mrf.mxu0
  %v3815 = vadd.f32 0.0, %v3814
  %3816 = vdwg.mxu0
  %v3818 = vsel %vm206, %v2565, 0
  %3820 = vmatpush.msra.mxu0 0.0
  %3821 = vmatpush.msra.mxu0 0.0
  %3822 = vmatpush.msra.mxu0 0.0
  %3823 = vmatpush.msra.mxu0 0.0
  %3824 = vmatpush.msra.mxu0 0.0
  %3825 = vmatpush.msra.mxu0 0.0
  %3826 = vmatpush.msra.mxu0 0.0
  %3827 = vmatpush.msra.mxu0 0.0
  %3828 = vmatpush.msra.mxu0 0.0
  %3829 = vmatpush.msra.mxu0 0.0
  %3830 = vmatpush.msra.mxu0 0.0
  %3831 = vmatpush.msra.mxu0 0.0
  %3832 = vmatpush.msra.mxu0 0.0
  %3833 = vmatpush.msra.mxu0 0.0
  %3834 = vmatpush.msra.mxu0 0.0
  %3835 = vmatpush.msra.mxu0 %v196
  %3836 = vmatmul.f32.gmra.mxu0 %v3818
  %v3837 = vpop.f32.mrf.mxu0
  %v3838 = vadd.f32 0.0, %v3837
  %3839 = vdwg.mxu0
  %v3841 = vsel %vm206, %v2566, 0
  %3843 = vmatpush.msra.mxu0 0.0
  %3844 = vmatpush.msra.mxu0 0.0
  %3845 = vmatpush.msra.mxu0 0.0
  %3846 = vmatpush.msra.mxu0 0.0
  %3847 = vmatpush.msra.mxu0 0.0
  %3848 = vmatpush.msra.mxu0 0.0
  %3849 = vmatpush.msra.mxu0 0.0
  %3850 = vmatpush.msra.mxu0 0.0
  %3851 = vmatpush.msra.mxu0 0.0
  %3852 = vmatpush.msra.mxu0 0.0
  %3853 = vmatpush.msra.mxu0 0.0
  %3854 = vmatpush.msra.mxu0 0.0
  %3855 = vmatpush.msra.mxu0 0.0
  %3856 = vmatpush.msra.mxu0 0.0
  %3857 = vmatpush.msra.mxu0 0.0
  %3858 = vmatpush.msra.mxu0 %v197
  %3859 = vmatmul.f32.gmra.mxu0 %v3841
  %v3860 = vpop.f32.mrf.mxu0
  %v3861 = vadd.f32 0.0, %v3860
  %3862 = vdwg.mxu0
  %v3864 = vsel %vm206, %v2567, 0
  %3866 = vmatpush.msra.mxu0 0.0
  %3867 = vmatpush.msra.mxu0 0.0
  %3868 = vmatpush.msra.mxu0 0.0
  %3869 = vmatpush.msra.mxu0 0.0
  %3870 = vmatpush.msra.mxu0 0.0
  %3871 = vmatpush.msra.mxu0 0.0
  %3872 = vmatpush.msra.mxu0 0.0
  %3873 = vmatpush.msra.mxu0 0.0
  %3874 = vmatpush.msra.mxu0 0.0
  %3875 = vmatpush.msra.mxu0 0.0
  %3876 = vmatpush.msra.mxu0 0.0
  %3877 = vmatpush.msra.mxu0 0.0
  %3878 = vmatpush.msra.mxu0 0.0
  %3879 = vmatpush.msra.mxu0 0.0
  %3880 = vmatpush.msra.mxu0 0.0
  %3881 = vmatpush.msra.mxu0 %v198
  %3882 = vmatmul.f32.gmra.mxu0 %v3864
  %v3883 = vpop.f32.mrf.mxu0
  %v3884 = vadd.f32 0.0, %v3883
  %3885 = vdwg.mxu0
  %v3887 = vsel %vm206, %v2568, 0
  %3889 = vmatpush.msra.mxu0 0.0
  %3890 = vmatpush.msra.mxu0 0.0
  %3891 = vmatpush.msra.mxu0 0.0
  %3892 = vmatpush.msra.mxu0 0.0
  %3893 = vmatpush.msra.mxu0 0.0
  %3894 = vmatpush.msra.mxu0 0.0
  %3895 = vmatpush.msra.mxu0 0.0
  %3896 = vmatpush.msra.mxu0 0.0
  %3897 = vmatpush.msra.mxu0 0.0
  %3898 = vmatpush.msra.mxu0 0.0
  %3899 = vmatpush.msra.mxu0 0.0
  %3900 = vmatpush.msra.mxu0 0.0
  %3901 = vmatpush.msra.mxu0 0.0
  %3902 = vmatpush.msra.mxu0 0.0
  %3903 = vmatpush.msra.mxu0 0.0
  %3904 = vmatpush.msra.mxu0 %v199
  %3905 = vmatmul.f32.gmra.mxu0 %v3887
  %v3906 = vpop.f32.mrf.mxu0
  %v3907 = vadd.f32 0.0, %v3906
  %3908 = vdwg.mxu0
  %v3910 = vsel %vm206, %v2569, 0
  %3912 = vmatpush.msra.mxu0 0.0
  %3913 = vmatpush.msra.mxu0 0.0
  %3914 = vmatpush.msra.mxu0 0.0
  %3915 = vmatpush.msra.mxu0 0.0
  %3916 = vmatpush.msra.mxu0 0.0
  %3917 = vmatpush.msra.mxu0 0.0
  %3918 = vmatpush.msra.mxu0 0.0
  %3919 = vmatpush.msra.mxu0 0.0
  %3920 = vmatpush.msra.mxu0 0.0
  %3921 = vmatpush.msra.mxu0 0.0
  %3922 = vmatpush.msra.mxu0 0.0
  %3923 = vmatpush.msra.mxu0 0.0
  %3924 = vmatpush.msra.mxu0 0.0
  %3925 = vmatpush.msra.mxu0 0.0
  %3926 = vmatpush.msra.mxu0 0.0
  %3927 = vmatpush.msra.mxu0 %v200
  %3928 = vmatmul.f32.gmra.mxu0 %v3910
  %v3929 = vpop.f32.mrf.mxu0
  %v3930 = vadd.f32 0.0, %v3929
  %3931 = vdwg.mxu0
  %v3933 = vsel %vm206, %v2570, 0
  %3935 = vmatpush.msra.mxu0 0.0
  %3936 = vmatpush.msra.mxu0 0.0
  %3937 = vmatpush.msra.mxu0 0.0
  %3938 = vmatpush.msra.mxu0 0.0
  %3939 = vmatpush.msra.mxu0 0.0
  %3940 = vmatpush.msra.mxu0 0.0
  %3941 = vmatpush.msra.mxu0 0.0
  %3942 = vmatpush.msra.mxu0 0.0
  %3943 = vmatpush.msra.mxu0 0.0
  %3944 = vmatpush.msra.mxu0 0.0
  %3945 = vmatpush.msra.mxu0 0.0
  %3946 = vmatpush.msra.mxu0 0.0
  %3947 = vmatpush.msra.mxu0 0.0
  %3948 = vmatpush.msra.mxu0 0.0
  %3949 = vmatpush.msra.mxu0 0.0
  %3950 = vmatpush.msra.mxu0 %v201
  %3951 = vmatmul.f32.gmra.mxu0 %v3933
  %v3952 = vpop.f32.mrf.mxu0
  %v3953 = vadd.f32 0.0, %v3952
  %3954 = vdwg.mxu0
  %v3956 = vsel %vm206, %v2571, 0
  %3958 = vmatpush.msra.mxu0 0.0
  %3959 = vmatpush.msra.mxu0 0.0
  %3960 = vmatpush.msra.mxu0 0.0
  %3961 = vmatpush.msra.mxu0 0.0
  %3962 = vmatpush.msra.mxu0 0.0
  %3963 = vmatpush.msra.mxu0 0.0
  %3964 = vmatpush.msra.mxu0 0.0
  %3965 = vmatpush.msra.mxu0 0.0
  %3966 = vmatpush.msra.mxu0 0.0
  %3967 = vmatpush.msra.mxu0 0.0
  %3968 = vmatpush.msra.mxu0 0.0
  %3969 = vmatpush.msra.mxu0 0.0
  %3970 = vmatpush.msra.mxu0 0.0
  %3971 = vmatpush.msra.mxu0 0.0
  %3972 = vmatpush.msra.mxu0 0.0
  %3973 = vmatpush.msra.mxu0 %v202
  %3974 = vmatmul.f32.gmra.mxu0 %v3956
  %v3975 = vpop.f32.mrf.mxu0
  %v3976 = vadd.f32 0.0, %v3975
  %3977 = vdwg.mxu0
  %v3979 = vsel %vm206, %v2572, 0
  %3981 = vmatpush.msra.mxu0 0.0
  %3982 = vmatpush.msra.mxu0 0.0
  %3983 = vmatpush.msra.mxu0 0.0
  %3984 = vmatpush.msra.mxu0 0.0
  %3985 = vmatpush.msra.mxu0 0.0
  %3986 = vmatpush.msra.mxu0 0.0
  %3987 = vmatpush.msra.mxu0 0.0
  %3988 = vmatpush.msra.mxu0 0.0
  %3989 = vmatpush.msra.mxu0 0.0
  %3990 = vmatpush.msra.mxu0 0.0
  %3991 = vmatpush.msra.mxu0 0.0
  %3992 = vmatpush.msra.mxu0 0.0
  %3993 = vmatpush.msra.mxu0 0.0
  %3994 = vmatpush.msra.mxu0 0.0
  %3995 = vmatpush.msra.mxu0 0.0
  %3996 = vmatpush.msra.mxu0 %v203
  %3997 = vmatmul.f32.gmra.mxu0 %v3979
  %v3998 = vpop.f32.mrf.mxu0
  %v3999 = vadd.f32 0.0, %v3998
  %4000 = vdwg.mxu0
  %v4002 = vsel %vm206, %v2573, 0
  %4004 = vmatpush.msra.mxu0 0.0
  %4005 = vmatpush.msra.mxu0 0.0
  %4006 = vmatpush.msra.mxu0 0.0
  %4007 = vmatpush.msra.mxu0 0.0
  %4008 = vmatpush.msra.mxu0 0.0
  %4009 = vmatpush.msra.mxu0 0.0
  %4010 = vmatpush.msra.mxu0 0.0
  %4011 = vmatpush.msra.mxu0 0.0
  %4012 = vmatpush.msra.mxu0 0.0
  %4013 = vmatpush.msra.mxu0 0.0
  %4014 = vmatpush.msra.mxu0 0.0
  %4015 = vmatpush.msra.mxu0 0.0
  %4016 = vmatpush.msra.mxu0 0.0
  %4017 = vmatpush.msra.mxu0 0.0
  %4018 = vmatpush.msra.mxu0 0.0
  %4019 = vmatpush.msra.mxu0 %v204
  %4020 = vmatmul.f32.gmra.mxu0 %v4002
  %v4021 = vpop.f32.mrf.mxu0
  %v4022 = vadd.f32 0.0, %v4021
  %4023 = vdwg.mxu0
  %v4025 = vsel %vm206, %v2574, 0
  %4027 = vmatpush.msra.mxu0 0.0
  %4028 = vmatpush.msra.mxu0 0.0
  %4029 = vmatpush.msra.mxu0 0.0
  %4030 = vmatpush.msra.mxu0 0.0
  %4031 = vmatpush.msra.mxu0 0.0
  %4032 = vmatpush.msra.mxu0 0.0
  %4033 = vmatpush.msra.mxu0 0.0
  %4034 = vmatpush.msra.mxu0 0.0
  %4035 = vmatpush.msra.mxu0 0.0
  %4036 = vmatpush.msra.mxu0 0.0
  %4037 = vmatpush.msra.mxu0 0.0
  %4038 = vmatpush.msra.mxu0 0.0
  %4039 = vmatpush.msra.mxu0 0.0
  %4040 = vmatpush.msra.mxu0 0.0
  %4041 = vmatpush.msra.mxu0 0.0
  %4042 = vmatpush.msra.mxu0 %v205
  %4043 = vmatmul.f32.gmra.mxu0 %v4025
  %v4044 = vpop.f32.mrf.mxu0
  %v4045 = vadd.f32 0.0, %v4044
  %4046 = vdwg.mxu0
  %4047 = vst.msk [vmem:[%s3] sm:$0xff] %vm206, %v2596
  %4048 = vst.msk [vmem:[%s3 + $0x8] sm:$0xff] %vm206, %v2619
  %4049 = vst.msk [vmem:[%s3 + $0x10] sm:$0xff] %vm206, %v2642
  %4050 = vst.msk [vmem:[%s3 + $0x18] sm:$0xff] %vm206, %v2665
  %4051 = vst.msk [vmem:[%s3 + $0x20] sm:$0xff] %vm206, %v2688
  %4052 = vst.msk [vmem:[%s3 + $0x28] sm:$0xff] %vm206, %v2711
  %4053 = vst.msk [vmem:[%s3 + $0x30] sm:$0xff] %vm206, %v2734
  %4054 = vst.msk [vmem:[%s3 + $0x38] sm:$0xff] %vm206, %v2757
  %4055 = vst.msk [vmem:[%s3 + $0x40] sm:$0xff] %vm206, %v2780
  %4056 = vst.msk [vmem:[%s3 + $0x48] sm:$0xff] %vm206, %v2803
  %4057 = vst.msk [vmem:[%s3 + $0x50] sm:$0xff] %vm206, %v2826
  %4058 = vst.msk [vmem:[%s3 + $0x58] sm:$0xff] %vm206, %v2849
  %4059 = vst.msk [vmem:[%s3 + $0x60] sm:$0xff] %vm206, %v2872
  %4060 = vst.msk [vmem:[%s3 + $0x68] sm:$0xff] %vm206, %v2895
  %4061 = vst.msk [vmem:[%s3 + $0x70] sm:$0xff] %vm206, %v2918
  %4062 = vst.msk [vmem:[%s3 + $0x78] sm:$0xff] %vm206, %v2941
  %4063 = vst.msk [vmem:[%s3 + $0x80] sm:$0xff] %vm206, %v2964
  %4064 = vst.msk [vmem:[%s3 + $0x88] sm:$0xff] %vm206, %v2987
  %4065 = vst.msk [vmem:[%s3 + $0x90] sm:$0xff] %vm206, %v3010
  %4066 = vst.msk [vmem:[%s3 + $0x98] sm:$0xff] %vm206, %v3033
  %4067 = vst.msk [vmem:[%s3 + $0xa0] sm:$0xff] %vm206, %v3056
  %4068 = vst.msk [vmem:[%s3 + $0xa8] sm:$0xff] %vm206, %v3079
  %4069 = vst.msk [vmem:[%s3 + $0xb0] sm:$0xff] %vm206, %v3102
  %4070 = vst.msk [vmem:[%s3 + $0xb8] sm:$0xff] %vm206, %v3125
  %4071 = vst.msk [vmem:[%s3 + $0xc0] sm:$0xff] %vm206, %v3148
  %4072 = vst.msk [vmem:[%s3 + $0xc8] sm:$0xff] %vm206, %v3171
  %4073 = vst.msk [vmem:[%s3 + $0xd0] sm:$0xff] %vm206, %v3194
  %4074 = vst.msk [vmem:[%s3 + $0xd8] sm:$0xff] %vm206, %v3217
  %4075 = vst.msk [vmem:[%s3 + $0xe0] sm:$0xff] %vm206, %v3240
  %4076 = vst.msk [vmem:[%s3 + $0xe8] sm:$0xff] %vm206, %v3263
  %4077 = vst.msk [vmem:[%s3 + $0xf0] sm:$0xff] %vm206, %v3286
  %4078 = vst.msk [vmem:[%s3 + $0xf8] sm:$0xff] %vm206, %v3309
  %4079 = vst.msk [vmem:[%s3 + $0x100] sm:$0xff] %vm206, %v3332
  %4080 = vst.msk [vmem:[%s3 + $0x108] sm:$0xff] %vm206, %v3355
  %4081 = vst.msk [vmem:[%s3 + $0x110] sm:$0xff] %vm206, %v3378
  %4082 = vst.msk [vmem:[%s3 + $0x118] sm:$0xff] %vm206, %v3401
  %4083 = vst.msk [vmem:[%s3 + $0x120] sm:$0xff] %vm206, %v3424
  %4084 = vst.msk [vmem:[%s3 + $0x128] sm:$0xff] %vm206, %v3447
  %4085 = vst.msk [vmem:[%s3 + $0x130] sm:$0xff] %vm206, %v3470
  %4086 = vst.msk [vmem:[%s3 + $0x138] sm:$0xff] %vm206, %v3493
  %4087 = vst.msk [vmem:[%s3 + $0x140] sm:$0xff] %vm206, %v3516
  %4088 = vst.msk [vmem:[%s3 + $0x148] sm:$0xff] %vm206, %v3539
  %4089 = vst.msk [vmem:[%s3 + $0x150] sm:$0xff] %vm206, %v3562
  %4090 = vst.msk [vmem:[%s3 + $0x158] sm:$0xff] %vm206, %v3585
  %4091 = vst.msk [vmem:[%s3 + $0x160] sm:$0xff] %vm206, %v3608
  %4092 = vst.msk [vmem:[%s3 + $0x168] sm:$0xff] %vm206, %v3631
  %4093 = vst.msk [vmem:[%s3 + $0x170] sm:$0xff] %vm206, %v3654
  %4094 = vst.msk [vmem:[%s3 + $0x178] sm:$0xff] %vm206, %v3677
  %4095 = vst.msk [vmem:[%s3 + $0x180] sm:$0xff] %vm206, %v3700
  %4096 = vst.msk [vmem:[%s3 + $0x188] sm:$0xff] %vm206, %v3723
  %4097 = vst.msk [vmem:[%s3 + $0x190] sm:$0xff] %vm206, %v3746
  %4098 = vst.msk [vmem:[%s3 + $0x198] sm:$0xff] %vm206, %v3769
  %4099 = vst.msk [vmem:[%s3 + $0x1a0] sm:$0xff] %vm206, %v3792
  %4100 = vst.msk [vmem:[%s3 + $0x1a8] sm:$0xff] %vm206, %v3815
  %4101 = vst.msk [vmem:[%s3 + $0x1b0] sm:$0xff] %vm206, %v3838
  %4102 = vst.msk [vmem:[%s3 + $0x1b8] sm:$0xff] %vm206, %v3861
  %4103 = vst.msk [vmem:[%s3 + $0x1c0] sm:$0xff] %vm206, %v3884
  %4104 = vst.msk [vmem:[%s3 + $0x1c8] sm:$0xff] %vm206, %v3907
  %4105 = vst.msk [vmem:[%s3 + $0x1d0] sm:$0xff] %vm206, %v3930
  %4106 = vst.msk [vmem:[%s3 + $0x1d8] sm:$0xff] %vm206, %v3953
  %4107 = vst.msk [vmem:[%s3 + $0x1e0] sm:$0xff] %vm206, %v3976
  %4108 = vst.msk [vmem:[%s3 + $0x1e8] sm:$0xff] %vm206, %v3999
  %4109 = vst.msk [vmem:[%s3 + $0x1f0] sm:$0xff] %vm206, %v4022
  %4110 = vst.msk [vmem:[%s3 + $0x1f8] sm:$0xff] %vm206, %v4045
  // Predicated region
  $region14: #{_lambda_.8} parent=0 // pred_check
    _
  $region15: #{_lambda_.8} parent=0 // pred_check_branch
    %4112 = sbr.rel (0) target = $region17
  $region16: #{_lambda_.8} parent=0 // pred_region
    _
  $region17: #{_lambda_.8} parent=0 // pred_fallthru
    _
  // Predicated region
  $region18: #{_lambda_.8} parent=0 // pred_check
    _
  $region19: #{_lambda_.8} parent=0 // pred_check_branch
    %4114 = sbr.rel (0) target = $region21
  $region20: #{_lambda_.8} parent=0 // pred_region
    _
  $region21: #{_lambda_.8} parent=0 // pred_fallthru
    _

// kernel: _lambda_.10
$region0: #{_lambda_.10}
  #allocation0 [shape = 'u32[]', space=smem, size = 0x4, offset = 0x4, fixed_abs, tag = 'smem constant byte address 0x4 - core index']
  #allocation1 [shape = 'u32[72,128]{1,0:T(1,128)}', space=vmem, size = 0x9000, scoped, tag = 'internal scratch']
  %s0 = inlined_call_operand.vmem [shape: f32[128,128], index: 0, kind: input, shape index: {}]
  %s1 = inlined_call_operand.vmem [shape: f32[128,128], index: 1, kind: input, shape index: {}]
  %s2 = inlined_call_operand.vmem [shape: f32[1,128], index: 2, kind: input, shape index: {}]
  %s3 = inlined_call_operand.vmem [shape: f32[128,128], index: 3, kind: output, shape index: {}]
  %s4 = sld [smem:[#allocation0]]
  $region22: #{_lambda_.10} parent=0
    _
  %s6 = ssub.s32 1, %s4
  %s7 = scalar_select 0, %s6, %s4
  // Predicated region
  $region2: #{_lambda_.10} parent=0 // pred_check
    _
  $region3: #{_lambda_.10} parent=0 // pred_check_branch
    %9 = sbr.rel (0) target = $region5
  $region4: #{_lambda_.10} parent=0 // pred_region
    _
  $region5: #{_lambda_.10} parent=0 // pred_fallthru
    _
  // Predicated region
  $region6: #{_lambda_.10} parent=0 // pred_check
    _
  $region7: #{_lambda_.10} parent=0 // pred_check_branch
    %11 = sbr.rel (0) target = $region9
  $region8: #{_lambda_.10} parent=0 // pred_region
    _
  $region9: #{_lambda_.10} parent=0 // pred_fallthru
    _
  // Predicated region
  $region10: #{_lambda_.10} parent=0 // pred_check
    _
  $region11: #{_lambda_.10} parent=0 // pred_check_branch
    %13 = sbr.rel (0) target = $region13
  $region12: #{_lambda_.10} parent=0 // pred_region
    _
  $region13: #{_lambda_.10} parent=0 // pred_fallthru
    _
  %v14 = vld [vmem:[%s0] sm:$0xff]
  %v15 = vld [vmem:[%s0 + $0x8] sm:$0xff]
  %v16 = vld [vmem:[%s0 + $0x10] sm:$0xff]
  %v17 = vld [vmem:[%s0 + $0x18] sm:$0xff]
  %v18 = vld [vmem:[%s0 + $0x20] sm:$0xff]
  %v19 = vld [vmem:[%s0 + $0x28] sm:$0xff]
  %v20 = vld [vmem:[%s0 + $0x30] sm:$0xff]
  %v21 = vld [vmem:[%s0 + $0x38] sm:$0xff]
  %v22 = vld [vmem:[%s0 + $0x40] sm:$0xff]
  %v23 = vld [vmem:[%s0 + $0x48] sm:$0xff]
  %v24 = vld [vmem:[%s0 + $0x50] sm:$0xff]
  %v25 = vld [vmem:[%s0 + $0x58] sm:$0xff]
  %v26 = vld [vmem:[%s0 + $0x60] sm:$0xff]
  %v27 = vld [vmem:[%s0 + $0x68] sm:$0xff]
  %v28 = vld [vmem:[%s0 + $0x70] sm:$0xff]
  %v29 = vld [vmem:[%s0 + $0x78] sm:$0xff]
  %v30 = vld [vmem:[%s1] sm:$0xff]
  %v31 = vld [vmem:[%s1 + $0x8] sm:$0xff]
  %v32 = vld [vmem:[%s1 + $0x10] sm:$0xff]
  %v33 = vld [vmem:[%s1 + $0x18] sm:$0xff]
  %v34 = vld [vmem:[%s1 + $0x20] sm:$0xff]
  %v35 = vld [vmem:[%s1 + $0x28] sm:$0xff]
  %v36 = vld [vmem:[%s1 + $0x30] sm:$0xff]
  %v37 = vld [vmem:[%s1 + $0x38] sm:$0xff]
  %v38 = vld [vmem:[%s1 + $0x40] sm:$0xff]
  %v39 = vld [vmem:[%s1 + $0x48] sm:$0xff]
  %v40 = vld [vmem:[%s1 + $0x50] sm:$0xff]
  %v41 = vld [vmem:[%s1 + $0x58] sm:$0xff]
  %v42 = vld [vmem:[%s1 + $0x60] sm:$0xff]
  %v43 = vld [vmem:[%s1 + $0x68] sm:$0xff]
  %v44 = vld [vmem:[%s1 + $0x70] sm:$0xff]
  %v45 = vld [vmem:[%s1 + $0x78] sm:$0xff]
  %v46 = vld [vmem:[%s2] sm:$0x1]
  %v48 = vperm.slane %v46, 0
  %50 = vmatpush.xpose.msra.mxu0 %v45
  %51 = vmatpush.xpose.msra.mxu0 %v44
  %52 = vmatpush.xpose.msra.mxu0 %v43
  %53 = vmatpush.xpose.msra.mxu0 %v42
  %54 = vmatpush.xpose.msra.mxu0 %v41
  %55 = vmatpush.xpose.msra.mxu0 %v40
  %56 = vmatpush.xpose.msra.mxu0 %v39
  %57 = vmatpush.xpose.msra.mxu0 %v38
  %58 = vmatpush.xpose.msra.mxu0 %v37
  %59 = vmatpush.xpose.msra.mxu0 %v36
  %60 = vmatpush.xpose.msra.mxu0 %v35
  %61 = vmatpush.xpose.msra.mxu0 %v34
  %62 = vmatpush.xpose.msra.mxu0 %v33
  %63 = vmatpush.xpose.msra.mxu0 %v32
  %64 = vmatpush.xpose.msra.mxu0 %v31
  %65 = vmatpush.xpose.msra.mxu0 %v30
  %66 = vmatmul.f32.gmra.mxu0 %v14
  %v67 = vpop.f32.mrf.mxu0
  %v68 = vadd.f32 %v48, %v67
  %69 = vmatmul.f32.gmra.mxu0 %v15
  %v70 = vpop.f32.mrf.mxu0
  %v71 = vadd.f32 %v48, %v70
  %72 = vmatmul.f32.gmra.mxu0 %v16
  %v73 = vpop.f32.mrf.mxu0
  %v74 = vadd.f32 %v48, %v73
  %75 = vmatmul.f32.gmra.mxu0 %v17
  %v76 = vpop.f32.mrf.mxu0
  %v77 = vadd.f32 %v48, %v76
  %78 = vmatmul.f32.gmra.mxu0 %v18
  %v79 = vpop.f32.mrf.mxu0
  %v80 = vadd.f32 %v48, %v79
  %81 = vmatmul.f32.gmra.mxu0 %v19
  %v82 = vpop.f32.mrf.mxu0
  %v83 = vadd.f32 %v48, %v82
  %84 = vmatmul.f32.gmra.mxu0 %v20
  %v85 = vpop.f32.mrf.mxu0
  %v86 = vadd.f32 %v48, %v85
  %87 = vmatmul.f32.gmra.mxu0 %v21
  %v88 = vpop.f32.mrf.mxu0
  %v89 = vadd.f32 %v48, %v88
  %90 = vmatmul.f32.gmra.mxu0 %v22
  %v91 = vpop.f32.mrf.mxu0
  %v92 = vadd.f32 %v48, %v91
  %93 = vmatmul.f32.gmra.mxu0 %v23
  %v94 = vpop.f32.mrf.mxu0
  %v95 = vadd.f32 %v48, %v94
  %96 = vmatmul.f32.gmra.mxu0 %v24
  %v97 = vpop.f32.mrf.mxu0
  %v98 = vadd.f32 %v48, %v97
  %99 = vmatmul.f32.gmra.mxu0 %v25
  %v100 = vpop.f32.mrf.mxu0
  %v101 = vadd.f32 %v48, %v100
  %102 = vmatmul.f32.gmra.mxu0 %v26
  %v103 = vpop.f32.mrf.mxu0
  %v104 = vadd.f32 %v48, %v103
  %105 = vmatmul.f32.gmra.mxu0 %v27
  %v106 = vpop.f32.mrf.mxu0
  %v107 = vadd.f32 %v48, %v106
  %108 = vmatmul.f32.gmra.mxu0 %v28
  %v109 = vpop.f32.mrf.mxu0
  %v110 = vadd.f32 %v48, %v109
  %111 = vmatmul.f32.gmra.mxu0 %v29
  %v112 = vpop.f32.mrf.mxu0
  %v113 = vadd.f32 %v48, %v112
  %114 = vdwg.mxu0
  %115 = vst [vmem:[%s3] sm:$0xff] %v68
  %116 = vst [vmem:[%s3 + $0x8] sm:$0xff] %v71
  %117 = vst [vmem:[%s3 + $0x10] sm:$0xff] %v74
  %118 = vst [vmem:[%s3 + $0x18] sm:$0xff] %v77
  %119 = vst [vmem:[%s3 + $0x20] sm:$0xff] %v80
  %120 = vst [vmem:[%s3 + $0x28] sm:$0xff] %v83
  %121 = vst [vmem:[%s3 + $0x30] sm:$0xff] %v86
  %122 = vst [vmem:[%s3 + $0x38] sm:$0xff] %v89
  %123 = vst [vmem:[%s3 + $0x40] sm:$0xff] %v92
  %124 = vst [vmem:[%s3 + $0x48] sm:$0xff] %v95
  %125 = vst [vmem:[%s3 + $0x50] sm:$0xff] %v98
  %126 = vst [vmem:[%s3 + $0x58] sm:$0xff] %v101
  %127 = vst [vmem:[%s3 + $0x60] sm:$0xff] %v104
  %128 = vst [vmem:[%s3 + $0x68] sm:$0xff] %v107
  %129 = vst [vmem:[%s3 + $0x70] sm:$0xff] %v110
  %130 = vst [vmem:[%s3 + $0x78] sm:$0xff] %v113
  // Predicated region
  $region14: #{_lambda_.10} parent=0 // pred_check
    _
  $region15: #{_lambda_.10} parent=0 // pred_check_branch
    %132 = sbr.rel (0) target = $region17
  $region16: #{_lambda_.10} parent=0 // pred_region
    _
  $region17: #{_lambda_.10} parent=0 // pred_fallthru
    _
  // Predicated region
  $region18: #{_lambda_.10} parent=0 // pred_check
    _
  $region19: #{_lambda_.10} parent=0 // pred_check_branch
    %134 = sbr.rel (0) target = $region21
  $region20: #{_lambda_.10} parent=0 // pred_region
    _
  $region21: #{_lambda_.10} parent=0 // pred_fallthru
    _

// kernel: _lambda_.9
$region0: #{_lambda_.9}
  #allocation0 [shape = 'u32[]', space=smem, size = 0x4, offset = 0x4, fixed_abs, tag = 'smem constant byte address 0x4 - core index']
  #allocation1 [shape = 'u32[72,128]{1,0:T(1,128)}', space=vmem, size = 0x9000, scoped, tag = 'internal scratch']
  %s0 = inlined_call_operand.vmem [shape: f32[48,32,8], index: 0, kind: input, shape index: {}]
  %s1 = inlined_call_operand.vmem [shape: f32[48,8,8], index: 1, kind: input, shape index: {}]
  %s2 = inlined_call_operand.vmem [shape: f32[48,8,8], index: 2, kind: input, shape index: {}]
  %s3 = inlined_call_operand.vmem [shape: f32[48,32,8], index: 3, kind: output, shape index: {}]
  %s4 = sld [smem:[#allocation0]]
  $region22: #{_lambda_.9} parent=0
    _
  %s6 = ssub.s32 1, %s4
  %s7 = scalar_select 0, %s6, %s4
  // Predicated region
  $region2: #{_lambda_.9} parent=0 // pred_check
    _
  $region3: #{_lambda_.9} parent=0 // pred_check_branch
    %9 = sbr.rel (0) target = $region5
  $region4: #{_lambda_.9} parent=0 // pred_region
    _
  $region5: #{_lambda_.9} parent=0 // pred_fallthru
    _
  // Predicated region
  $region6: #{_lambda_.9} parent=0 // pred_check
    _
  $region7: #{_lambda_.9} parent=0 // pred_check_branch
    %11 = sbr.rel (0) target = $region9
  $region8: #{_lambda_.9} parent=0 // pred_region
    _
  $region9: #{_lambda_.9} parent=0 // pred_fallthru
    _
  // Predicated region
  $region10: #{_lambda_.9} parent=0 // pred_check
    _
  $region11: #{_lambda_.9} parent=0 // pred_check_branch
    %13 = sbr.rel (0) target = $region13
  $region12: #{_lambda_.9} parent=0 // pred_region
    _
  $region13: #{_lambda_.9} parent=0 // pred_fallthru
    _
  %v14 = vld [vmem:[%s0] sm:$0xff]
  %v15 = vld [vmem:[%s0 + $0x8] sm:$0xff]
  %v16 = vld [vmem:[%s0 + $0x10] sm:$0xff]
  %v17 = vld [vmem:[%s0 + $0x18] sm:$0xff]
  %v18 = vld [vmem:[%s0 + $0x20] sm:$0xff]
  %v19 = vld [vmem:[%s0 + $0x28] sm:$0xff]
  %v20 = vld [vmem:[%s0 + $0x30] sm:$0xff]
  %v21 = vld [vmem:[%s0 + $0x38] sm:$0xff]
  %v22 = vld [vmem:[%s0 + $0x40] sm:$0xff]
  %v23 = vld [vmem:[%s0 + $0x48] sm:$0xff]
  %v24 = vld [vmem:[%s0 + $0x50] sm:$0xff]
  %v25 = vld [vmem:[%s0 + $0x58] sm:$0xff]
  %v26 = vld [vmem:[%s0 + $0x60] sm:$0xff]
  %v27 = vld [vmem:[%s0 + $0x68] sm:$0xff]
  %v28 = vld [vmem:[%s0 + $0x70] sm:$0xff]
  %v29 = vld [vmem:[%s0 + $0x78] sm:$0xff]
  %v30 = vld [vmem:[%s0 + $0x80] sm:$0xff]
  %v31 = vld [vmem:[%s0 + $0x88] sm:$0xff]
  %v32 = vld [vmem:[%s0 + $0x90] sm:$0xff]
  %v33 = vld [vmem:[%s0 + $0x98] sm:$0xff]
  %v34 = vld [vmem:[%s0 + $0xa0] sm:$0xff]
  %v35 = vld [vmem:[%s0 + $0xa8] sm:$0xff]
  %v36 = vld [vmem:[%s0 + $0xb0] sm:$0xff]
  %v37 = vld [vmem:[%s0 + $0xb8] sm:$0xff]
  %v38 = vld [vmem:[%s0 + $0xc0] sm:$0xff]
  %v39 = vld [vmem:[%s0 + $0xc8] sm:$0xff]
  %v40 = vld [vmem:[%s0 + $0xd0] sm:$0xff]
  %v41 = vld [vmem:[%s0 + $0xd8] sm:$0xff]
  %v42 = vld [vmem:[%s0 + $0xe0] sm:$0xff]
  %v43 = vld [vmem:[%s0 + $0xe8] sm:$0xff]
  %v44 = vld [vmem:[%s0 + $0xf0] sm:$0xff]
  %v45 = vld [vmem:[%s0 + $0xf8] sm:$0xff]
  %v46 = vld [vmem:[%s0 + $0x100] sm:$0xff]
  %v47 = vld [vmem:[%s0 + $0x108] sm:$0xff]
  %v48 = vld [vmem:[%s0 + $0x110] sm:$0xff]
  %v49 = vld [vmem:[%s0 + $0x118] sm:$0xff]
  %v50 = vld [vmem:[%s0 + $0x120] sm:$0xff]
  %v51 = vld [vmem:[%s0 + $0x128] sm:$0xff]
  %v52 = vld [vmem:[%s0 + $0x130] sm:$0xff]
  %v53 = vld [vmem:[%s0 + $0x138] sm:$0xff]
  %v54 = vld [vmem:[%s0 + $0x140] sm:$0xff]
  %v55 = vld [vmem:[%s0 + $0x148] sm:$0xff]
  %v56 = vld [vmem:[%s0 + $0x150] sm:$0xff]
  %v57 = vld [vmem:[%s0 + $0x158] sm:$0xff]
  %v58 = vld [vmem:[%s0 + $0x160] sm:$0xff]
  %v59 = vld [vmem:[%s0 + $0x168] sm:$0xff]
  %v60 = vld [vmem:[%s0 + $0x170] sm:$0xff]
  %v61 = vld [vmem:[%s0 + $0x178] sm:$0xff]
  %v62 = vld [vmem:[%s0 + $0x180] sm:$0xff]
  %v63 = vld [vmem:[%s0 + $0x188] sm:$0xff]
  %v64 = vld [vmem:[%s0 + $0x190] sm:$0xff]
  %v65 = vld [vmem:[%s0 + $0x198] sm:$0xff]
  %v66 = vld [vmem:[%s0 + $0x1a0] sm:$0xff]
  %v67 = vld [vmem:[%s0 + $0x1a8] sm:$0xff]
  %v68 = vld [vmem:[%s0 + $0x1b0] sm:$0xff]
  %v69 = vld [vmem:[%s0 + $0x1b8] sm:$0xff]
  %v70 = vld [vmem:[%s0 + $0x1c0] sm:$0xff]
  %v71 = vld [vmem:[%s0 + $0x1c8] sm:$0xff]
  %v72 = vld [vmem:[%s0 + $0x1d0] sm:$0xff]
  %v73 = vld [vmem:[%s0 + $0x1d8] sm:$0xff]
  %v74 = vld [vmem:[%s0 + $0x1e0] sm:$0xff]
  %v75 = vld [vmem:[%s0 + $0x1e8] sm:$0xff]
  %v76 = vld [vmem:[%s0 + $0x1f0] sm:$0xff]
  %v77 = vld [vmem:[%s0 + $0x1f8] sm:$0xff]
  %v78 = vld [vmem:[%s0 + $0x200] sm:$0xff]
  %v79 = vld [vmem:[%s0 + $0x208] sm:$0xff]
  %v80 = vld [vmem:[%s0 + $0x210] sm:$0xff]
  %v81 = vld [vmem:[%s0 + $0x218] sm:$0xff]
  %v82 = vld [vmem:[%s0 + $0x220] sm:$0xff]
  %v83 = vld [vmem:[%s0 + $0x228] sm:$0xff]
  %v84 = vld [vmem:[%s0 + $0x230] sm:$0xff]
  %v85 = vld [vmem:[%s0 + $0x238] sm:$0xff]
  %v86 = vld [vmem:[%s0 + $0x240] sm:$0xff]
  %v87 = vld [vmem:[%s0 + $0x248] sm:$0xff]
  %v88 = vld [vmem:[%s0 + $0x250] sm:$0xff]
  %v89 = vld [vmem:[%s0 + $0x258] sm:$0xff]
  %v90 = vld [vmem:[%s0 + $0x260] sm:$0xff]
  %v91 = vld [vmem:[%s0 + $0x268] sm:$0xff]
  %v92 = vld [vmem:[%s0 + $0x270] sm:$0xff]
  %v93 = vld [vmem:[%s0 + $0x278] sm:$0xff]
  %v94 = vld [vmem:[%s0 + $0x280] sm:$0xff]
  %v95 = vld [vmem:[%s0 + $0x288] sm:$0xff]
  %v96 = vld [vmem:[%s0 + $0x290] sm:$0xff]
  %v97 = vld [vmem:[%s0 + $0x298] sm:$0xff]
  %v98 = vld [vmem:[%s0 + $0x2a0] sm:$0xff]
  %v99 = vld [vmem:[%s0 + $0x2a8] sm:$0xff]
  %v100 = vld [vmem:[%s0 + $0x2b0] sm:$0xff]
  %v101 = vld [vmem:[%s0 + $0x2b8] sm:$0xff]
  %v102 = vld [vmem:[%s0 + $0x2c0] sm:$0xff]
  %v103 = vld [vmem:[%s0 + $0x2c8] sm:$0xff]
  %v104 = vld [vmem:[%s0 + $0x2d0] sm:$0xff]
  %v105 = vld [vmem:[%s0 + $0x2d8] sm:$0xff]
  %v106 = vld [vmem:[%s0 + $0x2e0] sm:$0xff]
  %v107 = vld [vmem:[%s0 + $0x2e8] sm:$0xff]
  %v108 = vld [vmem:[%s0 + $0x2f0] sm:$0xff]
  %v109 = vld [vmem:[%s0 + $0x2f8] sm:$0xff]
  %v110 = vld [vmem:[%s0 + $0x300] sm:$0xff]
  %v111 = vld [vmem:[%s0 + $0x308] sm:$0xff]
  %v112 = vld [vmem:[%s0 + $0x310] sm:$0xff]
  %v113 = vld [vmem:[%s0 + $0x318] sm:$0xff]
  %v114 = vld [vmem:[%s0 + $0x320] sm:$0xff]
  %v115 = vld [vmem:[%s0 + $0x328] sm:$0xff]
  %v116 = vld [vmem:[%s0 + $0x330] sm:$0xff]
  %v117 = vld [vmem:[%s0 + $0x338] sm:$0xff]
  %v118 = vld [vmem:[%s0 + $0x340] sm:$0xff]
  %v119 = vld [vmem:[%s0 + $0x348] sm:$0xff]
  %v120 = vld [vmem:[%s0 + $0x350] sm:$0xff]
  %v121 = vld [vmem:[%s0 + $0x358] sm:$0xff]
  %v122 = vld [vmem:[%s0 + $0x360] sm:$0xff]
  %v123 = vld [vmem:[%s0 + $0x368] sm:$0xff]
  %v124 = vld [vmem:[%s0 + $0x370] sm:$0xff]
  %v125 = vld [vmem:[%s0 + $0x378] sm:$0xff]
  %v126 = vld [vmem:[%s0 + $0x380] sm:$0xff]
  %v127 = vld [vmem:[%s0 + $0x388] sm:$0xff]
  %v128 = vld [vmem:[%s0 + $0x390] sm:$0xff]
  %v129 = vld [vmem:[%s0 + $0x398] sm:$0xff]
  %v130 = vld [vmem:[%s0 + $0x3a0] sm:$0xff]
  %v131 = vld [vmem:[%s0 + $0x3a8] sm:$0xff]
  %v132 = vld [vmem:[%s0 + $0x3b0] sm:$0xff]
  %v133 = vld [vmem:[%s0 + $0x3b8] sm:$0xff]
  %v134 = vld [vmem:[%s0 + $0x3c0] sm:$0xff]
  %v135 = vld [vmem:[%s0 + $0x3c8] sm:$0xff]
  %v136 = vld [vmem:[%s0 + $0x3d0] sm:$0xff]
  %v137 = vld [vmem:[%s0 + $0x3d8] sm:$0xff]
  %v138 = vld [vmem:[%s0 + $0x3e0] sm:$0xff]
  %v139 = vld [vmem:[%s0 + $0x3e8] sm:$0xff]
  %v140 = vld [vmem:[%s0 + $0x3f0] sm:$0xff]
  %v141 = vld [vmem:[%s0 + $0x3f8] sm:$0xff]
  %v142 = vld [vmem:[%s0 + $0x400] sm:$0xff]
  %v143 = vld [vmem:[%s0 + $0x408] sm:$0xff]
  %v144 = vld [vmem:[%s0 + $0x410] sm:$0xff]
  %v145 = vld [vmem:[%s0 + $0x418] sm:$0xff]
  %v146 = vld [vmem:[%s0 + $0x420] sm:$0xff]
  %v147 = vld [vmem:[%s0 + $0x428] sm:$0xff]
  %v148 = vld [vmem:[%s0 + $0x430] sm:$0xff]
  %v149 = vld [vmem:[%s0 + $0x438] sm:$0xff]
  %v150 = vld [vmem:[%s0 + $0x440] sm:$0xff]
  %v151 = vld [vmem:[%s0 + $0x448] sm:$0xff]
  %v152 = vld [vmem:[%s0 + $0x450] sm:$0xff]
  %v153 = vld [vmem:[%s0 + $0x458] sm:$0xff]
  %v154 = vld [vmem:[%s0 + $0x460] sm:$0xff]
  %v155 = vld [vmem:[%s0 + $0x468] sm:$0xff]
  %v156 = vld [vmem:[%s0 + $0x470] sm:$0xff]
  %v157 = vld [vmem:[%s0 + $0x478] sm:$0xff]
  %v158 = vld [vmem:[%s0 + $0x480] sm:$0xff]
  %v159 = vld [vmem:[%s0 + $0x488] sm:$0xff]
  %v160 = vld [vmem:[%s0 + $0x490] sm:$0xff]
  %v161 = vld [vmem:[%s0 + $0x498] sm:$0xff]
  %v162 = vld [vmem:[%s0 + $0x4a0] sm:$0xff]
  %v163 = vld [vmem:[%s0 + $0x4a8] sm:$0xff]
  %v164 = vld [vmem:[%s0 + $0x4b0] sm:$0xff]
  %v165 = vld [vmem:[%s0 + $0x4b8] sm:$0xff]
  %v166 = vld [vmem:[%s0 + $0x4c0] sm:$0xff]
  %v167 = vld [vmem:[%s0 + $0x4c8] sm:$0xff]
  %v168 = vld [vmem:[%s0 + $0x4d0] sm:$0xff]
  %v169 = vld [vmem:[%s0 + $0x4d8] sm:$0xff]
  %v170 = vld [vmem:[%s0 + $0x4e0] sm:$0xff]
  %v171 = vld [vmem:[%s0 + $0x4e8] sm:$0xff]
  %v172 = vld [vmem:[%s0 + $0x4f0] sm:$0xff]
  %v173 = vld [vmem:[%s0 + $0x4f8] sm:$0xff]
  %v174 = vld [vmem:[%s0 + $0x500] sm:$0xff]
  %v175 = vld [vmem:[%s0 + $0x508] sm:$0xff]
  %v176 = vld [vmem:[%s0 + $0x510] sm:$0xff]
  %v177 = vld [vmem:[%s0 + $0x518] sm:$0xff]
  %v178 = vld [vmem:[%s0 + $0x520] sm:$0xff]
  %v179 = vld [vmem:[%s0 + $0x528] sm:$0xff]
  %v180 = vld [vmem:[%s0 + $0x530] sm:$0xff]
  %v181 = vld [vmem:[%s0 + $0x538] sm:$0xff]
  %v182 = vld [vmem:[%s0 + $0x540] sm:$0xff]
  %v183 = vld [vmem:[%s0 + $0x548] sm:$0xff]
  %v184 = vld [vmem:[%s0 + $0x550] sm:$0xff]
  %v185 = vld [vmem:[%s0 + $0x558] sm:$0xff]
  %v186 = vld [vmem:[%s0 + $0x560] sm:$0xff]
  %v187 = vld [vmem:[%s0 + $0x568] sm:$0xff]
  %v188 = vld [vmem:[%s0 + $0x570] sm:$0xff]
  %v189 = vld [vmem:[%s0 + $0x578] sm:$0xff]
  %v190 = vld [vmem:[%s0 + $0x580] sm:$0xff]
  %v191 = vld [vmem:[%s0 + $0x588] sm:$0xff]
  %v192 = vld [vmem:[%s0 + $0x590] sm:$0xff]
  %v193 = vld [vmem:[%s0 + $0x598] sm:$0xff]
  %v194 = vld [vmem:[%s0 + $0x5a0] sm:$0xff]
  %v195 = vld [vmem:[%s0 + $0x5a8] sm:$0xff]
  %v196 = vld [vmem:[%s0 + $0x5b0] sm:$0xff]
  %v197 = vld [vmem:[%s0 + $0x5b8] sm:$0xff]
  %v198 = vld [vmem:[%s0 + $0x5c0] sm:$0xff]
  %v199 = vld [vmem:[%s0 + $0x5c8] sm:$0xff]
  %v200 = vld [vmem:[%s0 + $0x5d0] sm:$0xff]
  %v201 = vld [vmem:[%s0 + $0x5d8] sm:$0xff]
  %v202 = vld [vmem:[%s0 + $0x5e0] sm:$0xff]
  %v203 = vld [vmem:[%s0 + $0x5e8] sm:$0xff]
  %v204 = vld [vmem:[%s0 + $0x5f0] sm:$0xff]
  %v205 = vld [vmem:[%s0 + $0x5f8] sm:$0xff]
  %v206 = vld [vmem:[%s1] sm:$0xff]
  %v207 = vld [vmem:[%s1 + $0x8] sm:$0xff]
  %v208 = vld [vmem:[%s1 + $0x10] sm:$0xff]
  %v209 = vld [vmem:[%s1 + $0x18] sm:$0xff]
  %v210 = vld [vmem:[%s1 + $0x20] sm:$0xff]
  %v211 = vld [vmem:[%s1 + $0x28] sm:$0xff]
  %v212 = vld [vmem:[%s1 + $0x30] sm:$0xff]
  %v213 = vld [vmem:[%s1 + $0x38] sm:$0xff]
  %v214 = vld [vmem:[%s1 + $0x40] sm:$0xff]
  %v215 = vld [vmem:[%s1 + $0x48] sm:$0xff]
  %v216 = vld [vmem:[%s1 + $0x50] sm:$0xff]
  %v217 = vld [vmem:[%s1 + $0x58] sm:$0xff]
  %v218 = vld [vmem:[%s1 + $0x60] sm:$0xff]
  %v219 = vld [vmem:[%s1 + $0x68] sm:$0xff]
  %v220 = vld [vmem:[%s1 + $0x70] sm:$0xff]
  %v221 = vld [vmem:[%s1 + $0x78] sm:$0xff]
  %v222 = vld [vmem:[%s1 + $0x80] sm:$0xff]
  %v223 = vld [vmem:[%s1 + $0x88] sm:$0xff]
  %v224 = vld [vmem:[%s1 + $0x90] sm:$0xff]
  %v225 = vld [vmem:[%s1 + $0x98] sm:$0xff]
  %v226 = vld [vmem:[%s1 + $0xa0] sm:$0xff]
  %v227 = vld [vmem:[%s1 + $0xa8] sm:$0xff]
  %v228 = vld [vmem:[%s1 + $0xb0] sm:$0xff]
  %v229 = vld [vmem:[%s1 + $0xb8] sm:$0xff]
  %v230 = vld [vmem:[%s1 + $0xc0] sm:$0xff]
  %v231 = vld [vmem:[%s1 + $0xc8] sm:$0xff]
  %v232 = vld [vmem:[%s1 + $0xd0] sm:$0xff]
  %v233 = vld [vmem:[%s1 + $0xd8] sm:$0xff]
  %v234 = vld [vmem:[%s1 + $0xe0] sm:$0xff]
  %v235 = vld [vmem:[%s1 + $0xe8] sm:$0xff]
  %v236 = vld [vmem:[%s1 + $0xf0] sm:$0xff]
  %v237 = vld [vmem:[%s1 + $0xf8] sm:$0xff]
  %v238 = vld [vmem:[%s1 + $0x100] sm:$0xff]
  %v239 = vld [vmem:[%s1 + $0x108] sm:$0xff]
  %v240 = vld [vmem:[%s1 + $0x110] sm:$0xff]
  %v241 = vld [vmem:[%s1 + $0x118] sm:$0xff]
  %v242 = vld [vmem:[%s1 + $0x120] sm:$0xff]
  %v243 = vld [vmem:[%s1 + $0x128] sm:$0xff]
  %v244 = vld [vmem:[%s1 + $0x130] sm:$0xff]
  %v245 = vld [vmem:[%s1 + $0x138] sm:$0xff]
  %v246 = vld [vmem:[%s1 + $0x140] sm:$0xff]
  %v247 = vld [vmem:[%s1 + $0x148] sm:$0xff]
  %v248 = vld [vmem:[%s1 + $0x150] sm:$0xff]
  %v249 = vld [vmem:[%s1 + $0x158] sm:$0xff]
  %v250 = vld [vmem:[%s1 + $0x160] sm:$0xff]
  %v251 = vld [vmem:[%s1 + $0x168] sm:$0xff]
  %v252 = vld [vmem:[%s1 + $0x170] sm:$0xff]
  %v253 = vld [vmem:[%s1 + $0x178] sm:$0xff]
  %v254 = vld [vmem:[%s2] sm:$0xff]
  %v255 = vld [vmem:[%s2 + $0x8] sm:$0xff]
  %v256 = vld [vmem:[%s2 + $0x10] sm:$0xff]
  %v257 = vld [vmem:[%s2 + $0x18] sm:$0xff]
  %v258 = vld [vmem:[%s2 + $0x20] sm:$0xff]
  %v259 = vld [vmem:[%s2 + $0x28] sm:$0xff]
  %v260 = vld [vmem:[%s2 + $0x30] sm:$0xff]
  %v261 = vld [vmem:[%s2 + $0x38] sm:$0xff]
  %v262 = vld [vmem:[%s2 + $0x40] sm:$0xff]
  %v263 = vld [vmem:[%s2 + $0x48] sm:$0xff]
  %v264 = vld [vmem:[%s2 + $0x50] sm:$0xff]
  %v265 = vld [vmem:[%s2 + $0x58] sm:$0xff]
  %v266 = vld [vmem:[%s2 + $0x60] sm:$0xff]
  %v267 = vld [vmem:[%s2 + $0x68] sm:$0xff]
  %v268 = vld [vmem:[%s2 + $0x70] sm:$0xff]
  %v269 = vld [vmem:[%s2 + $0x78] sm:$0xff]
  %v270 = vld [vmem:[%s2 + $0x80] sm:$0xff]
  %v271 = vld [vmem:[%s2 + $0x88] sm:$0xff]
  %v272 = vld [vmem:[%s2 + $0x90] sm:$0xff]
  %v273 = vld [vmem:[%s2 + $0x98] sm:$0xff]
  %v274 = vld [vmem:[%s2 + $0xa0] sm:$0xff]
  %v275 = vld [vmem:[%s2 + $0xa8] sm:$0xff]
  %v276 = vld [vmem:[%s2 + $0xb0] sm:$0xff]
  %v277 = vld [vmem:[%s2 + $0xb8] sm:$0xff]
  %v278 = vld [vmem:[%s2 + $0xc0] sm:$0xff]
  %v279 = vld [vmem:[%s2 + $0xc8] sm:$0xff]
  %v280 = vld [vmem:[%s2 + $0xd0] sm:$0xff]
  %v281 = vld [vmem:[%s2 + $0xd8] sm:$0xff]
  %v282 = vld [vmem:[%s2 + $0xe0] sm:$0xff]
  %v283 = vld [vmem:[%s2 + $0xe8] sm:$0xff]
  %v284 = vld [vmem:[%s2 + $0xf0] sm:$0xff]
  %v285 = vld [vmem:[%s2 + $0xf8] sm:$0xff]
  %v286 = vld [vmem:[%s2 + $0x100] sm:$0xff]
  %v287 = vld [vmem:[%s2 + $0x108] sm:$0xff]
  %v288 = vld [vmem:[%s2 + $0x110] sm:$0xff]
  %v289 = vld [vmem:[%s2 + $0x118] sm:$0xff]
  %v290 = vld [vmem:[%s2 + $0x120] sm:$0xff]
  %v291 = vld [vmem:[%s2 + $0x128] sm:$0xff]
  %v292 = vld [vmem:[%s2 + $0x130] sm:$0xff]
  %v293 = vld [vmem:[%s2 + $0x138] sm:$0xff]
  %v294 = vld [vmem:[%s2 + $0x140] sm:$0xff]
  %v295 = vld [vmem:[%s2 + $0x148] sm:$0xff]
  %v296 = vld [vmem:[%s2 + $0x150] sm:$0xff]
  %v297 = vld [vmem:[%s2 + $0x158] sm:$0xff]
  %v298 = vld [vmem:[%s2 + $0x160] sm:$0xff]
  %v299 = vld [vmem:[%s2 + $0x168] sm:$0xff]
  %v300 = vld [vmem:[%s2 + $0x170] sm:$0xff]
  %v301 = vld [vmem:[%s2 + $0x178] sm:$0xff]
  %vm302 = vcmask 64512
  %v304 = vsel %vm302, %v14, 0
  %v307 = vsel %vm302, %v15, 0
  %v310 = vsel %vm302, %v16, 0
  %v313 = vsel %vm302, %v17, 0
  %v316 = vsel %vm302, %v206, 0
  %318 = vmatpush.xpose.msra.mxu0 0.0
  %319 = vmatpush.xpose.msra.mxu0 0.0
  %320 = vmatpush.xpose.msra.mxu0 0.0
  %321 = vmatpush.xpose.msra.mxu0 0.0
  %322 = vmatpush.xpose.msra.mxu0 0.0
  %323 = vmatpush.xpose.msra.mxu0 0.0
  %324 = vmatpush.xpose.msra.mxu0 0.0
  %325 = vmatpush.xpose.msra.mxu0 0.0
  %326 = vmatpush.xpose.msra.mxu0 0.0
  %327 = vmatpush.xpose.msra.mxu0 0.0
  %328 = vmatpush.xpose.msra.mxu0 0.0
  %329 = vmatpush.xpose.msra.mxu0 0.0
  %330 = vmatpush.xpose.msra.mxu0 0.0
  %331 = vmatpush.xpose.msra.mxu0 0.0
  %332 = vmatpush.xpose.msra.mxu0 0.0
  %333 = vmatpush.xpose.msra.mxu0 %v316
  %334 = vmatmul.f32.gmra.mxu0 %v304
  %v335 = vpop.f32.mrf.mxu0
  %v336 = vadd.f32 0.0, %v335
  %337 = vmatmul.f32.gmra.mxu0 %v307
  %v338 = vpop.f32.mrf.mxu0
  %v339 = vadd.f32 0.0, %v338
  %340 = vmatmul.f32.gmra.mxu0 %v310
  %v341 = vpop.f32.mrf.mxu0
  %v342 = vadd.f32 0.0, %v341
  %343 = vmatmul.f32.gmra.mxu0 %v313
  %v344 = vpop.f32.mrf.mxu0
  %v345 = vadd.f32 0.0, %v344
  %346 = vdwg.mxu0
  %v348 = vsel %vm302, %v18, 0
  %v351 = vsel %vm302, %v19, 0
  %v354 = vsel %vm302, %v20, 0
  %v357 = vsel %vm302, %v21, 0
  %v360 = vsel %vm302, %v207, 0
  %362 = vmatpush.xpose.msra.mxu0 0.0
  %363 = vmatpush.xpose.msra.mxu0 0.0
  %364 = vmatpush.xpose.msra.mxu0 0.0
  %365 = vmatpush.xpose.msra.mxu0 0.0
  %366 = vmatpush.xpose.msra.mxu0 0.0
  %367 = vmatpush.xpose.msra.mxu0 0.0
  %368 = vmatpush.xpose.msra.mxu0 0.0
  %369 = vmatpush.xpose.msra.mxu0 0.0
  %370 = vmatpush.xpose.msra.mxu0 0.0
  %371 = vmatpush.xpose.msra.mxu0 0.0
  %372 = vmatpush.xpose.msra.mxu0 0.0
  %373 = vmatpush.xpose.msra.mxu0 0.0
  %374 = vmatpush.xpose.msra.mxu0 0.0
  %375 = vmatpush.xpose.msra.mxu0 0.0
  %376 = vmatpush.xpose.msra.mxu0 0.0
  %377 = vmatpush.xpose.msra.mxu0 %v360
  %378 = vmatmul.f32.gmra.mxu0 %v348
  %v379 = vpop.f32.mrf.mxu0
  %v380 = vadd.f32 0.0, %v379
  %381 = vmatmul.f32.gmra.mxu0 %v351
  %v382 = vpop.f32.mrf.mxu0
  %v383 = vadd.f32 0.0, %v382
  %384 = vmatmul.f32.gmra.mxu0 %v354
  %v385 = vpop.f32.mrf.mxu0
  %v386 = vadd.f32 0.0, %v385
  %387 = vmatmul.f32.gmra.mxu0 %v357
  %v388 = vpop.f32.mrf.mxu0
  %v389 = vadd.f32 0.0, %v388
  %390 = vdwg.mxu0
  %v392 = vsel %vm302, %v22, 0
  %v395 = vsel %vm302, %v23, 0
  %v398 = vsel %vm302, %v24, 0
  %v401 = vsel %vm302, %v25, 0
  %v404 = vsel %vm302, %v208, 0
  %406 = vmatpush.xpose.msra.mxu0 0.0
  %407 = vmatpush.xpose.msra.mxu0 0.0
  %408 = vmatpush.xpose.msra.mxu0 0.0
  %409 = vmatpush.xpose.msra.mxu0 0.0
  %410 = vmatpush.xpose.msra.mxu0 0.0
  %411 = vmatpush.xpose.msra.mxu0 0.0
  %412 = vmatpush.xpose.msra.mxu0 0.0
  %413 = vmatpush.xpose.msra.mxu0 0.0
  %414 = vmatpush.xpose.msra.mxu0 0.0
  %415 = vmatpush.xpose.msra.mxu0 0.0
  %416 = vmatpush.xpose.msra.mxu0 0.0
  %417 = vmatpush.xpose.msra.mxu0 0.0
  %418 = vmatpush.xpose.msra.mxu0 0.0
  %419 = vmatpush.xpose.msra.mxu0 0.0
  %420 = vmatpush.xpose.msra.mxu0 0.0
  %421 = vmatpush.xpose.msra.mxu0 %v404
  %422 = vmatmul.f32.gmra.mxu0 %v392
  %v423 = vpop.f32.mrf.mxu0
  %v424 = vadd.f32 0.0, %v423
  %425 = vmatmul.f32.gmra.mxu0 %v395
  %v426 = vpop.f32.mrf.mxu0
  %v427 = vadd.f32 0.0, %v426
  %428 = vmatmul.f32.gmra.mxu0 %v398
  %v429 = vpop.f32.mrf.mxu0
  %v430 = vadd.f32 0.0, %v429
  %431 = vmatmul.f32.gmra.mxu0 %v401
  %v432 = vpop.f32.mrf.mxu0
  %v433 = vadd.f32 0.0, %v432
  %434 = vdwg.mxu0
  %v436 = vsel %vm302, %v26, 0
  %v439 = vsel %vm302, %v27, 0
  %v442 = vsel %vm302, %v28, 0
  %v445 = vsel %vm302, %v29, 0
  %v448 = vsel %vm302, %v209, 0
  %450 = vmatpush.xpose.msra.mxu0 0.0
  %451 = vmatpush.xpose.msra.mxu0 0.0
  %452 = vmatpush.xpose.msra.mxu0 0.0
  %453 = vmatpush.xpose.msra.mxu0 0.0
  %454 = vmatpush.xpose.msra.mxu0 0.0
  %455 = vmatpush.xpose.msra.mxu0 0.0
  %456 = vmatpush.xpose.msra.mxu0 0.0
  %457 = vmatpush.xpose.msra.mxu0 0.0
  %458 = vmatpush.xpose.msra.mxu0 0.0
  %459 = vmatpush.xpose.msra.mxu0 0.0
  %460 = vmatpush.xpose.msra.mxu0 0.0
  %461 = vmatpush.xpose.msra.mxu0 0.0
  %462 = vmatpush.xpose.msra.mxu0 0.0
  %463 = vmatpush.xpose.msra.mxu0 0.0
  %464 = vmatpush.xpose.msra.mxu0 0.0
  %465 = vmatpush.xpose.msra.mxu0 %v448
  %466 = vmatmul.f32.gmra.mxu0 %v436
  %v467 = vpop.f32.mrf.mxu0
  %v468 = vadd.f32 0.0, %v467
  %469 = vmatmul.f32.gmra.mxu0 %v439
  %v470 = vpop.f32.mrf.mxu0
  %v471 = vadd.f32 0.0, %v470
  %472 = vmatmul.f32.gmra.mxu0 %v442
  %v473 = vpop.f32.mrf.mxu0
  %v474 = vadd.f32 0.0, %v473
  %475 = vmatmul.f32.gmra.mxu0 %v445
  %v476 = vpop.f32.mrf.mxu0
  %v477 = vadd.f32 0.0, %v476
  %478 = vdwg.mxu0
  %v480 = vsel %vm302, %v30, 0
  %v483 = vsel %vm302, %v31, 0
  %v486 = vsel %vm302, %v32, 0
  %v489 = vsel %vm302, %v33, 0
  %v492 = vsel %vm302, %v210, 0
  %494 = vmatpush.xpose.msra.mxu0 0.0
  %495 = vmatpush.xpose.msra.mxu0 0.0
  %496 = vmatpush.xpose.msra.mxu0 0.0
  %497 = vmatpush.xpose.msra.mxu0 0.0
  %498 = vmatpush.xpose.msra.mxu0 0.0
  %499 = vmatpush.xpose.msra.mxu0 0.0
  %500 = vmatpush.xpose.msra.mxu0 0.0
  %501 = vmatpush.xpose.msra.mxu0 0.0
  %502 = vmatpush.xpose.msra.mxu0 0.0
  %503 = vmatpush.xpose.msra.mxu0 0.0
  %504 = vmatpush.xpose.msra.mxu0 0.0
  %505 = vmatpush.xpose.msra.mxu0 0.0
  %506 = vmatpush.xpose.msra.mxu0 0.0
  %507 = vmatpush.xpose.msra.mxu0 0.0
  %508 = vmatpush.xpose.msra.mxu0 0.0
  %509 = vmatpush.xpose.msra.mxu0 %v492
  %510 = vmatmul.f32.gmra.mxu0 %v480
  %v511 = vpop.f32.mrf.mxu0
  %v512 = vadd.f32 0.0, %v511
  %513 = vmatmul.f32.gmra.mxu0 %v483
  %v514 = vpop.f32.mrf.mxu0
  %v515 = vadd.f32 0.0, %v514
  %516 = vmatmul.f32.gmra.mxu0 %v486
  %v517 = vpop.f32.mrf.mxu0
  %v518 = vadd.f32 0.0, %v517
  %519 = vmatmul.f32.gmra.mxu0 %v489
  %v520 = vpop.f32.mrf.mxu0
  %v521 = vadd.f32 0.0, %v520
  %522 = vdwg.mxu0
  %v524 = vsel %vm302, %v34, 0
  %v527 = vsel %vm302, %v35, 0
  %v530 = vsel %vm302, %v36, 0
  %v533 = vsel %vm302, %v37, 0
  %v536 = vsel %vm302, %v211, 0
  %538 = vmatpush.xpose.msra.mxu0 0.0
  %539 = vmatpush.xpose.msra.mxu0 0.0
  %540 = vmatpush.xpose.msra.mxu0 0.0
  %541 = vmatpush.xpose.msra.mxu0 0.0
  %542 = vmatpush.xpose.msra.mxu0 0.0
  %543 = vmatpush.xpose.msra.mxu0 0.0
  %544 = vmatpush.xpose.msra.mxu0 0.0
  %545 = vmatpush.xpose.msra.mxu0 0.0
  %546 = vmatpush.xpose.msra.mxu0 0.0
  %547 = vmatpush.xpose.msra.mxu0 0.0
  %548 = vmatpush.xpose.msra.mxu0 0.0
  %549 = vmatpush.xpose.msra.mxu0 0.0
  %550 = vmatpush.xpose.msra.mxu0 0.0
  %551 = vmatpush.xpose.msra.mxu0 0.0
  %552 = vmatpush.xpose.msra.mxu0 0.0
  %553 = vmatpush.xpose.msra.mxu0 %v536
  %554 = vmatmul.f32.gmra.mxu0 %v524
  %v555 = vpop.f32.mrf.mxu0
  %v556 = vadd.f32 0.0, %v555
  %557 = vmatmul.f32.gmra.mxu0 %v527
  %v558 = vpop.f32.mrf.mxu0
  %v559 = vadd.f32 0.0, %v558
  %560 = vmatmul.f32.gmra.mxu0 %v530
  %v561 = vpop.f32.mrf.mxu0
  %v562 = vadd.f32 0.0, %v561
  %563 = vmatmul.f32.gmra.mxu0 %v533
  %v564 = vpop.f32.mrf.mxu0
  %v565 = vadd.f32 0.0, %v564
  %566 = vdwg.mxu0
  %v568 = vsel %vm302, %v38, 0
  %v571 = vsel %vm302, %v39, 0
  %v574 = vsel %vm302, %v40, 0
  %v577 = vsel %vm302, %v41, 0
  %v580 = vsel %vm302, %v212, 0
  %582 = vmatpush.xpose.msra.mxu0 0.0
  %583 = vmatpush.xpose.msra.mxu0 0.0
  %584 = vmatpush.xpose.msra.mxu0 0.0
  %585 = vmatpush.xpose.msra.mxu0 0.0
  %586 = vmatpush.xpose.msra.mxu0 0.0
  %587 = vmatpush.xpose.msra.mxu0 0.0
  %588 = vmatpush.xpose.msra.mxu0 0.0
  %589 = vmatpush.xpose.msra.mxu0 0.0
  %590 = vmatpush.xpose.msra.mxu0 0.0
  %591 = vmatpush.xpose.msra.mxu0 0.0
  %592 = vmatpush.xpose.msra.mxu0 0.0
  %593 = vmatpush.xpose.msra.mxu0 0.0
  %594 = vmatpush.xpose.msra.mxu0 0.0
  %595 = vmatpush.xpose.msra.mxu0 0.0
  %596 = vmatpush.xpose.msra.mxu0 0.0
  %597 = vmatpush.xpose.msra.mxu0 %v580
  %598 = vmatmul.f32.gmra.mxu0 %v568
  %v599 = vpop.f32.mrf.mxu0
  %v600 = vadd.f32 0.0, %v599
  %601 = vmatmul.f32.gmra.mxu0 %v571
  %v602 = vpop.f32.mrf.mxu0
  %v603 = vadd.f32 0.0, %v602
  %604 = vmatmul.f32.gmra.mxu0 %v574
  %v605 = vpop.f32.mrf.mxu0
  %v606 = vadd.f32 0.0, %v605
  %607 = vmatmul.f32.gmra.mxu0 %v577
  %v608 = vpop.f32.mrf.mxu0
  %v609 = vadd.f32 0.0, %v608
  %610 = vdwg.mxu0
  %v612 = vsel %vm302, %v42, 0
  %v615 = vsel %vm302, %v43, 0
  %v618 = vsel %vm302, %v44, 0
  %v621 = vsel %vm302, %v45, 0
  %v624 = vsel %vm302, %v213, 0
  %626 = vmatpush.xpose.msra.mxu0 0.0
  %627 = vmatpush.xpose.msra.mxu0 0.0
  %628 = vmatpush.xpose.msra.mxu0 0.0
  %629 = vmatpush.xpose.msra.mxu0 0.0
  %630 = vmatpush.xpose.msra.mxu0 0.0
  %631 = vmatpush.xpose.msra.mxu0 0.0
  %632 = vmatpush.xpose.msra.mxu0 0.0
  %633 = vmatpush.xpose.msra.mxu0 0.0
  %634 = vmatpush.xpose.msra.mxu0 0.0
  %635 = vmatpush.xpose.msra.mxu0 0.0
  %636 = vmatpush.xpose.msra.mxu0 0.0
  %637 = vmatpush.xpose.msra.mxu0 0.0
  %638 = vmatpush.xpose.msra.mxu0 0.0
  %639 = vmatpush.xpose.msra.mxu0 0.0
  %640 = vmatpush.xpose.msra.mxu0 0.0
  %641 = vmatpush.xpose.msra.mxu0 %v624
  %642 = vmatmul.f32.gmra.mxu0 %v612
  %v643 = vpop.f32.mrf.mxu0
  %v644 = vadd.f32 0.0, %v643
  %645 = vmatmul.f32.gmra.mxu0 %v615
  %v646 = vpop.f32.mrf.mxu0
  %v647 = vadd.f32 0.0, %v646
  %648 = vmatmul.f32.gmra.mxu0 %v618
  %v649 = vpop.f32.mrf.mxu0
  %v650 = vadd.f32 0.0, %v649
  %651 = vmatmul.f32.gmra.mxu0 %v621
  %v652 = vpop.f32.mrf.mxu0
  %v653 = vadd.f32 0.0, %v652
  %654 = vdwg.mxu0
  %v656 = vsel %vm302, %v46, 0
  %v659 = vsel %vm302, %v47, 0
  %v662 = vsel %vm302, %v48, 0
  %v665 = vsel %vm302, %v49, 0
  %v668 = vsel %vm302, %v214, 0
  %670 = vmatpush.xpose.msra.mxu0 0.0
  %671 = vmatpush.xpose.msra.mxu0 0.0
  %672 = vmatpush.xpose.msra.mxu0 0.0
  %673 = vmatpush.xpose.msra.mxu0 0.0
  %674 = vmatpush.xpose.msra.mxu0 0.0
  %675 = vmatpush.xpose.msra.mxu0 0.0
  %676 = vmatpush.xpose.msra.mxu0 0.0
  %677 = vmatpush.xpose.msra.mxu0 0.0
  %678 = vmatpush.xpose.msra.mxu0 0.0
  %679 = vmatpush.xpose.msra.mxu0 0.0
  %680 = vmatpush.xpose.msra.mxu0 0.0
  %681 = vmatpush.xpose.msra.mxu0 0.0
  %682 = vmatpush.xpose.msra.mxu0 0.0
  %683 = vmatpush.xpose.msra.mxu0 0.0
  %684 = vmatpush.xpose.msra.mxu0 0.0
  %685 = vmatpush.xpose.msra.mxu0 %v668
  %686 = vmatmul.f32.gmra.mxu0 %v656
  %v687 = vpop.f32.mrf.mxu0
  %v688 = vadd.f32 0.0, %v687
  %689 = vmatmul.f32.gmra.mxu0 %v659
  %v690 = vpop.f32.mrf.mxu0
  %v691 = vadd.f32 0.0, %v690
  %692 = vmatmul.f32.gmra.mxu0 %v662
  %v693 = vpop.f32.mrf.mxu0
  %v694 = vadd.f32 0.0, %v693
  %695 = vmatmul.f32.gmra.mxu0 %v665
  %v696 = vpop.f32.mrf.mxu0
  %v697 = vadd.f32 0.0, %v696
  %698 = vdwg.mxu0
  %v700 = vsel %vm302, %v50, 0
  %v703 = vsel %vm302, %v51, 0
  %v706 = vsel %vm302, %v52, 0
  %v709 = vsel %vm302, %v53, 0
  %v712 = vsel %vm302, %v215, 0
  %714 = vmatpush.xpose.msra.mxu0 0.0
  %715 = vmatpush.xpose.msra.mxu0 0.0
  %716 = vmatpush.xpose.msra.mxu0 0.0
  %717 = vmatpush.xpose.msra.mxu0 0.0
  %718 = vmatpush.xpose.msra.mxu0 0.0
  %719 = vmatpush.xpose.msra.mxu0 0.0
  %720 = vmatpush.xpose.msra.mxu0 0.0
  %721 = vmatpush.xpose.msra.mxu0 0.0
  %722 = vmatpush.xpose.msra.mxu0 0.0
  %723 = vmatpush.xpose.msra.mxu0 0.0
  %724 = vmatpush.xpose.msra.mxu0 0.0
  %725 = vmatpush.xpose.msra.mxu0 0.0
  %726 = vmatpush.xpose.msra.mxu0 0.0
  %727 = vmatpush.xpose.msra.mxu0 0.0
  %728 = vmatpush.xpose.msra.mxu0 0.0
  %729 = vmatpush.xpose.msra.mxu0 %v712
  %730 = vmatmul.f32.gmra.mxu0 %v700
  %v731 = vpop.f32.mrf.mxu0
  %v732 = vadd.f32 0.0, %v731
  %733 = vmatmul.f32.gmra.mxu0 %v703
  %v734 = vpop.f32.mrf.mxu0
  %v735 = vadd.f32 0.0, %v734
  %736 = vmatmul.f32.gmra.mxu0 %v706
  %v737 = vpop.f32.mrf.mxu0
  %v738 = vadd.f32 0.0, %v737
  %739 = vmatmul.f32.gmra.mxu0 %v709
  %v740 = vpop.f32.mrf.mxu0
  %v741 = vadd.f32 0.0, %v740
  %742 = vdwg.mxu0
  %v744 = vsel %vm302, %v54, 0
  %v747 = vsel %vm302, %v55, 0
  %v750 = vsel %vm302, %v56, 0
  %v753 = vsel %vm302, %v57, 0
  %v756 = vsel %vm302, %v216, 0
  %758 = vmatpush.xpose.msra.mxu0 0.0
  %759 = vmatpush.xpose.msra.mxu0 0.0
  %760 = vmatpush.xpose.msra.mxu0 0.0
  %761 = vmatpush.xpose.msra.mxu0 0.0
  %762 = vmatpush.xpose.msra.mxu0 0.0
  %763 = vmatpush.xpose.msra.mxu0 0.0
  %764 = vmatpush.xpose.msra.mxu0 0.0
  %765 = vmatpush.xpose.msra.mxu0 0.0
  %766 = vmatpush.xpose.msra.mxu0 0.0
  %767 = vmatpush.xpose.msra.mxu0 0.0
  %768 = vmatpush.xpose.msra.mxu0 0.0
  %769 = vmatpush.xpose.msra.mxu0 0.0
  %770 = vmatpush.xpose.msra.mxu0 0.0
  %771 = vmatpush.xpose.msra.mxu0 0.0
  %772 = vmatpush.xpose.msra.mxu0 0.0
  %773 = vmatpush.xpose.msra.mxu0 %v756
  %774 = vmatmul.f32.gmra.mxu0 %v744
  %v775 = vpop.f32.mrf.mxu0
  %v776 = vadd.f32 0.0, %v775
  %777 = vmatmul.f32.gmra.mxu0 %v747
  %v778 = vpop.f32.mrf.mxu0
  %v779 = vadd.f32 0.0, %v778
  %780 = vmatmul.f32.gmra.mxu0 %v750
  %v781 = vpop.f32.mrf.mxu0
  %v782 = vadd.f32 0.0, %v781
  %783 = vmatmul.f32.gmra.mxu0 %v753
  %v784 = vpop.f32.mrf.mxu0
  %v785 = vadd.f32 0.0, %v784
  %786 = vdwg.mxu0
  %v788 = vsel %vm302, %v58, 0
  %v791 = vsel %vm302, %v59, 0
  %v794 = vsel %vm302, %v60, 0
  %v797 = vsel %vm302, %v61, 0
  %v800 = vsel %vm302, %v217, 0
  %802 = vmatpush.xpose.msra.mxu0 0.0
  %803 = vmatpush.xpose.msra.mxu0 0.0
  %804 = vmatpush.xpose.msra.mxu0 0.0
  %805 = vmatpush.xpose.msra.mxu0 0.0
  %806 = vmatpush.xpose.msra.mxu0 0.0
  %807 = vmatpush.xpose.msra.mxu0 0.0
  %808 = vmatpush.xpose.msra.mxu0 0.0
  %809 = vmatpush.xpose.msra.mxu0 0.0
  %810 = vmatpush.xpose.msra.mxu0 0.0
  %811 = vmatpush.xpose.msra.mxu0 0.0
  %812 = vmatpush.xpose.msra.mxu0 0.0
  %813 = vmatpush.xpose.msra.mxu0 0.0
  %814 = vmatpush.xpose.msra.mxu0 0.0
  %815 = vmatpush.xpose.msra.mxu0 0.0
  %816 = vmatpush.xpose.msra.mxu0 0.0
  %817 = vmatpush.xpose.msra.mxu0 %v800
  %818 = vmatmul.f32.gmra.mxu0 %v788
  %v819 = vpop.f32.mrf.mxu0
  %v820 = vadd.f32 0.0, %v819
  %821 = vmatmul.f32.gmra.mxu0 %v791
  %v822 = vpop.f32.mrf.mxu0
  %v823 = vadd.f32 0.0, %v822
  %824 = vmatmul.f32.gmra.mxu0 %v794
  %v825 = vpop.f32.mrf.mxu0
  %v826 = vadd.f32 0.0, %v825
  %827 = vmatmul.f32.gmra.mxu0 %v797
  %v828 = vpop.f32.mrf.mxu0
  %v829 = vadd.f32 0.0, %v828
  %830 = vdwg.mxu0
  %v832 = vsel %vm302, %v62, 0
  %v835 = vsel %vm302, %v63, 0
  %v838 = vsel %vm302, %v64, 0
  %v841 = vsel %vm302, %v65, 0
  %v844 = vsel %vm302, %v218, 0
  %846 = vmatpush.xpose.msra.mxu0 0.0
  %847 = vmatpush.xpose.msra.mxu0 0.0
  %848 = vmatpush.xpose.msra.mxu0 0.0
  %849 = vmatpush.xpose.msra.mxu0 0.0
  %850 = vmatpush.xpose.msra.mxu0 0.0
  %851 = vmatpush.xpose.msra.mxu0 0.0
  %852 = vmatpush.xpose.msra.mxu0 0.0
  %853 = vmatpush.xpose.msra.mxu0 0.0
  %854 = vmatpush.xpose.msra.mxu0 0.0
  %855 = vmatpush.xpose.msra.mxu0 0.0
  %856 = vmatpush.xpose.msra.mxu0 0.0
  %857 = vmatpush.xpose.msra.mxu0 0.0
  %858 = vmatpush.xpose.msra.mxu0 0.0
  %859 = vmatpush.xpose.msra.mxu0 0.0
  %860 = vmatpush.xpose.msra.mxu0 0.0
  %861 = vmatpush.xpose.msra.mxu0 %v844
  %862 = vmatmul.f32.gmra.mxu0 %v832
  %v863 = vpop.f32.mrf.mxu0
  %v864 = vadd.f32 0.0, %v863
  %865 = vmatmul.f32.gmra.mxu0 %v835
  %v866 = vpop.f32.mrf.mxu0
  %v867 = vadd.f32 0.0, %v866
  %868 = vmatmul.f32.gmra.mxu0 %v838
  %v869 = vpop.f32.mrf.mxu0
  %v870 = vadd.f32 0.0, %v869
  %871 = vmatmul.f32.gmra.mxu0 %v841
  %v872 = vpop.f32.mrf.mxu0
  %v873 = vadd.f32 0.0, %v872
  %874 = vdwg.mxu0
  %v876 = vsel %vm302, %v66, 0
  %v879 = vsel %vm302, %v67, 0
  %v882 = vsel %vm302, %v68, 0
  %v885 = vsel %vm302, %v69, 0
  %v888 = vsel %vm302, %v219, 0
  %890 = vmatpush.xpose.msra.mxu0 0.0
  %891 = vmatpush.xpose.msra.mxu0 0.0
  %892 = vmatpush.xpose.msra.mxu0 0.0
  %893 = vmatpush.xpose.msra.mxu0 0.0
  %894 = vmatpush.xpose.msra.mxu0 0.0
  %895 = vmatpush.xpose.msra.mxu0 0.0
  %896 = vmatpush.xpose.msra.mxu0 0.0
  %897 = vmatpush.xpose.msra.mxu0 0.0
  %898 = vmatpush.xpose.msra.mxu0 0.0
  %899 = vmatpush.xpose.msra.mxu0 0.0
  %900 = vmatpush.xpose.msra.mxu0 0.0
  %901 = vmatpush.xpose.msra.mxu0 0.0
  %902 = vmatpush.xpose.msra.mxu0 0.0
  %903 = vmatpush.xpose.msra.mxu0 0.0
  %904 = vmatpush.xpose.msra.mxu0 0.0
  %905 = vmatpush.xpose.msra.mxu0 %v888
  %906 = vmatmul.f32.gmra.mxu0 %v876
  %v907 = vpop.f32.mrf.mxu0
  %v908 = vadd.f32 0.0, %v907
  %909 = vmatmul.f32.gmra.mxu0 %v879
  %v910 = vpop.f32.mrf.mxu0
  %v911 = vadd.f32 0.0, %v910
  %912 = vmatmul.f32.gmra.mxu0 %v882
  %v913 = vpop.f32.mrf.mxu0
  %v914 = vadd.f32 0.0, %v913
  %915 = vmatmul.f32.gmra.mxu0 %v885
  %v916 = vpop.f32.mrf.mxu0
  %v917 = vadd.f32 0.0, %v916
  %918 = vdwg.mxu0
  %v920 = vsel %vm302, %v70, 0
  %v923 = vsel %vm302, %v71, 0
  %v926 = vsel %vm302, %v72, 0
  %v929 = vsel %vm302, %v73, 0
  %v932 = vsel %vm302, %v220, 0
  %934 = vmatpush.xpose.msra.mxu0 0.0
  %935 = vmatpush.xpose.msra.mxu0 0.0
  %936 = vmatpush.xpose.msra.mxu0 0.0
  %937 = vmatpush.xpose.msra.mxu0 0.0
  %938 = vmatpush.xpose.msra.mxu0 0.0
  %939 = vmatpush.xpose.msra.mxu0 0.0
  %940 = vmatpush.xpose.msra.mxu0 0.0
  %941 = vmatpush.xpose.msra.mxu0 0.0
  %942 = vmatpush.xpose.msra.mxu0 0.0
  %943 = vmatpush.xpose.msra.mxu0 0.0
  %944 = vmatpush.xpose.msra.mxu0 0.0
  %945 = vmatpush.xpose.msra.mxu0 0.0
  %946 = vmatpush.xpose.msra.mxu0 0.0
  %947 = vmatpush.xpose.msra.mxu0 0.0
  %948 = vmatpush.xpose.msra.mxu0 0.0
  %949 = vmatpush.xpose.msra.mxu0 %v932
  %950 = vmatmul.f32.gmra.mxu0 %v920
  %v951 = vpop.f32.mrf.mxu0
  %v952 = vadd.f32 0.0, %v951
  %953 = vmatmul.f32.gmra.mxu0 %v923
  %v954 = vpop.f32.mrf.mxu0
  %v955 = vadd.f32 0.0, %v954
  %956 = vmatmul.f32.gmra.mxu0 %v926
  %v957 = vpop.f32.mrf.mxu0
  %v958 = vadd.f32 0.0, %v957
  %959 = vmatmul.f32.gmra.mxu0 %v929
  %v960 = vpop.f32.mrf.mxu0
  %v961 = vadd.f32 0.0, %v960
  %962 = vdwg.mxu0
  %v964 = vsel %vm302, %v74, 0
  %v967 = vsel %vm302, %v75, 0
  %v970 = vsel %vm302, %v76, 0
  %v973 = vsel %vm302, %v77, 0
  %v976 = vsel %vm302, %v221, 0
  %978 = vmatpush.xpose.msra.mxu0 0.0
  %979 = vmatpush.xpose.msra.mxu0 0.0
  %980 = vmatpush.xpose.msra.mxu0 0.0
  %981 = vmatpush.xpose.msra.mxu0 0.0
  %982 = vmatpush.xpose.msra.mxu0 0.0
  %983 = vmatpush.xpose.msra.mxu0 0.0
  %984 = vmatpush.xpose.msra.mxu0 0.0
  %985 = vmatpush.xpose.msra.mxu0 0.0
  %986 = vmatpush.xpose.msra.mxu0 0.0
  %987 = vmatpush.xpose.msra.mxu0 0.0
  %988 = vmatpush.xpose.msra.mxu0 0.0
  %989 = vmatpush.xpose.msra.mxu0 0.0
  %990 = vmatpush.xpose.msra.mxu0 0.0
  %991 = vmatpush.xpose.msra.mxu0 0.0
  %992 = vmatpush.xpose.msra.mxu0 0.0
  %993 = vmatpush.xpose.msra.mxu0 %v976
  %994 = vmatmul.f32.gmra.mxu0 %v964
  %v995 = vpop.f32.mrf.mxu0
  %v996 = vadd.f32 0.0, %v995
  %997 = vmatmul.f32.gmra.mxu0 %v967
  %v998 = vpop.f32.mrf.mxu0
  %v999 = vadd.f32 0.0, %v998
  %1000 = vmatmul.f32.gmra.mxu0 %v970
  %v1001 = vpop.f32.mrf.mxu0
  %v1002 = vadd.f32 0.0, %v1001
  %1003 = vmatmul.f32.gmra.mxu0 %v973
  %v1004 = vpop.f32.mrf.mxu0
  %v1005 = vadd.f32 0.0, %v1004
  %1006 = vdwg.mxu0
  %v1008 = vsel %vm302, %v78, 0
  %v1011 = vsel %vm302, %v79, 0
  %v1014 = vsel %vm302, %v80, 0
  %v1017 = vsel %vm302, %v81, 0
  %v1020 = vsel %vm302, %v222, 0
  %1022 = vmatpush.xpose.msra.mxu0 0.0
  %1023 = vmatpush.xpose.msra.mxu0 0.0
  %1024 = vmatpush.xpose.msra.mxu0 0.0
  %1025 = vmatpush.xpose.msra.mxu0 0.0
  %1026 = vmatpush.xpose.msra.mxu0 0.0
  %1027 = vmatpush.xpose.msra.mxu0 0.0
  %1028 = vmatpush.xpose.msra.mxu0 0.0
  %1029 = vmatpush.xpose.msra.mxu0 0.0
  %1030 = vmatpush.xpose.msra.mxu0 0.0
  %1031 = vmatpush.xpose.msra.mxu0 0.0
  %1032 = vmatpush.xpose.msra.mxu0 0.0
  %1033 = vmatpush.xpose.msra.mxu0 0.0
  %1034 = vmatpush.xpose.msra.mxu0 0.0
  %1035 = vmatpush.xpose.msra.mxu0 0.0
  %1036 = vmatpush.xpose.msra.mxu0 0.0
  %1037 = vmatpush.xpose.msra.mxu0 %v1020
  %1038 = vmatmul.f32.gmra.mxu0 %v1008
  %v1039 = vpop.f32.mrf.mxu0
  %v1040 = vadd.f32 0.0, %v1039
  %1041 = vmatmul.f32.gmra.mxu0 %v1011
  %v1042 = vpop.f32.mrf.mxu0
  %v1043 = vadd.f32 0.0, %v1042
  %1044 = vmatmul.f32.gmra.mxu0 %v1014
  %v1045 = vpop.f32.mrf.mxu0
  %v1046 = vadd.f32 0.0, %v1045
  %1047 = vmatmul.f32.gmra.mxu0 %v1017
  %v1048 = vpop.f32.mrf.mxu0
  %v1049 = vadd.f32 0.0, %v1048
  %1050 = vdwg.mxu0
  %v1052 = vsel %vm302, %v82, 0
  %v1055 = vsel %vm302, %v83, 0
  %v1058 = vsel %vm302, %v84, 0
  %v1061 = vsel %vm302, %v85, 0
  %v1064 = vsel %vm302, %v223, 0
  %1066 = vmatpush.xpose.msra.mxu0 0.0
  %1067 = vmatpush.xpose.msra.mxu0 0.0
  %1068 = vmatpush.xpose.msra.mxu0 0.0
  %1069 = vmatpush.xpose.msra.mxu0 0.0
  %1070 = vmatpush.xpose.msra.mxu0 0.0
  %1071 = vmatpush.xpose.msra.mxu0 0.0
  %1072 = vmatpush.xpose.msra.mxu0 0.0
  %1073 = vmatpush.xpose.msra.mxu0 0.0
  %1074 = vmatpush.xpose.msra.mxu0 0.0
  %1075 = vmatpush.xpose.msra.mxu0 0.0
  %1076 = vmatpush.xpose.msra.mxu0 0.0
  %1077 = vmatpush.xpose.msra.mxu0 0.0
  %1078 = vmatpush.xpose.msra.mxu0 0.0
  %1079 = vmatpush.xpose.msra.mxu0 0.0
  %1080 = vmatpush.xpose.msra.mxu0 0.0
  %1081 = vmatpush.xpose.msra.mxu0 %v1064
  %1082 = vmatmul.f32.gmra.mxu0 %v1052
  %v1083 = vpop.f32.mrf.mxu0
  %v1084 = vadd.f32 0.0, %v1083
  %1085 = vmatmul.f32.gmra.mxu0 %v1055
  %v1086 = vpop.f32.mrf.mxu0
  %v1087 = vadd.f32 0.0, %v1086
  %1088 = vmatmul.f32.gmra.mxu0 %v1058
  %v1089 = vpop.f32.mrf.mxu0
  %v1090 = vadd.f32 0.0, %v1089
  %1091 = vmatmul.f32.gmra.mxu0 %v1061
  %v1092 = vpop.f32.mrf.mxu0
  %v1093 = vadd.f32 0.0, %v1092
  %1094 = vdwg.mxu0
  %v1096 = vsel %vm302, %v86, 0
  %v1099 = vsel %vm302, %v87, 0
  %v1102 = vsel %vm302, %v88, 0
  %v1105 = vsel %vm302, %v89, 0
  %v1108 = vsel %vm302, %v224, 0
  %1110 = vmatpush.xpose.msra.mxu0 0.0
  %1111 = vmatpush.xpose.msra.mxu0 0.0
  %1112 = vmatpush.xpose.msra.mxu0 0.0
  %1113 = vmatpush.xpose.msra.mxu0 0.0
  %1114 = vmatpush.xpose.msra.mxu0 0.0
  %1115 = vmatpush.xpose.msra.mxu0 0.0
  %1116 = vmatpush.xpose.msra.mxu0 0.0
  %1117 = vmatpush.xpose.msra.mxu0 0.0
  %1118 = vmatpush.xpose.msra.mxu0 0.0
  %1119 = vmatpush.xpose.msra.mxu0 0.0
  %1120 = vmatpush.xpose.msra.mxu0 0.0
  %1121 = vmatpush.xpose.msra.mxu0 0.0
  %1122 = vmatpush.xpose.msra.mxu0 0.0
  %1123 = vmatpush.xpose.msra.mxu0 0.0
  %1124 = vmatpush.xpose.msra.mxu0 0.0
  %1125 = vmatpush.xpose.msra.mxu0 %v1108
  %1126 = vmatmul.f32.gmra.mxu0 %v1096
  %v1127 = vpop.f32.mrf.mxu0
  %v1128 = vadd.f32 0.0, %v1127
  %1129 = vmatmul.f32.gmra.mxu0 %v1099
  %v1130 = vpop.f32.mrf.mxu0
  %v1131 = vadd.f32 0.0, %v1130
  %1132 = vmatmul.f32.gmra.mxu0 %v1102
  %v1133 = vpop.f32.mrf.mxu0
  %v1134 = vadd.f32 0.0, %v1133
  %1135 = vmatmul.f32.gmra.mxu0 %v1105
  %v1136 = vpop.f32.mrf.mxu0
  %v1137 = vadd.f32 0.0, %v1136
  %1138 = vdwg.mxu0
  %v1140 = vsel %vm302, %v90, 0
  %v1143 = vsel %vm302, %v91, 0
  %v1146 = vsel %vm302, %v92, 0
  %v1149 = vsel %vm302, %v93, 0
  %v1152 = vsel %vm302, %v225, 0
  %1154 = vmatpush.xpose.msra.mxu0 0.0
  %1155 = vmatpush.xpose.msra.mxu0 0.0
  %1156 = vmatpush.xpose.msra.mxu0 0.0
  %1157 = vmatpush.xpose.msra.mxu0 0.0
  %1158 = vmatpush.xpose.msra.mxu0 0.0
  %1159 = vmatpush.xpose.msra.mxu0 0.0
  %1160 = vmatpush.xpose.msra.mxu0 0.0
  %1161 = vmatpush.xpose.msra.mxu0 0.0
  %1162 = vmatpush.xpose.msra.mxu0 0.0
  %1163 = vmatpush.xpose.msra.mxu0 0.0
  %1164 = vmatpush.xpose.msra.mxu0 0.0
  %1165 = vmatpush.xpose.msra.mxu0 0.0
  %1166 = vmatpush.xpose.msra.mxu0 0.0
  %1167 = vmatpush.xpose.msra.mxu0 0.0
  %1168 = vmatpush.xpose.msra.mxu0 0.0
  %1169 = vmatpush.xpose.msra.mxu0 %v1152
  %1170 = vmatmul.f32.gmra.mxu0 %v1140
  %v1171 = vpop.f32.mrf.mxu0
  %v1172 = vadd.f32 0.0, %v1171
  %1173 = vmatmul.f32.gmra.mxu0 %v1143
  %v1174 = vpop.f32.mrf.mxu0
  %v1175 = vadd.f32 0.0, %v1174
  %1176 = vmatmul.f32.gmra.mxu0 %v1146
  %v1177 = vpop.f32.mrf.mxu0
  %v1178 = vadd.f32 0.0, %v1177
  %1179 = vmatmul.f32.gmra.mxu0 %v1149
  %v1180 = vpop.f32.mrf.mxu0
  %v1181 = vadd.f32 0.0, %v1180
  %1182 = vdwg.mxu0
  %v1184 = vsel %vm302, %v94, 0
  %v1187 = vsel %vm302, %v95, 0
  %v1190 = vsel %vm302, %v96, 0
  %v1193 = vsel %vm302, %v97, 0
  %v1196 = vsel %vm302, %v226, 0
  %1198 = vmatpush.xpose.msra.mxu0 0.0
  %1199 = vmatpush.xpose.msra.mxu0 0.0
  %1200 = vmatpush.xpose.msra.mxu0 0.0
  %1201 = vmatpush.xpose.msra.mxu0 0.0
  %1202 = vmatpush.xpose.msra.mxu0 0.0
  %1203 = vmatpush.xpose.msra.mxu0 0.0
  %1204 = vmatpush.xpose.msra.mxu0 0.0
  %1205 = vmatpush.xpose.msra.mxu0 0.0
  %1206 = vmatpush.xpose.msra.mxu0 0.0
  %1207 = vmatpush.xpose.msra.mxu0 0.0
  %1208 = vmatpush.xpose.msra.mxu0 0.0
  %1209 = vmatpush.xpose.msra.mxu0 0.0
  %1210 = vmatpush.xpose.msra.mxu0 0.0
  %1211 = vmatpush.xpose.msra.mxu0 0.0
  %1212 = vmatpush.xpose.msra.mxu0 0.0
  %1213 = vmatpush.xpose.msra.mxu0 %v1196
  %1214 = vmatmul.f32.gmra.mxu0 %v1184
  %v1215 = vpop.f32.mrf.mxu0
  %v1216 = vadd.f32 0.0, %v1215
  %1217 = vmatmul.f32.gmra.mxu0 %v1187
  %v1218 = vpop.f32.mrf.mxu0
  %v1219 = vadd.f32 0.0, %v1218
  %1220 = vmatmul.f32.gmra.mxu0 %v1190
  %v1221 = vpop.f32.mrf.mxu0
  %v1222 = vadd.f32 0.0, %v1221
  %1223 = vmatmul.f32.gmra.mxu0 %v1193
  %v1224 = vpop.f32.mrf.mxu0
  %v1225 = vadd.f32 0.0, %v1224
  %1226 = vdwg.mxu0
  %v1228 = vsel %vm302, %v98, 0
  %v1231 = vsel %vm302, %v99, 0
  %v1234 = vsel %vm302, %v100, 0
  %v1237 = vsel %vm302, %v101, 0
  %v1240 = vsel %vm302, %v227, 0
  %1242 = vmatpush.xpose.msra.mxu0 0.0
  %1243 = vmatpush.xpose.msra.mxu0 0.0
  %1244 = vmatpush.xpose.msra.mxu0 0.0
  %1245 = vmatpush.xpose.msra.mxu0 0.0
  %1246 = vmatpush.xpose.msra.mxu0 0.0
  %1247 = vmatpush.xpose.msra.mxu0 0.0
  %1248 = vmatpush.xpose.msra.mxu0 0.0
  %1249 = vmatpush.xpose.msra.mxu0 0.0
  %1250 = vmatpush.xpose.msra.mxu0 0.0
  %1251 = vmatpush.xpose.msra.mxu0 0.0
  %1252 = vmatpush.xpose.msra.mxu0 0.0
  %1253 = vmatpush.xpose.msra.mxu0 0.0
  %1254 = vmatpush.xpose.msra.mxu0 0.0
  %1255 = vmatpush.xpose.msra.mxu0 0.0
  %1256 = vmatpush.xpose.msra.mxu0 0.0
  %1257 = vmatpush.xpose.msra.mxu0 %v1240
  %1258 = vmatmul.f32.gmra.mxu0 %v1228
  %v1259 = vpop.f32.mrf.mxu0
  %v1260 = vadd.f32 0.0, %v1259
  %1261 = vmatmul.f32.gmra.mxu0 %v1231
  %v1262 = vpop.f32.mrf.mxu0
  %v1263 = vadd.f32 0.0, %v1262
  %1264 = vmatmul.f32.gmra.mxu0 %v1234
  %v1265 = vpop.f32.mrf.mxu0
  %v1266 = vadd.f32 0.0, %v1265
  %1267 = vmatmul.f32.gmra.mxu0 %v1237
  %v1268 = vpop.f32.mrf.mxu0
  %v1269 = vadd.f32 0.0, %v1268
  %1270 = vdwg.mxu0
  %v1272 = vsel %vm302, %v102, 0
  %v1275 = vsel %vm302, %v103, 0
  %v1278 = vsel %vm302, %v104, 0
  %v1281 = vsel %vm302, %v105, 0
  %v1284 = vsel %vm302, %v228, 0
  %1286 = vmatpush.xpose.msra.mxu0 0.0
  %1287 = vmatpush.xpose.msra.mxu0 0.0
  %1288 = vmatpush.xpose.msra.mxu0 0.0
  %1289 = vmatpush.xpose.msra.mxu0 0.0
  %1290 = vmatpush.xpose.msra.mxu0 0.0
  %1291 = vmatpush.xpose.msra.mxu0 0.0
  %1292 = vmatpush.xpose.msra.mxu0 0.0
  %1293 = vmatpush.xpose.msra.mxu0 0.0
  %1294 = vmatpush.xpose.msra.mxu0 0.0
  %1295 = vmatpush.xpose.msra.mxu0 0.0
  %1296 = vmatpush.xpose.msra.mxu0 0.0
  %1297 = vmatpush.xpose.msra.mxu0 0.0
  %1298 = vmatpush.xpose.msra.mxu0 0.0
  %1299 = vmatpush.xpose.msra.mxu0 0.0
  %1300 = vmatpush.xpose.msra.mxu0 0.0
  %1301 = vmatpush.xpose.msra.mxu0 %v1284
  %1302 = vmatmul.f32.gmra.mxu0 %v1272
  %v1303 = vpop.f32.mrf.mxu0
  %v1304 = vadd.f32 0.0, %v1303
  %1305 = vmatmul.f32.gmra.mxu0 %v1275
  %v1306 = vpop.f32.mrf.mxu0
  %v1307 = vadd.f32 0.0, %v1306
  %1308 = vmatmul.f32.gmra.mxu0 %v1278
  %v1309 = vpop.f32.mrf.mxu0
  %v1310 = vadd.f32 0.0, %v1309
  %1311 = vmatmul.f32.gmra.mxu0 %v1281
  %v1312 = vpop.f32.mrf.mxu0
  %v1313 = vadd.f32 0.0, %v1312
  %1314 = vdwg.mxu0
  %v1316 = vsel %vm302, %v106, 0
  %v1319 = vsel %vm302, %v107, 0
  %v1322 = vsel %vm302, %v108, 0
  %v1325 = vsel %vm302, %v109, 0
  %v1328 = vsel %vm302, %v229, 0
  %1330 = vmatpush.xpose.msra.mxu0 0.0
  %1331 = vmatpush.xpose.msra.mxu0 0.0
  %1332 = vmatpush.xpose.msra.mxu0 0.0
  %1333 = vmatpush.xpose.msra.mxu0 0.0
  %1334 = vmatpush.xpose.msra.mxu0 0.0
  %1335 = vmatpush.xpose.msra.mxu0 0.0
  %1336 = vmatpush.xpose.msra.mxu0 0.0
  %1337 = vmatpush.xpose.msra.mxu0 0.0
  %1338 = vmatpush.xpose.msra.mxu0 0.0
  %1339 = vmatpush.xpose.msra.mxu0 0.0
  %1340 = vmatpush.xpose.msra.mxu0 0.0
  %1341 = vmatpush.xpose.msra.mxu0 0.0
  %1342 = vmatpush.xpose.msra.mxu0 0.0
  %1343 = vmatpush.xpose.msra.mxu0 0.0
  %1344 = vmatpush.xpose.msra.mxu0 0.0
  %1345 = vmatpush.xpose.msra.mxu0 %v1328
  %1346 = vmatmul.f32.gmra.mxu0 %v1316
  %v1347 = vpop.f32.mrf.mxu0
  %v1348 = vadd.f32 0.0, %v1347
  %1349 = vmatmul.f32.gmra.mxu0 %v1319
  %v1350 = vpop.f32.mrf.mxu0
  %v1351 = vadd.f32 0.0, %v1350
  %1352 = vmatmul.f32.gmra.mxu0 %v1322
  %v1353 = vpop.f32.mrf.mxu0
  %v1354 = vadd.f32 0.0, %v1353
  %1355 = vmatmul.f32.gmra.mxu0 %v1325
  %v1356 = vpop.f32.mrf.mxu0
  %v1357 = vadd.f32 0.0, %v1356
  %1358 = vdwg.mxu0
  %v1360 = vsel %vm302, %v110, 0
  %v1363 = vsel %vm302, %v111, 0
  %v1366 = vsel %vm302, %v112, 0
  %v1369 = vsel %vm302, %v113, 0
  %v1372 = vsel %vm302, %v230, 0
  %1374 = vmatpush.xpose.msra.mxu0 0.0
  %1375 = vmatpush.xpose.msra.mxu0 0.0
  %1376 = vmatpush.xpose.msra.mxu0 0.0
  %1377 = vmatpush.xpose.msra.mxu0 0.0
  %1378 = vmatpush.xpose.msra.mxu0 0.0
  %1379 = vmatpush.xpose.msra.mxu0 0.0
  %1380 = vmatpush.xpose.msra.mxu0 0.0
  %1381 = vmatpush.xpose.msra.mxu0 0.0
  %1382 = vmatpush.xpose.msra.mxu0 0.0
  %1383 = vmatpush.xpose.msra.mxu0 0.0
  %1384 = vmatpush.xpose.msra.mxu0 0.0
  %1385 = vmatpush.xpose.msra.mxu0 0.0
  %1386 = vmatpush.xpose.msra.mxu0 0.0
  %1387 = vmatpush.xpose.msra.mxu0 0.0
  %1388 = vmatpush.xpose.msra.mxu0 0.0
  %1389 = vmatpush.xpose.msra.mxu0 %v1372
  %1390 = vmatmul.f32.gmra.mxu0 %v1360
  %v1391 = vpop.f32.mrf.mxu0
  %v1392 = vadd.f32 0.0, %v1391
  %1393 = vmatmul.f32.gmra.mxu0 %v1363
  %v1394 = vpop.f32.mrf.mxu0
  %v1395 = vadd.f32 0.0, %v1394
  %1396 = vmatmul.f32.gmra.mxu0 %v1366
  %v1397 = vpop.f32.mrf.mxu0
  %v1398 = vadd.f32 0.0, %v1397
  %1399 = vmatmul.f32.gmra.mxu0 %v1369
  %v1400 = vpop.f32.mrf.mxu0
  %v1401 = vadd.f32 0.0, %v1400
  %1402 = vdwg.mxu0
  %v1404 = vsel %vm302, %v114, 0
  %v1407 = vsel %vm302, %v115, 0
  %v1410 = vsel %vm302, %v116, 0
  %v1413 = vsel %vm302, %v117, 0
  %v1416 = vsel %vm302, %v231, 0
  %1418 = vmatpush.xpose.msra.mxu0 0.0
  %1419 = vmatpush.xpose.msra.mxu0 0.0
  %1420 = vmatpush.xpose.msra.mxu0 0.0
  %1421 = vmatpush.xpose.msra.mxu0 0.0
  %1422 = vmatpush.xpose.msra.mxu0 0.0
  %1423 = vmatpush.xpose.msra.mxu0 0.0
  %1424 = vmatpush.xpose.msra.mxu0 0.0
  %1425 = vmatpush.xpose.msra.mxu0 0.0
  %1426 = vmatpush.xpose.msra.mxu0 0.0
  %1427 = vmatpush.xpose.msra.mxu0 0.0
  %1428 = vmatpush.xpose.msra.mxu0 0.0
  %1429 = vmatpush.xpose.msra.mxu0 0.0
  %1430 = vmatpush.xpose.msra.mxu0 0.0
  %1431 = vmatpush.xpose.msra.mxu0 0.0
  %1432 = vmatpush.xpose.msra.mxu0 0.0
  %1433 = vmatpush.xpose.msra.mxu0 %v1416
  %1434 = vmatmul.f32.gmra.mxu0 %v1404
  %v1435 = vpop.f32.mrf.mxu0
  %v1436 = vadd.f32 0.0, %v1435
  %1437 = vmatmul.f32.gmra.mxu0 %v1407
  %v1438 = vpop.f32.mrf.mxu0
  %v1439 = vadd.f32 0.0, %v1438
  %1440 = vmatmul.f32.gmra.mxu0 %v1410
  %v1441 = vpop.f32.mrf.mxu0
  %v1442 = vadd.f32 0.0, %v1441
  %1443 = vmatmul.f32.gmra.mxu0 %v1413
  %v1444 = vpop.f32.mrf.mxu0
  %v1445 = vadd.f32 0.0, %v1444
  %1446 = vdwg.mxu0
  %v1448 = vsel %vm302, %v118, 0
  %v1451 = vsel %vm302, %v119, 0
  %v1454 = vsel %vm302, %v120, 0
  %v1457 = vsel %vm302, %v121, 0
  %v1460 = vsel %vm302, %v232, 0
  %1462 = vmatpush.xpose.msra.mxu0 0.0
  %1463 = vmatpush.xpose.msra.mxu0 0.0
  %1464 = vmatpush.xpose.msra.mxu0 0.0
  %1465 = vmatpush.xpose.msra.mxu0 0.0
  %1466 = vmatpush.xpose.msra.mxu0 0.0
  %1467 = vmatpush.xpose.msra.mxu0 0.0
  %1468 = vmatpush.xpose.msra.mxu0 0.0
  %1469 = vmatpush.xpose.msra.mxu0 0.0
  %1470 = vmatpush.xpose.msra.mxu0 0.0
  %1471 = vmatpush.xpose.msra.mxu0 0.0
  %1472 = vmatpush.xpose.msra.mxu0 0.0
  %1473 = vmatpush.xpose.msra.mxu0 0.0
  %1474 = vmatpush.xpose.msra.mxu0 0.0
  %1475 = vmatpush.xpose.msra.mxu0 0.0
  %1476 = vmatpush.xpose.msra.mxu0 0.0
  %1477 = vmatpush.xpose.msra.mxu0 %v1460
  %1478 = vmatmul.f32.gmra.mxu0 %v1448
  %v1479 = vpop.f32.mrf.mxu0
  %v1480 = vadd.f32 0.0, %v1479
  %1481 = vmatmul.f32.gmra.mxu0 %v1451
  %v1482 = vpop.f32.mrf.mxu0
  %v1483 = vadd.f32 0.0, %v1482
  %1484 = vmatmul.f32.gmra.mxu0 %v1454
  %v1485 = vpop.f32.mrf.mxu0
  %v1486 = vadd.f32 0.0, %v1485
  %1487 = vmatmul.f32.gmra.mxu0 %v1457
  %v1488 = vpop.f32.mrf.mxu0
  %v1489 = vadd.f32 0.0, %v1488
  %1490 = vdwg.mxu0
  %v1492 = vsel %vm302, %v122, 0
  %v1495 = vsel %vm302, %v123, 0
  %v1498 = vsel %vm302, %v124, 0
  %v1501 = vsel %vm302, %v125, 0
  %v1504 = vsel %vm302, %v233, 0
  %1506 = vmatpush.xpose.msra.mxu0 0.0
  %1507 = vmatpush.xpose.msra.mxu0 0.0
  %1508 = vmatpush.xpose.msra.mxu0 0.0
  %1509 = vmatpush.xpose.msra.mxu0 0.0
  %1510 = vmatpush.xpose.msra.mxu0 0.0
  %1511 = vmatpush.xpose.msra.mxu0 0.0
  %1512 = vmatpush.xpose.msra.mxu0 0.0
  %1513 = vmatpush.xpose.msra.mxu0 0.0
  %1514 = vmatpush.xpose.msra.mxu0 0.0
  %1515 = vmatpush.xpose.msra.mxu0 0.0
  %1516 = vmatpush.xpose.msra.mxu0 0.0
  %1517 = vmatpush.xpose.msra.mxu0 0.0
  %1518 = vmatpush.xpose.msra.mxu0 0.0
  %1519 = vmatpush.xpose.msra.mxu0 0.0
  %1520 = vmatpush.xpose.msra.mxu0 0.0
  %1521 = vmatpush.xpose.msra.mxu0 %v1504
  %1522 = vmatmul.f32.gmra.mxu0 %v1492
  %v1523 = vpop.f32.mrf.mxu0
  %v1524 = vadd.f32 0.0, %v1523
  %1525 = vmatmul.f32.gmra.mxu0 %v1495
  %v1526 = vpop.f32.mrf.mxu0
  %v1527 = vadd.f32 0.0, %v1526
  %1528 = vmatmul.f32.gmra.mxu0 %v1498
  %v1529 = vpop.f32.mrf.mxu0
  %v1530 = vadd.f32 0.0, %v1529
  %1531 = vmatmul.f32.gmra.mxu0 %v1501
  %v1532 = vpop.f32.mrf.mxu0
  %v1533 = vadd.f32 0.0, %v1532
  %1534 = vdwg.mxu0
  %v1536 = vsel %vm302, %v126, 0
  %v1539 = vsel %vm302, %v127, 0
  %v1542 = vsel %vm302, %v128, 0
  %v1545 = vsel %vm302, %v129, 0
  %v1548 = vsel %vm302, %v234, 0
  %1550 = vmatpush.xpose.msra.mxu0 0.0
  %1551 = vmatpush.xpose.msra.mxu0 0.0
  %1552 = vmatpush.xpose.msra.mxu0 0.0
  %1553 = vmatpush.xpose.msra.mxu0 0.0
  %1554 = vmatpush.xpose.msra.mxu0 0.0
  %1555 = vmatpush.xpose.msra.mxu0 0.0
  %1556 = vmatpush.xpose.msra.mxu0 0.0
  %1557 = vmatpush.xpose.msra.mxu0 0.0
  %1558 = vmatpush.xpose.msra.mxu0 0.0
  %1559 = vmatpush.xpose.msra.mxu0 0.0
  %1560 = vmatpush.xpose.msra.mxu0 0.0
  %1561 = vmatpush.xpose.msra.mxu0 0.0
  %1562 = vmatpush.xpose.msra.mxu0 0.0
  %1563 = vmatpush.xpose.msra.mxu0 0.0
  %1564 = vmatpush.xpose.msra.mxu0 0.0
  %1565 = vmatpush.xpose.msra.mxu0 %v1548
  %1566 = vmatmul.f32.gmra.mxu0 %v1536
  %v1567 = vpop.f32.mrf.mxu0
  %v1568 = vadd.f32 0.0, %v1567
  %1569 = vmatmul.f32.gmra.mxu0 %v1539
  %v1570 = vpop.f32.mrf.mxu0
  %v1571 = vadd.f32 0.0, %v1570
  %1572 = vmatmul.f32.gmra.mxu0 %v1542
  %v1573 = vpop.f32.mrf.mxu0
  %v1574 = vadd.f32 0.0, %v1573
  %1575 = vmatmul.f32.gmra.mxu0 %v1545
  %v1576 = vpop.f32.mrf.mxu0
  %v1577 = vadd.f32 0.0, %v1576
  %1578 = vdwg.mxu0
  %v1580 = vsel %vm302, %v130, 0
  %v1583 = vsel %vm302, %v131, 0
  %v1586 = vsel %vm302, %v132, 0
  %v1589 = vsel %vm302, %v133, 0
  %v1592 = vsel %vm302, %v235, 0
  %1594 = vmatpush.xpose.msra.mxu0 0.0
  %1595 = vmatpush.xpose.msra.mxu0 0.0
  %1596 = vmatpush.xpose.msra.mxu0 0.0
  %1597 = vmatpush.xpose.msra.mxu0 0.0
  %1598 = vmatpush.xpose.msra.mxu0 0.0
  %1599 = vmatpush.xpose.msra.mxu0 0.0
  %1600 = vmatpush.xpose.msra.mxu0 0.0
  %1601 = vmatpush.xpose.msra.mxu0 0.0
  %1602 = vmatpush.xpose.msra.mxu0 0.0
  %1603 = vmatpush.xpose.msra.mxu0 0.0
  %1604 = vmatpush.xpose.msra.mxu0 0.0
  %1605 = vmatpush.xpose.msra.mxu0 0.0
  %1606 = vmatpush.xpose.msra.mxu0 0.0
  %1607 = vmatpush.xpose.msra.mxu0 0.0
  %1608 = vmatpush.xpose.msra.mxu0 0.0
  %1609 = vmatpush.xpose.msra.mxu0 %v1592
  %1610 = vmatmul.f32.gmra.mxu0 %v1580
  %v1611 = vpop.f32.mrf.mxu0
  %v1612 = vadd.f32 0.0, %v1611
  %1613 = vmatmul.f32.gmra.mxu0 %v1583
  %v1614 = vpop.f32.mrf.mxu0
  %v1615 = vadd.f32 0.0, %v1614
  %1616 = vmatmul.f32.gmra.mxu0 %v1586
  %v1617 = vpop.f32.mrf.mxu0
  %v1618 = vadd.f32 0.0, %v1617
  %1619 = vmatmul.f32.gmra.mxu0 %v1589
  %v1620 = vpop.f32.mrf.mxu0
  %v1621 = vadd.f32 0.0, %v1620
  %1622 = vdwg.mxu0
  %v1624 = vsel %vm302, %v134, 0
  %v1627 = vsel %vm302, %v135, 0
  %v1630 = vsel %vm302, %v136, 0
  %v1633 = vsel %vm302, %v137, 0
  %v1636 = vsel %vm302, %v236, 0
  %1638 = vmatpush.xpose.msra.mxu0 0.0
  %1639 = vmatpush.xpose.msra.mxu0 0.0
  %1640 = vmatpush.xpose.msra.mxu0 0.0
  %1641 = vmatpush.xpose.msra.mxu0 0.0
  %1642 = vmatpush.xpose.msra.mxu0 0.0
  %1643 = vmatpush.xpose.msra.mxu0 0.0
  %1644 = vmatpush.xpose.msra.mxu0 0.0
  %1645 = vmatpush.xpose.msra.mxu0 0.0
  %1646 = vmatpush.xpose.msra.mxu0 0.0
  %1647 = vmatpush.xpose.msra.mxu0 0.0
  %1648 = vmatpush.xpose.msra.mxu0 0.0
  %1649 = vmatpush.xpose.msra.mxu0 0.0
  %1650 = vmatpush.xpose.msra.mxu0 0.0
  %1651 = vmatpush.xpose.msra.mxu0 0.0
  %1652 = vmatpush.xpose.msra.mxu0 0.0
  %1653 = vmatpush.xpose.msra.mxu0 %v1636
  %1654 = vmatmul.f32.gmra.mxu0 %v1624
  %v1655 = vpop.f32.mrf.mxu0
  %v1656 = vadd.f32 0.0, %v1655
  %1657 = vmatmul.f32.gmra.mxu0 %v1627
  %v1658 = vpop.f32.mrf.mxu0
  %v1659 = vadd.f32 0.0, %v1658
  %1660 = vmatmul.f32.gmra.mxu0 %v1630
  %v1661 = vpop.f32.mrf.mxu0
  %v1662 = vadd.f32 0.0, %v1661
  %1663 = vmatmul.f32.gmra.mxu0 %v1633
  %v1664 = vpop.f32.mrf.mxu0
  %v1665 = vadd.f32 0.0, %v1664
  %1666 = vdwg.mxu0
  %v1668 = vsel %vm302, %v138, 0
  %v1671 = vsel %vm302, %v139, 0
  %v1674 = vsel %vm302, %v140, 0
  %v1677 = vsel %vm302, %v141, 0
  %v1680 = vsel %vm302, %v237, 0
  %1682 = vmatpush.xpose.msra.mxu0 0.0
  %1683 = vmatpush.xpose.msra.mxu0 0.0
  %1684 = vmatpush.xpose.msra.mxu0 0.0
  %1685 = vmatpush.xpose.msra.mxu0 0.0
  %1686 = vmatpush.xpose.msra.mxu0 0.0
  %1687 = vmatpush.xpose.msra.mxu0 0.0
  %1688 = vmatpush.xpose.msra.mxu0 0.0
  %1689 = vmatpush.xpose.msra.mxu0 0.0
  %1690 = vmatpush.xpose.msra.mxu0 0.0
  %1691 = vmatpush.xpose.msra.mxu0 0.0
  %1692 = vmatpush.xpose.msra.mxu0 0.0
  %1693 = vmatpush.xpose.msra.mxu0 0.0
  %1694 = vmatpush.xpose.msra.mxu0 0.0
  %1695 = vmatpush.xpose.msra.mxu0 0.0
  %1696 = vmatpush.xpose.msra.mxu0 0.0
  %1697 = vmatpush.xpose.msra.mxu0 %v1680
  %1698 = vmatmul.f32.gmra.mxu0 %v1668
  %v1699 = vpop.f32.mrf.mxu0
  %v1700 = vadd.f32 0.0, %v1699
  %1701 = vmatmul.f32.gmra.mxu0 %v1671
  %v1702 = vpop.f32.mrf.mxu0
  %v1703 = vadd.f32 0.0, %v1702
  %1704 = vmatmul.f32.gmra.mxu0 %v1674
  %v1705 = vpop.f32.mrf.mxu0
  %v1706 = vadd.f32 0.0, %v1705
  %1707 = vmatmul.f32.gmra.mxu0 %v1677
  %v1708 = vpop.f32.mrf.mxu0
  %v1709 = vadd.f32 0.0, %v1708
  %1710 = vdwg.mxu0
  %v1712 = vsel %vm302, %v142, 0
  %v1715 = vsel %vm302, %v143, 0
  %v1718 = vsel %vm302, %v144, 0
  %v1721 = vsel %vm302, %v145, 0
  %v1724 = vsel %vm302, %v238, 0
  %1726 = vmatpush.xpose.msra.mxu0 0.0
  %1727 = vmatpush.xpose.msra.mxu0 0.0
  %1728 = vmatpush.xpose.msra.mxu0 0.0
  %1729 = vmatpush.xpose.msra.mxu0 0.0
  %1730 = vmatpush.xpose.msra.mxu0 0.0
  %1731 = vmatpush.xpose.msra.mxu0 0.0
  %1732 = vmatpush.xpose.msra.mxu0 0.0
  %1733 = vmatpush.xpose.msra.mxu0 0.0
  %1734 = vmatpush.xpose.msra.mxu0 0.0
  %1735 = vmatpush.xpose.msra.mxu0 0.0
  %1736 = vmatpush.xpose.msra.mxu0 0.0
  %1737 = vmatpush.xpose.msra.mxu0 0.0
  %1738 = vmatpush.xpose.msra.mxu0 0.0
  %1739 = vmatpush.xpose.msra.mxu0 0.0
  %1740 = vmatpush.xpose.msra.mxu0 0.0
  %1741 = vmatpush.xpose.msra.mxu0 %v1724
  %1742 = vmatmul.f32.gmra.mxu0 %v1712
  %v1743 = vpop.f32.mrf.mxu0
  %v1744 = vadd.f32 0.0, %v1743
  %1745 = vmatmul.f32.gmra.mxu0 %v1715
  %v1746 = vpop.f32.mrf.mxu0
  %v1747 = vadd.f32 0.0, %v1746
  %1748 = vmatmul.f32.gmra.mxu0 %v1718
  %v1749 = vpop.f32.mrf.mxu0
  %v1750 = vadd.f32 0.0, %v1749
  %1751 = vmatmul.f32.gmra.mxu0 %v1721
  %v1752 = vpop.f32.mrf.mxu0
  %v1753 = vadd.f32 0.0, %v1752
  %1754 = vdwg.mxu0
  %v1756 = vsel %vm302, %v146, 0
  %v1759 = vsel %vm302, %v147, 0
  %v1762 = vsel %vm302, %v148, 0
  %v1765 = vsel %vm302, %v149, 0
  %v1768 = vsel %vm302, %v239, 0
  %1770 = vmatpush.xpose.msra.mxu0 0.0
  %1771 = vmatpush.xpose.msra.mxu0 0.0
  %1772 = vmatpush.xpose.msra.mxu0 0.0
  %1773 = vmatpush.xpose.msra.mxu0 0.0
  %1774 = vmatpush.xpose.msra.mxu0 0.0
  %1775 = vmatpush.xpose.msra.mxu0 0.0
  %1776 = vmatpush.xpose.msra.mxu0 0.0
  %1777 = vmatpush.xpose.msra.mxu0 0.0
  %1778 = vmatpush.xpose.msra.mxu0 0.0
  %1779 = vmatpush.xpose.msra.mxu0 0.0
  %1780 = vmatpush.xpose.msra.mxu0 0.0
  %1781 = vmatpush.xpose.msra.mxu0 0.0
  %1782 = vmatpush.xpose.msra.mxu0 0.0
  %1783 = vmatpush.xpose.msra.mxu0 0.0
  %1784 = vmatpush.xpose.msra.mxu0 0.0
  %1785 = vmatpush.xpose.msra.mxu0 %v1768
  %1786 = vmatmul.f32.gmra.mxu0 %v1756
  %v1787 = vpop.f32.mrf.mxu0
  %v1788 = vadd.f32 0.0, %v1787
  %1789 = vmatmul.f32.gmra.mxu0 %v1759
  %v1790 = vpop.f32.mrf.mxu0
  %v1791 = vadd.f32 0.0, %v1790
  %1792 = vmatmul.f32.gmra.mxu0 %v1762
  %v1793 = vpop.f32.mrf.mxu0
  %v1794 = vadd.f32 0.0, %v1793
  %1795 = vmatmul.f32.gmra.mxu0 %v1765
  %v1796 = vpop.f32.mrf.mxu0
  %v1797 = vadd.f32 0.0, %v1796
  %1798 = vdwg.mxu0
  %v1800 = vsel %vm302, %v150, 0
  %v1803 = vsel %vm302, %v151, 0
  %v1806 = vsel %vm302, %v152, 0
  %v1809 = vsel %vm302, %v153, 0
  %v1812 = vsel %vm302, %v240, 0
  %1814 = vmatpush.xpose.msra.mxu0 0.0
  %1815 = vmatpush.xpose.msra.mxu0 0.0
  %1816 = vmatpush.xpose.msra.mxu0 0.0
  %1817 = vmatpush.xpose.msra.mxu0 0.0
  %1818 = vmatpush.xpose.msra.mxu0 0.0
  %1819 = vmatpush.xpose.msra.mxu0 0.0
  %1820 = vmatpush.xpose.msra.mxu0 0.0
  %1821 = vmatpush.xpose.msra.mxu0 0.0
  %1822 = vmatpush.xpose.msra.mxu0 0.0
  %1823 = vmatpush.xpose.msra.mxu0 0.0
  %1824 = vmatpush.xpose.msra.mxu0 0.0
  %1825 = vmatpush.xpose.msra.mxu0 0.0
  %1826 = vmatpush.xpose.msra.mxu0 0.0
  %1827 = vmatpush.xpose.msra.mxu0 0.0
  %1828 = vmatpush.xpose.msra.mxu0 0.0
  %1829 = vmatpush.xpose.msra.mxu0 %v1812
  %1830 = vmatmul.f32.gmra.mxu0 %v1800
  %v1831 = vpop.f32.mrf.mxu0
  %v1832 = vadd.f32 0.0, %v1831
  %1833 = vmatmul.f32.gmra.mxu0 %v1803
  %v1834 = vpop.f32.mrf.mxu0
  %v1835 = vadd.f32 0.0, %v1834
  %1836 = vmatmul.f32.gmra.mxu0 %v1806
  %v1837 = vpop.f32.mrf.mxu0
  %v1838 = vadd.f32 0.0, %v1837
  %1839 = vmatmul.f32.gmra.mxu0 %v1809
  %v1840 = vpop.f32.mrf.mxu0
  %v1841 = vadd.f32 0.0, %v1840
  %1842 = vdwg.mxu0
  %v1844 = vsel %vm302, %v154, 0
  %v1847 = vsel %vm302, %v155, 0
  %v1850 = vsel %vm302, %v156, 0
  %v1853 = vsel %vm302, %v157, 0
  %v1856 = vsel %vm302, %v241, 0
  %1858 = vmatpush.xpose.msra.mxu0 0.0
  %1859 = vmatpush.xpose.msra.mxu0 0.0
  %1860 = vmatpush.xpose.msra.mxu0 0.0
  %1861 = vmatpush.xpose.msra.mxu0 0.0
  %1862 = vmatpush.xpose.msra.mxu0 0.0
  %1863 = vmatpush.xpose.msra.mxu0 0.0
  %1864 = vmatpush.xpose.msra.mxu0 0.0
  %1865 = vmatpush.xpose.msra.mxu0 0.0
  %1866 = vmatpush.xpose.msra.mxu0 0.0
  %1867 = vmatpush.xpose.msra.mxu0 0.0
  %1868 = vmatpush.xpose.msra.mxu0 0.0
  %1869 = vmatpush.xpose.msra.mxu0 0.0
  %1870 = vmatpush.xpose.msra.mxu0 0.0
  %1871 = vmatpush.xpose.msra.mxu0 0.0
  %1872 = vmatpush.xpose.msra.mxu0 0.0
  %1873 = vmatpush.xpose.msra.mxu0 %v1856
  %1874 = vmatmul.f32.gmra.mxu0 %v1844
  %v1875 = vpop.f32.mrf.mxu0
  %v1876 = vadd.f32 0.0, %v1875
  %1877 = vmatmul.f32.gmra.mxu0 %v1847
  %v1878 = vpop.f32.mrf.mxu0
  %v1879 = vadd.f32 0.0, %v1878
  %1880 = vmatmul.f32.gmra.mxu0 %v1850
  %v1881 = vpop.f32.mrf.mxu0
  %v1882 = vadd.f32 0.0, %v1881
  %1883 = vmatmul.f32.gmra.mxu0 %v1853
  %v1884 = vpop.f32.mrf.mxu0
  %v1885 = vadd.f32 0.0, %v1884
  %1886 = vdwg.mxu0
  %v1888 = vsel %vm302, %v158, 0
  %v1891 = vsel %vm302, %v159, 0
  %v1894 = vsel %vm302, %v160, 0
  %v1897 = vsel %vm302, %v161, 0
  %v1900 = vsel %vm302, %v242, 0
  %1902 = vmatpush.xpose.msra.mxu0 0.0
  %1903 = vmatpush.xpose.msra.mxu0 0.0
  %1904 = vmatpush.xpose.msra.mxu0 0.0
  %1905 = vmatpush.xpose.msra.mxu0 0.0
  %1906 = vmatpush.xpose.msra.mxu0 0.0
  %1907 = vmatpush.xpose.msra.mxu0 0.0
  %1908 = vmatpush.xpose.msra.mxu0 0.0
  %1909 = vmatpush.xpose.msra.mxu0 0.0
  %1910 = vmatpush.xpose.msra.mxu0 0.0
  %1911 = vmatpush.xpose.msra.mxu0 0.0
  %1912 = vmatpush.xpose.msra.mxu0 0.0
  %1913 = vmatpush.xpose.msra.mxu0 0.0
  %1914 = vmatpush.xpose.msra.mxu0 0.0
  %1915 = vmatpush.xpose.msra.mxu0 0.0
  %1916 = vmatpush.xpose.msra.mxu0 0.0
  %1917 = vmatpush.xpose.msra.mxu0 %v1900
  %1918 = vmatmul.f32.gmra.mxu0 %v1888
  %v1919 = vpop.f32.mrf.mxu0
  %v1920 = vadd.f32 0.0, %v1919
  %1921 = vmatmul.f32.gmra.mxu0 %v1891
  %v1922 = vpop.f32.mrf.mxu0
  %v1923 = vadd.f32 0.0, %v1922
  %1924 = vmatmul.f32.gmra.mxu0 %v1894
  %v1925 = vpop.f32.mrf.mxu0
  %v1926 = vadd.f32 0.0, %v1925
  %1927 = vmatmul.f32.gmra.mxu0 %v1897
  %v1928 = vpop.f32.mrf.mxu0
  %v1929 = vadd.f32 0.0, %v1928
  %1930 = vdwg.mxu0
  %v1932 = vsel %vm302, %v162, 0
  %v1935 = vsel %vm302, %v163, 0
  %v1938 = vsel %vm302, %v164, 0
  %v1941 = vsel %vm302, %v165, 0
  %v1944 = vsel %vm302, %v243, 0
  %1946 = vmatpush.xpose.msra.mxu0 0.0
  %1947 = vmatpush.xpose.msra.mxu0 0.0
  %1948 = vmatpush.xpose.msra.mxu0 0.0
  %1949 = vmatpush.xpose.msra.mxu0 0.0
  %1950 = vmatpush.xpose.msra.mxu0 0.0
  %1951 = vmatpush.xpose.msra.mxu0 0.0
  %1952 = vmatpush.xpose.msra.mxu0 0.0
  %1953 = vmatpush.xpose.msra.mxu0 0.0
  %1954 = vmatpush.xpose.msra.mxu0 0.0
  %1955 = vmatpush.xpose.msra.mxu0 0.0
  %1956 = vmatpush.xpose.msra.mxu0 0.0
  %1957 = vmatpush.xpose.msra.mxu0 0.0
  %1958 = vmatpush.xpose.msra.mxu0 0.0
  %1959 = vmatpush.xpose.msra.mxu0 0.0
  %1960 = vmatpush.xpose.msra.mxu0 0.0
  %1961 = vmatpush.xpose.msra.mxu0 %v1944
  %1962 = vmatmul.f32.gmra.mxu0 %v1932
  %v1963 = vpop.f32.mrf.mxu0
  %v1964 = vadd.f32 0.0, %v1963
  %1965 = vmatmul.f32.gmra.mxu0 %v1935
  %v1966 = vpop.f32.mrf.mxu0
  %v1967 = vadd.f32 0.0, %v1966
  %1968 = vmatmul.f32.gmra.mxu0 %v1938
  %v1969 = vpop.f32.mrf.mxu0
  %v1970 = vadd.f32 0.0, %v1969
  %1971 = vmatmul.f32.gmra.mxu0 %v1941
  %v1972 = vpop.f32.mrf.mxu0
  %v1973 = vadd.f32 0.0, %v1972
  %1974 = vdwg.mxu0
  %v1976 = vsel %vm302, %v166, 0
  %v1979 = vsel %vm302, %v167, 0
  %v1982 = vsel %vm302, %v168, 0
  %v1985 = vsel %vm302, %v169, 0
  %v1988 = vsel %vm302, %v244, 0
  %1990 = vmatpush.xpose.msra.mxu0 0.0
  %1991 = vmatpush.xpose.msra.mxu0 0.0
  %1992 = vmatpush.xpose.msra.mxu0 0.0
  %1993 = vmatpush.xpose.msra.mxu0 0.0
  %1994 = vmatpush.xpose.msra.mxu0 0.0
  %1995 = vmatpush.xpose.msra.mxu0 0.0
  %1996 = vmatpush.xpose.msra.mxu0 0.0
  %1997 = vmatpush.xpose.msra.mxu0 0.0
  %1998 = vmatpush.xpose.msra.mxu0 0.0
  %1999 = vmatpush.xpose.msra.mxu0 0.0
  %2000 = vmatpush.xpose.msra.mxu0 0.0
  %2001 = vmatpush.xpose.msra.mxu0 0.0
  %2002 = vmatpush.xpose.msra.mxu0 0.0
  %2003 = vmatpush.xpose.msra.mxu0 0.0
  %2004 = vmatpush.xpose.msra.mxu0 0.0
  %2005 = vmatpush.xpose.msra.mxu0 %v1988
  %2006 = vmatmul.f32.gmra.mxu0 %v1976
  %v2007 = vpop.f32.mrf.mxu0
  %v2008 = vadd.f32 0.0, %v2007
  %2009 = vmatmul.f32.gmra.mxu0 %v1979
  %v2010 = vpop.f32.mrf.mxu0
  %v2011 = vadd.f32 0.0, %v2010
  %2012 = vmatmul.f32.gmra.mxu0 %v1982
  %v2013 = vpop.f32.mrf.mxu0
  %v2014 = vadd.f32 0.0, %v2013
  %2015 = vmatmul.f32.gmra.mxu0 %v1985
  %v2016 = vpop.f32.mrf.mxu0
  %v2017 = vadd.f32 0.0, %v2016
  %2018 = vdwg.mxu0
  %v2020 = vsel %vm302, %v170, 0
  %v2023 = vsel %vm302, %v171, 0
  %v2026 = vsel %vm302, %v172, 0
  %v2029 = vsel %vm302, %v173, 0
  %v2032 = vsel %vm302, %v245, 0
  %2034 = vmatpush.xpose.msra.mxu0 0.0
  %2035 = vmatpush.xpose.msra.mxu0 0.0
  %2036 = vmatpush.xpose.msra.mxu0 0.0
  %2037 = vmatpush.xpose.msra.mxu0 0.0
  %2038 = vmatpush.xpose.msra.mxu0 0.0
  %2039 = vmatpush.xpose.msra.mxu0 0.0
  %2040 = vmatpush.xpose.msra.mxu0 0.0
  %2041 = vmatpush.xpose.msra.mxu0 0.0
  %2042 = vmatpush.xpose.msra.mxu0 0.0
  %2043 = vmatpush.xpose.msra.mxu0 0.0
  %2044 = vmatpush.xpose.msra.mxu0 0.0
  %2045 = vmatpush.xpose.msra.mxu0 0.0
  %2046 = vmatpush.xpose.msra.mxu0 0.0
  %2047 = vmatpush.xpose.msra.mxu0 0.0
  %2048 = vmatpush.xpose.msra.mxu0 0.0
  %2049 = vmatpush.xpose.msra.mxu0 %v2032
  %2050 = vmatmul.f32.gmra.mxu0 %v2020
  %v2051 = vpop.f32.mrf.mxu0
  %v2052 = vadd.f32 0.0, %v2051
  %2053 = vmatmul.f32.gmra.mxu0 %v2023
  %v2054 = vpop.f32.mrf.mxu0
  %v2055 = vadd.f32 0.0, %v2054
  %2056 = vmatmul.f32.gmra.mxu0 %v2026
  %v2057 = vpop.f32.mrf.mxu0
  %v2058 = vadd.f32 0.0, %v2057
  %2059 = vmatmul.f32.gmra.mxu0 %v2029
  %v2060 = vpop.f32.mrf.mxu0
  %v2061 = vadd.f32 0.0, %v2060
  %2062 = vdwg.mxu0
  %v2064 = vsel %vm302, %v174, 0
  %v2067 = vsel %vm302, %v175, 0
  %v2070 = vsel %vm302, %v176, 0
  %v2073 = vsel %vm302, %v177, 0
  %v2076 = vsel %vm302, %v246, 0
  %2078 = vmatpush.xpose.msra.mxu0 0.0
  %2079 = vmatpush.xpose.msra.mxu0 0.0
  %2080 = vmatpush.xpose.msra.mxu0 0.0
  %2081 = vmatpush.xpose.msra.mxu0 0.0
  %2082 = vmatpush.xpose.msra.mxu0 0.0
  %2083 = vmatpush.xpose.msra.mxu0 0.0
  %2084 = vmatpush.xpose.msra.mxu0 0.0
  %2085 = vmatpush.xpose.msra.mxu0 0.0
  %2086 = vmatpush.xpose.msra.mxu0 0.0
  %2087 = vmatpush.xpose.msra.mxu0 0.0
  %2088 = vmatpush.xpose.msra.mxu0 0.0
  %2089 = vmatpush.xpose.msra.mxu0 0.0
  %2090 = vmatpush.xpose.msra.mxu0 0.0
  %2091 = vmatpush.xpose.msra.mxu0 0.0
  %2092 = vmatpush.xpose.msra.mxu0 0.0
  %2093 = vmatpush.xpose.msra.mxu0 %v2076
  %2094 = vmatmul.f32.gmra.mxu0 %v2064
  %v2095 = vpop.f32.mrf.mxu0
  %v2096 = vadd.f32 0.0, %v2095
  %2097 = vmatmul.f32.gmra.mxu0 %v2067
  %v2098 = vpop.f32.mrf.mxu0
  %v2099 = vadd.f32 0.0, %v2098
  %2100 = vmatmul.f32.gmra.mxu0 %v2070
  %v2101 = vpop.f32.mrf.mxu0
  %v2102 = vadd.f32 0.0, %v2101
  %2103 = vmatmul.f32.gmra.mxu0 %v2073
  %v2104 = vpop.f32.mrf.mxu0
  %v2105 = vadd.f32 0.0, %v2104
  %2106 = vdwg.mxu0
  %v2108 = vsel %vm302, %v178, 0
  %v2111 = vsel %vm302, %v179, 0
  %v2114 = vsel %vm302, %v180, 0
  %v2117 = vsel %vm302, %v181, 0
  %v2120 = vsel %vm302, %v247, 0
  %2122 = vmatpush.xpose.msra.mxu0 0.0
  %2123 = vmatpush.xpose.msra.mxu0 0.0
  %2124 = vmatpush.xpose.msra.mxu0 0.0
  %2125 = vmatpush.xpose.msra.mxu0 0.0
  %2126 = vmatpush.xpose.msra.mxu0 0.0
  %2127 = vmatpush.xpose.msra.mxu0 0.0
  %2128 = vmatpush.xpose.msra.mxu0 0.0
  %2129 = vmatpush.xpose.msra.mxu0 0.0
  %2130 = vmatpush.xpose.msra.mxu0 0.0
  %2131 = vmatpush.xpose.msra.mxu0 0.0
  %2132 = vmatpush.xpose.msra.mxu0 0.0
  %2133 = vmatpush.xpose.msra.mxu0 0.0
  %2134 = vmatpush.xpose.msra.mxu0 0.0
  %2135 = vmatpush.xpose.msra.mxu0 0.0
  %2136 = vmatpush.xpose.msra.mxu0 0.0
  %2137 = vmatpush.xpose.msra.mxu0 %v2120
  %2138 = vmatmul.f32.gmra.mxu0 %v2108
  %v2139 = vpop.f32.mrf.mxu0
  %v2140 = vadd.f32 0.0, %v2139
  %2141 = vmatmul.f32.gmra.mxu0 %v2111
  %v2142 = vpop.f32.mrf.mxu0
  %v2143 = vadd.f32 0.0, %v2142
  %2144 = vmatmul.f32.gmra.mxu0 %v2114
  %v2145 = vpop.f32.mrf.mxu0
  %v2146 = vadd.f32 0.0, %v2145
  %2147 = vmatmul.f32.gmra.mxu0 %v2117
  %v2148 = vpop.f32.mrf.mxu0
  %v2149 = vadd.f32 0.0, %v2148
  %2150 = vdwg.mxu0
  %v2152 = vsel %vm302, %v182, 0
  %v2155 = vsel %vm302, %v183, 0
  %v2158 = vsel %vm302, %v184, 0
  %v2161 = vsel %vm302, %v185, 0
  %v2164 = vsel %vm302, %v248, 0
  %2166 = vmatpush.xpose.msra.mxu0 0.0
  %2167 = vmatpush.xpose.msra.mxu0 0.0
  %2168 = vmatpush.xpose.msra.mxu0 0.0
  %2169 = vmatpush.xpose.msra.mxu0 0.0
  %2170 = vmatpush.xpose.msra.mxu0 0.0
  %2171 = vmatpush.xpose.msra.mxu0 0.0
  %2172 = vmatpush.xpose.msra.mxu0 0.0
  %2173 = vmatpush.xpose.msra.mxu0 0.0
  %2174 = vmatpush.xpose.msra.mxu0 0.0
  %2175 = vmatpush.xpose.msra.mxu0 0.0
  %2176 = vmatpush.xpose.msra.mxu0 0.0
  %2177 = vmatpush.xpose.msra.mxu0 0.0
  %2178 = vmatpush.xpose.msra.mxu0 0.0
  %2179 = vmatpush.xpose.msra.mxu0 0.0
  %2180 = vmatpush.xpose.msra.mxu0 0.0
  %2181 = vmatpush.xpose.msra.mxu0 %v2164
  %2182 = vmatmul.f32.gmra.mxu0 %v2152
  %v2183 = vpop.f32.mrf.mxu0
  %v2184 = vadd.f32 0.0, %v2183
  %2185 = vmatmul.f32.gmra.mxu0 %v2155
  %v2186 = vpop.f32.mrf.mxu0
  %v2187 = vadd.f32 0.0, %v2186
  %2188 = vmatmul.f32.gmra.mxu0 %v2158
  %v2189 = vpop.f32.mrf.mxu0
  %v2190 = vadd.f32 0.0, %v2189
  %2191 = vmatmul.f32.gmra.mxu0 %v2161
  %v2192 = vpop.f32.mrf.mxu0
  %v2193 = vadd.f32 0.0, %v2192
  %2194 = vdwg.mxu0
  %v2196 = vsel %vm302, %v186, 0
  %v2199 = vsel %vm302, %v187, 0
  %v2202 = vsel %vm302, %v188, 0
  %v2205 = vsel %vm302, %v189, 0
  %v2208 = vsel %vm302, %v249, 0
  %2210 = vmatpush.xpose.msra.mxu0 0.0
  %2211 = vmatpush.xpose.msra.mxu0 0.0
  %2212 = vmatpush.xpose.msra.mxu0 0.0
  %2213 = vmatpush.xpose.msra.mxu0 0.0
  %2214 = vmatpush.xpose.msra.mxu0 0.0
  %2215 = vmatpush.xpose.msra.mxu0 0.0
  %2216 = vmatpush.xpose.msra.mxu0 0.0
  %2217 = vmatpush.xpose.msra.mxu0 0.0
  %2218 = vmatpush.xpose.msra.mxu0 0.0
  %2219 = vmatpush.xpose.msra.mxu0 0.0
  %2220 = vmatpush.xpose.msra.mxu0 0.0
  %2221 = vmatpush.xpose.msra.mxu0 0.0
  %2222 = vmatpush.xpose.msra.mxu0 0.0
  %2223 = vmatpush.xpose.msra.mxu0 0.0
  %2224 = vmatpush.xpose.msra.mxu0 0.0
  %2225 = vmatpush.xpose.msra.mxu0 %v2208
  %2226 = vmatmul.f32.gmra.mxu0 %v2196
  %v2227 = vpop.f32.mrf.mxu0
  %v2228 = vadd.f32 0.0, %v2227
  %2229 = vmatmul.f32.gmra.mxu0 %v2199
  %v2230 = vpop.f32.mrf.mxu0
  %v2231 = vadd.f32 0.0, %v2230
  %2232 = vmatmul.f32.gmra.mxu0 %v2202
  %v2233 = vpop.f32.mrf.mxu0
  %v2234 = vadd.f32 0.0, %v2233
  %2235 = vmatmul.f32.gmra.mxu0 %v2205
  %v2236 = vpop.f32.mrf.mxu0
  %v2237 = vadd.f32 0.0, %v2236
  %2238 = vdwg.mxu0
  %v2240 = vsel %vm302, %v190, 0
  %v2243 = vsel %vm302, %v191, 0
  %v2246 = vsel %vm302, %v192, 0
  %v2249 = vsel %vm302, %v193, 0
  %v2252 = vsel %vm302, %v250, 0
  %2254 = vmatpush.xpose.msra.mxu0 0.0
  %2255 = vmatpush.xpose.msra.mxu0 0.0
  %2256 = vmatpush.xpose.msra.mxu0 0.0
  %2257 = vmatpush.xpose.msra.mxu0 0.0
  %2258 = vmatpush.xpose.msra.mxu0 0.0
  %2259 = vmatpush.xpose.msra.mxu0 0.0
  %2260 = vmatpush.xpose.msra.mxu0 0.0
  %2261 = vmatpush.xpose.msra.mxu0 0.0
  %2262 = vmatpush.xpose.msra.mxu0 0.0
  %2263 = vmatpush.xpose.msra.mxu0 0.0
  %2264 = vmatpush.xpose.msra.mxu0 0.0
  %2265 = vmatpush.xpose.msra.mxu0 0.0
  %2266 = vmatpush.xpose.msra.mxu0 0.0
  %2267 = vmatpush.xpose.msra.mxu0 0.0
  %2268 = vmatpush.xpose.msra.mxu0 0.0
  %2269 = vmatpush.xpose.msra.mxu0 %v2252
  %2270 = vmatmul.f32.gmra.mxu0 %v2240
  %v2271 = vpop.f32.mrf.mxu0
  %v2272 = vadd.f32 0.0, %v2271
  %2273 = vmatmul.f32.gmra.mxu0 %v2243
  %v2274 = vpop.f32.mrf.mxu0
  %v2275 = vadd.f32 0.0, %v2274
  %2276 = vmatmul.f32.gmra.mxu0 %v2246
  %v2277 = vpop.f32.mrf.mxu0
  %v2278 = vadd.f32 0.0, %v2277
  %2279 = vmatmul.f32.gmra.mxu0 %v2249
  %v2280 = vpop.f32.mrf.mxu0
  %v2281 = vadd.f32 0.0, %v2280
  %2282 = vdwg.mxu0
  %v2284 = vsel %vm302, %v194, 0
  %v2287 = vsel %vm302, %v195, 0
  %v2290 = vsel %vm302, %v196, 0
  %v2293 = vsel %vm302, %v197, 0
  %v2296 = vsel %vm302, %v251, 0
  %2298 = vmatpush.xpose.msra.mxu0 0.0
  %2299 = vmatpush.xpose.msra.mxu0 0.0
  %2300 = vmatpush.xpose.msra.mxu0 0.0
  %2301 = vmatpush.xpose.msra.mxu0 0.0
  %2302 = vmatpush.xpose.msra.mxu0 0.0
  %2303 = vmatpush.xpose.msra.mxu0 0.0
  %2304 = vmatpush.xpose.msra.mxu0 0.0
  %2305 = vmatpush.xpose.msra.mxu0 0.0
  %2306 = vmatpush.xpose.msra.mxu0 0.0
  %2307 = vmatpush.xpose.msra.mxu0 0.0
  %2308 = vmatpush.xpose.msra.mxu0 0.0
  %2309 = vmatpush.xpose.msra.mxu0 0.0
  %2310 = vmatpush.xpose.msra.mxu0 0.0
  %2311 = vmatpush.xpose.msra.mxu0 0.0
  %2312 = vmatpush.xpose.msra.mxu0 0.0
  %2313 = vmatpush.xpose.msra.mxu0 %v2296
  %2314 = vmatmul.f32.gmra.mxu0 %v2284
  %v2315 = vpop.f32.mrf.mxu0
  %v2316 = vadd.f32 0.0, %v2315
  %2317 = vmatmul.f32.gmra.mxu0 %v2287
  %v2318 = vpop.f32.mrf.mxu0
  %v2319 = vadd.f32 0.0, %v2318
  %2320 = vmatmul.f32.gmra.mxu0 %v2290
  %v2321 = vpop.f32.mrf.mxu0
  %v2322 = vadd.f32 0.0, %v2321
  %2323 = vmatmul.f32.gmra.mxu0 %v2293
  %v2324 = vpop.f32.mrf.mxu0
  %v2325 = vadd.f32 0.0, %v2324
  %2326 = vdwg.mxu0
  %v2328 = vsel %vm302, %v198, 0
  %v2331 = vsel %vm302, %v199, 0
  %v2334 = vsel %vm302, %v200, 0
  %v2337 = vsel %vm302, %v201, 0
  %v2340 = vsel %vm302, %v252, 0
  %2342 = vmatpush.xpose.msra.mxu0 0.0
  %2343 = vmatpush.xpose.msra.mxu0 0.0
  %2344 = vmatpush.xpose.msra.mxu0 0.0
  %2345 = vmatpush.xpose.msra.mxu0 0.0
  %2346 = vmatpush.xpose.msra.mxu0 0.0
  %2347 = vmatpush.xpose.msra.mxu0 0.0
  %2348 = vmatpush.xpose.msra.mxu0 0.0
  %2349 = vmatpush.xpose.msra.mxu0 0.0
  %2350 = vmatpush.xpose.msra.mxu0 0.0
  %2351 = vmatpush.xpose.msra.mxu0 0.0
  %2352 = vmatpush.xpose.msra.mxu0 0.0
  %2353 = vmatpush.xpose.msra.mxu0 0.0
  %2354 = vmatpush.xpose.msra.mxu0 0.0
  %2355 = vmatpush.xpose.msra.mxu0 0.0
  %2356 = vmatpush.xpose.msra.mxu0 0.0
  %2357 = vmatpush.xpose.msra.mxu0 %v2340
  %2358 = vmatmul.f32.gmra.mxu0 %v2328
  %v2359 = vpop.f32.mrf.mxu0
  %v2360 = vadd.f32 0.0, %v2359
  %2361 = vmatmul.f32.gmra.mxu0 %v2331
  %v2362 = vpop.f32.mrf.mxu0
  %v2363 = vadd.f32 0.0, %v2362
  %2364 = vmatmul.f32.gmra.mxu0 %v2334
  %v2365 = vpop.f32.mrf.mxu0
  %v2366 = vadd.f32 0.0, %v2365
  %2367 = vmatmul.f32.gmra.mxu0 %v2337
  %v2368 = vpop.f32.mrf.mxu0
  %v2369 = vadd.f32 0.0, %v2368
  %2370 = vdwg.mxu0
  %v2372 = vsel %vm302, %v202, 0
  %v2375 = vsel %vm302, %v203, 0
  %v2378 = vsel %vm302, %v204, 0
  %v2381 = vsel %vm302, %v205, 0
  %v2384 = vsel %vm302, %v253, 0
  %2386 = vmatpush.xpose.msra.mxu0 0.0
  %2387 = vmatpush.xpose.msra.mxu0 0.0
  %2388 = vmatpush.xpose.msra.mxu0 0.0
  %2389 = vmatpush.xpose.msra.mxu0 0.0
  %2390 = vmatpush.xpose.msra.mxu0 0.0
  %2391 = vmatpush.xpose.msra.mxu0 0.0
  %2392 = vmatpush.xpose.msra.mxu0 0.0
  %2393 = vmatpush.xpose.msra.mxu0 0.0
  %2394 = vmatpush.xpose.msra.mxu0 0.0
  %2395 = vmatpush.xpose.msra.mxu0 0.0
  %2396 = vmatpush.xpose.msra.mxu0 0.0
  %2397 = vmatpush.xpose.msra.mxu0 0.0
  %2398 = vmatpush.xpose.msra.mxu0 0.0
  %2399 = vmatpush.xpose.msra.mxu0 0.0
  %2400 = vmatpush.xpose.msra.mxu0 0.0
  %2401 = vmatpush.xpose.msra.mxu0 %v2384
  %2402 = vmatmul.f32.gmra.mxu0 %v2372
  %v2403 = vpop.f32.mrf.mxu0
  %v2404 = vadd.f32 0.0, %v2403
  %2405 = vmatmul.f32.gmra.mxu0 %v2375
  %v2406 = vpop.f32.mrf.mxu0
  %v2407 = vadd.f32 0.0, %v2406
  %2408 = vmatmul.f32.gmra.mxu0 %v2378
  %v2409 = vpop.f32.mrf.mxu0
  %v2410 = vadd.f32 0.0, %v2409
  %2411 = vmatmul.f32.gmra.mxu0 %v2381
  %v2412 = vpop.f32.mrf.mxu0
  %v2413 = vadd.f32 0.0, %v2412
  %2414 = vdwg.mxu0
  %v2415 = vsel %vm302, %v336, -inf
  %2416 = vmax.xlane.f32.xlu0 %v2415
  %v2417 = vpop.xlane.xlu0 %2416
  %v2418 = vsel %vm302, %v339, -inf
  %2419 = vmax.xlane.f32.xlu0 %v2418
  %v2420 = vpop.xlane.xlu0 %2419
  %v2421 = vsel %vm302, %v342, -inf
  %2422 = vmax.xlane.f32.xlu0 %v2421
  %v2423 = vpop.xlane.xlu0 %2422
  %v2424 = vsel %vm302, %v345, -inf
  %2425 = vmax.xlane.f32.xlu0 %v2424
  %v2426 = vpop.xlane.xlu0 %2425
  %v2427 = vsel %vm302, %v380, -inf
  %2428 = vmax.xlane.f32.xlu0 %v2427
  %v2429 = vpop.xlane.xlu0 %2428
  %v2430 = vsel %vm302, %v383, -inf
  %2431 = vmax.xlane.f32.xlu0 %v2430
  %v2432 = vpop.xlane.xlu0 %2431
  %v2433 = vsel %vm302, %v386, -inf
  %2434 = vmax.xlane.f32.xlu0 %v2433
  %v2435 = vpop.xlane.xlu0 %2434
  %v2436 = vsel %vm302, %v389, -inf
  %2437 = vmax.xlane.f32.xlu0 %v2436
  %v2438 = vpop.xlane.xlu0 %2437
  %v2439 = vsel %vm302, %v424, -inf
  %2440 = vmax.xlane.f32.xlu0 %v2439
  %v2441 = vpop.xlane.xlu0 %2440
  %v2442 = vsel %vm302, %v427, -inf
  %2443 = vmax.xlane.f32.xlu0 %v2442
  %v2444 = vpop.xlane.xlu0 %2443
  %v2445 = vsel %vm302, %v430, -inf
  %2446 = vmax.xlane.f32.xlu0 %v2445
  %v2447 = vpop.xlane.xlu0 %2446
  %v2448 = vsel %vm302, %v433, -inf
  %2449 = vmax.xlane.f32.xlu0 %v2448
  %v2450 = vpop.xlane.xlu0 %2449
  %v2451 = vsel %vm302, %v468, -inf
  %2452 = vmax.xlane.f32.xlu0 %v2451
  %v2453 = vpop.xlane.xlu0 %2452
  %v2454 = vsel %vm302, %v471, -inf
  %2455 = vmax.xlane.f32.xlu0 %v2454
  %v2456 = vpop.xlane.xlu0 %2455
  %v2457 = vsel %vm302, %v474, -inf
  %2458 = vmax.xlane.f32.xlu0 %v2457
  %v2459 = vpop.xlane.xlu0 %2458
  %v2460 = vsel %vm302, %v477, -inf
  %2461 = vmax.xlane.f32.xlu0 %v2460
  %v2462 = vpop.xlane.xlu0 %2461
  %v2463 = vsel %vm302, %v512, -inf
  %2464 = vmax.xlane.f32.xlu0 %v2463
  %v2465 = vpop.xlane.xlu0 %2464
  %v2466 = vsel %vm302, %v515, -inf
  %2467 = vmax.xlane.f32.xlu0 %v2466
  %v2468 = vpop.xlane.xlu0 %2467
  %v2469 = vsel %vm302, %v518, -inf
  %2470 = vmax.xlane.f32.xlu0 %v2469
  %v2471 = vpop.xlane.xlu0 %2470
  %v2472 = vsel %vm302, %v521, -inf
  %2473 = vmax.xlane.f32.xlu0 %v2472
  %v2474 = vpop.xlane.xlu0 %2473
  %v2475 = vsel %vm302, %v556, -inf
  %2476 = vmax.xlane.f32.xlu0 %v2475
  %v2477 = vpop.xlane.xlu0 %2476
  %v2478 = vsel %vm302, %v559, -inf
  %2479 = vmax.xlane.f32.xlu0 %v2478
  %v2480 = vpop.xlane.xlu0 %2479
  %v2481 = vsel %vm302, %v562, -inf
  %2482 = vmax.xlane.f32.xlu0 %v2481
  %v2483 = vpop.xlane.xlu0 %2482
  %v2484 = vsel %vm302, %v565, -inf
  %2485 = vmax.xlane.f32.xlu0 %v2484
  %v2486 = vpop.xlane.xlu0 %2485
  %v2487 = vsel %vm302, %v600, -inf
  %2488 = vmax.xlane.f32.xlu0 %v2487
  %v2489 = vpop.xlane.xlu0 %2488
  %v2490 = vsel %vm302, %v603, -inf
  %2491 = vmax.xlane.f32.xlu0 %v2490
  %v2492 = vpop.xlane.xlu0 %2491
  %v2493 = vsel %vm302, %v606, -inf
  %2494 = vmax.xlane.f32.xlu0 %v2493
  %v2495 = vpop.xlane.xlu0 %2494
  %v2496 = vsel %vm302, %v609, -inf
  %2497 = vmax.xlane.f32.xlu0 %v2496
  %v2498 = vpop.xlane.xlu0 %2497
  %v2499 = vsel %vm302, %v644, -inf
  %2500 = vmax.xlane.f32.xlu0 %v2499
  %v2501 = vpop.xlane.xlu0 %2500
  %v2502 = vsel %vm302, %v647, -inf
  %2503 = vmax.xlane.f32.xlu0 %v2502
  %v2504 = vpop.xlane.xlu0 %2503
  %v2505 = vsel %vm302, %v650, -inf
  %2506 = vmax.xlane.f32.xlu0 %v2505
  %v2507 = vpop.xlane.xlu0 %2506
  %v2508 = vsel %vm302, %v653, -inf
  %2509 = vmax.xlane.f32.xlu0 %v2508
  %v2510 = vpop.xlane.xlu0 %2509
  %v2511 = vsel %vm302, %v688, -inf
  %2512 = vmax.xlane.f32.xlu0 %v2511
  %v2513 = vpop.xlane.xlu0 %2512
  %v2514 = vsel %vm302, %v691, -inf
  %2515 = vmax.xlane.f32.xlu0 %v2514
  %v2516 = vpop.xlane.xlu0 %2515
  %v2517 = vsel %vm302, %v694, -inf
  %2518 = vmax.xlane.f32.xlu0 %v2517
  %v2519 = vpop.xlane.xlu0 %2518
  %v2520 = vsel %vm302, %v697, -inf
  %2521 = vmax.xlane.f32.xlu0 %v2520
  %v2522 = vpop.xlane.xlu0 %2521
  %v2523 = vsel %vm302, %v732, -inf
  %2524 = vmax.xlane.f32.xlu0 %v2523
  %v2525 = vpop.xlane.xlu0 %2524
  %v2526 = vsel %vm302, %v735, -inf
  %2527 = vmax.xlane.f32.xlu0 %v2526
  %v2528 = vpop.xlane.xlu0 %2527
  %v2529 = vsel %vm302, %v738, -inf
  %2530 = vmax.xlane.f32.xlu0 %v2529
  %v2531 = vpop.xlane.xlu0 %2530
  %v2532 = vsel %vm302, %v741, -inf
  %2533 = vmax.xlane.f32.xlu0 %v2532
  %v2534 = vpop.xlane.xlu0 %2533
  %v2535 = vsel %vm302, %v776, -inf
  %2536 = vmax.xlane.f32.xlu0 %v2535
  %v2537 = vpop.xlane.xlu0 %2536
  %v2538 = vsel %vm302, %v779, -inf
  %2539 = vmax.xlane.f32.xlu0 %v2538
  %v2540 = vpop.xlane.xlu0 %2539
  %v2541 = vsel %vm302, %v782, -inf
  %2542 = vmax.xlane.f32.xlu0 %v2541
  %v2543 = vpop.xlane.xlu0 %2542
  %v2544 = vsel %vm302, %v785, -inf
  %2545 = vmax.xlane.f32.xlu0 %v2544
  %v2546 = vpop.xlane.xlu0 %2545
  %v2547 = vsel %vm302, %v820, -inf
  %2548 = vmax.xlane.f32.xlu0 %v2547
  %v2549 = vpop.xlane.xlu0 %2548
  %v2550 = vsel %vm302, %v823, -inf
  %2551 = vmax.xlane.f32.xlu0 %v2550
  %v2552 = vpop.xlane.xlu0 %2551
  %v2553 = vsel %vm302, %v826, -inf
  %2554 = vmax.xlane.f32.xlu0 %v2553
  %v2555 = vpop.xlane.xlu0 %2554
  %v2556 = vsel %vm302, %v829, -inf
  %2557 = vmax.xlane.f32.xlu0 %v2556
  %v2558 = vpop.xlane.xlu0 %2557
  %v2559 = vsel %vm302, %v864, -inf
  %2560 = vmax.xlane.f32.xlu0 %v2559
  %v2561 = vpop.xlane.xlu0 %2560
  %v2562 = vsel %vm302, %v867, -inf
  %2563 = vmax.xlane.f32.xlu0 %v2562
  %v2564 = vpop.xlane.xlu0 %2563
  %v2565 = vsel %vm302, %v870, -inf
  %2566 = vmax.xlane.f32.xlu0 %v2565
  %v2567 = vpop.xlane.xlu0 %2566
  %v2568 = vsel %vm302, %v873, -inf
  %2569 = vmax.xlane.f32.xlu0 %v2568
  %v2570 = vpop.xlane.xlu0 %2569
  %v2571 = vsel %vm302, %v908, -inf
  %2572 = vmax.xlane.f32.xlu0 %v2571
  %v2573 = vpop.xlane.xlu0 %2572
  %v2574 = vsel %vm302, %v911, -inf
  %2575 = vmax.xlane.f32.xlu0 %v2574
  %v2576 = vpop.xlane.xlu0 %2575
  %v2577 = vsel %vm302, %v914, -inf
  %2578 = vmax.xlane.f32.xlu0 %v2577
  %v2579 = vpop.xlane.xlu0 %2578
  %v2580 = vsel %vm302, %v917, -inf
  %2581 = vmax.xlane.f32.xlu0 %v2580
  %v2582 = vpop.xlane.xlu0 %2581
  %v2583 = vsel %vm302, %v952, -inf
  %2584 = vmax.xlane.f32.xlu0 %v2583
  %v2585 = vpop.xlane.xlu0 %2584
  %v2586 = vsel %vm302, %v955, -inf
  %2587 = vmax.xlane.f32.xlu0 %v2586
  %v2588 = vpop.xlane.xlu0 %2587
  %v2589 = vsel %vm302, %v958, -inf
  %2590 = vmax.xlane.f32.xlu0 %v2589
  %v2591 = vpop.xlane.xlu0 %2590
  %v2592 = vsel %vm302, %v961, -inf
  %2593 = vmax.xlane.f32.xlu0 %v2592
  %v2594 = vpop.xlane.xlu0 %2593
  %v2595 = vsel %vm302, %v996, -inf
  %2596 = vmax.xlane.f32.xlu0 %v2595
  %v2597 = vpop.xlane.xlu0 %2596
  %v2598 = vsel %vm302, %v999, -inf
  %2599 = vmax.xlane.f32.xlu0 %v2598
  %v2600 = vpop.xlane.xlu0 %2599
  %v2601 = vsel %vm302, %v1002, -inf
  %2602 = vmax.xlane.f32.xlu0 %v2601
  %v2603 = vpop.xlane.xlu0 %2602
  %v2604 = vsel %vm302, %v1005, -inf
  %2605 = vmax.xlane.f32.xlu0 %v2604
  %v2606 = vpop.xlane.xlu0 %2605
  %v2607 = vsel %vm302, %v1040, -inf
  %2608 = vmax.xlane.f32.xlu0 %v2607
  %v2609 = vpop.xlane.xlu0 %2608
  %v2610 = vsel %vm302, %v1043, -inf
  %2611 = vmax.xlane.f32.xlu0 %v2610
  %v2612 = vpop.xlane.xlu0 %2611
  %v2613 = vsel %vm302, %v1046, -inf
  %2614 = vmax.xlane.f32.xlu0 %v2613
  %v2615 = vpop.xlane.xlu0 %2614
  %v2616 = vsel %vm302, %v1049, -inf
  %2617 = vmax.xlane.f32.xlu0 %v2616
  %v2618 = vpop.xlane.xlu0 %2617
  %v2619 = vsel %vm302, %v1084, -inf
  %2620 = vmax.xlane.f32.xlu0 %v2619
  %v2621 = vpop.xlane.xlu0 %2620
  %v2622 = vsel %vm302, %v1087, -inf
  %2623 = vmax.xlane.f32.xlu0 %v2622
  %v2624 = vpop.xlane.xlu0 %2623
  %v2625 = vsel %vm302, %v1090, -inf
  %2626 = vmax.xlane.f32.xlu0 %v2625
  %v2627 = vpop.xlane.xlu0 %2626
  %v2628 = vsel %vm302, %v1093, -inf
  %2629 = vmax.xlane.f32.xlu0 %v2628
  %v2630 = vpop.xlane.xlu0 %2629
  %v2631 = vsel %vm302, %v1128, -inf
  %2632 = vmax.xlane.f32.xlu0 %v2631
  %v2633 = vpop.xlane.xlu0 %2632
  %v2634 = vsel %vm302, %v1131, -inf
  %2635 = vmax.xlane.f32.xlu0 %v2634
  %v2636 = vpop.xlane.xlu0 %2635
  %v2637 = vsel %vm302, %v1134, -inf
  %2638 = vmax.xlane.f32.xlu0 %v2637
  %v2639 = vpop.xlane.xlu0 %2638
  %v2640 = vsel %vm302, %v1137, -inf
  %2641 = vmax.xlane.f32.xlu0 %v2640
  %v2642 = vpop.xlane.xlu0 %2641
  %v2643 = vsel %vm302, %v1172, -inf
  %2644 = vmax.xlane.f32.xlu0 %v2643
  %v2645 = vpop.xlane.xlu0 %2644
  %v2646 = vsel %vm302, %v1175, -inf
  %2647 = vmax.xlane.f32.xlu0 %v2646
  %v2648 = vpop.xlane.xlu0 %2647
  %v2649 = vsel %vm302, %v1178, -inf
  %2650 = vmax.xlane.f32.xlu0 %v2649
  %v2651 = vpop.xlane.xlu0 %2650
  %v2652 = vsel %vm302, %v1181, -inf
  %2653 = vmax.xlane.f32.xlu0 %v2652
  %v2654 = vpop.xlane.xlu0 %2653
  %v2655 = vsel %vm302, %v1216, -inf
  %2656 = vmax.xlane.f32.xlu0 %v2655
  %v2657 = vpop.xlane.xlu0 %2656
  %v2658 = vsel %vm302, %v1219, -inf
  %2659 = vmax.xlane.f32.xlu0 %v2658
  %v2660 = vpop.xlane.xlu0 %2659
  %v2661 = vsel %vm302, %v1222, -inf
  %2662 = vmax.xlane.f32.xlu0 %v2661
  %v2663 = vpop.xlane.xlu0 %2662
  %v2664 = vsel %vm302, %v1225, -inf
  %2665 = vmax.xlane.f32.xlu0 %v2664
  %v2666 = vpop.xlane.xlu0 %2665
  %v2667 = vsel %vm302, %v1260, -inf
  %2668 = vmax.xlane.f32.xlu0 %v2667
  %v2669 = vpop.xlane.xlu0 %2668
  %v2670 = vsel %vm302, %v1263, -inf
  %2671 = vmax.xlane.f32.xlu0 %v2670
  %v2672 = vpop.xlane.xlu0 %2671
  %v2673 = vsel %vm302, %v1266, -inf
  %2674 = vmax.xlane.f32.xlu0 %v2673
  %v2675 = vpop.xlane.xlu0 %2674
  %v2676 = vsel %vm302, %v1269, -inf
  %2677 = vmax.xlane.f32.xlu0 %v2676
  %v2678 = vpop.xlane.xlu0 %2677
  %v2679 = vsel %vm302, %v1304, -inf
  %2680 = vmax.xlane.f32.xlu0 %v2679
  %v2681 = vpop.xlane.xlu0 %2680
  %v2682 = vsel %vm302, %v1307, -inf
  %2683 = vmax.xlane.f32.xlu0 %v2682
  %v2684 = vpop.xlane.xlu0 %2683
  %v2685 = vsel %vm302, %v1310, -inf
  %2686 = vmax.xlane.f32.xlu0 %v2685
  %v2687 = vpop.xlane.xlu0 %2686
  %v2688 = vsel %vm302, %v1313, -inf
  %2689 = vmax.xlane.f32.xlu0 %v2688
  %v2690 = vpop.xlane.xlu0 %2689
  %v2691 = vsel %vm302, %v1348, -inf
  %2692 = vmax.xlane.f32.xlu0 %v2691
  %v2693 = vpop.xlane.xlu0 %2692
  %v2694 = vsel %vm302, %v1351, -inf
  %2695 = vmax.xlane.f32.xlu0 %v2694
  %v2696 = vpop.xlane.xlu0 %2695
  %v2697 = vsel %vm302, %v1354, -inf
  %2698 = vmax.xlane.f32.xlu0 %v2697
  %v2699 = vpop.xlane.xlu0 %2698
  %v2700 = vsel %vm302, %v1357, -inf
  %2701 = vmax.xlane.f32.xlu0 %v2700
  %v2702 = vpop.xlane.xlu0 %2701
  %v2703 = vsel %vm302, %v1392, -inf
  %2704 = vmax.xlane.f32.xlu0 %v2703
  %v2705 = vpop.xlane.xlu0 %2704
  %v2706 = vsel %vm302, %v1395, -inf
  %2707 = vmax.xlane.f32.xlu0 %v2706
  %v2708 = vpop.xlane.xlu0 %2707
  %v2709 = vsel %vm302, %v1398, -inf
  %2710 = vmax.xlane.f32.xlu0 %v2709
  %v2711 = vpop.xlane.xlu0 %2710
  %v2712 = vsel %vm302, %v1401, -inf
  %2713 = vmax.xlane.f32.xlu0 %v2712
  %v2714 = vpop.xlane.xlu0 %2713
  %v2715 = vsel %vm302, %v1436, -inf
  %2716 = vmax.xlane.f32.xlu0 %v2715
  %v2717 = vpop.xlane.xlu0 %2716
  %v2718 = vsel %vm302, %v1439, -inf
  %2719 = vmax.xlane.f32.xlu0 %v2718
  %v2720 = vpop.xlane.xlu0 %2719
  %v2721 = vsel %vm302, %v1442, -inf
  %2722 = vmax.xlane.f32.xlu0 %v2721
  %v2723 = vpop.xlane.xlu0 %2722
  %v2724 = vsel %vm302, %v1445, -inf
  %2725 = vmax.xlane.f32.xlu0 %v2724
  %v2726 = vpop.xlane.xlu0 %2725
  %v2727 = vsel %vm302, %v1480, -inf
  %2728 = vmax.xlane.f32.xlu0 %v2727
  %v2729 = vpop.xlane.xlu0 %2728
  %v2730 = vsel %vm302, %v1483, -inf
  %2731 = vmax.xlane.f32.xlu0 %v2730
  %v2732 = vpop.xlane.xlu0 %2731
  %v2733 = vsel %vm302, %v1486, -inf
  %2734 = vmax.xlane.f32.xlu0 %v2733
  %v2735 = vpop.xlane.xlu0 %2734
  %v2736 = vsel %vm302, %v1489, -inf
  %2737 = vmax.xlane.f32.xlu0 %v2736
  %v2738 = vpop.xlane.xlu0 %2737
  %v2739 = vsel %vm302, %v1524, -inf
  %2740 = vmax.xlane.f32.xlu0 %v2739
  %v2741 = vpop.xlane.xlu0 %2740
  %v2742 = vsel %vm302, %v1527, -inf
  %2743 = vmax.xlane.f32.xlu0 %v2742
  %v2744 = vpop.xlane.xlu0 %2743
  %v2745 = vsel %vm302, %v1530, -inf
  %2746 = vmax.xlane.f32.xlu0 %v2745
  %v2747 = vpop.xlane.xlu0 %2746
  %v2748 = vsel %vm302, %v1533, -inf
  %2749 = vmax.xlane.f32.xlu0 %v2748
  %v2750 = vpop.xlane.xlu0 %2749
  %v2751 = vsel %vm302, %v1568, -inf
  %2752 = vmax.xlane.f32.xlu0 %v2751
  %v2753 = vpop.xlane.xlu0 %2752
  %v2754 = vsel %vm302, %v1571, -inf
  %2755 = vmax.xlane.f32.xlu0 %v2754
  %v2756 = vpop.xlane.xlu0 %2755
  %v2757 = vsel %vm302, %v1574, -inf
  %2758 = vmax.xlane.f32.xlu0 %v2757
  %v2759 = vpop.xlane.xlu0 %2758
  %v2760 = vsel %vm302, %v1577, -inf
  %2761 = vmax.xlane.f32.xlu0 %v2760
  %v2762 = vpop.xlane.xlu0 %2761
  %v2763 = vsel %vm302, %v1612, -inf
  %2764 = vmax.xlane.f32.xlu0 %v2763
  %v2765 = vpop.xlane.xlu0 %2764
  %v2766 = vsel %vm302, %v1615, -inf
  %2767 = vmax.xlane.f32.xlu0 %v2766
  %v2768 = vpop.xlane.xlu0 %2767
  %v2769 = vsel %vm302, %v1618, -inf
  %2770 = vmax.xlane.f32.xlu0 %v2769
  %v2771 = vpop.xlane.xlu0 %2770
  %v2772 = vsel %vm302, %v1621, -inf
  %2773 = vmax.xlane.f32.xlu0 %v2772
  %v2774 = vpop.xlane.xlu0 %2773
  %v2775 = vsel %vm302, %v1656, -inf
  %2776 = vmax.xlane.f32.xlu0 %v2775
  %v2777 = vpop.xlane.xlu0 %2776
  %v2778 = vsel %vm302, %v1659, -inf
  %2779 = vmax.xlane.f32.xlu0 %v2778
  %v2780 = vpop.xlane.xlu0 %2779
  %v2781 = vsel %vm302, %v1662, -inf
  %2782 = vmax.xlane.f32.xlu0 %v2781
  %v2783 = vpop.xlane.xlu0 %2782
  %v2784 = vsel %vm302, %v1665, -inf
  %2785 = vmax.xlane.f32.xlu0 %v2784
  %v2786 = vpop.xlane.xlu0 %2785
  %v2787 = vsel %vm302, %v1700, -inf
  %2788 = vmax.xlane.f32.xlu0 %v2787
  %v2789 = vpop.xlane.xlu0 %2788
  %v2790 = vsel %vm302, %v1703, -inf
  %2791 = vmax.xlane.f32.xlu0 %v2790
  %v2792 = vpop.xlane.xlu0 %2791
  %v2793 = vsel %vm302, %v1706, -inf
  %2794 = vmax.xlane.f32.xlu0 %v2793
  %v2795 = vpop.xlane.xlu0 %2794
  %v2796 = vsel %vm302, %v1709, -inf
  %2797 = vmax.xlane.f32.xlu0 %v2796
  %v2798 = vpop.xlane.xlu0 %2797
  %v2799 = vsel %vm302, %v1744, -inf
  %2800 = vmax.xlane.f32.xlu0 %v2799
  %v2801 = vpop.xlane.xlu0 %2800
  %v2802 = vsel %vm302, %v1747, -inf
  %2803 = vmax.xlane.f32.xlu0 %v2802
  %v2804 = vpop.xlane.xlu0 %2803
  %v2805 = vsel %vm302, %v1750, -inf
  %2806 = vmax.xlane.f32.xlu0 %v2805
  %v2807 = vpop.xlane.xlu0 %2806
  %v2808 = vsel %vm302, %v1753, -inf
  %2809 = vmax.xlane.f32.xlu0 %v2808
  %v2810 = vpop.xlane.xlu0 %2809
  %v2811 = vsel %vm302, %v1788, -inf
  %2812 = vmax.xlane.f32.xlu0 %v2811
  %v2813 = vpop.xlane.xlu0 %2812
  %v2814 = vsel %vm302, %v1791, -inf
  %2815 = vmax.xlane.f32.xlu0 %v2814
  %v2816 = vpop.xlane.xlu0 %2815
  %v2817 = vsel %vm302, %v1794, -inf
  %2818 = vmax.xlane.f32.xlu0 %v2817
  %v2819 = vpop.xlane.xlu0 %2818
  %v2820 = vsel %vm302, %v1797, -inf
  %2821 = vmax.xlane.f32.xlu0 %v2820
  %v2822 = vpop.xlane.xlu0 %2821
  %v2823 = vsel %vm302, %v1832, -inf
  %2824 = vmax.xlane.f32.xlu0 %v2823
  %v2825 = vpop.xlane.xlu0 %2824
  %v2826 = vsel %vm302, %v1835, -inf
  %2827 = vmax.xlane.f32.xlu0 %v2826
  %v2828 = vpop.xlane.xlu0 %2827
  %v2829 = vsel %vm302, %v1838, -inf
  %2830 = vmax.xlane.f32.xlu0 %v2829
  %v2831 = vpop.xlane.xlu0 %2830
  %v2832 = vsel %vm302, %v1841, -inf
  %2833 = vmax.xlane.f32.xlu0 %v2832
  %v2834 = vpop.xlane.xlu0 %2833
  %v2835 = vsel %vm302, %v1876, -inf
  %2836 = vmax.xlane.f32.xlu0 %v2835
  %v2837 = vpop.xlane.xlu0 %2836
  %v2838 = vsel %vm302, %v1879, -inf
  %2839 = vmax.xlane.f32.xlu0 %v2838
  %v2840 = vpop.xlane.xlu0 %2839
  %v2841 = vsel %vm302, %v1882, -inf
  %2842 = vmax.xlane.f32.xlu0 %v2841
  %v2843 = vpop.xlane.xlu0 %2842
  %v2844 = vsel %vm302, %v1885, -inf
  %2845 = vmax.xlane.f32.xlu0 %v2844
  %v2846 = vpop.xlane.xlu0 %2845
  %v2847 = vsel %vm302, %v1920, -inf
  %2848 = vmax.xlane.f32.xlu0 %v2847
  %v2849 = vpop.xlane.xlu0 %2848
  %v2850 = vsel %vm302, %v1923, -inf
  %2851 = vmax.xlane.f32.xlu0 %v2850
  %v2852 = vpop.xlane.xlu0 %2851
  %v2853 = vsel %vm302, %v1926, -inf
  %2854 = vmax.xlane.f32.xlu0 %v2853
  %v2855 = vpop.xlane.xlu0 %2854
  %v2856 = vsel %vm302, %v1929, -inf
  %2857 = vmax.xlane.f32.xlu0 %v2856
  %v2858 = vpop.xlane.xlu0 %2857
  %v2859 = vsel %vm302, %v1964, -inf
  %2860 = vmax.xlane.f32.xlu0 %v2859
  %v2861 = vpop.xlane.xlu0 %2860
  %v2862 = vsel %vm302, %v1967, -inf
  %2863 = vmax.xlane.f32.xlu0 %v2862
  %v2864 = vpop.xlane.xlu0 %2863
  %v2865 = vsel %vm302, %v1970, -inf
  %2866 = vmax.xlane.f32.xlu0 %v2865
  %v2867 = vpop.xlane.xlu0 %2866
  %v2868 = vsel %vm302, %v1973, -inf
  %2869 = vmax.xlane.f32.xlu0 %v2868
  %v2870 = vpop.xlane.xlu0 %2869
  %v2871 = vsel %vm302, %v2008, -inf
  %2872 = vmax.xlane.f32.xlu0 %v2871
  %v2873 = vpop.xlane.xlu0 %2872
  %v2874 = vsel %vm302, %v2011, -inf
  %2875 = vmax.xlane.f32.xlu0 %v2874
  %v2876 = vpop.xlane.xlu0 %2875
  %v2877 = vsel %vm302, %v2014, -inf
  %2878 = vmax.xlane.f32.xlu0 %v2877
  %v2879 = vpop.xlane.xlu0 %2878
  %v2880 = vsel %vm302, %v2017, -inf
  %2881 = vmax.xlane.f32.xlu0 %v2880
  %v2882 = vpop.xlane.xlu0 %2881
  %v2883 = vsel %vm302, %v2052, -inf
  %2884 = vmax.xlane.f32.xlu0 %v2883
  %v2885 = vpop.xlane.xlu0 %2884
  %v2886 = vsel %vm302, %v2055, -inf
  %2887 = vmax.xlane.f32.xlu0 %v2886
  %v2888 = vpop.xlane.xlu0 %2887
  %v2889 = vsel %vm302, %v2058, -inf
  %2890 = vmax.xlane.f32.xlu0 %v2889
  %v2891 = vpop.xlane.xlu0 %2890
  %v2892 = vsel %vm302, %v2061, -inf
  %2893 = vmax.xlane.f32.xlu0 %v2892
  %v2894 = vpop.xlane.xlu0 %2893
  %v2895 = vsel %vm302, %v2096, -inf
  %2896 = vmax.xlane.f32.xlu0 %v2895
  %v2897 = vpop.xlane.xlu0 %2896
  %v2898 = vsel %vm302, %v2099, -inf
  %2899 = vmax.xlane.f32.xlu0 %v2898
  %v2900 = vpop.xlane.xlu0 %2899
  %v2901 = vsel %vm302, %v2102, -inf
  %2902 = vmax.xlane.f32.xlu0 %v2901
  %v2903 = vpop.xlane.xlu0 %2902
  %v2904 = vsel %vm302, %v2105, -inf
  %2905 = vmax.xlane.f32.xlu0 %v2904
  %v2906 = vpop.xlane.xlu0 %2905
  %v2907 = vsel %vm302, %v2140, -inf
  %2908 = vmax.xlane.f32.xlu0 %v2907
  %v2909 = vpop.xlane.xlu0 %2908
  %v2910 = vsel %vm302, %v2143, -inf
  %2911 = vmax.xlane.f32.xlu0 %v2910
  %v2912 = vpop.xlane.xlu0 %2911
  %v2913 = vsel %vm302, %v2146, -inf
  %2914 = vmax.xlane.f32.xlu0 %v2913
  %v2915 = vpop.xlane.xlu0 %2914
  %v2916 = vsel %vm302, %v2149, -inf
  %2917 = vmax.xlane.f32.xlu0 %v2916
  %v2918 = vpop.xlane.xlu0 %2917
  %v2919 = vsel %vm302, %v2184, -inf
  %2920 = vmax.xlane.f32.xlu0 %v2919
  %v2921 = vpop.xlane.xlu0 %2920
  %v2922 = vsel %vm302, %v2187, -inf
  %2923 = vmax.xlane.f32.xlu0 %v2922
  %v2924 = vpop.xlane.xlu0 %2923
  %v2925 = vsel %vm302, %v2190, -inf
  %2926 = vmax.xlane.f32.xlu0 %v2925
  %v2927 = vpop.xlane.xlu0 %2926
  %v2928 = vsel %vm302, %v2193, -inf
  %2929 = vmax.xlane.f32.xlu0 %v2928
  %v2930 = vpop.xlane.xlu0 %2929
  %v2931 = vsel %vm302, %v2228, -inf
  %2932 = vmax.xlane.f32.xlu0 %v2931
  %v2933 = vpop.xlane.xlu0 %2932
  %v2934 = vsel %vm302, %v2231, -inf
  %2935 = vmax.xlane.f32.xlu0 %v2934
  %v2936 = vpop.xlane.xlu0 %2935
  %v2937 = vsel %vm302, %v2234, -inf
  %2938 = vmax.xlane.f32.xlu0 %v2937
  %v2939 = vpop.xlane.xlu0 %2938
  %v2940 = vsel %vm302, %v2237, -inf
  %2941 = vmax.xlane.f32.xlu0 %v2940
  %v2942 = vpop.xlane.xlu0 %2941
  %v2943 = vsel %vm302, %v2272, -inf
  %2944 = vmax.xlane.f32.xlu0 %v2943
  %v2945 = vpop.xlane.xlu0 %2944
  %v2946 = vsel %vm302, %v2275, -inf
  %2947 = vmax.xlane.f32.xlu0 %v2946
  %v2948 = vpop.xlane.xlu0 %2947
  %v2949 = vsel %vm302, %v2278, -inf
  %2950 = vmax.xlane.f32.xlu0 %v2949
  %v2951 = vpop.xlane.xlu0 %2950
  %v2952 = vsel %vm302, %v2281, -inf
  %2953 = vmax.xlane.f32.xlu0 %v2952
  %v2954 = vpop.xlane.xlu0 %2953
  %v2955 = vsel %vm302, %v2316, -inf
  %2956 = vmax.xlane.f32.xlu0 %v2955
  %v2957 = vpop.xlane.xlu0 %2956
  %v2958 = vsel %vm302, %v2319, -inf
  %2959 = vmax.xlane.f32.xlu0 %v2958
  %v2960 = vpop.xlane.xlu0 %2959
  %v2961 = vsel %vm302, %v2322, -inf
  %2962 = vmax.xlane.f32.xlu0 %v2961
  %v2963 = vpop.xlane.xlu0 %2962
  %v2964 = vsel %vm302, %v2325, -inf
  %2965 = vmax.xlane.f32.xlu0 %v2964
  %v2966 = vpop.xlane.xlu0 %2965
  %v2967 = vsel %vm302, %v2360, -inf
  %2968 = vmax.xlane.f32.xlu0 %v2967
  %v2969 = vpop.xlane.xlu0 %2968
  %v2970 = vsel %vm302, %v2363, -inf
  %2971 = vmax.xlane.f32.xlu0 %v2970
  %v2972 = vpop.xlane.xlu0 %2971
  %v2973 = vsel %vm302, %v2366, -inf
  %2974 = vmax.xlane.f32.xlu0 %v2973
  %v2975 = vpop.xlane.xlu0 %2974
  %v2976 = vsel %vm302, %v2369, -inf
  %2977 = vmax.xlane.f32.xlu0 %v2976
  %v2978 = vpop.xlane.xlu0 %2977
  %v2979 = vsel %vm302, %v2404, -inf
  %2980 = vmax.xlane.f32.xlu0 %v2979
  %v2981 = vpop.xlane.xlu0 %2980
  %v2982 = vsel %vm302, %v2407, -inf
  %2983 = vmax.xlane.f32.xlu0 %v2982
  %v2984 = vpop.xlane.xlu0 %2983
  %v2985 = vsel %vm302, %v2410, -inf
  %2986 = vmax.xlane.f32.xlu0 %v2985
  %v2987 = vpop.xlane.xlu0 %2986
  %v2988 = vsel %vm302, %v2413, -inf
  %2989 = vmax.xlane.f32.xlu0 %v2988
  %v2990 = vpop.xlane.xlu0 %2989
  %v2991 = vsub.f32 %v336, %v2417
  %v2992 = vsub.f32 %v339, %v2420
  %v2993 = vsub.f32 %v342, %v2423
  %v2994 = vsub.f32 %v345, %v2426
  %v2995 = vsub.f32 %v380, %v2429
  %v2996 = vsub.f32 %v383, %v2432
  %v2997 = vsub.f32 %v386, %v2435
  %v2998 = vsub.f32 %v389, %v2438
  %v2999 = vsub.f32 %v424, %v2441
  %v3000 = vsub.f32 %v427, %v2444
  %v3001 = vsub.f32 %v430, %v2447
  %v3002 = vsub.f32 %v433, %v2450
  %v3003 = vsub.f32 %v468, %v2453
  %v3004 = vsub.f32 %v471, %v2456
  %v3005 = vsub.f32 %v474, %v2459
  %v3006 = vsub.f32 %v477, %v2462
  %v3007 = vsub.f32 %v512, %v2465
  %v3008 = vsub.f32 %v515, %v2468
  %v3009 = vsub.f32 %v518, %v2471
  %v3010 = vsub.f32 %v521, %v2474
  %v3011 = vsub.f32 %v556, %v2477
  %v3012 = vsub.f32 %v559, %v2480
  %v3013 = vsub.f32 %v562, %v2483
  %v3014 = vsub.f32 %v565, %v2486
  %v3015 = vsub.f32 %v600, %v2489
  %v3016 = vsub.f32 %v603, %v2492
  %v3017 = vsub.f32 %v606, %v2495
  %v3018 = vsub.f32 %v609, %v2498
  %v3019 = vsub.f32 %v644, %v2501
  %v3020 = vsub.f32 %v647, %v2504
  %v3021 = vsub.f32 %v650, %v2507
  %v3022 = vsub.f32 %v653, %v2510
  %v3023 = vsub.f32 %v688, %v2513
  %v3024 = vsub.f32 %v691, %v2516
  %v3025 = vsub.f32 %v694, %v2519
  %v3026 = vsub.f32 %v697, %v2522
  %v3027 = vsub.f32 %v732, %v2525
  %v3028 = vsub.f32 %v735, %v2528
  %v3029 = vsub.f32 %v738, %v2531
  %v3030 = vsub.f32 %v741, %v2534
  %v3031 = vsub.f32 %v776, %v2537
  %v3032 = vsub.f32 %v779, %v2540
  %v3033 = vsub.f32 %v782, %v2543
  %v3034 = vsub.f32 %v785, %v2546
  %v3035 = vsub.f32 %v820, %v2549
  %v3036 = vsub.f32 %v823, %v2552
  %v3037 = vsub.f32 %v826, %v2555
  %v3038 = vsub.f32 %v829, %v2558
  %v3039 = vsub.f32 %v864, %v2561
  %v3040 = vsub.f32 %v867, %v2564
  %v3041 = vsub.f32 %v870, %v2567
  %v3042 = vsub.f32 %v873, %v2570
  %v3043 = vsub.f32 %v908, %v2573
  %v3044 = vsub.f32 %v911, %v2576
  %v3045 = vsub.f32 %v914, %v2579
  %v3046 = vsub.f32 %v917, %v2582
  %v3047 = vsub.f32 %v952, %v2585
  %v3048 = vsub.f32 %v955, %v2588
  %v3049 = vsub.f32 %v958, %v2591
  %v3050 = vsub.f32 %v961, %v2594
  %v3051 = vsub.f32 %v996, %v2597
  %v3052 = vsub.f32 %v999, %v2600
  %v3053 = vsub.f32 %v1002, %v2603
  %v3054 = vsub.f32 %v1005, %v2606
  %v3055 = vsub.f32 %v1040, %v2609
  %v3056 = vsub.f32 %v1043, %v2612
  %v3057 = vsub.f32 %v1046, %v2615
  %v3058 = vsub.f32 %v1049, %v2618
  %v3059 = vsub.f32 %v1084, %v2621
  %v3060 = vsub.f32 %v1087, %v2624
  %v3061 = vsub.f32 %v1090, %v2627
  %v3062 = vsub.f32 %v1093, %v2630
  %v3063 = vsub.f32 %v1128, %v2633
  %v3064 = vsub.f32 %v1131, %v2636
  %v3065 = vsub.f32 %v1134, %v2639
  %v3066 = vsub.f32 %v1137, %v2642
  %v3067 = vsub.f32 %v1172, %v2645
  %v3068 = vsub.f32 %v1175, %v2648
  %v3069 = vsub.f32 %v1178, %v2651
  %v3070 = vsub.f32 %v1181, %v2654
  %v3071 = vsub.f32 %v1216, %v2657
  %v3072 = vsub.f32 %v1219, %v2660
  %v3073 = vsub.f32 %v1222, %v2663
  %v3074 = vsub.f32 %v1225, %v2666
  %v3075 = vsub.f32 %v1260, %v2669
  %v3076 = vsub.f32 %v1263, %v2672
  %v3077 = vsub.f32 %v1266, %v2675
  %v3078 = vsub.f32 %v1269, %v2678
  %v3079 = vsub.f32 %v1304, %v2681
  %v3080 = vsub.f32 %v1307, %v2684
  %v3081 = vsub.f32 %v1310, %v2687
  %v3082 = vsub.f32 %v1313, %v2690
  %v3083 = vsub.f32 %v1348, %v2693
  %v3084 = vsub.f32 %v1351, %v2696
  %v3085 = vsub.f32 %v1354, %v2699
  %v3086 = vsub.f32 %v1357, %v2702
  %v3087 = vsub.f32 %v1392, %v2705
  %v3088 = vsub.f32 %v1395, %v2708
  %v3089 = vsub.f32 %v1398, %v2711
  %v3090 = vsub.f32 %v1401, %v2714
  %v3091 = vsub.f32 %v1436, %v2717
  %v3092 = vsub.f32 %v1439, %v2720
  %v3093 = vsub.f32 %v1442, %v2723
  %v3094 = vsub.f32 %v1445, %v2726
  %v3095 = vsub.f32 %v1480, %v2729
  %v3096 = vsub.f32 %v1483, %v2732
  %v3097 = vsub.f32 %v1486, %v2735
  %v3098 = vsub.f32 %v1489, %v2738
  %v3099 = vsub.f32 %v1524, %v2741
  %v3100 = vsub.f32 %v1527, %v2744
  %v3101 = vsub.f32 %v1530, %v2747
  %v3102 = vsub.f32 %v1533, %v2750
  %v3103 = vsub.f32 %v1568, %v2753
  %v3104 = vsub.f32 %v1571, %v2756
  %v3105 = vsub.f32 %v1574, %v2759
  %v3106 = vsub.f32 %v1577, %v2762
  %v3107 = vsub.f32 %v1612, %v2765
  %v3108 = vsub.f32 %v1615, %v2768
  %v3109 = vsub.f32 %v1618, %v2771
  %v3110 = vsub.f32 %v1621, %v2774
  %v3111 = vsub.f32 %v1656, %v2777
  %v3112 = vsub.f32 %v1659, %v2780
  %v3113 = vsub.f32 %v1662, %v2783
  %v3114 = vsub.f32 %v1665, %v2786
  %v3115 = vsub.f32 %v1700, %v2789
  %v3116 = vsub.f32 %v1703, %v2792
  %v3117 = vsub.f32 %v1706, %v2795
  %v3118 = vsub.f32 %v1709, %v2798
  %v3119 = vsub.f32 %v1744, %v2801
  %v3120 = vsub.f32 %v1747, %v2804
  %v3121 = vsub.f32 %v1750, %v2807
  %v3122 = vsub.f32 %v1753, %v2810
  %v3123 = vsub.f32 %v1788, %v2813
  %v3124 = vsub.f32 %v1791, %v2816
  %v3125 = vsub.f32 %v1794, %v2819
  %v3126 = vsub.f32 %v1797, %v2822
  %v3127 = vsub.f32 %v1832, %v2825
  %v3128 = vsub.f32 %v1835, %v2828
  %v3129 = vsub.f32 %v1838, %v2831
  %v3130 = vsub.f32 %v1841, %v2834
  %v3131 = vsub.f32 %v1876, %v2837
  %v3132 = vsub.f32 %v1879, %v2840
  %v3133 = vsub.f32 %v1882, %v2843
  %v3134 = vsub.f32 %v1885, %v2846
  %v3135 = vsub.f32 %v1920, %v2849
  %v3136 = vsub.f32 %v1923, %v2852
  %v3137 = vsub.f32 %v1926, %v2855
  %v3138 = vsub.f32 %v1929, %v2858
  %v3139 = vsub.f32 %v1964, %v2861
  %v3140 = vsub.f32 %v1967, %v2864
  %v3141 = vsub.f32 %v1970, %v2867
  %v3142 = vsub.f32 %v1973, %v2870
  %v3143 = vsub.f32 %v2008, %v2873
  %v3144 = vsub.f32 %v2011, %v2876
  %v3145 = vsub.f32 %v2014, %v2879
  %v3146 = vsub.f32 %v2017, %v2882
  %v3147 = vsub.f32 %v2052, %v2885
  %v3148 = vsub.f32 %v2055, %v2888
  %v3149 = vsub.f32 %v2058, %v2891
  %v3150 = vsub.f32 %v2061, %v2894
  %v3151 = vsub.f32 %v2096, %v2897
  %v3152 = vsub.f32 %v2099, %v2900
  %v3153 = vsub.f32 %v2102, %v2903
  %v3154 = vsub.f32 %v2105, %v2906
  %v3155 = vsub.f32 %v2140, %v2909
  %v3156 = vsub.f32 %v2143, %v2912
  %v3157 = vsub.f32 %v2146, %v2915
  %v3158 = vsub.f32 %v2149, %v2918
  %v3159 = vsub.f32 %v2184, %v2921
  %v3160 = vsub.f32 %v2187, %v2924
  %v3161 = vsub.f32 %v2190, %v2927
  %v3162 = vsub.f32 %v2193, %v2930
  %v3163 = vsub.f32 %v2228, %v2933
  %v3164 = vsub.f32 %v2231, %v2936
  %v3165 = vsub.f32 %v2234, %v2939
  %v3166 = vsub.f32 %v2237, %v2942
  %v3167 = vsub.f32 %v2272, %v2945
  %v3168 = vsub.f32 %v2275, %v2948
  %v3169 = vsub.f32 %v2278, %v2951
  %v3170 = vsub.f32 %v2281, %v2954
  %v3171 = vsub.f32 %v2316, %v2957
  %v3172 = vsub.f32 %v2319, %v2960
  %v3173 = vsub.f32 %v2322, %v2963
  %v3174 = vsub.f32 %v2325, %v2966
  %v3175 = vsub.f32 %v2360, %v2969
  %v3176 = vsub.f32 %v2363, %v2972
  %v3177 = vsub.f32 %v2366, %v2975
  %v3178 = vsub.f32 %v2369, %v2978
  %v3179 = vsub.f32 %v2404, %v2981
  %v3180 = vsub.f32 %v2407, %v2984
  %v3181 = vsub.f32 %v2410, %v2987
  %v3182 = vsub.f32 %v2413, %v2990
  %v3183 = vmul.f32 %v2991, 1.442695
  %v3184 = vpow.pop %v3183
  %v3185 = vmul.f32 %v2992, 1.442695
  %v3186 = vpow.pop %v3185
  %v3187 = vmul.f32 %v2993, 1.442695
  %v3188 = vpow.pop %v3187
  %v3189 = vmul.f32 %v2994, 1.442695
  %v3190 = vpow.pop %v3189
  %v3191 = vmul.f32 %v2995, 1.442695
  %v3192 = vpow.pop %v3191
  %v3193 = vmul.f32 %v2996, 1.442695
  %v3194 = vpow.pop %v3193
  %v3195 = vmul.f32 %v2997, 1.442695
  %v3196 = vpow.pop %v3195
  %v3197 = vmul.f32 %v2998, 1.442695
  %v3198 = vpow.pop %v3197
  %v3199 = vmul.f32 %v2999, 1.442695
  %v3200 = vpow.pop %v3199
  %v3201 = vmul.f32 %v3000, 1.442695
  %v3202 = vpow.pop %v3201
  %v3203 = vmul.f32 %v3001, 1.442695
  %v3204 = vpow.pop %v3203
  %v3205 = vmul.f32 %v3002, 1.442695
  %v3206 = vpow.pop %v3205
  %v3207 = vmul.f32 %v3003, 1.442695
  %v3208 = vpow.pop %v3207
  %v3209 = vmul.f32 %v3004, 1.442695
  %v3210 = vpow.pop %v3209
  %v3211 = vmul.f32 %v3005, 1.442695
  %v3212 = vpow.pop %v3211
  %v3213 = vmul.f32 %v3006, 1.442695
  %v3214 = vpow.pop %v3213
  %v3215 = vmul.f32 %v3007, 1.442695
  %v3216 = vpow.pop %v3215
  %v3217 = vmul.f32 %v3008, 1.442695
  %v3218 = vpow.pop %v3217
  %v3219 = vmul.f32 %v3009, 1.442695
  %v3220 = vpow.pop %v3219
  %v3221 = vmul.f32 %v3010, 1.442695
  %v3222 = vpow.pop %v3221
  %v3223 = vmul.f32 %v3011, 1.442695
  %v3224 = vpow.pop %v3223
  %v3225 = vmul.f32 %v3012, 1.442695
  %v3226 = vpow.pop %v3225
  %v3227 = vmul.f32 %v3013, 1.442695
  %v3228 = vpow.pop %v3227
  %v3229 = vmul.f32 %v3014, 1.442695
  %v3230 = vpow.pop %v3229
  %v3231 = vmul.f32 %v3015, 1.442695
  %v3232 = vpow.pop %v3231
  %v3233 = vmul.f32 %v3016, 1.442695
  %v3234 = vpow.pop %v3233
  %v3235 = vmul.f32 %v3017, 1.442695
  %v3236 = vpow.pop %v3235
  %v3237 = vmul.f32 %v3018, 1.442695
  %v3238 = vpow.pop %v3237
  %v3239 = vmul.f32 %v3019, 1.442695
  %v3240 = vpow.pop %v3239
  %v3241 = vmul.f32 %v3020, 1.442695
  %v3242 = vpow.pop %v3241
  %v3243 = vmul.f32 %v3021, 1.442695
  %v3244 = vpow.pop %v3243
  %v3245 = vmul.f32 %v3022, 1.442695
  %v3246 = vpow.pop %v3245
  %v3247 = vmul.f32 %v3023, 1.442695
  %v3248 = vpow.pop %v3247
  %v3249 = vmul.f32 %v3024, 1.442695
  %v3250 = vpow.pop %v3249
  %v3251 = vmul.f32 %v3025, 1.442695
  %v3252 = vpow.pop %v3251
  %v3253 = vmul.f32 %v3026, 1.442695
  %v3254 = vpow.pop %v3253
  %v3255 = vmul.f32 %v3027, 1.442695
  %v3256 = vpow.pop %v3255
  %v3257 = vmul.f32 %v3028, 1.442695
  %v3258 = vpow.pop %v3257
  %v3259 = vmul.f32 %v3029, 1.442695
  %v3260 = vpow.pop %v3259
  %v3261 = vmul.f32 %v3030, 1.442695
  %v3262 = vpow.pop %v3261
  %v3263 = vmul.f32 %v3031, 1.442695
  %v3264 = vpow.pop %v3263
  %v3265 = vmul.f32 %v3032, 1.442695
  %v3266 = vpow.pop %v3265
  %v3267 = vmul.f32 %v3033, 1.442695
  %v3268 = vpow.pop %v3267
  %v3269 = vmul.f32 %v3034, 1.442695
  %v3270 = vpow.pop %v3269
  %v3271 = vmul.f32 %v3035, 1.442695
  %v3272 = vpow.pop %v3271
  %v3273 = vmul.f32 %v3036, 1.442695
  %v3274 = vpow.pop %v3273
  %v3275 = vmul.f32 %v3037, 1.442695
  %v3276 = vpow.pop %v3275
  %v3277 = vmul.f32 %v3038, 1.442695
  %v3278 = vpow.pop %v3277
  %v3279 = vmul.f32 %v3039, 1.442695
  %v3280 = vpow.pop %v3279
  %v3281 = vmul.f32 %v3040, 1.442695
  %v3282 = vpow.pop %v3281
  %v3283 = vmul.f32 %v3041, 1.442695
  %v3284 = vpow.pop %v3283
  %v3285 = vmul.f32 %v3042, 1.442695
  %v3286 = vpow.pop %v3285
  %v3287 = vmul.f32 %v3043, 1.442695
  %v3288 = vpow.pop %v3287
  %v3289 = vmul.f32 %v3044, 1.442695
  %v3290 = vpow.pop %v3289
  %v3291 = vmul.f32 %v3045, 1.442695
  %v3292 = vpow.pop %v3291
  %v3293 = vmul.f32 %v3046, 1.442695
  %v3294 = vpow.pop %v3293
  %v3295 = vmul.f32 %v3047, 1.442695
  %v3296 = vpow.pop %v3295
  %v3297 = vmul.f32 %v3048, 1.442695
  %v3298 = vpow.pop %v3297
  %v3299 = vmul.f32 %v3049, 1.442695
  %v3300 = vpow.pop %v3299
  %v3301 = vmul.f32 %v3050, 1.442695
  %v3302 = vpow.pop %v3301
  %v3303 = vmul.f32 %v3051, 1.442695
  %v3304 = vpow.pop %v3303
  %v3305 = vmul.f32 %v3052, 1.442695
  %v3306 = vpow.pop %v3305
  %v3307 = vmul.f32 %v3053, 1.442695
  %v3308 = vpow.pop %v3307
  %v3309 = vmul.f32 %v3054, 1.442695
  %v3310 = vpow.pop %v3309
  %v3311 = vmul.f32 %v3055, 1.442695
  %v3312 = vpow.pop %v3311
  %v3313 = vmul.f32 %v3056, 1.442695
  %v3314 = vpow.pop %v3313
  %v3315 = vmul.f32 %v3057, 1.442695
  %v3316 = vpow.pop %v3315
  %v3317 = vmul.f32 %v3058, 1.442695
  %v3318 = vpow.pop %v3317
  %v3319 = vmul.f32 %v3059, 1.442695
  %v3320 = vpow.pop %v3319
  %v3321 = vmul.f32 %v3060, 1.442695
  %v3322 = vpow.pop %v3321
  %v3323 = vmul.f32 %v3061, 1.442695
  %v3324 = vpow.pop %v3323
  %v3325 = vmul.f32 %v3062, 1.442695
  %v3326 = vpow.pop %v3325
  %v3327 = vmul.f32 %v3063, 1.442695
  %v3328 = vpow.pop %v3327
  %v3329 = vmul.f32 %v3064, 1.442695
  %v3330 = vpow.pop %v3329
  %v3331 = vmul.f32 %v3065, 1.442695
  %v3332 = vpow.pop %v3331
  %v3333 = vmul.f32 %v3066, 1.442695
  %v3334 = vpow.pop %v3333
  %v3335 = vmul.f32 %v3067, 1.442695
  %v3336 = vpow.pop %v3335
  %v3337 = vmul.f32 %v3068, 1.442695
  %v3338 = vpow.pop %v3337
  %v3339 = vmul.f32 %v3069, 1.442695
  %v3340 = vpow.pop %v3339
  %v3341 = vmul.f32 %v3070, 1.442695
  %v3342 = vpow.pop %v3341
  %v3343 = vmul.f32 %v3071, 1.442695
  %v3344 = vpow.pop %v3343
  %v3345 = vmul.f32 %v3072, 1.442695
  %v3346 = vpow.pop %v3345
  %v3347 = vmul.f32 %v3073, 1.442695
  %v3348 = vpow.pop %v3347
  %v3349 = vmul.f32 %v3074, 1.442695
  %v3350 = vpow.pop %v3349
  %v3351 = vmul.f32 %v3075, 1.442695
  %v3352 = vpow.pop %v3351
  %v3353 = vmul.f32 %v3076, 1.442695
  %v3354 = vpow.pop %v3353
  %v3355 = vmul.f32 %v3077, 1.442695
  %v3356 = vpow.pop %v3355
  %v3357 = vmul.f32 %v3078, 1.442695
  %v3358 = vpow.pop %v3357
  %v3359 = vmul.f32 %v3079, 1.442695
  %v3360 = vpow.pop %v3359
  %v3361 = vmul.f32 %v3080, 1.442695
  %v3362 = vpow.pop %v3361
  %v3363 = vmul.f32 %v3081, 1.442695
  %v3364 = vpow.pop %v3363
  %v3365 = vmul.f32 %v3082, 1.442695
  %v3366 = vpow.pop %v3365
  %v3367 = vmul.f32 %v3083, 1.442695
  %v3368 = vpow.pop %v3367
  %v3369 = vmul.f32 %v3084, 1.442695
  %v3370 = vpow.pop %v3369
  %v3371 = vmul.f32 %v3085, 1.442695
  %v3372 = vpow.pop %v3371
  %v3373 = vmul.f32 %v3086, 1.442695
  %v3374 = vpow.pop %v3373
  %v3375 = vmul.f32 %v3087, 1.442695
  %v3376 = vpow.pop %v3375
  %v3377 = vmul.f32 %v3088, 1.442695
  %v3378 = vpow.pop %v3377
  %v3379 = vmul.f32 %v3089, 1.442695
  %v3380 = vpow.pop %v3379
  %v3381 = vmul.f32 %v3090, 1.442695
  %v3382 = vpow.pop %v3381
  %v3383 = vmul.f32 %v3091, 1.442695
  %v3384 = vpow.pop %v3383
  %v3385 = vmul.f32 %v3092, 1.442695
  %v3386 = vpow.pop %v3385
  %v3387 = vmul.f32 %v3093, 1.442695
  %v3388 = vpow.pop %v3387
  %v3389 = vmul.f32 %v3094, 1.442695
  %v3390 = vpow.pop %v3389
  %v3391 = vmul.f32 %v3095, 1.442695
  %v3392 = vpow.pop %v3391
  %v3393 = vmul.f32 %v3096, 1.442695
  %v3394 = vpow.pop %v3393
  %v3395 = vmul.f32 %v3097, 1.442695
  %v3396 = vpow.pop %v3395
  %v3397 = vmul.f32 %v3098, 1.442695
  %v3398 = vpow.pop %v3397
  %v3399 = vmul.f32 %v3099, 1.442695
  %v3400 = vpow.pop %v3399
  %v3401 = vmul.f32 %v3100, 1.442695
  %v3402 = vpow.pop %v3401
  %v3403 = vmul.f32 %v3101, 1.442695
  %v3404 = vpow.pop %v3403
  %v3405 = vmul.f32 %v3102, 1.442695
  %v3406 = vpow.pop %v3405
  %v3407 = vmul.f32 %v3103, 1.442695
  %v3408 = vpow.pop %v3407
  %v3409 = vmul.f32 %v3104, 1.442695
  %v3410 = vpow.pop %v3409
  %v3411 = vmul.f32 %v3105, 1.442695
  %v3412 = vpow.pop %v3411
  %v3413 = vmul.f32 %v3106, 1.442695
  %v3414 = vpow.pop %v3413
  %v3415 = vmul.f32 %v3107, 1.442695
  %v3416 = vpow.pop %v3415
  %v3417 = vmul.f32 %v3108, 1.442695
  %v3418 = vpow.pop %v3417
  %v3419 = vmul.f32 %v3109, 1.442695
  %v3420 = vpow.pop %v3419
  %v3421 = vmul.f32 %v3110, 1.442695
  %v3422 = vpow.pop %v3421
  %v3423 = vmul.f32 %v3111, 1.442695
  %v3424 = vpow.pop %v3423
  %v3425 = vmul.f32 %v3112, 1.442695
  %v3426 = vpow.pop %v3425
  %v3427 = vmul.f32 %v3113, 1.442695
  %v3428 = vpow.pop %v3427
  %v3429 = vmul.f32 %v3114, 1.442695
  %v3430 = vpow.pop %v3429
  %v3431 = vmul.f32 %v3115, 1.442695
  %v3432 = vpow.pop %v3431
  %v3433 = vmul.f32 %v3116, 1.442695
  %v3434 = vpow.pop %v3433
  %v3435 = vmul.f32 %v3117, 1.442695
  %v3436 = vpow.pop %v3435
  %v3437 = vmul.f32 %v3118, 1.442695
  %v3438 = vpow.pop %v3437
  %v3439 = vmul.f32 %v3119, 1.442695
  %v3440 = vpow.pop %v3439
  %v3441 = vmul.f32 %v3120, 1.442695
  %v3442 = vpow.pop %v3441
  %v3443 = vmul.f32 %v3121, 1.442695
  %v3444 = vpow.pop %v3443
  %v3445 = vmul.f32 %v3122, 1.442695
  %v3446 = vpow.pop %v3445
  %v3447 = vmul.f32 %v3123, 1.442695
  %v3448 = vpow.pop %v3447
  %v3449 = vmul.f32 %v3124, 1.442695
  %v3450 = vpow.pop %v3449
  %v3451 = vmul.f32 %v3125, 1.442695
  %v3452 = vpow.pop %v3451
  %v3453 = vmul.f32 %v3126, 1.442695
  %v3454 = vpow.pop %v3453
  %v3455 = vmul.f32 %v3127, 1.442695
  %v3456 = vpow.pop %v3455
  %v3457 = vmul.f32 %v3128, 1.442695
  %v3458 = vpow.pop %v3457
  %v3459 = vmul.f32 %v3129, 1.442695
  %v3460 = vpow.pop %v3459
  %v3461 = vmul.f32 %v3130, 1.442695
  %v3462 = vpow.pop %v3461
  %v3463 = vmul.f32 %v3131, 1.442695
  %v3464 = vpow.pop %v3463
  %v3465 = vmul.f32 %v3132, 1.442695
  %v3466 = vpow.pop %v3465
  %v3467 = vmul.f32 %v3133, 1.442695
  %v3468 = vpow.pop %v3467
  %v3469 = vmul.f32 %v3134, 1.442695
  %v3470 = vpow.pop %v3469
  %v3471 = vmul.f32 %v3135, 1.442695
  %v3472 = vpow.pop %v3471
  %v3473 = vmul.f32 %v3136, 1.442695
  %v3474 = vpow.pop %v3473
  %v3475 = vmul.f32 %v3137, 1.442695
  %v3476 = vpow.pop %v3475
  %v3477 = vmul.f32 %v3138, 1.442695
  %v3478 = vpow.pop %v3477
  %v3479 = vmul.f32 %v3139, 1.442695
  %v3480 = vpow.pop %v3479
  %v3481 = vmul.f32 %v3140, 1.442695
  %v3482 = vpow.pop %v3481
  %v3483 = vmul.f32 %v3141, 1.442695
  %v3484 = vpow.pop %v3483
  %v3485 = vmul.f32 %v3142, 1.442695
  %v3486 = vpow.pop %v3485
  %v3487 = vmul.f32 %v3143, 1.442695
  %v3488 = vpow.pop %v3487
  %v3489 = vmul.f32 %v3144, 1.442695
  %v3490 = vpow.pop %v3489
  %v3491 = vmul.f32 %v3145, 1.442695
  %v3492 = vpow.pop %v3491
  %v3493 = vmul.f32 %v3146, 1.442695
  %v3494 = vpow.pop %v3493
  %v3495 = vmul.f32 %v3147, 1.442695
  %v3496 = vpow.pop %v3495
  %v3497 = vmul.f32 %v3148, 1.442695
  %v3498 = vpow.pop %v3497
  %v3499 = vmul.f32 %v3149, 1.442695
  %v3500 = vpow.pop %v3499
  %v3501 = vmul.f32 %v3150, 1.442695
  %v3502 = vpow.pop %v3501
  %v3503 = vmul.f32 %v3151, 1.442695
  %v3504 = vpow.pop %v3503
  %v3505 = vmul.f32 %v3152, 1.442695
  %v3506 = vpow.pop %v3505
  %v3507 = vmul.f32 %v3153, 1.442695
  %v3508 = vpow.pop %v3507
  %v3509 = vmul.f32 %v3154, 1.442695
  %v3510 = vpow.pop %v3509
  %v3511 = vmul.f32 %v3155, 1.442695
  %v3512 = vpow.pop %v3511
  %v3513 = vmul.f32 %v3156, 1.442695
  %v3514 = vpow.pop %v3513
  %v3515 = vmul.f32 %v3157, 1.442695
  %v3516 = vpow.pop %v3515
  %v3517 = vmul.f32 %v3158, 1.442695
  %v3518 = vpow.pop %v3517
  %v3519 = vmul.f32 %v3159, 1.442695
  %v3520 = vpow.pop %v3519
  %v3521 = vmul.f32 %v3160, 1.442695
  %v3522 = vpow.pop %v3521
  %v3523 = vmul.f32 %v3161, 1.442695
  %v3524 = vpow.pop %v3523
  %v3525 = vmul.f32 %v3162, 1.442695
  %v3526 = vpow.pop %v3525
  %v3527 = vmul.f32 %v3163, 1.442695
  %v3528 = vpow.pop %v3527
  %v3529 = vmul.f32 %v3164, 1.442695
  %v3530 = vpow.pop %v3529
  %v3531 = vmul.f32 %v3165, 1.442695
  %v3532 = vpow.pop %v3531
  %v3533 = vmul.f32 %v3166, 1.442695
  %v3534 = vpow.pop %v3533
  %v3535 = vmul.f32 %v3167, 1.442695
  %v3536 = vpow.pop %v3535
  %v3537 = vmul.f32 %v3168, 1.442695
  %v3538 = vpow.pop %v3537
  %v3539 = vmul.f32 %v3169, 1.442695
  %v3540 = vpow.pop %v3539
  %v3541 = vmul.f32 %v3170, 1.442695
  %v3542 = vpow.pop %v3541
  %v3543 = vmul.f32 %v3171, 1.442695
  %v3544 = vpow.pop %v3543
  %v3545 = vmul.f32 %v3172, 1.442695
  %v3546 = vpow.pop %v3545
  %v3547 = vmul.f32 %v3173, 1.442695
  %v3548 = vpow.pop %v3547
  %v3549 = vmul.f32 %v3174, 1.442695
  %v3550 = vpow.pop %v3549
  %v3551 = vmul.f32 %v3175, 1.442695
  %v3552 = vpow.pop %v3551
  %v3553 = vmul.f32 %v3176, 1.442695
  %v3554 = vpow.pop %v3553
  %v3555 = vmul.f32 %v3177, 1.442695
  %v3556 = vpow.pop %v3555
  %v3557 = vmul.f32 %v3178, 1.442695
  %v3558 = vpow.pop %v3557
  %v3559 = vmul.f32 %v3179, 1.442695
  %v3560 = vpow.pop %v3559
  %v3561 = vmul.f32 %v3180, 1.442695
  %v3562 = vpow.pop %v3561
  %v3563 = vmul.f32 %v3181, 1.442695
  %v3564 = vpow.pop %v3563
  %v3565 = vmul.f32 %v3182, 1.442695
  %v3566 = vpow.pop %v3565
  %v3567 = vsel %vm302, %v3184, 0.0
  %3568 = vadd.xlane.f32.xlu0 %v3567
  %v3569 = vpop.xlane.xlu0 %3568
  %v3570 = vsel %vm302, %v3186, 0.0
  %3571 = vadd.xlane.f32.xlu0 %v3570
  %v3572 = vpop.xlane.xlu0 %3571
  %v3573 = vsel %vm302, %v3188, 0.0
  %3574 = vadd.xlane.f32.xlu0 %v3573
  %v3575 = vpop.xlane.xlu0 %3574
  %v3576 = vsel %vm302, %v3190, 0.0
  %3577 = vadd.xlane.f32.xlu0 %v3576
  %v3578 = vpop.xlane.xlu0 %3577
  %v3579 = vsel %vm302, %v3192, 0.0
  %3580 = vadd.xlane.f32.xlu0 %v3579
  %v3581 = vpop.xlane.xlu0 %3580
  %v3582 = vsel %vm302, %v3194, 0.0
  %3583 = vadd.xlane.f32.xlu0 %v3582
  %v3584 = vpop.xlane.xlu0 %3583
  %v3585 = vsel %vm302, %v3196, 0.0
  %3586 = vadd.xlane.f32.xlu0 %v3585
  %v3587 = vpop.xlane.xlu0 %3586
  %v3588 = vsel %vm302, %v3198, 0.0
  %3589 = vadd.xlane.f32.xlu0 %v3588
  %v3590 = vpop.xlane.xlu0 %3589
  %v3591 = vsel %vm302, %v3200, 0.0
  %3592 = vadd.xlane.f32.xlu0 %v3591
  %v3593 = vpop.xlane.xlu0 %3592
  %v3594 = vsel %vm302, %v3202, 0.0
  %3595 = vadd.xlane.f32.xlu0 %v3594
  %v3596 = vpop.xlane.xlu0 %3595
  %v3597 = vsel %vm302, %v3204, 0.0
  %3598 = vadd.xlane.f32.xlu0 %v3597
  %v3599 = vpop.xlane.xlu0 %3598
  %v3600 = vsel %vm302, %v3206, 0.0
  %3601 = vadd.xlane.f32.xlu0 %v3600
  %v3602 = vpop.xlane.xlu0 %3601
  %v3603 = vsel %vm302, %v3208, 0.0
  %3604 = vadd.xlane.f32.xlu0 %v3603
  %v3605 = vpop.xlane.xlu0 %3604
  %v3606 = vsel %vm302, %v3210, 0.0
  %3607 = vadd.xlane.f32.xlu0 %v3606
  %v3608 = vpop.xlane.xlu0 %3607
  %v3609 = vsel %vm302, %v3212, 0.0
  %3610 = vadd.xlane.f32.xlu0 %v3609
  %v3611 = vpop.xlane.xlu0 %3610
  %v3612 = vsel %vm302, %v3214, 0.0
  %3613 = vadd.xlane.f32.xlu0 %v3612
  %v3614 = vpop.xlane.xlu0 %3613
  %v3615 = vsel %vm302, %v3216, 0.0
  %3616 = vadd.xlane.f32.xlu0 %v3615
  %v3617 = vpop.xlane.xlu0 %3616
  %v3618 = vsel %vm302, %v3218, 0.0
  %3619 = vadd.xlane.f32.xlu0 %v3618
  %v3620 = vpop.xlane.xlu0 %3619
  %v3621 = vsel %vm302, %v3220, 0.0
  %3622 = vadd.xlane.f32.xlu0 %v3621
  %v3623 = vpop.xlane.xlu0 %3622
  %v3624 = vsel %vm302, %v3222, 0.0
  %3625 = vadd.xlane.f32.xlu0 %v3624
  %v3626 = vpop.xlane.xlu0 %3625
  %v3627 = vsel %vm302, %v3224, 0.0
  %3628 = vadd.xlane.f32.xlu0 %v3627
  %v3629 = vpop.xlane.xlu0 %3628
  %v3630 = vsel %vm302, %v3226, 0.0
  %3631 = vadd.xlane.f32.xlu0 %v3630
  %v3632 = vpop.xlane.xlu0 %3631
  %v3633 = vsel %vm302, %v3228, 0.0
  %3634 = vadd.xlane.f32.xlu0 %v3633
  %v3635 = vpop.xlane.xlu0 %3634
  %v3636 = vsel %vm302, %v3230, 0.0
  %3637 = vadd.xlane.f32.xlu0 %v3636
  %v3638 = vpop.xlane.xlu0 %3637
  %v3639 = vsel %vm302, %v3232, 0.0
  %3640 = vadd.xlane.f32.xlu0 %v3639
  %v3641 = vpop.xlane.xlu0 %3640
  %v3642 = vsel %vm302, %v3234, 0.0
  %3643 = vadd.xlane.f32.xlu0 %v3642
  %v3644 = vpop.xlane.xlu0 %3643
  %v3645 = vsel %vm302, %v3236, 0.0
  %3646 = vadd.xlane.f32.xlu0 %v3645
  %v3647 = vpop.xlane.xlu0 %3646
  %v3648 = vsel %vm302, %v3238, 0.0
  %3649 = vadd.xlane.f32.xlu0 %v3648
  %v3650 = vpop.xlane.xlu0 %3649
  %v3651 = vsel %vm302, %v3240, 0.0
  %3652 = vadd.xlane.f32.xlu0 %v3651
  %v3653 = vpop.xlane.xlu0 %3652
  %v3654 = vsel %vm302, %v3242, 0.0
  %3655 = vadd.xlane.f32.xlu0 %v3654
  %v3656 = vpop.xlane.xlu0 %3655
  %v3657 = vsel %vm302, %v3244, 0.0
  %3658 = vadd.xlane.f32.xlu0 %v3657
  %v3659 = vpop.xlane.xlu0 %3658
  %v3660 = vsel %vm302, %v3246, 0.0
  %3661 = vadd.xlane.f32.xlu0 %v3660
  %v3662 = vpop.xlane.xlu0 %3661
  %v3663 = vsel %vm302, %v3248, 0.0
  %3664 = vadd.xlane.f32.xlu0 %v3663
  %v3665 = vpop.xlane.xlu0 %3664
  %v3666 = vsel %vm302, %v3250, 0.0
  %3667 = vadd.xlane.f32.xlu0 %v3666
  %v3668 = vpop.xlane.xlu0 %3667
  %v3669 = vsel %vm302, %v3252, 0.0
  %3670 = vadd.xlane.f32.xlu0 %v3669
  %v3671 = vpop.xlane.xlu0 %3670
  %v3672 = vsel %vm302, %v3254, 0.0
  %3673 = vadd.xlane.f32.xlu0 %v3672
  %v3674 = vpop.xlane.xlu0 %3673
  %v3675 = vsel %vm302, %v3256, 0.0
  %3676 = vadd.xlane.f32.xlu0 %v3675
  %v3677 = vpop.xlane.xlu0 %3676
  %v3678 = vsel %vm302, %v3258, 0.0
  %3679 = vadd.xlane.f32.xlu0 %v3678
  %v3680 = vpop.xlane.xlu0 %3679
  %v3681 = vsel %vm302, %v3260, 0.0
  %3682 = vadd.xlane.f32.xlu0 %v3681
  %v3683 = vpop.xlane.xlu0 %3682
  %v3684 = vsel %vm302, %v3262, 0.0
  %3685 = vadd.xlane.f32.xlu0 %v3684
  %v3686 = vpop.xlane.xlu0 %3685
  %v3687 = vsel %vm302, %v3264, 0.0
  %3688 = vadd.xlane.f32.xlu0 %v3687
  %v3689 = vpop.xlane.xlu0 %3688
  %v3690 = vsel %vm302, %v3266, 0.0
  %3691 = vadd.xlane.f32.xlu0 %v3690
  %v3692 = vpop.xlane.xlu0 %3691
  %v3693 = vsel %vm302, %v3268, 0.0
  %3694 = vadd.xlane.f32.xlu0 %v3693
  %v3695 = vpop.xlane.xlu0 %3694
  %v3696 = vsel %vm302, %v3270, 0.0
  %3697 = vadd.xlane.f32.xlu0 %v3696
  %v3698 = vpop.xlane.xlu0 %3697
  %v3699 = vsel %vm302, %v3272, 0.0
  %3700 = vadd.xlane.f32.xlu0 %v3699
  %v3701 = vpop.xlane.xlu0 %3700
  %v3702 = vsel %vm302, %v3274, 0.0
  %3703 = vadd.xlane.f32.xlu0 %v3702
  %v3704 = vpop.xlane.xlu0 %3703
  %v3705 = vsel %vm302, %v3276, 0.0
  %3706 = vadd.xlane.f32.xlu0 %v3705
  %v3707 = vpop.xlane.xlu0 %3706
  %v3708 = vsel %vm302, %v3278, 0.0
  %3709 = vadd.xlane.f32.xlu0 %v3708
  %v3710 = vpop.xlane.xlu0 %3709
  %v3711 = vsel %vm302, %v3280, 0.0
  %3712 = vadd.xlane.f32.xlu0 %v3711
  %v3713 = vpop.xlane.xlu0 %3712
  %v3714 = vsel %vm302, %v3282, 0.0
  %3715 = vadd.xlane.f32.xlu0 %v3714
  %v3716 = vpop.xlane.xlu0 %3715
  %v3717 = vsel %vm302, %v3284, 0.0
  %3718 = vadd.xlane.f32.xlu0 %v3717
  %v3719 = vpop.xlane.xlu0 %3718
  %v3720 = vsel %vm302, %v3286, 0.0
  %3721 = vadd.xlane.f32.xlu0 %v3720
  %v3722 = vpop.xlane.xlu0 %3721
  %v3723 = vsel %vm302, %v3288, 0.0
  %3724 = vadd.xlane.f32.xlu0 %v3723
  %v3725 = vpop.xlane.xlu0 %3724
  %v3726 = vsel %vm302, %v3290, 0.0
  %3727 = vadd.xlane.f32.xlu0 %v3726
  %v3728 = vpop.xlane.xlu0 %3727
  %v3729 = vsel %vm302, %v3292, 0.0
  %3730 = vadd.xlane.f32.xlu0 %v3729
  %v3731 = vpop.xlane.xlu0 %3730
  %v3732 = vsel %vm302, %v3294, 0.0
  %3733 = vadd.xlane.f32.xlu0 %v3732
  %v3734 = vpop.xlane.xlu0 %3733
  %v3735 = vsel %vm302, %v3296, 0.0
  %3736 = vadd.xlane.f32.xlu0 %v3735
  %v3737 = vpop.xlane.xlu0 %3736
  %v3738 = vsel %vm302, %v3298, 0.0
  %3739 = vadd.xlane.f32.xlu0 %v3738
  %v3740 = vpop.xlane.xlu0 %3739
  %v3741 = vsel %vm302, %v3300, 0.0
  %3742 = vadd.xlane.f32.xlu0 %v3741
  %v3743 = vpop.xlane.xlu0 %3742
  %v3744 = vsel %vm302, %v3302, 0.0
  %3745 = vadd.xlane.f32.xlu0 %v3744
  %v3746 = vpop.xlane.xlu0 %3745
  %v3747 = vsel %vm302, %v3304, 0.0
  %3748 = vadd.xlane.f32.xlu0 %v3747
  %v3749 = vpop.xlane.xlu0 %3748
  %v3750 = vsel %vm302, %v3306, 0.0
  %3751 = vadd.xlane.f32.xlu0 %v3750
  %v3752 = vpop.xlane.xlu0 %3751
  %v3753 = vsel %vm302, %v3308, 0.0
  %3754 = vadd.xlane.f32.xlu0 %v3753
  %v3755 = vpop.xlane.xlu0 %3754
  %v3756 = vsel %vm302, %v3310, 0.0
  %3757 = vadd.xlane.f32.xlu0 %v3756
  %v3758 = vpop.xlane.xlu0 %3757
  %v3759 = vsel %vm302, %v3312, 0.0
  %3760 = vadd.xlane.f32.xlu0 %v3759
  %v3761 = vpop.xlane.xlu0 %3760
  %v3762 = vsel %vm302, %v3314, 0.0
  %3763 = vadd.xlane.f32.xlu0 %v3762
  %v3764 = vpop.xlane.xlu0 %3763
  %v3765 = vsel %vm302, %v3316, 0.0
  %3766 = vadd.xlane.f32.xlu0 %v3765
  %v3767 = vpop.xlane.xlu0 %3766
  %v3768 = vsel %vm302, %v3318, 0.0
  %3769 = vadd.xlane.f32.xlu0 %v3768
  %v3770 = vpop.xlane.xlu0 %3769
  %v3771 = vsel %vm302, %v3320, 0.0
  %3772 = vadd.xlane.f32.xlu0 %v3771
  %v3773 = vpop.xlane.xlu0 %3772
  %v3774 = vsel %vm302, %v3322, 0.0
  %3775 = vadd.xlane.f32.xlu0 %v3774
  %v3776 = vpop.xlane.xlu0 %3775
  %v3777 = vsel %vm302, %v3324, 0.0
  %3778 = vadd.xlane.f32.xlu0 %v3777
  %v3779 = vpop.xlane.xlu0 %3778
  %v3780 = vsel %vm302, %v3326, 0.0
  %3781 = vadd.xlane.f32.xlu0 %v3780
  %v3782 = vpop.xlane.xlu0 %3781
  %v3783 = vsel %vm302, %v3328, 0.0
  %3784 = vadd.xlane.f32.xlu0 %v3783
  %v3785 = vpop.xlane.xlu0 %3784
  %v3786 = vsel %vm302, %v3330, 0.0
  %3787 = vadd.xlane.f32.xlu0 %v3786
  %v3788 = vpop.xlane.xlu0 %3787
  %v3789 = vsel %vm302, %v3332, 0.0
  %3790 = vadd.xlane.f32.xlu0 %v3789
  %v3791 = vpop.xlane.xlu0 %3790
  %v3792 = vsel %vm302, %v3334, 0.0
  %3793 = vadd.xlane.f32.xlu0 %v3792
  %v3794 = vpop.xlane.xlu0 %3793
  %v3795 = vsel %vm302, %v3336, 0.0
  %3796 = vadd.xlane.f32.xlu0 %v3795
  %v3797 = vpop.xlane.xlu0 %3796
  %v3798 = vsel %vm302, %v3338, 0.0
  %3799 = vadd.xlane.f32.xlu0 %v3798
  %v3800 = vpop.xlane.xlu0 %3799
  %v3801 = vsel %vm302, %v3340, 0.0
  %3802 = vadd.xlane.f32.xlu0 %v3801
  %v3803 = vpop.xlane.xlu0 %3802
  %v3804 = vsel %vm302, %v3342, 0.0
  %3805 = vadd.xlane.f32.xlu0 %v3804
  %v3806 = vpop.xlane.xlu0 %3805
  %v3807 = vsel %vm302, %v3344, 0.0
  %3808 = vadd.xlane.f32.xlu0 %v3807
  %v3809 = vpop.xlane.xlu0 %3808
  %v3810 = vsel %vm302, %v3346, 0.0
  %3811 = vadd.xlane.f32.xlu0 %v3810
  %v3812 = vpop.xlane.xlu0 %3811
  %v3813 = vsel %vm302, %v3348, 0.0
  %3814 = vadd.xlane.f32.xlu0 %v3813
  %v3815 = vpop.xlane.xlu0 %3814
  %v3816 = vsel %vm302, %v3350, 0.0
  %3817 = vadd.xlane.f32.xlu0 %v3816
  %v3818 = vpop.xlane.xlu0 %3817
  %v3819 = vsel %vm302, %v3352, 0.0
  %3820 = vadd.xlane.f32.xlu0 %v3819
  %v3821 = vpop.xlane.xlu0 %3820
  %v3822 = vsel %vm302, %v3354, 0.0
  %3823 = vadd.xlane.f32.xlu0 %v3822
  %v3824 = vpop.xlane.xlu0 %3823
  %v3825 = vsel %vm302, %v3356, 0.0
  %3826 = vadd.xlane.f32.xlu0 %v3825
  %v3827 = vpop.xlane.xlu0 %3826
  %v3828 = vsel %vm302, %v3358, 0.0
  %3829 = vadd.xlane.f32.xlu0 %v3828
  %v3830 = vpop.xlane.xlu0 %3829
  %v3831 = vsel %vm302, %v3360, 0.0
  %3832 = vadd.xlane.f32.xlu0 %v3831
  %v3833 = vpop.xlane.xlu0 %3832
  %v3834 = vsel %vm302, %v3362, 0.0
  %3835 = vadd.xlane.f32.xlu0 %v3834
  %v3836 = vpop.xlane.xlu0 %3835
  %v3837 = vsel %vm302, %v3364, 0.0
  %3838 = vadd.xlane.f32.xlu0 %v3837
  %v3839 = vpop.xlane.xlu0 %3838
  %v3840 = vsel %vm302, %v3366, 0.0
  %3841 = vadd.xlane.f32.xlu0 %v3840
  %v3842 = vpop.xlane.xlu0 %3841
  %v3843 = vsel %vm302, %v3368, 0.0
  %3844 = vadd.xlane.f32.xlu0 %v3843
  %v3845 = vpop.xlane.xlu0 %3844
  %v3846 = vsel %vm302, %v3370, 0.0
  %3847 = vadd.xlane.f32.xlu0 %v3846
  %v3848 = vpop.xlane.xlu0 %3847
  %v3849 = vsel %vm302, %v3372, 0.0
  %3850 = vadd.xlane.f32.xlu0 %v3849
  %v3851 = vpop.xlane.xlu0 %3850
  %v3852 = vsel %vm302, %v3374, 0.0
  %3853 = vadd.xlane.f32.xlu0 %v3852
  %v3854 = vpop.xlane.xlu0 %3853
  %v3855 = vsel %vm302, %v3376, 0.0
  %3856 = vadd.xlane.f32.xlu0 %v3855
  %v3857 = vpop.xlane.xlu0 %3856
  %v3858 = vsel %vm302, %v3378, 0.0
  %3859 = vadd.xlane.f32.xlu0 %v3858
  %v3860 = vpop.xlane.xlu0 %3859
  %v3861 = vsel %vm302, %v3380, 0.0
  %3862 = vadd.xlane.f32.xlu0 %v3861
  %v3863 = vpop.xlane.xlu0 %3862
  %v3864 = vsel %vm302, %v3382, 0.0
  %3865 = vadd.xlane.f32.xlu0 %v3864
  %v3866 = vpop.xlane.xlu0 %3865
  %v3867 = vsel %vm302, %v3384, 0.0
  %3868 = vadd.xlane.f32.xlu0 %v3867
  %v3869 = vpop.xlane.xlu0 %3868
  %v3870 = vsel %vm302, %v3386, 0.0
  %3871 = vadd.xlane.f32.xlu0 %v3870
  %v3872 = vpop.xlane.xlu0 %3871
  %v3873 = vsel %vm302, %v3388, 0.0
  %3874 = vadd.xlane.f32.xlu0 %v3873
  %v3875 = vpop.xlane.xlu0 %3874
  %v3876 = vsel %vm302, %v3390, 0.0
  %3877 = vadd.xlane.f32.xlu0 %v3876
  %v3878 = vpop.xlane.xlu0 %3877
  %v3879 = vsel %vm302, %v3392, 0.0
  %3880 = vadd.xlane.f32.xlu0 %v3879
  %v3881 = vpop.xlane.xlu0 %3880
  %v3882 = vsel %vm302, %v3394, 0.0
  %3883 = vadd.xlane.f32.xlu0 %v3882
  %v3884 = vpop.xlane.xlu0 %3883
  %v3885 = vsel %vm302, %v3396, 0.0
  %3886 = vadd.xlane.f32.xlu0 %v3885
  %v3887 = vpop.xlane.xlu0 %3886
  %v3888 = vsel %vm302, %v3398, 0.0
  %3889 = vadd.xlane.f32.xlu0 %v3888
  %v3890 = vpop.xlane.xlu0 %3889
  %v3891 = vsel %vm302, %v3400, 0.0
  %3892 = vadd.xlane.f32.xlu0 %v3891
  %v3893 = vpop.xlane.xlu0 %3892
  %v3894 = vsel %vm302, %v3402, 0.0
  %3895 = vadd.xlane.f32.xlu0 %v3894
  %v3896 = vpop.xlane.xlu0 %3895
  %v3897 = vsel %vm302, %v3404, 0.0
  %3898 = vadd.xlane.f32.xlu0 %v3897
  %v3899 = vpop.xlane.xlu0 %3898
  %v3900 = vsel %vm302, %v3406, 0.0
  %3901 = vadd.xlane.f32.xlu0 %v3900
  %v3902 = vpop.xlane.xlu0 %3901
  %v3903 = vsel %vm302, %v3408, 0.0
  %3904 = vadd.xlane.f32.xlu0 %v3903
  %v3905 = vpop.xlane.xlu0 %3904
  %v3906 = vsel %vm302, %v3410, 0.0
  %3907 = vadd.xlane.f32.xlu0 %v3906
  %v3908 = vpop.xlane.xlu0 %3907
  %v3909 = vsel %vm302, %v3412, 0.0
  %3910 = vadd.xlane.f32.xlu0 %v3909
  %v3911 = vpop.xlane.xlu0 %3910
  %v3912 = vsel %vm302, %v3414, 0.0
  %3913 = vadd.xlane.f32.xlu0 %v3912
  %v3914 = vpop.xlane.xlu0 %3913
  %v3915 = vsel %vm302, %v3416, 0.0
  %3916 = vadd.xlane.f32.xlu0 %v3915
  %v3917 = vpop.xlane.xlu0 %3916
  %v3918 = vsel %vm302, %v3418, 0.0
  %3919 = vadd.xlane.f32.xlu0 %v3918
  %v3920 = vpop.xlane.xlu0 %3919
  %v3921 = vsel %vm302, %v3420, 0.0
  %3922 = vadd.xlane.f32.xlu0 %v3921
  %v3923 = vpop.xlane.xlu0 %3922
  %v3924 = vsel %vm302, %v3422, 0.0
  %3925 = vadd.xlane.f32.xlu0 %v3924
  %v3926 = vpop.xlane.xlu0 %3925
  %v3927 = vsel %vm302, %v3424, 0.0
  %3928 = vadd.xlane.f32.xlu0 %v3927
  %v3929 = vpop.xlane.xlu0 %3928
  %v3930 = vsel %vm302, %v3426, 0.0
  %3931 = vadd.xlane.f32.xlu0 %v3930
  %v3932 = vpop.xlane.xlu0 %3931
  %v3933 = vsel %vm302, %v3428, 0.0
  %3934 = vadd.xlane.f32.xlu0 %v3933
  %v3935 = vpop.xlane.xlu0 %3934
  %v3936 = vsel %vm302, %v3430, 0.0
  %3937 = vadd.xlane.f32.xlu0 %v3936
  %v3938 = vpop.xlane.xlu0 %3937
  %v3939 = vsel %vm302, %v3432, 0.0
  %3940 = vadd.xlane.f32.xlu0 %v3939
  %v3941 = vpop.xlane.xlu0 %3940
  %v3942 = vsel %vm302, %v3434, 0.0
  %3943 = vadd.xlane.f32.xlu0 %v3942
  %v3944 = vpop.xlane.xlu0 %3943
  %v3945 = vsel %vm302, %v3436, 0.0
  %3946 = vadd.xlane.f32.xlu0 %v3945
  %v3947 = vpop.xlane.xlu0 %3946
  %v3948 = vsel %vm302, %v3438, 0.0
  %3949 = vadd.xlane.f32.xlu0 %v3948
  %v3950 = vpop.xlane.xlu0 %3949
  %v3951 = vsel %vm302, %v3440, 0.0
  %3952 = vadd.xlane.f32.xlu0 %v3951
  %v3953 = vpop.xlane.xlu0 %3952
  %v3954 = vsel %vm302, %v3442, 0.0
  %3955 = vadd.xlane.f32.xlu0 %v3954
  %v3956 = vpop.xlane.xlu0 %3955
  %v3957 = vsel %vm302, %v3444, 0.0
  %3958 = vadd.xlane.f32.xlu0 %v3957
  %v3959 = vpop.xlane.xlu0 %3958
  %v3960 = vsel %vm302, %v3446, 0.0
  %3961 = vadd.xlane.f32.xlu0 %v3960
  %v3962 = vpop.xlane.xlu0 %3961
  %v3963 = vsel %vm302, %v3448, 0.0
  %3964 = vadd.xlane.f32.xlu0 %v3963
  %v3965 = vpop.xlane.xlu0 %3964
  %v3966 = vsel %vm302, %v3450, 0.0
  %3967 = vadd.xlane.f32.xlu0 %v3966
  %v3968 = vpop.xlane.xlu0 %3967
  %v3969 = vsel %vm302, %v3452, 0.0
  %3970 = vadd.xlane.f32.xlu0 %v3969
  %v3971 = vpop.xlane.xlu0 %3970
  %v3972 = vsel %vm302, %v3454, 0.0
  %3973 = vadd.xlane.f32.xlu0 %v3972
  %v3974 = vpop.xlane.xlu0 %3973
  %v3975 = vsel %vm302, %v3456, 0.0
  %3976 = vadd.xlane.f32.xlu0 %v3975
  %v3977 = vpop.xlane.xlu0 %3976
  %v3978 = vsel %vm302, %v3458, 0.0
  %3979 = vadd.xlane.f32.xlu0 %v3978
  %v3980 = vpop.xlane.xlu0 %3979
  %v3981 = vsel %vm302, %v3460, 0.0
  %3982 = vadd.xlane.f32.xlu0 %v3981
  %v3983 = vpop.xlane.xlu0 %3982
  %v3984 = vsel %vm302, %v3462, 0.0
  %3985 = vadd.xlane.f32.xlu0 %v3984
  %v3986 = vpop.xlane.xlu0 %3985
  %v3987 = vsel %vm302, %v3464, 0.0
  %3988 = vadd.xlane.f32.xlu0 %v3987
  %v3989 = vpop.xlane.xlu0 %3988
  %v3990 = vsel %vm302, %v3466, 0.0
  %3991 = vadd.xlane.f32.xlu0 %v3990
  %v3992 = vpop.xlane.xlu0 %3991
  %v3993 = vsel %vm302, %v3468, 0.0
  %3994 = vadd.xlane.f32.xlu0 %v3993
  %v3995 = vpop.xlane.xlu0 %3994
  %v3996 = vsel %vm302, %v3470, 0.0
  %3997 = vadd.xlane.f32.xlu0 %v3996
  %v3998 = vpop.xlane.xlu0 %3997
  %v3999 = vsel %vm302, %v3472, 0.0
  %4000 = vadd.xlane.f32.xlu0 %v3999
  %v4001 = vpop.xlane.xlu0 %4000
  %v4002 = vsel %vm302, %v3474, 0.0
  %4003 = vadd.xlane.f32.xlu0 %v4002
  %v4004 = vpop.xlane.xlu0 %4003
  %v4005 = vsel %vm302, %v3476, 0.0
  %4006 = vadd.xlane.f32.xlu0 %v4005
  %v4007 = vpop.xlane.xlu0 %4006
  %v4008 = vsel %vm302, %v3478, 0.0
  %4009 = vadd.xlane.f32.xlu0 %v4008
  %v4010 = vpop.xlane.xlu0 %4009
  %v4011 = vsel %vm302, %v3480, 0.0
  %4012 = vadd.xlane.f32.xlu0 %v4011
  %v4013 = vpop.xlane.xlu0 %4012
  %v4014 = vsel %vm302, %v3482, 0.0
  %4015 = vadd.xlane.f32.xlu0 %v4014
  %v4016 = vpop.xlane.xlu0 %4015
  %v4017 = vsel %vm302, %v3484, 0.0
  %4018 = vadd.xlane.f32.xlu0 %v4017
  %v4019 = vpop.xlane.xlu0 %4018
  %v4020 = vsel %vm302, %v3486, 0.0
  %4021 = vadd.xlane.f32.xlu0 %v4020
  %v4022 = vpop.xlane.xlu0 %4021
  %v4023 = vsel %vm302, %v3488, 0.0
  %4024 = vadd.xlane.f32.xlu0 %v4023
  %v4025 = vpop.xlane.xlu0 %4024
  %v4026 = vsel %vm302, %v3490, 0.0
  %4027 = vadd.xlane.f32.xlu0 %v4026
  %v4028 = vpop.xlane.xlu0 %4027
  %v4029 = vsel %vm302, %v3492, 0.0
  %4030 = vadd.xlane.f32.xlu0 %v4029
  %v4031 = vpop.xlane.xlu0 %4030
  %v4032 = vsel %vm302, %v3494, 0.0
  %4033 = vadd.xlane.f32.xlu0 %v4032
  %v4034 = vpop.xlane.xlu0 %4033
  %v4035 = vsel %vm302, %v3496, 0.0
  %4036 = vadd.xlane.f32.xlu0 %v4035
  %v4037 = vpop.xlane.xlu0 %4036
  %v4038 = vsel %vm302, %v3498, 0.0
  %4039 = vadd.xlane.f32.xlu0 %v4038
  %v4040 = vpop.xlane.xlu0 %4039
  %v4041 = vsel %vm302, %v3500, 0.0
  %4042 = vadd.xlane.f32.xlu0 %v4041
  %v4043 = vpop.xlane.xlu0 %4042
  %v4044 = vsel %vm302, %v3502, 0.0
  %4045 = vadd.xlane.f32.xlu0 %v4044
  %v4046 = vpop.xlane.xlu0 %4045
  %v4047 = vsel %vm302, %v3504, 0.0
  %4048 = vadd.xlane.f32.xlu0 %v4047
  %v4049 = vpop.xlane.xlu0 %4048
  %v4050 = vsel %vm302, %v3506, 0.0
  %4051 = vadd.xlane.f32.xlu0 %v4050
  %v4052 = vpop.xlane.xlu0 %4051
  %v4053 = vsel %vm302, %v3508, 0.0
  %4054 = vadd.xlane.f32.xlu0 %v4053
  %v4055 = vpop.xlane.xlu0 %4054
  %v4056 = vsel %vm302, %v3510, 0.0
  %4057 = vadd.xlane.f32.xlu0 %v4056
  %v4058 = vpop.xlane.xlu0 %4057
  %v4059 = vsel %vm302, %v3512, 0.0
  %4060 = vadd.xlane.f32.xlu0 %v4059
  %v4061 = vpop.xlane.xlu0 %4060
  %v4062 = vsel %vm302, %v3514, 0.0
  %4063 = vadd.xlane.f32.xlu0 %v4062
  %v4064 = vpop.xlane.xlu0 %4063
  %v4065 = vsel %vm302, %v3516, 0.0
  %4066 = vadd.xlane.f32.xlu0 %v4065
  %v4067 = vpop.xlane.xlu0 %4066
  %v4068 = vsel %vm302, %v3518, 0.0
  %4069 = vadd.xlane.f32.xlu0 %v4068
  %v4070 = vpop.xlane.xlu0 %4069
  %v4071 = vsel %vm302, %v3520, 0.0
  %4072 = vadd.xlane.f32.xlu0 %v4071
  %v4073 = vpop.xlane.xlu0 %4072
  %v4074 = vsel %vm302, %v3522, 0.0
  %4075 = vadd.xlane.f32.xlu0 %v4074
  %v4076 = vpop.xlane.xlu0 %4075
  %v4077 = vsel %vm302, %v3524, 0.0
  %4078 = vadd.xlane.f32.xlu0 %v4077
  %v4079 = vpop.xlane.xlu0 %4078
  %v4080 = vsel %vm302, %v3526, 0.0
  %4081 = vadd.xlane.f32.xlu0 %v4080
  %v4082 = vpop.xlane.xlu0 %4081
  %v4083 = vsel %vm302, %v3528, 0.0
  %4084 = vadd.xlane.f32.xlu0 %v4083
  %v4085 = vpop.xlane.xlu0 %4084
  %v4086 = vsel %vm302, %v3530, 0.0
  %4087 = vadd.xlane.f32.xlu0 %v4086
  %v4088 = vpop.xlane.xlu0 %4087
  %v4089 = vsel %vm302, %v3532, 0.0
  %4090 = vadd.xlane.f32.xlu0 %v4089
  %v4091 = vpop.xlane.xlu0 %4090
  %v4092 = vsel %vm302, %v3534, 0.0
  %4093 = vadd.xlane.f32.xlu0 %v4092
  %v4094 = vpop.xlane.xlu0 %4093
  %v4095 = vsel %vm302, %v3536, 0.0
  %4096 = vadd.xlane.f32.xlu0 %v4095
  %v4097 = vpop.xlane.xlu0 %4096
  %v4098 = vsel %vm302, %v3538, 0.0
  %4099 = vadd.xlane.f32.xlu0 %v4098
  %v4100 = vpop.xlane.xlu0 %4099
  %v4101 = vsel %vm302, %v3540, 0.0
  %4102 = vadd.xlane.f32.xlu0 %v4101
  %v4103 = vpop.xlane.xlu0 %4102
  %v4104 = vsel %vm302, %v3542, 0.0
  %4105 = vadd.xlane.f32.xlu0 %v4104
  %v4106 = vpop.xlane.xlu0 %4105
  %v4107 = vsel %vm302, %v3544, 0.0
  %4108 = vadd.xlane.f32.xlu0 %v4107
  %v4109 = vpop.xlane.xlu0 %4108
  %v4110 = vsel %vm302, %v3546, 0.0
  %4111 = vadd.xlane.f32.xlu0 %v4110
  %v4112 = vpop.xlane.xlu0 %4111
  %v4113 = vsel %vm302, %v3548, 0.0
  %4114 = vadd.xlane.f32.xlu0 %v4113
  %v4115 = vpop.xlane.xlu0 %4114
  %v4116 = vsel %vm302, %v3550, 0.0
  %4117 = vadd.xlane.f32.xlu0 %v4116
  %v4118 = vpop.xlane.xlu0 %4117
  %v4119 = vsel %vm302, %v3552, 0.0
  %4120 = vadd.xlane.f32.xlu0 %v4119
  %v4121 = vpop.xlane.xlu0 %4120
  %v4122 = vsel %vm302, %v3554, 0.0
  %4123 = vadd.xlane.f32.xlu0 %v4122
  %v4124 = vpop.xlane.xlu0 %4123
  %v4125 = vsel %vm302, %v3556, 0.0
  %4126 = vadd.xlane.f32.xlu0 %v4125
  %v4127 = vpop.xlane.xlu0 %4126
  %v4128 = vsel %vm302, %v3558, 0.0
  %4129 = vadd.xlane.f32.xlu0 %v4128
  %v4130 = vpop.xlane.xlu0 %4129
  %v4131 = vsel %vm302, %v3560, 0.0
  %4132 = vadd.xlane.f32.xlu0 %v4131
  %v4133 = vpop.xlane.xlu0 %4132
  %v4134 = vsel %vm302, %v3562, 0.0
  %4135 = vadd.xlane.f32.xlu0 %v4134
  %v4136 = vpop.xlane.xlu0 %4135
  %v4137 = vsel %vm302, %v3564, 0.0
  %4138 = vadd.xlane.f32.xlu0 %v4137
  %v4139 = vpop.xlane.xlu0 %4138
  %v4140 = vsel %vm302, %v3566, 0.0
  %4141 = vadd.xlane.f32.xlu0 %v4140
  %v4142 = vpop.xlane.xlu0 %4141
  %v4143 = vrcp.pop %v3569
  %v4144 = vrcp.pop %v3572
  %v4145 = vrcp.pop %v3575
  %v4146 = vrcp.pop %v3578
  %v4147 = vrcp.pop %v3581
  %v4148 = vrcp.pop %v3584
  %v4149 = vrcp.pop %v3587
  %v4150 = vrcp.pop %v3590
  %v4151 = vrcp.pop %v3593
  %v4152 = vrcp.pop %v3596
  %v4153 = vrcp.pop %v3599
  %v4154 = vrcp.pop %v3602
  %v4155 = vrcp.pop %v3605
  %v4156 = vrcp.pop %v3608
  %v4157 = vrcp.pop %v3611
  %v4158 = vrcp.pop %v3614
  %v4159 = vrcp.pop %v3617
  %v4160 = vrcp.pop %v3620
  %v4161 = vrcp.pop %v3623
  %v4162 = vrcp.pop %v3626
  %v4163 = vrcp.pop %v3629
  %v4164 = vrcp.pop %v3632
  %v4165 = vrcp.pop %v3635
  %v4166 = vrcp.pop %v3638
  %v4167 = vrcp.pop %v3641
  %v4168 = vrcp.pop %v3644
  %v4169 = vrcp.pop %v3647
  %v4170 = vrcp.pop %v3650
  %v4171 = vrcp.pop %v3653
  %v4172 = vrcp.pop %v3656
  %v4173 = vrcp.pop %v3659
  %v4174 = vrcp.pop %v3662
  %v4175 = vrcp.pop %v3665
  %v4176 = vrcp.pop %v3668
  %v4177 = vrcp.pop %v3671
  %v4178 = vrcp.pop %v3674
  %v4179 = vrcp.pop %v3677
  %v4180 = vrcp.pop %v3680
  %v4181 = vrcp.pop %v3683
  %v4182 = vrcp.pop %v3686
  %v4183 = vrcp.pop %v3689
  %v4184 = vrcp.pop %v3692
  %v4185 = vrcp.pop %v3695
  %v4186 = vrcp.pop %v3698
  %v4187 = vrcp.pop %v3701
  %v4188 = vrcp.pop %v3704
  %v4189 = vrcp.pop %v3707
  %v4190 = vrcp.pop %v3710
  %v4191 = vrcp.pop %v3713
  %v4192 = vrcp.pop %v3716
  %v4193 = vrcp.pop %v3719
  %v4194 = vrcp.pop %v3722
  %v4195 = vrcp.pop %v3725
  %v4196 = vrcp.pop %v3728
  %v4197 = vrcp.pop %v3731
  %v4198 = vrcp.pop %v3734
  %v4199 = vrcp.pop %v3737
  %v4200 = vrcp.pop %v3740
  %v4201 = vrcp.pop %v3743
  %v4202 = vrcp.pop %v3746
  %v4203 = vrcp.pop %v3749
  %v4204 = vrcp.pop %v3752
  %v4205 = vrcp.pop %v3755
  %v4206 = vrcp.pop %v3758
  %v4207 = vrcp.pop %v3761
  %v4208 = vrcp.pop %v3764
  %v4209 = vrcp.pop %v3767
  %v4210 = vrcp.pop %v3770
  %v4211 = vrcp.pop %v3773
  %v4212 = vrcp.pop %v3776
  %v4213 = vrcp.pop %v3779
  %v4214 = vrcp.pop %v3782
  %v4215 = vrcp.pop %v3785
  %v4216 = vrcp.pop %v3788
  %v4217 = vrcp.pop %v3791
  %v4218 = vrcp.pop %v3794
  %v4219 = vrcp.pop %v3797
  %v4220 = vrcp.pop %v3800
  %v4221 = vrcp.pop %v3803
  %v4222 = vrcp.pop %v3806
  %v4223 = vrcp.pop %v3809
  %v4224 = vrcp.pop %v3812
  %v4225 = vrcp.pop %v3815
  %v4226 = vrcp.pop %v3818
  %v4227 = vrcp.pop %v3821
  %v4228 = vrcp.pop %v3824
  %v4229 = vrcp.pop %v3827
  %v4230 = vrcp.pop %v3830
  %v4231 = vrcp.pop %v3833
  %v4232 = vrcp.pop %v3836
  %v4233 = vrcp.pop %v3839
  %v4234 = vrcp.pop %v3842
  %v4235 = vrcp.pop %v3845
  %v4236 = vrcp.pop %v3848
  %v4237 = vrcp.pop %v3851
  %v4238 = vrcp.pop %v3854
  %v4239 = vrcp.pop %v3857
  %v4240 = vrcp.pop %v3860
  %v4241 = vrcp.pop %v3863
  %v4242 = vrcp.pop %v3866
  %v4243 = vrcp.pop %v3869
  %v4244 = vrcp.pop %v3872
  %v4245 = vrcp.pop %v3875
  %v4246 = vrcp.pop %v3878
  %v4247 = vrcp.pop %v3881
  %v4248 = vrcp.pop %v3884
  %v4249 = vrcp.pop %v3887
  %v4250 = vrcp.pop %v3890
  %v4251 = vrcp.pop %v3893
  %v4252 = vrcp.pop %v3896
  %v4253 = vrcp.pop %v3899
  %v4254 = vrcp.pop %v3902
  %v4255 = vrcp.pop %v3905
  %v4256 = vrcp.pop %v3908
  %v4257 = vrcp.pop %v3911
  %v4258 = vrcp.pop %v3914
  %v4259 = vrcp.pop %v3917
  %v4260 = vrcp.pop %v3920
  %v4261 = vrcp.pop %v3923
  %v4262 = vrcp.pop %v3926
  %v4263 = vrcp.pop %v3929
  %v4264 = vrcp.pop %v3932
  %v4265 = vrcp.pop %v3935
  %v4266 = vrcp.pop %v3938
  %v4267 = vrcp.pop %v3941
  %v4268 = vrcp.pop %v3944
  %v4269 = vrcp.pop %v3947
  %v4270 = vrcp.pop %v3950
  %v4271 = vrcp.pop %v3953
  %v4272 = vrcp.pop %v3956
  %v4273 = vrcp.pop %v3959
  %v4274 = vrcp.pop %v3962
  %v4275 = vrcp.pop %v3965
  %v4276 = vrcp.pop %v3968
  %v4277 = vrcp.pop %v3971
  %v4278 = vrcp.pop %v3974
  %v4279 = vrcp.pop %v3977
  %v4280 = vrcp.pop %v3980
  %v4281 = vrcp.pop %v3983
  %v4282 = vrcp.pop %v3986
  %v4283 = vrcp.pop %v3989
  %v4284 = vrcp.pop %v3992
  %v4285 = vrcp.pop %v3995
  %v4286 = vrcp.pop %v3998
  %v4287 = vrcp.pop %v4001
  %v4288 = vrcp.pop %v4004
  %v4289 = vrcp.pop %v4007
  %v4290 = vrcp.pop %v4010
  %v4291 = vrcp.pop %v4013
  %v4292 = vrcp.pop %v4016
  %v4293 = vrcp.pop %v4019
  %v4294 = vrcp.pop %v4022
  %v4295 = vrcp.pop %v4025
  %v4296 = vrcp.pop %v4028
  %v4297 = vrcp.pop %v4031
  %v4298 = vrcp.pop %v4034
  %v4299 = vrcp.pop %v4037
  %v4300 = vrcp.pop %v4040
  %v4301 = vrcp.pop %v4043
  %v4302 = vrcp.pop %v4046
  %v4303 = vrcp.pop %v4049
  %v4304 = vrcp.pop %v4052
  %v4305 = vrcp.pop %v4055
  %v4306 = vrcp.pop %v4058
  %v4307 = vrcp.pop %v4061
  %v4308 = vrcp.pop %v4064
  %v4309 = vrcp.pop %v4067
  %v4310 = vrcp.pop %v4070
  %v4311 = vrcp.pop %v4073
  %v4312 = vrcp.pop %v4076
  %v4313 = vrcp.pop %v4079
  %v4314 = vrcp.pop %v4082
  %v4315 = vrcp.pop %v4085
  %v4316 = vrcp.pop %v4088
  %v4317 = vrcp.pop %v4091
  %v4318 = vrcp.pop %v4094
  %v4319 = vrcp.pop %v4097
  %v4320 = vrcp.pop %v4100
  %v4321 = vrcp.pop %v4103
  %v4322 = vrcp.pop %v4106
  %v4323 = vrcp.pop %v4109
  %v4324 = vrcp.pop %v4112
  %v4325 = vrcp.pop %v4115
  %v4326 = vrcp.pop %v4118
  %v4327 = vrcp.pop %v4121
  %v4328 = vrcp.pop %v4124
  %v4329 = vrcp.pop %v4127
  %v4330 = vrcp.pop %v4130
  %v4331 = vrcp.pop %v4133
  %v4332 = vrcp.pop %v4136
  %v4333 = vrcp.pop %v4139
  %v4334 = vrcp.pop %v4142
  %v4335 = vmul.f32 %v3184, %v4143
  %v4336 = vmul.f32 %v3186, %v4144
  %v4337 = vmul.f32 %v3188, %v4145
  %v4338 = vmul.f32 %v3190, %v4146
  %v4339 = vmul.f32 %v3192, %v4147
  %v4340 = vmul.f32 %v3194, %v4148
  %v4341 = vmul.f32 %v3196, %v4149
  %v4342 = vmul.f32 %v3198, %v4150
  %v4343 = vmul.f32 %v3200, %v4151
  %v4344 = vmul.f32 %v3202, %v4152
  %v4345 = vmul.f32 %v3204, %v4153
  %v4346 = vmul.f32 %v3206, %v4154
  %v4347 = vmul.f32 %v3208, %v4155
  %v4348 = vmul.f32 %v3210, %v4156
  %v4349 = vmul.f32 %v3212, %v4157
  %v4350 = vmul.f32 %v3214, %v4158
  %v4351 = vmul.f32 %v3216, %v4159
  %v4352 = vmul.f32 %v3218, %v4160
  %v4353 = vmul.f32 %v3220, %v4161
  %v4354 = vmul.f32 %v3222, %v4162
  %v4355 = vmul.f32 %v3224, %v4163
  %v4356 = vmul.f32 %v3226, %v4164
  %v4357 = vmul.f32 %v3228, %v4165
  %v4358 = vmul.f32 %v3230, %v4166
  %v4359 = vmul.f32 %v3232, %v4167
  %v4360 = vmul.f32 %v3234, %v4168
  %v4361 = vmul.f32 %v3236, %v4169
  %v4362 = vmul.f32 %v3238, %v4170
  %v4363 = vmul.f32 %v3240, %v4171
  %v4364 = vmul.f32 %v3242, %v4172
  %v4365 = vmul.f32 %v3244, %v4173
  %v4366 = vmul.f32 %v3246, %v4174
  %v4367 = vmul.f32 %v3248, %v4175
  %v4368 = vmul.f32 %v3250, %v4176
  %v4369 = vmul.f32 %v3252, %v4177
  %v4370 = vmul.f32 %v3254, %v4178
  %v4371 = vmul.f32 %v3256, %v4179
  %v4372 = vmul.f32 %v3258, %v4180
  %v4373 = vmul.f32 %v3260, %v4181
  %v4374 = vmul.f32 %v3262, %v4182
  %v4375 = vmul.f32 %v3264, %v4183
  %v4376 = vmul.f32 %v3266, %v4184
  %v4377 = vmul.f32 %v3268, %v4185
  %v4378 = vmul.f32 %v3270, %v4186
  %v4379 = vmul.f32 %v3272, %v4187
  %v4380 = vmul.f32 %v3274, %v4188
  %v4381 = vmul.f32 %v3276, %v4189
  %v4382 = vmul.f32 %v3278, %v4190
  %v4383 = vmul.f32 %v3280, %v4191
  %v4384 = vmul.f32 %v3282, %v4192
  %v4385 = vmul.f32 %v3284, %v4193
  %v4386 = vmul.f32 %v3286, %v4194
  %v4387 = vmul.f32 %v3288, %v4195
  %v4388 = vmul.f32 %v3290, %v4196
  %v4389 = vmul.f32 %v3292, %v4197
  %v4390 = vmul.f32 %v3294, %v4198
  %v4391 = vmul.f32 %v3296, %v4199
  %v4392 = vmul.f32 %v3298, %v4200
  %v4393 = vmul.f32 %v3300, %v4201
  %v4394 = vmul.f32 %v3302, %v4202
  %v4395 = vmul.f32 %v3304, %v4203
  %v4396 = vmul.f32 %v3306, %v4204
  %v4397 = vmul.f32 %v3308, %v4205
  %v4398 = vmul.f32 %v3310, %v4206
  %v4399 = vmul.f32 %v3312, %v4207
  %v4400 = vmul.f32 %v3314, %v4208
  %v4401 = vmul.f32 %v3316, %v4209
  %v4402 = vmul.f32 %v3318, %v4210
  %v4403 = vmul.f32 %v3320, %v4211
  %v4404 = vmul.f32 %v3322, %v4212
  %v4405 = vmul.f32 %v3324, %v4213
  %v4406 = vmul.f32 %v3326, %v4214
  %v4407 = vmul.f32 %v3328, %v4215
  %v4408 = vmul.f32 %v3330, %v4216
  %v4409 = vmul.f32 %v3332, %v4217
  %v4410 = vmul.f32 %v3334, %v4218
  %v4411 = vmul.f32 %v3336, %v4219
  %v4412 = vmul.f32 %v3338, %v4220
  %v4413 = vmul.f32 %v3340, %v4221
  %v4414 = vmul.f32 %v3342, %v4222
  %v4415 = vmul.f32 %v3344, %v4223
  %v4416 = vmul.f32 %v3346, %v4224
  %v4417 = vmul.f32 %v3348, %v4225
  %v4418 = vmul.f32 %v3350, %v4226
  %v4419 = vmul.f32 %v3352, %v4227
  %v4420 = vmul.f32 %v3354, %v4228
  %v4421 = vmul.f32 %v3356, %v4229
  %v4422 = vmul.f32 %v3358, %v4230
  %v4423 = vmul.f32 %v3360, %v4231
  %v4424 = vmul.f32 %v3362, %v4232
  %v4425 = vmul.f32 %v3364, %v4233
  %v4426 = vmul.f32 %v3366, %v4234
  %v4427 = vmul.f32 %v3368, %v4235
  %v4428 = vmul.f32 %v3370, %v4236
  %v4429 = vmul.f32 %v3372, %v4237
  %v4430 = vmul.f32 %v3374, %v4238
  %v4431 = vmul.f32 %v3376, %v4239
  %v4432 = vmul.f32 %v3378, %v4240
  %v4433 = vmul.f32 %v3380, %v4241
  %v4434 = vmul.f32 %v3382, %v4242
  %v4435 = vmul.f32 %v3384, %v4243
  %v4436 = vmul.f32 %v3386, %v4244
  %v4437 = vmul.f32 %v3388, %v4245
  %v4438 = vmul.f32 %v3390, %v4246
  %v4439 = vmul.f32 %v3392, %v4247
  %v4440 = vmul.f32 %v3394, %v4248
  %v4441 = vmul.f32 %v3396, %v4249
  %v4442 = vmul.f32 %v3398, %v4250
  %v4443 = vmul.f32 %v3400, %v4251
  %v4444 = vmul.f32 %v3402, %v4252
  %v4445 = vmul.f32 %v3404, %v4253
  %v4446 = vmul.f32 %v3406, %v4254
  %v4447 = vmul.f32 %v3408, %v4255
  %v4448 = vmul.f32 %v3410, %v4256
  %v4449 = vmul.f32 %v3412, %v4257
  %v4450 = vmul.f32 %v3414, %v4258
  %v4451 = vmul.f32 %v3416, %v4259
  %v4452 = vmul.f32 %v3418, %v4260
  %v4453 = vmul.f32 %v3420, %v4261
  %v4454 = vmul.f32 %v3422, %v4262
  %v4455 = vmul.f32 %v3424, %v4263
  %v4456 = vmul.f32 %v3426, %v4264
  %v4457 = vmul.f32 %v3428, %v4265
  %v4458 = vmul.f32 %v3430, %v4266
  %v4459 = vmul.f32 %v3432, %v4267
  %v4460 = vmul.f32 %v3434, %v4268
  %v4461 = vmul.f32 %v3436, %v4269
  %v4462 = vmul.f32 %v3438, %v4270
  %v4463 = vmul.f32 %v3440, %v4271
  %v4464 = vmul.f32 %v3442, %v4272
  %v4465 = vmul.f32 %v3444, %v4273
  %v4466 = vmul.f32 %v3446, %v4274
  %v4467 = vmul.f32 %v3448, %v4275
  %v4468 = vmul.f32 %v3450, %v4276
  %v4469 = vmul.f32 %v3452, %v4277
  %v4470 = vmul.f32 %v3454, %v4278
  %v4471 = vmul.f32 %v3456, %v4279
  %v4472 = vmul.f32 %v3458, %v4280
  %v4473 = vmul.f32 %v3460, %v4281
  %v4474 = vmul.f32 %v3462, %v4282
  %v4475 = vmul.f32 %v3464, %v4283
  %v4476 = vmul.f32 %v3466, %v4284
  %v4477 = vmul.f32 %v3468, %v4285
  %v4478 = vmul.f32 %v3470, %v4286
  %v4479 = vmul.f32 %v3472, %v4287
  %v4480 = vmul.f32 %v3474, %v4288
  %v4481 = vmul.f32 %v3476, %v4289
  %v4482 = vmul.f32 %v3478, %v4290
  %v4483 = vmul.f32 %v3480, %v4291
  %v4484 = vmul.f32 %v3482, %v4292
  %v4485 = vmul.f32 %v3484, %v4293
  %v4486 = vmul.f32 %v3486, %v4294
  %v4487 = vmul.f32 %v3488, %v4295
  %v4488 = vmul.f32 %v3490, %v4296
  %v4489 = vmul.f32 %v3492, %v4297
  %v4490 = vmul.f32 %v3494, %v4298
  %v4491 = vmul.f32 %v3496, %v4299
  %v4492 = vmul.f32 %v3498, %v4300
  %v4493 = vmul.f32 %v3500, %v4301
  %v4494 = vmul.f32 %v3502, %v4302
  %v4495 = vmul.f32 %v3504, %v4303
  %v4496 = vmul.f32 %v3506, %v4304
  %v4497 = vmul.f32 %v3508, %v4305
  %v4498 = vmul.f32 %v3510, %v4306
  %v4499 = vmul.f32 %v3512, %v4307
  %v4500 = vmul.f32 %v3514, %v4308
  %v4501 = vmul.f32 %v3516, %v4309
  %v4502 = vmul.f32 %v3518, %v4310
  %v4503 = vmul.f32 %v3520, %v4311
  %v4504 = vmul.f32 %v3522, %v4312
  %v4505 = vmul.f32 %v3524, %v4313
  %v4506 = vmul.f32 %v3526, %v4314
  %v4507 = vmul.f32 %v3528, %v4315
  %v4508 = vmul.f32 %v3530, %v4316
  %v4509 = vmul.f32 %v3532, %v4317
  %v4510 = vmul.f32 %v3534, %v4318
  %v4511 = vmul.f32 %v3536, %v4319
  %v4512 = vmul.f32 %v3538, %v4320
  %v4513 = vmul.f32 %v3540, %v4321
  %v4514 = vmul.f32 %v3542, %v4322
  %v4515 = vmul.f32 %v3544, %v4323
  %v4516 = vmul.f32 %v3546, %v4324
  %v4517 = vmul.f32 %v3548, %v4325
  %v4518 = vmul.f32 %v3550, %v4326
  %v4519 = vmul.f32 %v3552, %v4327
  %v4520 = vmul.f32 %v3554, %v4328
  %v4521 = vmul.f32 %v3556, %v4329
  %v4522 = vmul.f32 %v3558, %v4330
  %v4523 = vmul.f32 %v3560, %v4331
  %v4524 = vmul.f32 %v3562, %v4332
  %v4525 = vmul.f32 %v3564, %v4333
  %v4526 = vmul.f32 %v3566, %v4334
  %v4528 = vsel %vm302, %v4335, 0
  %v4531 = vsel %vm302, %v4336, 0
  %v4534 = vsel %vm302, %v4337, 0
  %v4537 = vsel %vm302, %v4338, 0
  %4539 = vmatpush.msra.mxu0 0.0
  %4540 = vmatpush.msra.mxu0 0.0
  %4541 = vmatpush.msra.mxu0 0.0
  %4542 = vmatpush.msra.mxu0 0.0
  %4543 = vmatpush.msra.mxu0 0.0
  %4544 = vmatpush.msra.mxu0 0.0
  %4545 = vmatpush.msra.mxu0 0.0
  %4546 = vmatpush.msra.mxu0 0.0
  %4547 = vmatpush.msra.mxu0 0.0
  %4548 = vmatpush.msra.mxu0 0.0
  %4549 = vmatpush.msra.mxu0 0.0
  %4550 = vmatpush.msra.mxu0 0.0
  %4551 = vmatpush.msra.mxu0 0.0
  %4552 = vmatpush.msra.mxu0 0.0
  %4553 = vmatpush.msra.mxu0 0.0
  %4554 = vmatpush.msra.mxu0 %v254
  %4555 = vmatmul.f32.gmra.mxu0 %v4528
  %v4556 = vpop.f32.mrf.mxu0
  %v4557 = vadd.f32 0.0, %v4556
  %4558 = vmatmul.f32.gmra.mxu0 %v4531
  %v4559 = vpop.f32.mrf.mxu0
  %v4560 = vadd.f32 0.0, %v4559
  %4561 = vmatmul.f32.gmra.mxu0 %v4534
  %v4562 = vpop.f32.mrf.mxu0
  %v4563 = vadd.f32 0.0, %v4562
  %4564 = vmatmul.f32.gmra.mxu0 %v4537
  %v4565 = vpop.f32.mrf.mxu0
  %v4566 = vadd.f32 0.0, %v4565
  %4567 = vdwg.mxu0
  %v4569 = vsel %vm302, %v4339, 0
  %v4572 = vsel %vm302, %v4340, 0
  %v4575 = vsel %vm302, %v4341, 0
  %v4578 = vsel %vm302, %v4342, 0
  %4580 = vmatpush.msra.mxu0 0.0
  %4581 = vmatpush.msra.mxu0 0.0
  %4582 = vmatpush.msra.mxu0 0.0
  %4583 = vmatpush.msra.mxu0 0.0
  %4584 = vmatpush.msra.mxu0 0.0
  %4585 = vmatpush.msra.mxu0 0.0
  %4586 = vmatpush.msra.mxu0 0.0
  %4587 = vmatpush.msra.mxu0 0.0
  %4588 = vmatpush.msra.mxu0 0.0
  %4589 = vmatpush.msra.mxu0 0.0
  %4590 = vmatpush.msra.mxu0 0.0
  %4591 = vmatpush.msra.mxu0 0.0
  %4592 = vmatpush.msra.mxu0 0.0
  %4593 = vmatpush.msra.mxu0 0.0
  %4594 = vmatpush.msra.mxu0 0.0
  %4595 = vmatpush.msra.mxu0 %v255
  %4596 = vmatmul.f32.gmra.mxu0 %v4569
  %v4597 = vpop.f32.mrf.mxu0
  %v4598 = vadd.f32 0.0, %v4597
  %4599 = vmatmul.f32.gmra.mxu0 %v4572
  %v4600 = vpop.f32.mrf.mxu0
  %v4601 = vadd.f32 0.0, %v4600
  %4602 = vmatmul.f32.gmra.mxu0 %v4575
  %v4603 = vpop.f32.mrf.mxu0
  %v4604 = vadd.f32 0.0, %v4603
  %4605 = vmatmul.f32.gmra.mxu0 %v4578
  %v4606 = vpop.f32.mrf.mxu0
  %v4607 = vadd.f32 0.0, %v4606
  %4608 = vdwg.mxu0
  %v4610 = vsel %vm302, %v4343, 0
  %v4613 = vsel %vm302, %v4344, 0
  %v4616 = vsel %vm302, %v4345, 0
  %v4619 = vsel %vm302, %v4346, 0
  %4621 = vmatpush.msra.mxu0 0.0
  %4622 = vmatpush.msra.mxu0 0.0
  %4623 = vmatpush.msra.mxu0 0.0
  %4624 = vmatpush.msra.mxu0 0.0
  %4625 = vmatpush.msra.mxu0 0.0
  %4626 = vmatpush.msra.mxu0 0.0
  %4627 = vmatpush.msra.mxu0 0.0
  %4628 = vmatpush.msra.mxu0 0.0
  %4629 = vmatpush.msra.mxu0 0.0
  %4630 = vmatpush.msra.mxu0 0.0
  %4631 = vmatpush.msra.mxu0 0.0
  %4632 = vmatpush.msra.mxu0 0.0
  %4633 = vmatpush.msra.mxu0 0.0
  %4634 = vmatpush.msra.mxu0 0.0
  %4635 = vmatpush.msra.mxu0 0.0
  %4636 = vmatpush.msra.mxu0 %v256
  %4637 = vmatmul.f32.gmra.mxu0 %v4610
  %v4638 = vpop.f32.mrf.mxu0
  %v4639 = vadd.f32 0.0, %v4638
  %4640 = vmatmul.f32.gmra.mxu0 %v4613
  %v4641 = vpop.f32.mrf.mxu0
  %v4642 = vadd.f32 0.0, %v4641
  %4643 = vmatmul.f32.gmra.mxu0 %v4616
  %v4644 = vpop.f32.mrf.mxu0
  %v4645 = vadd.f32 0.0, %v4644
  %4646 = vmatmul.f32.gmra.mxu0 %v4619
  %v4647 = vpop.f32.mrf.mxu0
  %v4648 = vadd.f32 0.0, %v4647
  %4649 = vdwg.mxu0
  %v4651 = vsel %vm302, %v4347, 0
  %v4654 = vsel %vm302, %v4348, 0
  %v4657 = vsel %vm302, %v4349, 0
  %v4660 = vsel %vm302, %v4350, 0
  %4662 = vmatpush.msra.mxu0 0.0
  %4663 = vmatpush.msra.mxu0 0.0
  %4664 = vmatpush.msra.mxu0 0.0
  %4665 = vmatpush.msra.mxu0 0.0
  %4666 = vmatpush.msra.mxu0 0.0
  %4667 = vmatpush.msra.mxu0 0.0
  %4668 = vmatpush.msra.mxu0 0.0
  %4669 = vmatpush.msra.mxu0 0.0
  %4670 = vmatpush.msra.mxu0 0.0
  %4671 = vmatpush.msra.mxu0 0.0
  %4672 = vmatpush.msra.mxu0 0.0
  %4673 = vmatpush.msra.mxu0 0.0
  %4674 = vmatpush.msra.mxu0 0.0
  %4675 = vmatpush.msra.mxu0 0.0
  %4676 = vmatpush.msra.mxu0 0.0
  %4677 = vmatpush.msra.mxu0 %v257
  %4678 = vmatmul.f32.gmra.mxu0 %v4651
  %v4679 = vpop.f32.mrf.mxu0
  %v4680 = vadd.f32 0.0, %v4679
  %4681 = vmatmul.f32.gmra.mxu0 %v4654
  %v4682 = vpop.f32.mrf.mxu0
  %v4683 = vadd.f32 0.0, %v4682
  %4684 = vmatmul.f32.gmra.mxu0 %v4657
  %v4685 = vpop.f32.mrf.mxu0
  %v4686 = vadd.f32 0.0, %v4685
  %4687 = vmatmul.f32.gmra.mxu0 %v4660
  %v4688 = vpop.f32.mrf.mxu0
  %v4689 = vadd.f32 0.0, %v4688
  %4690 = vdwg.mxu0
  %v4692 = vsel %vm302, %v4351, 0
  %v4695 = vsel %vm302, %v4352, 0
  %v4698 = vsel %vm302, %v4353, 0
  %v4701 = vsel %vm302, %v4354, 0
  %4703 = vmatpush.msra.mxu0 0.0
  %4704 = vmatpush.msra.mxu0 0.0
  %4705 = vmatpush.msra.mxu0 0.0
  %4706 = vmatpush.msra.mxu0 0.0
  %4707 = vmatpush.msra.mxu0 0.0
  %4708 = vmatpush.msra.mxu0 0.0
  %4709 = vmatpush.msra.mxu0 0.0
  %4710 = vmatpush.msra.mxu0 0.0
  %4711 = vmatpush.msra.mxu0 0.0
  %4712 = vmatpush.msra.mxu0 0.0
  %4713 = vmatpush.msra.mxu0 0.0
  %4714 = vmatpush.msra.mxu0 0.0
  %4715 = vmatpush.msra.mxu0 0.0
  %4716 = vmatpush.msra.mxu0 0.0
  %4717 = vmatpush.msra.mxu0 0.0
  %4718 = vmatpush.msra.mxu0 %v258
  %4719 = vmatmul.f32.gmra.mxu0 %v4692
  %v4720 = vpop.f32.mrf.mxu0
  %v4721 = vadd.f32 0.0, %v4720
  %4722 = vmatmul.f32.gmra.mxu0 %v4695
  %v4723 = vpop.f32.mrf.mxu0
  %v4724 = vadd.f32 0.0, %v4723
  %4725 = vmatmul.f32.gmra.mxu0 %v4698
  %v4726 = vpop.f32.mrf.mxu0
  %v4727 = vadd.f32 0.0, %v4726
  %4728 = vmatmul.f32.gmra.mxu0 %v4701
  %v4729 = vpop.f32.mrf.mxu0
  %v4730 = vadd.f32 0.0, %v4729
  %4731 = vdwg.mxu0
  %v4733 = vsel %vm302, %v4355, 0
  %v4736 = vsel %vm302, %v4356, 0
  %v4739 = vsel %vm302, %v4357, 0
  %v4742 = vsel %vm302, %v4358, 0
  %4744 = vmatpush.msra.mxu0 0.0
  %4745 = vmatpush.msra.mxu0 0.0
  %4746 = vmatpush.msra.mxu0 0.0
  %4747 = vmatpush.msra.mxu0 0.0
  %4748 = vmatpush.msra.mxu0 0.0
  %4749 = vmatpush.msra.mxu0 0.0
  %4750 = vmatpush.msra.mxu0 0.0
  %4751 = vmatpush.msra.mxu0 0.0
  %4752 = vmatpush.msra.mxu0 0.0
  %4753 = vmatpush.msra.mxu0 0.0
  %4754 = vmatpush.msra.mxu0 0.0
  %4755 = vmatpush.msra.mxu0 0.0
  %4756 = vmatpush.msra.mxu0 0.0
  %4757 = vmatpush.msra.mxu0 0.0
  %4758 = vmatpush.msra.mxu0 0.0
  %4759 = vmatpush.msra.mxu0 %v259
  %4760 = vmatmul.f32.gmra.mxu0 %v4733
  %v4761 = vpop.f32.mrf.mxu0
  %v4762 = vadd.f32 0.0, %v4761
  %4763 = vmatmul.f32.gmra.mxu0 %v4736
  %v4764 = vpop.f32.mrf.mxu0
  %v4765 = vadd.f32 0.0, %v4764
  %4766 = vmatmul.f32.gmra.mxu0 %v4739
  %v4767 = vpop.f32.mrf.mxu0
  %v4768 = vadd.f32 0.0, %v4767
  %4769 = vmatmul.f32.gmra.mxu0 %v4742
  %v4770 = vpop.f32.mrf.mxu0
  %v4771 = vadd.f32 0.0, %v4770
  %4772 = vdwg.mxu0
  %v4774 = vsel %vm302, %v4359, 0
  %v4777 = vsel %vm302, %v4360, 0
  %v4780 = vsel %vm302, %v4361, 0
  %v4783 = vsel %vm302, %v4362, 0
  %4785 = vmatpush.msra.mxu0 0.0
  %4786 = vmatpush.msra.mxu0 0.0
  %4787 = vmatpush.msra.mxu0 0.0
  %4788 = vmatpush.msra.mxu0 0.0
  %4789 = vmatpush.msra.mxu0 0.0
  %4790 = vmatpush.msra.mxu0 0.0
  %4791 = vmatpush.msra.mxu0 0.0
  %4792 = vmatpush.msra.mxu0 0.0
  %4793 = vmatpush.msra.mxu0 0.0
  %4794 = vmatpush.msra.mxu0 0.0
  %4795 = vmatpush.msra.mxu0 0.0
  %4796 = vmatpush.msra.mxu0 0.0
  %4797 = vmatpush.msra.mxu0 0.0
  %4798 = vmatpush.msra.mxu0 0.0
  %4799 = vmatpush.msra.mxu0 0.0
  %4800 = vmatpush.msra.mxu0 %v260
  %4801 = vmatmul.f32.gmra.mxu0 %v4774
  %v4802 = vpop.f32.mrf.mxu0
  %v4803 = vadd.f32 0.0, %v4802
  %4804 = vmatmul.f32.gmra.mxu0 %v4777
  %v4805 = vpop.f32.mrf.mxu0
  %v4806 = vadd.f32 0.0, %v4805
  %4807 = vmatmul.f32.gmra.mxu0 %v4780
  %v4808 = vpop.f32.mrf.mxu0
  %v4809 = vadd.f32 0.0, %v4808
  %4810 = vmatmul.f32.gmra.mxu0 %v4783
  %v4811 = vpop.f32.mrf.mxu0
  %v4812 = vadd.f32 0.0, %v4811
  %4813 = vdwg.mxu0
  %v4815 = vsel %vm302, %v4363, 0
  %v4818 = vsel %vm302, %v4364, 0
  %v4821 = vsel %vm302, %v4365, 0
  %v4824 = vsel %vm302, %v4366, 0
  %4826 = vmatpush.msra.mxu0 0.0
  %4827 = vmatpush.msra.mxu0 0.0
  %4828 = vmatpush.msra.mxu0 0.0
  %4829 = vmatpush.msra.mxu0 0.0
  %4830 = vmatpush.msra.mxu0 0.0
  %4831 = vmatpush.msra.mxu0 0.0
  %4832 = vmatpush.msra.mxu0 0.0
  %4833 = vmatpush.msra.mxu0 0.0
  %4834 = vmatpush.msra.mxu0 0.0
  %4835 = vmatpush.msra.mxu0 0.0
  %4836 = vmatpush.msra.mxu0 0.0
  %4837 = vmatpush.msra.mxu0 0.0
  %4838 = vmatpush.msra.mxu0 0.0
  %4839 = vmatpush.msra.mxu0 0.0
  %4840 = vmatpush.msra.mxu0 0.0
  %4841 = vmatpush.msra.mxu0 %v261
  %4842 = vmatmul.f32.gmra.mxu0 %v4815
  %v4843 = vpop.f32.mrf.mxu0
  %v4844 = vadd.f32 0.0, %v4843
  %4845 = vmatmul.f32.gmra.mxu0 %v4818
  %v4846 = vpop.f32.mrf.mxu0
  %v4847 = vadd.f32 0.0, %v4846
  %4848 = vmatmul.f32.gmra.mxu0 %v4821
  %v4849 = vpop.f32.mrf.mxu0
  %v4850 = vadd.f32 0.0, %v4849
  %4851 = vmatmul.f32.gmra.mxu0 %v4824
  %v4852 = vpop.f32.mrf.mxu0
  %v4853 = vadd.f32 0.0, %v4852
  %4854 = vdwg.mxu0
  %v4856 = vsel %vm302, %v4367, 0
  %v4859 = vsel %vm302, %v4368, 0
  %v4862 = vsel %vm302, %v4369, 0
  %v4865 = vsel %vm302, %v4370, 0
  %4867 = vmatpush.msra.mxu0 0.0
  %4868 = vmatpush.msra.mxu0 0.0
  %4869 = vmatpush.msra.mxu0 0.0
  %4870 = vmatpush.msra.mxu0 0.0
  %4871 = vmatpush.msra.mxu0 0.0
  %4872 = vmatpush.msra.mxu0 0.0
  %4873 = vmatpush.msra.mxu0 0.0
  %4874 = vmatpush.msra.mxu0 0.0
  %4875 = vmatpush.msra.mxu0 0.0
  %4876 = vmatpush.msra.mxu0 0.0
  %4877 = vmatpush.msra.mxu0 0.0
  %4878 = vmatpush.msra.mxu0 0.0
  %4879 = vmatpush.msra.mxu0 0.0
  %4880 = vmatpush.msra.mxu0 0.0
  %4881 = vmatpush.msra.mxu0 0.0
  %4882 = vmatpush.msra.mxu0 %v262
  %4883 = vmatmul.f32.gmra.mxu0 %v4856
  %v4884 = vpop.f32.mrf.mxu0
  %v4885 = vadd.f32 0.0, %v4884
  %4886 = vmatmul.f32.gmra.mxu0 %v4859
  %v4887 = vpop.f32.mrf.mxu0
  %v4888 = vadd.f32 0.0, %v4887
  %4889 = vmatmul.f32.gmra.mxu0 %v4862
  %v4890 = vpop.f32.mrf.mxu0
  %v4891 = vadd.f32 0.0, %v4890
  %4892 = vmatmul.f32.gmra.mxu0 %v4865
  %v4893 = vpop.f32.mrf.mxu0
  %v4894 = vadd.f32 0.0, %v4893
  %4895 = vdwg.mxu0
  %v4897 = vsel %vm302, %v4371, 0
  %v4900 = vsel %vm302, %v4372, 0
  %v4903 = vsel %vm302, %v4373, 0
  %v4906 = vsel %vm302, %v4374, 0
  %4908 = vmatpush.msra.mxu0 0.0
  %4909 = vmatpush.msra.mxu0 0.0
  %4910 = vmatpush.msra.mxu0 0.0
  %4911 = vmatpush.msra.mxu0 0.0
  %4912 = vmatpush.msra.mxu0 0.0
  %4913 = vmatpush.msra.mxu0 0.0
  %4914 = vmatpush.msra.mxu0 0.0
  %4915 = vmatpush.msra.mxu0 0.0
  %4916 = vmatpush.msra.mxu0 0.0
  %4917 = vmatpush.msra.mxu0 0.0
  %4918 = vmatpush.msra.mxu0 0.0
  %4919 = vmatpush.msra.mxu0 0.0
  %4920 = vmatpush.msra.mxu0 0.0
  %4921 = vmatpush.msra.mxu0 0.0
  %4922 = vmatpush.msra.mxu0 0.0
  %4923 = vmatpush.msra.mxu0 %v263
  %4924 = vmatmul.f32.gmra.mxu0 %v4897
  %v4925 = vpop.f32.mrf.mxu0
  %v4926 = vadd.f32 0.0, %v4925
  %4927 = vmatmul.f32.gmra.mxu0 %v4900
  %v4928 = vpop.f32.mrf.mxu0
  %v4929 = vadd.f32 0.0, %v4928
  %4930 = vmatmul.f32.gmra.mxu0 %v4903
  %v4931 = vpop.f32.mrf.mxu0
  %v4932 = vadd.f32 0.0, %v4931
  %4933 = vmatmul.f32.gmra.mxu0 %v4906
  %v4934 = vpop.f32.mrf.mxu0
  %v4935 = vadd.f32 0.0, %v4934
  %4936 = vdwg.mxu0
  %v4938 = vsel %vm302, %v4375, 0
  %v4941 = vsel %vm302, %v4376, 0
  %v4944 = vsel %vm302, %v4377, 0
  %v4947 = vsel %vm302, %v4378, 0
  %4949 = vmatpush.msra.mxu0 0.0
  %4950 = vmatpush.msra.mxu0 0.0
  %4951 = vmatpush.msra.mxu0 0.0
  %4952 = vmatpush.msra.mxu0 0.0
  %4953 = vmatpush.msra.mxu0 0.0
  %4954 = vmatpush.msra.mxu0 0.0
  %4955 = vmatpush.msra.mxu0 0.0
  %4956 = vmatpush.msra.mxu0 0.0
  %4957 = vmatpush.msra.mxu0 0.0
  %4958 = vmatpush.msra.mxu0 0.0
  %4959 = vmatpush.msra.mxu0 0.0
  %4960 = vmatpush.msra.mxu0 0.0
  %4961 = vmatpush.msra.mxu0 0.0
  %4962 = vmatpush.msra.mxu0 0.0
  %4963 = vmatpush.msra.mxu0 0.0
  %4964 = vmatpush.msra.mxu0 %v264
  %4965 = vmatmul.f32.gmra.mxu0 %v4938
  %v4966 = vpop.f32.mrf.mxu0
  %v4967 = vadd.f32 0.0, %v4966
  %4968 = vmatmul.f32.gmra.mxu0 %v4941
  %v4969 = vpop.f32.mrf.mxu0
  %v4970 = vadd.f32 0.0, %v4969
  %4971 = vmatmul.f32.gmra.mxu0 %v4944
  %v4972 = vpop.f32.mrf.mxu0
  %v4973 = vadd.f32 0.0, %v4972
  %4974 = vmatmul.f32.gmra.mxu0 %v4947
  %v4975 = vpop.f32.mrf.mxu0
  %v4976 = vadd.f32 0.0, %v4975
  %4977 = vdwg.mxu0
  %v4979 = vsel %vm302, %v4379, 0
  %v4982 = vsel %vm302, %v4380, 0
  %v4985 = vsel %vm302, %v4381, 0
  %v4988 = vsel %vm302, %v4382, 0
  %4990 = vmatpush.msra.mxu0 0.0
  %4991 = vmatpush.msra.mxu0 0.0
  %4992 = vmatpush.msra.mxu0 0.0
  %4993 = vmatpush.msra.mxu0 0.0
  %4994 = vmatpush.msra.mxu0 0.0
  %4995 = vmatpush.msra.mxu0 0.0
  %4996 = vmatpush.msra.mxu0 0.0
  %4997 = vmatpush.msra.mxu0 0.0
  %4998 = vmatpush.msra.mxu0 0.0
  %4999 = vmatpush.msra.mxu0 0.0
  %5000 = vmatpush.msra.mxu0 0.0
  %5001 = vmatpush.msra.mxu0 0.0
  %5002 = vmatpush.msra.mxu0 0.0
  %5003 = vmatpush.msra.mxu0 0.0
  %5004 = vmatpush.msra.mxu0 0.0
  %5005 = vmatpush.msra.mxu0 %v265
  %5006 = vmatmul.f32.gmra.mxu0 %v4979
  %v5007 = vpop.f32.mrf.mxu0
  %v5008 = vadd.f32 0.0, %v5007
  %5009 = vmatmul.f32.gmra.mxu0 %v4982
  %v5010 = vpop.f32.mrf.mxu0
  %v5011 = vadd.f32 0.0, %v5010
  %5012 = vmatmul.f32.gmra.mxu0 %v4985
  %v5013 = vpop.f32.mrf.mxu0
  %v5014 = vadd.f32 0.0, %v5013
  %5015 = vmatmul.f32.gmra.mxu0 %v4988
  %v5016 = vpop.f32.mrf.mxu0
  %v5017 = vadd.f32 0.0, %v5016
  %5018 = vdwg.mxu0
  %v5020 = vsel %vm302, %v4383, 0
  %v5023 = vsel %vm302, %v4384, 0
  %v5026 = vsel %vm302, %v4385, 0
  %v5029 = vsel %vm302, %v4386, 0
  %5031 = vmatpush.msra.mxu0 0.0
  %5032 = vmatpush.msra.mxu0 0.0
  %5033 = vmatpush.msra.mxu0 0.0
  %5034 = vmatpush.msra.mxu0 0.0
  %5035 = vmatpush.msra.mxu0 0.0
  %5036 = vmatpush.msra.mxu0 0.0
  %5037 = vmatpush.msra.mxu0 0.0
  %5038 = vmatpush.msra.mxu0 0.0
  %5039 = vmatpush.msra.mxu0 0.0
  %5040 = vmatpush.msra.mxu0 0.0
  %5041 = vmatpush.msra.mxu0 0.0
  %5042 = vmatpush.msra.mxu0 0.0
  %5043 = vmatpush.msra.mxu0 0.0
  %5044 = vmatpush.msra.mxu0 0.0
  %5045 = vmatpush.msra.mxu0 0.0
  %5046 = vmatpush.msra.mxu0 %v266
  %5047 = vmatmul.f32.gmra.mxu0 %v5020
  %v5048 = vpop.f32.mrf.mxu0
  %v5049 = vadd.f32 0.0, %v5048
  %5050 = vmatmul.f32.gmra.mxu0 %v5023
  %v5051 = vpop.f32.mrf.mxu0
  %v5052 = vadd.f32 0.0, %v5051
  %5053 = vmatmul.f32.gmra.mxu0 %v5026
  %v5054 = vpop.f32.mrf.mxu0
  %v5055 = vadd.f32 0.0, %v5054
  %5056 = vmatmul.f32.gmra.mxu0 %v5029
  %v5057 = vpop.f32.mrf.mxu0
  %v5058 = vadd.f32 0.0, %v5057
  %5059 = vdwg.mxu0
  %v5061 = vsel %vm302, %v4387, 0
  %v5064 = vsel %vm302, %v4388, 0
  %v5067 = vsel %vm302, %v4389, 0
  %v5070 = vsel %vm302, %v4390, 0
  %5072 = vmatpush.msra.mxu0 0.0
  %5073 = vmatpush.msra.mxu0 0.0
  %5074 = vmatpush.msra.mxu0 0.0
  %5075 = vmatpush.msra.mxu0 0.0
  %5076 = vmatpush.msra.mxu0 0.0
  %5077 = vmatpush.msra.mxu0 0.0
  %5078 = vmatpush.msra.mxu0 0.0
  %5079 = vmatpush.msra.mxu0 0.0
  %5080 = vmatpush.msra.mxu0 0.0
  %5081 = vmatpush.msra.mxu0 0.0
  %5082 = vmatpush.msra.mxu0 0.0
  %5083 = vmatpush.msra.mxu0 0.0
  %5084 = vmatpush.msra.mxu0 0.0
  %5085 = vmatpush.msra.mxu0 0.0
  %5086 = vmatpush.msra.mxu0 0.0
  %5087 = vmatpush.msra.mxu0 %v267
  %5088 = vmatmul.f32.gmra.mxu0 %v5061
  %v5089 = vpop.f32.mrf.mxu0
  %v5090 = vadd.f32 0.0, %v5089
  %5091 = vmatmul.f32.gmra.mxu0 %v5064
  %v5092 = vpop.f32.mrf.mxu0
  %v5093 = vadd.f32 0.0, %v5092
  %5094 = vmatmul.f32.gmra.mxu0 %v5067
  %v5095 = vpop.f32.mrf.mxu0
  %v5096 = vadd.f32 0.0, %v5095
  %5097 = vmatmul.f32.gmra.mxu0 %v5070
  %v5098 = vpop.f32.mrf.mxu0
  %v5099 = vadd.f32 0.0, %v5098
  %5100 = vdwg.mxu0
  %v5102 = vsel %vm302, %v4391, 0
  %v5105 = vsel %vm302, %v4392, 0
  %v5108 = vsel %vm302, %v4393, 0
  %v5111 = vsel %vm302, %v4394, 0
  %5113 = vmatpush.msra.mxu0 0.0
  %5114 = vmatpush.msra.mxu0 0.0
  %5115 = vmatpush.msra.mxu0 0.0
  %5116 = vmatpush.msra.mxu0 0.0
  %5117 = vmatpush.msra.mxu0 0.0
  %5118 = vmatpush.msra.mxu0 0.0
  %5119 = vmatpush.msra.mxu0 0.0
  %5120 = vmatpush.msra.mxu0 0.0
  %5121 = vmatpush.msra.mxu0 0.0
  %5122 = vmatpush.msra.mxu0 0.0
  %5123 = vmatpush.msra.mxu0 0.0
  %5124 = vmatpush.msra.mxu0 0.0
  %5125 = vmatpush.msra.mxu0 0.0
  %5126 = vmatpush.msra.mxu0 0.0
  %5127 = vmatpush.msra.mxu0 0.0
  %5128 = vmatpush.msra.mxu0 %v268
  %5129 = vmatmul.f32.gmra.mxu0 %v5102
  %v5130 = vpop.f32.mrf.mxu0
  %v5131 = vadd.f32 0.0, %v5130
  %5132 = vmatmul.f32.gmra.mxu0 %v5105
  %v5133 = vpop.f32.mrf.mxu0
  %v5134 = vadd.f32 0.0, %v5133
  %5135 = vmatmul.f32.gmra.mxu0 %v5108
  %v5136 = vpop.f32.mrf.mxu0
  %v5137 = vadd.f32 0.0, %v5136
  %5138 = vmatmul.f32.gmra.mxu0 %v5111
  %v5139 = vpop.f32.mrf.mxu0
  %v5140 = vadd.f32 0.0, %v5139
  %5141 = vdwg.mxu0
  %v5143 = vsel %vm302, %v4395, 0
  %v5146 = vsel %vm302, %v4396, 0
  %v5149 = vsel %vm302, %v4397, 0
  %v5152 = vsel %vm302, %v4398, 0
  %5154 = vmatpush.msra.mxu0 0.0
  %5155 = vmatpush.msra.mxu0 0.0
  %5156 = vmatpush.msra.mxu0 0.0
  %5157 = vmatpush.msra.mxu0 0.0
  %5158 = vmatpush.msra.mxu0 0.0
  %5159 = vmatpush.msra.mxu0 0.0
  %5160 = vmatpush.msra.mxu0 0.0
  %5161 = vmatpush.msra.mxu0 0.0
  %5162 = vmatpush.msra.mxu0 0.0
  %5163 = vmatpush.msra.mxu0 0.0
  %5164 = vmatpush.msra.mxu0 0.0
  %5165 = vmatpush.msra.mxu0 0.0
  %5166 = vmatpush.msra.mxu0 0.0
  %5167 = vmatpush.msra.mxu0 0.0
  %5168 = vmatpush.msra.mxu0 0.0
  %5169 = vmatpush.msra.mxu0 %v269
  %5170 = vmatmul.f32.gmra.mxu0 %v5143
  %v5171 = vpop.f32.mrf.mxu0
  %v5172 = vadd.f32 0.0, %v5171
  %5173 = vmatmul.f32.gmra.mxu0 %v5146
  %v5174 = vpop.f32.mrf.mxu0
  %v5175 = vadd.f32 0.0, %v5174
  %5176 = vmatmul.f32.gmra.mxu0 %v5149
  %v5177 = vpop.f32.mrf.mxu0
  %v5178 = vadd.f32 0.0, %v5177
  %5179 = vmatmul.f32.gmra.mxu0 %v5152
  %v5180 = vpop.f32.mrf.mxu0
  %v5181 = vadd.f32 0.0, %v5180
  %5182 = vdwg.mxu0
  %v5184 = vsel %vm302, %v4399, 0
  %v5187 = vsel %vm302, %v4400, 0
  %v5190 = vsel %vm302, %v4401, 0
  %v5193 = vsel %vm302, %v4402, 0
  %5195 = vmatpush.msra.mxu0 0.0
  %5196 = vmatpush.msra.mxu0 0.0
  %5197 = vmatpush.msra.mxu0 0.0
  %5198 = vmatpush.msra.mxu0 0.0
  %5199 = vmatpush.msra.mxu0 0.0
  %5200 = vmatpush.msra.mxu0 0.0
  %5201 = vmatpush.msra.mxu0 0.0
  %5202 = vmatpush.msra.mxu0 0.0
  %5203 = vmatpush.msra.mxu0 0.0
  %5204 = vmatpush.msra.mxu0 0.0
  %5205 = vmatpush.msra.mxu0 0.0
  %5206 = vmatpush.msra.mxu0 0.0
  %5207 = vmatpush.msra.mxu0 0.0
  %5208 = vmatpush.msra.mxu0 0.0
  %5209 = vmatpush.msra.mxu0 0.0
  %5210 = vmatpush.msra.mxu0 %v270
  %5211 = vmatmul.f32.gmra.mxu0 %v5184
  %v5212 = vpop.f32.mrf.mxu0
  %v5213 = vadd.f32 0.0, %v5212
  %5214 = vmatmul.f32.gmra.mxu0 %v5187
  %v5215 = vpop.f32.mrf.mxu0
  %v5216 = vadd.f32 0.0, %v5215
  %5217 = vmatmul.f32.gmra.mxu0 %v5190
  %v5218 = vpop.f32.mrf.mxu0
  %v5219 = vadd.f32 0.0, %v5218
  %5220 = vmatmul.f32.gmra.mxu0 %v5193
  %v5221 = vpop.f32.mrf.mxu0
  %v5222 = vadd.f32 0.0, %v5221
  %5223 = vdwg.mxu0
  %v5225 = vsel %vm302, %v4403, 0
  %v5228 = vsel %vm302, %v4404, 0
  %v5231 = vsel %vm302, %v4405, 0
  %v5234 = vsel %vm302, %v4406, 0
  %5236 = vmatpush.msra.mxu0 0.0
  %5237 = vmatpush.msra.mxu0 0.0
  %5238 = vmatpush.msra.mxu0 0.0
  %5239 = vmatpush.msra.mxu0 0.0
  %5240 = vmatpush.msra.mxu0 0.0
  %5241 = vmatpush.msra.mxu0 0.0
  %5242 = vmatpush.msra.mxu0 0.0
  %5243 = vmatpush.msra.mxu0 0.0
  %5244 = vmatpush.msra.mxu0 0.0
  %5245 = vmatpush.msra.mxu0 0.0
  %5246 = vmatpush.msra.mxu0 0.0
  %5247 = vmatpush.msra.mxu0 0.0
  %5248 = vmatpush.msra.mxu0 0.0
  %5249 = vmatpush.msra.mxu0 0.0
  %5250 = vmatpush.msra.mxu0 0.0
  %5251 = vmatpush.msra.mxu0 %v271
  %5252 = vmatmul.f32.gmra.mxu0 %v5225
  %v5253 = vpop.f32.mrf.mxu0
  %v5254 = vadd.f32 0.0, %v5253
  %5255 = vmatmul.f32.gmra.mxu0 %v5228
  %v5256 = vpop.f32.mrf.mxu0
  %v5257 = vadd.f32 0.0, %v5256
  %5258 = vmatmul.f32.gmra.mxu0 %v5231
  %v5259 = vpop.f32.mrf.mxu0
  %v5260 = vadd.f32 0.0, %v5259
  %5261 = vmatmul.f32.gmra.mxu0 %v5234
  %v5262 = vpop.f32.mrf.mxu0
  %v5263 = vadd.f32 0.0, %v5262
  %5264 = vdwg.mxu0
  %v5266 = vsel %vm302, %v4407, 0
  %v5269 = vsel %vm302, %v4408, 0
  %v5272 = vsel %vm302, %v4409, 0
  %v5275 = vsel %vm302, %v4410, 0
  %5277 = vmatpush.msra.mxu0 0.0
  %5278 = vmatpush.msra.mxu0 0.0
  %5279 = vmatpush.msra.mxu0 0.0
  %5280 = vmatpush.msra.mxu0 0.0
  %5281 = vmatpush.msra.mxu0 0.0
  %5282 = vmatpush.msra.mxu0 0.0
  %5283 = vmatpush.msra.mxu0 0.0
  %5284 = vmatpush.msra.mxu0 0.0
  %5285 = vmatpush.msra.mxu0 0.0
  %5286 = vmatpush.msra.mxu0 0.0
  %5287 = vmatpush.msra.mxu0 0.0
  %5288 = vmatpush.msra.mxu0 0.0
  %5289 = vmatpush.msra.mxu0 0.0
  %5290 = vmatpush.msra.mxu0 0.0
  %5291 = vmatpush.msra.mxu0 0.0
  %5292 = vmatpush.msra.mxu0 %v272
  %5293 = vmatmul.f32.gmra.mxu0 %v5266
  %v5294 = vpop.f32.mrf.mxu0
  %v5295 = vadd.f32 0.0, %v5294
  %5296 = vmatmul.f32.gmra.mxu0 %v5269
  %v5297 = vpop.f32.mrf.mxu0
  %v5298 = vadd.f32 0.0, %v5297
  %5299 = vmatmul.f32.gmra.mxu0 %v5272
  %v5300 = vpop.f32.mrf.mxu0
  %v5301 = vadd.f32 0.0, %v5300
  %5302 = vmatmul.f32.gmra.mxu0 %v5275
  %v5303 = vpop.f32.mrf.mxu0
  %v5304 = vadd.f32 0.0, %v5303
  %5305 = vdwg.mxu0
  %v5307 = vsel %vm302, %v4411, 0
  %v5310 = vsel %vm302, %v4412, 0
  %v5313 = vsel %vm302, %v4413, 0
  %v5316 = vsel %vm302, %v4414, 0
  %5318 = vmatpush.msra.mxu0 0.0
  %5319 = vmatpush.msra.mxu0 0.0
  %5320 = vmatpush.msra.mxu0 0.0
  %5321 = vmatpush.msra.mxu0 0.0
  %5322 = vmatpush.msra.mxu0 0.0
  %5323 = vmatpush.msra.mxu0 0.0
  %5324 = vmatpush.msra.mxu0 0.0
  %5325 = vmatpush.msra.mxu0 0.0
  %5326 = vmatpush.msra.mxu0 0.0
  %5327 = vmatpush.msra.mxu0 0.0
  %5328 = vmatpush.msra.mxu0 0.0
  %5329 = vmatpush.msra.mxu0 0.0
  %5330 = vmatpush.msra.mxu0 0.0
  %5331 = vmatpush.msra.mxu0 0.0
  %5332 = vmatpush.msra.mxu0 0.0
  %5333 = vmatpush.msra.mxu0 %v273
  %5334 = vmatmul.f32.gmra.mxu0 %v5307
  %v5335 = vpop.f32.mrf.mxu0
  %v5336 = vadd.f32 0.0, %v5335
  %5337 = vmatmul.f32.gmra.mxu0 %v5310
  %v5338 = vpop.f32.mrf.mxu0
  %v5339 = vadd.f32 0.0, %v5338
  %5340 = vmatmul.f32.gmra.mxu0 %v5313
  %v5341 = vpop.f32.mrf.mxu0
  %v5342 = vadd.f32 0.0, %v5341
  %5343 = vmatmul.f32.gmra.mxu0 %v5316
  %v5344 = vpop.f32.mrf.mxu0
  %v5345 = vadd.f32 0.0, %v5344
  %5346 = vdwg.mxu0
  %v5348 = vsel %vm302, %v4415, 0
  %v5351 = vsel %vm302, %v4416, 0
  %v5354 = vsel %vm302, %v4417, 0
  %v5357 = vsel %vm302, %v4418, 0
  %5359 = vmatpush.msra.mxu0 0.0
  %5360 = vmatpush.msra.mxu0 0.0
  %5361 = vmatpush.msra.mxu0 0.0
  %5362 = vmatpush.msra.mxu0 0.0
  %5363 = vmatpush.msra.mxu0 0.0
  %5364 = vmatpush.msra.mxu0 0.0
  %5365 = vmatpush.msra.mxu0 0.0
  %5366 = vmatpush.msra.mxu0 0.0
  %5367 = vmatpush.msra.mxu0 0.0
  %5368 = vmatpush.msra.mxu0 0.0
  %5369 = vmatpush.msra.mxu0 0.0
  %5370 = vmatpush.msra.mxu0 0.0
  %5371 = vmatpush.msra.mxu0 0.0
  %5372 = vmatpush.msra.mxu0 0.0
  %5373 = vmatpush.msra.mxu0 0.0
  %5374 = vmatpush.msra.mxu0 %v274
  %5375 = vmatmul.f32.gmra.mxu0 %v5348
  %v5376 = vpop.f32.mrf.mxu0
  %v5377 = vadd.f32 0.0, %v5376
  %5378 = vmatmul.f32.gmra.mxu0 %v5351
  %v5379 = vpop.f32.mrf.mxu0
  %v5380 = vadd.f32 0.0, %v5379
  %5381 = vmatmul.f32.gmra.mxu0 %v5354
  %v5382 = vpop.f32.mrf.mxu0
  %v5383 = vadd.f32 0.0, %v5382
  %5384 = vmatmul.f32.gmra.mxu0 %v5357
  %v5385 = vpop.f32.mrf.mxu0
  %v5386 = vadd.f32 0.0, %v5385
  %5387 = vdwg.mxu0
  %v5389 = vsel %vm302, %v4419, 0
  %v5392 = vsel %vm302, %v4420, 0
  %v5395 = vsel %vm302, %v4421, 0
  %v5398 = vsel %vm302, %v4422, 0
  %5400 = vmatpush.msra.mxu0 0.0
  %5401 = vmatpush.msra.mxu0 0.0
  %5402 = vmatpush.msra.mxu0 0.0
  %5403 = vmatpush.msra.mxu0 0.0
  %5404 = vmatpush.msra.mxu0 0.0
  %5405 = vmatpush.msra.mxu0 0.0
  %5406 = vmatpush.msra.mxu0 0.0
  %5407 = vmatpush.msra.mxu0 0.0
  %5408 = vmatpush.msra.mxu0 0.0
  %5409 = vmatpush.msra.mxu0 0.0
  %5410 = vmatpush.msra.mxu0 0.0
  %5411 = vmatpush.msra.mxu0 0.0
  %5412 = vmatpush.msra.mxu0 0.0
  %5413 = vmatpush.msra.mxu0 0.0
  %5414 = vmatpush.msra.mxu0 0.0
  %5415 = vmatpush.msra.mxu0 %v275
  %5416 = vmatmul.f32.gmra.mxu0 %v5389
  %v5417 = vpop.f32.mrf.mxu0
  %v5418 = vadd.f32 0.0, %v5417
  %5419 = vmatmul.f32.gmra.mxu0 %v5392
  %v5420 = vpop.f32.mrf.mxu0
  %v5421 = vadd.f32 0.0, %v5420
  %5422 = vmatmul.f32.gmra.mxu0 %v5395
  %v5423 = vpop.f32.mrf.mxu0
  %v5424 = vadd.f32 0.0, %v5423
  %5425 = vmatmul.f32.gmra.mxu0 %v5398
  %v5426 = vpop.f32.mrf.mxu0
  %v5427 = vadd.f32 0.0, %v5426
  %5428 = vdwg.mxu0
  %v5430 = vsel %vm302, %v4423, 0
  %v5433 = vsel %vm302, %v4424, 0
  %v5436 = vsel %vm302, %v4425, 0
  %v5439 = vsel %vm302, %v4426, 0
  %5441 = vmatpush.msra.mxu0 0.0
  %5442 = vmatpush.msra.mxu0 0.0
  %5443 = vmatpush.msra.mxu0 0.0
  %5444 = vmatpush.msra.mxu0 0.0
  %5445 = vmatpush.msra.mxu0 0.0
  %5446 = vmatpush.msra.mxu0 0.0
  %5447 = vmatpush.msra.mxu0 0.0
  %5448 = vmatpush.msra.mxu0 0.0
  %5449 = vmatpush.msra.mxu0 0.0
  %5450 = vmatpush.msra.mxu0 0.0
  %5451 = vmatpush.msra.mxu0 0.0
  %5452 = vmatpush.msra.mxu0 0.0
  %5453 = vmatpush.msra.mxu0 0.0
  %5454 = vmatpush.msra.mxu0 0.0
  %5455 = vmatpush.msra.mxu0 0.0
  %5456 = vmatpush.msra.mxu0 %v276
  %5457 = vmatmul.f32.gmra.mxu0 %v5430
  %v5458 = vpop.f32.mrf.mxu0
  %v5459 = vadd.f32 0.0, %v5458
  %5460 = vmatmul.f32.gmra.mxu0 %v5433
  %v5461 = vpop.f32.mrf.mxu0
  %v5462 = vadd.f32 0.0, %v5461
  %5463 = vmatmul.f32.gmra.mxu0 %v5436
  %v5464 = vpop.f32.mrf.mxu0
  %v5465 = vadd.f32 0.0, %v5464
  %5466 = vmatmul.f32.gmra.mxu0 %v5439
  %v5467 = vpop.f32.mrf.mxu0
  %v5468 = vadd.f32 0.0, %v5467
  %5469 = vdwg.mxu0
  %v5471 = vsel %vm302, %v4427, 0
  %v5474 = vsel %vm302, %v4428, 0
  %v5477 = vsel %vm302, %v4429, 0
  %v5480 = vsel %vm302, %v4430, 0
  %5482 = vmatpush.msra.mxu0 0.0
  %5483 = vmatpush.msra.mxu0 0.0
  %5484 = vmatpush.msra.mxu0 0.0
  %5485 = vmatpush.msra.mxu0 0.0
  %5486 = vmatpush.msra.mxu0 0.0
  %5487 = vmatpush.msra.mxu0 0.0
  %5488 = vmatpush.msra.mxu0 0.0
  %5489 = vmatpush.msra.mxu0 0.0
  %5490 = vmatpush.msra.mxu0 0.0
  %5491 = vmatpush.msra.mxu0 0.0
  %5492 = vmatpush.msra.mxu0 0.0
  %5493 = vmatpush.msra.mxu0 0.0
  %5494 = vmatpush.msra.mxu0 0.0
  %5495 = vmatpush.msra.mxu0 0.0
  %5496 = vmatpush.msra.mxu0 0.0
  %5497 = vmatpush.msra.mxu0 %v277
  %5498 = vmatmul.f32.gmra.mxu0 %v5471
  %v5499 = vpop.f32.mrf.mxu0
  %v5500 = vadd.f32 0.0, %v5499
  %5501 = vmatmul.f32.gmra.mxu0 %v5474
  %v5502 = vpop.f32.mrf.mxu0
  %v5503 = vadd.f32 0.0, %v5502
  %5504 = vmatmul.f32.gmra.mxu0 %v5477
  %v5505 = vpop.f32.mrf.mxu0
  %v5506 = vadd.f32 0.0, %v5505
  %5507 = vmatmul.f32.gmra.mxu0 %v5480
  %v5508 = vpop.f32.mrf.mxu0
  %v5509 = vadd.f32 0.0, %v5508
  %5510 = vdwg.mxu0
  %v5512 = vsel %vm302, %v4431, 0
  %v5515 = vsel %vm302, %v4432, 0
  %v5518 = vsel %vm302, %v4433, 0
  %v5521 = vsel %vm302, %v4434, 0
  %5523 = vmatpush.msra.mxu0 0.0
  %5524 = vmatpush.msra.mxu0 0.0
  %5525 = vmatpush.msra.mxu0 0.0
  %5526 = vmatpush.msra.mxu0 0.0
  %5527 = vmatpush.msra.mxu0 0.0
  %5528 = vmatpush.msra.mxu0 0.0
  %5529 = vmatpush.msra.mxu0 0.0
  %5530 = vmatpush.msra.mxu0 0.0
  %5531 = vmatpush.msra.mxu0 0.0
  %5532 = vmatpush.msra.mxu0 0.0
  %5533 = vmatpush.msra.mxu0 0.0
  %5534 = vmatpush.msra.mxu0 0.0
  %5535 = vmatpush.msra.mxu0 0.0
  %5536 = vmatpush.msra.mxu0 0.0
  %5537 = vmatpush.msra.mxu0 0.0
  %5538 = vmatpush.msra.mxu0 %v278
  %5539 = vmatmul.f32.gmra.mxu0 %v5512
  %v5540 = vpop.f32.mrf.mxu0
  %v5541 = vadd.f32 0.0, %v5540
  %5542 = vmatmul.f32.gmra.mxu0 %v5515
  %v5543 = vpop.f32.mrf.mxu0
  %v5544 = vadd.f32 0.0, %v5543
  %5545 = vmatmul.f32.gmra.mxu0 %v5518
  %v5546 = vpop.f32.mrf.mxu0
  %v5547 = vadd.f32 0.0, %v5546
  %5548 = vmatmul.f32.gmra.mxu0 %v5521
  %v5549 = vpop.f32.mrf.mxu0
  %v5550 = vadd.f32 0.0, %v5549
  %5551 = vdwg.mxu0
  %v5553 = vsel %vm302, %v4435, 0
  %v5556 = vsel %vm302, %v4436, 0
  %v5559 = vsel %vm302, %v4437, 0
  %v5562 = vsel %vm302, %v4438, 0
  %5564 = vmatpush.msra.mxu0 0.0
  %5565 = vmatpush.msra.mxu0 0.0
  %5566 = vmatpush.msra.mxu0 0.0
  %5567 = vmatpush.msra.mxu0 0.0
  %5568 = vmatpush.msra.mxu0 0.0
  %5569 = vmatpush.msra.mxu0 0.0
  %5570 = vmatpush.msra.mxu0 0.0
  %5571 = vmatpush.msra.mxu0 0.0
  %5572 = vmatpush.msra.mxu0 0.0
  %5573 = vmatpush.msra.mxu0 0.0
  %5574 = vmatpush.msra.mxu0 0.0
  %5575 = vmatpush.msra.mxu0 0.0
  %5576 = vmatpush.msra.mxu0 0.0
  %5577 = vmatpush.msra.mxu0 0.0
  %5578 = vmatpush.msra.mxu0 0.0
  %5579 = vmatpush.msra.mxu0 %v279
  %5580 = vmatmul.f32.gmra.mxu0 %v5553
  %v5581 = vpop.f32.mrf.mxu0
  %v5582 = vadd.f32 0.0, %v5581
  %5583 = vmatmul.f32.gmra.mxu0 %v5556
  %v5584 = vpop.f32.mrf.mxu0
  %v5585 = vadd.f32 0.0, %v5584
  %5586 = vmatmul.f32.gmra.mxu0 %v5559
  %v5587 = vpop.f32.mrf.mxu0
  %v5588 = vadd.f32 0.0, %v5587
  %5589 = vmatmul.f32.gmra.mxu0 %v5562
  %v5590 = vpop.f32.mrf.mxu0
  %v5591 = vadd.f32 0.0, %v5590
  %5592 = vdwg.mxu0
  %v5594 = vsel %vm302, %v4439, 0
  %v5597 = vsel %vm302, %v4440, 0
  %v5600 = vsel %vm302, %v4441, 0
  %v5603 = vsel %vm302, %v4442, 0
  %5605 = vmatpush.msra.mxu0 0.0
  %5606 = vmatpush.msra.mxu0 0.0
  %5607 = vmatpush.msra.mxu0 0.0
  %5608 = vmatpush.msra.mxu0 0.0
  %5609 = vmatpush.msra.mxu0 0.0
  %5610 = vmatpush.msra.mxu0 0.0
  %5611 = vmatpush.msra.mxu0 0.0
  %5612 = vmatpush.msra.mxu0 0.0
  %5613 = vmatpush.msra.mxu0 0.0
  %5614 = vmatpush.msra.mxu0 0.0
  %5615 = vmatpush.msra.mxu0 0.0
  %5616 = vmatpush.msra.mxu0 0.0
  %5617 = vmatpush.msra.mxu0 0.0
  %5618 = vmatpush.msra.mxu0 0.0
  %5619 = vmatpush.msra.mxu0 0.0
  %5620 = vmatpush.msra.mxu0 %v280
  %5621 = vmatmul.f32.gmra.mxu0 %v5594
  %v5622 = vpop.f32.mrf.mxu0
  %v5623 = vadd.f32 0.0, %v5622
  %5624 = vmatmul.f32.gmra.mxu0 %v5597
  %v5625 = vpop.f32.mrf.mxu0
  %v5626 = vadd.f32 0.0, %v5625
  %5627 = vmatmul.f32.gmra.mxu0 %v5600
  %v5628 = vpop.f32.mrf.mxu0
  %v5629 = vadd.f32 0.0, %v5628
  %5630 = vmatmul.f32.gmra.mxu0 %v5603
  %v5631 = vpop.f32.mrf.mxu0
  %v5632 = vadd.f32 0.0, %v5631
  %5633 = vdwg.mxu0
  %v5635 = vsel %vm302, %v4443, 0
  %v5638 = vsel %vm302, %v4444, 0
  %v5641 = vsel %vm302, %v4445, 0
  %v5644 = vsel %vm302, %v4446, 0
  %5646 = vmatpush.msra.mxu0 0.0
  %5647 = vmatpush.msra.mxu0 0.0
  %5648 = vmatpush.msra.mxu0 0.0
  %5649 = vmatpush.msra.mxu0 0.0
  %5650 = vmatpush.msra.mxu0 0.0
  %5651 = vmatpush.msra.mxu0 0.0
  %5652 = vmatpush.msra.mxu0 0.0
  %5653 = vmatpush.msra.mxu0 0.0
  %5654 = vmatpush.msra.mxu0 0.0
  %5655 = vmatpush.msra.mxu0 0.0
  %5656 = vmatpush.msra.mxu0 0.0
  %5657 = vmatpush.msra.mxu0 0.0
  %5658 = vmatpush.msra.mxu0 0.0
  %5659 = vmatpush.msra.mxu0 0.0
  %5660 = vmatpush.msra.mxu0 0.0
  %5661 = vmatpush.msra.mxu0 %v281
  %5662 = vmatmul.f32.gmra.mxu0 %v5635
  %v5663 = vpop.f32.mrf.mxu0
  %v5664 = vadd.f32 0.0, %v5663
  %5665 = vmatmul.f32.gmra.mxu0 %v5638
  %v5666 = vpop.f32.mrf.mxu0
  %v5667 = vadd.f32 0.0, %v5666
  %5668 = vmatmul.f32.gmra.mxu0 %v5641
  %v5669 = vpop.f32.mrf.mxu0
  %v5670 = vadd.f32 0.0, %v5669
  %5671 = vmatmul.f32.gmra.mxu0 %v5644
  %v5672 = vpop.f32.mrf.mxu0
  %v5673 = vadd.f32 0.0, %v5672
  %5674 = vdwg.mxu0
  %v5676 = vsel %vm302, %v4447, 0
  %v5679 = vsel %vm302, %v4448, 0
  %v5682 = vsel %vm302, %v4449, 0
  %v5685 = vsel %vm302, %v4450, 0
  %5687 = vmatpush.msra.mxu0 0.0
  %5688 = vmatpush.msra.mxu0 0.0
  %5689 = vmatpush.msra.mxu0 0.0
  %5690 = vmatpush.msra.mxu0 0.0
  %5691 = vmatpush.msra.mxu0 0.0
  %5692 = vmatpush.msra.mxu0 0.0
  %5693 = vmatpush.msra.mxu0 0.0
  %5694 = vmatpush.msra.mxu0 0.0
  %5695 = vmatpush.msra.mxu0 0.0
  %5696 = vmatpush.msra.mxu0 0.0
  %5697 = vmatpush.msra.mxu0 0.0
  %5698 = vmatpush.msra.mxu0 0.0
  %5699 = vmatpush.msra.mxu0 0.0
  %5700 = vmatpush.msra.mxu0 0.0
  %5701 = vmatpush.msra.mxu0 0.0
  %5702 = vmatpush.msra.mxu0 %v282
  %5703 = vmatmul.f32.gmra.mxu0 %v5676
  %v5704 = vpop.f32.mrf.mxu0
  %v5705 = vadd.f32 0.0, %v5704
  %5706 = vmatmul.f32.gmra.mxu0 %v5679
  %v5707 = vpop.f32.mrf.mxu0
  %v5708 = vadd.f32 0.0, %v5707
  %5709 = vmatmul.f32.gmra.mxu0 %v5682
  %v5710 = vpop.f32.mrf.mxu0
  %v5711 = vadd.f32 0.0, %v5710
  %5712 = vmatmul.f32.gmra.mxu0 %v5685
  %v5713 = vpop.f32.mrf.mxu0
  %v5714 = vadd.f32 0.0, %v5713
  %5715 = vdwg.mxu0
  %v5717 = vsel %vm302, %v4451, 0
  %v5720 = vsel %vm302, %v4452, 0
  %v5723 = vsel %vm302, %v4453, 0
  %v5726 = vsel %vm302, %v4454, 0
  %5728 = vmatpush.msra.mxu0 0.0
  %5729 = vmatpush.msra.mxu0 0.0
  %5730 = vmatpush.msra.mxu0 0.0
  %5731 = vmatpush.msra.mxu0 0.0
  %5732 = vmatpush.msra.mxu0 0.0
  %5733 = vmatpush.msra.mxu0 0.0
  %5734 = vmatpush.msra.mxu0 0.0
  %5735 = vmatpush.msra.mxu0 0.0
  %5736 = vmatpush.msra.mxu0 0.0
  %5737 = vmatpush.msra.mxu0 0.0
  %5738 = vmatpush.msra.mxu0 0.0
  %5739 = vmatpush.msra.mxu0 0.0
  %5740 = vmatpush.msra.mxu0 0.0
  %5741 = vmatpush.msra.mxu0 0.0
  %5742 = vmatpush.msra.mxu0 0.0
  %5743 = vmatpush.msra.mxu0 %v283
  %5744 = vmatmul.f32.gmra.mxu0 %v5717
  %v5745 = vpop.f32.mrf.mxu0
  %v5746 = vadd.f32 0.0, %v5745
  %5747 = vmatmul.f32.gmra.mxu0 %v5720
  %v5748 = vpop.f32.mrf.mxu0
  %v5749 = vadd.f32 0.0, %v5748
  %5750 = vmatmul.f32.gmra.mxu0 %v5723
  %v5751 = vpop.f32.mrf.mxu0
  %v5752 = vadd.f32 0.0, %v5751
  %5753 = vmatmul.f32.gmra.mxu0 %v5726
  %v5754 = vpop.f32.mrf.mxu0
  %v5755 = vadd.f32 0.0, %v5754
  %5756 = vdwg.mxu0
  %v5758 = vsel %vm302, %v4455, 0
  %v5761 = vsel %vm302, %v4456, 0
  %v5764 = vsel %vm302, %v4457, 0
  %v5767 = vsel %vm302, %v4458, 0
  %5769 = vmatpush.msra.mxu0 0.0
  %5770 = vmatpush.msra.mxu0 0.0
  %5771 = vmatpush.msra.mxu0 0.0
  %5772 = vmatpush.msra.mxu0 0.0
  %5773 = vmatpush.msra.mxu0 0.0
  %5774 = vmatpush.msra.mxu0 0.0
  %5775 = vmatpush.msra.mxu0 0.0
  %5776 = vmatpush.msra.mxu0 0.0
  %5777 = vmatpush.msra.mxu0 0.0
  %5778 = vmatpush.msra.mxu0 0.0
  %5779 = vmatpush.msra.mxu0 0.0
  %5780 = vmatpush.msra.mxu0 0.0
  %5781 = vmatpush.msra.mxu0 0.0
  %5782 = vmatpush.msra.mxu0 0.0
  %5783 = vmatpush.msra.mxu0 0.0
  %5784 = vmatpush.msra.mxu0 %v284
  %5785 = vmatmul.f32.gmra.mxu0 %v5758
  %v5786 = vpop.f32.mrf.mxu0
  %v5787 = vadd.f32 0.0, %v5786
  %5788 = vmatmul.f32.gmra.mxu0 %v5761
  %v5789 = vpop.f32.mrf.mxu0
  %v5790 = vadd.f32 0.0, %v5789
  %5791 = vmatmul.f32.gmra.mxu0 %v5764
  %v5792 = vpop.f32.mrf.mxu0
  %v5793 = vadd.f32 0.0, %v5792
  %5794 = vmatmul.f32.gmra.mxu0 %v5767
  %v5795 = vpop.f32.mrf.mxu0
  %v5796 = vadd.f32 0.0, %v5795
  %5797 = vdwg.mxu0
  %v5799 = vsel %vm302, %v4459, 0
  %v5802 = vsel %vm302, %v4460, 0
  %v5805 = vsel %vm302, %v4461, 0
  %v5808 = vsel %vm302, %v4462, 0
  %5810 = vmatpush.msra.mxu0 0.0
  %5811 = vmatpush.msra.mxu0 0.0
  %5812 = vmatpush.msra.mxu0 0.0
  %5813 = vmatpush.msra.mxu0 0.0
  %5814 = vmatpush.msra.mxu0 0.0
  %5815 = vmatpush.msra.mxu0 0.0
  %5816 = vmatpush.msra.mxu0 0.0
  %5817 = vmatpush.msra.mxu0 0.0
  %5818 = vmatpush.msra.mxu0 0.0
  %5819 = vmatpush.msra.mxu0 0.0
  %5820 = vmatpush.msra.mxu0 0.0
  %5821 = vmatpush.msra.mxu0 0.0
  %5822 = vmatpush.msra.mxu0 0.0
  %5823 = vmatpush.msra.mxu0 0.0
  %5824 = vmatpush.msra.mxu0 0.0
  %5825 = vmatpush.msra.mxu0 %v285
  %5826 = vmatmul.f32.gmra.mxu0 %v5799
  %v5827 = vpop.f32.mrf.mxu0
  %v5828 = vadd.f32 0.0, %v5827
  %5829 = vmatmul.f32.gmra.mxu0 %v5802
  %v5830 = vpop.f32.mrf.mxu0
  %v5831 = vadd.f32 0.0, %v5830
  %5832 = vmatmul.f32.gmra.mxu0 %v5805
  %v5833 = vpop.f32.mrf.mxu0
  %v5834 = vadd.f32 0.0, %v5833
  %5835 = vmatmul.f32.gmra.mxu0 %v5808
  %v5836 = vpop.f32.mrf.mxu0
  %v5837 = vadd.f32 0.0, %v5836
  %5838 = vdwg.mxu0
  %v5840 = vsel %vm302, %v4463, 0
  %v5843 = vsel %vm302, %v4464, 0
  %v5846 = vsel %vm302, %v4465, 0
  %v5849 = vsel %vm302, %v4466, 0
  %5851 = vmatpush.msra.mxu0 0.0
  %5852 = vmatpush.msra.mxu0 0.0
  %5853 = vmatpush.msra.mxu0 0.0
  %5854 = vmatpush.msra.mxu0 0.0
  %5855 = vmatpush.msra.mxu0 0.0
  %5856 = vmatpush.msra.mxu0 0.0
  %5857 = vmatpush.msra.mxu0 0.0
  %5858 = vmatpush.msra.mxu0 0.0
  %5859 = vmatpush.msra.mxu0 0.0
  %5860 = vmatpush.msra.mxu0 0.0
  %5861 = vmatpush.msra.mxu0 0.0
  %5862 = vmatpush.msra.mxu0 0.0
  %5863 = vmatpush.msra.mxu0 0.0
  %5864 = vmatpush.msra.mxu0 0.0
  %5865 = vmatpush.msra.mxu0 0.0
  %5866 = vmatpush.msra.mxu0 %v286
  %5867 = vmatmul.f32.gmra.mxu0 %v5840
  %v5868 = vpop.f32.mrf.mxu0
  %v5869 = vadd.f32 0.0, %v5868
  %5870 = vmatmul.f32.gmra.mxu0 %v5843
  %v5871 = vpop.f32.mrf.mxu0
  %v5872 = vadd.f32 0.0, %v5871
  %5873 = vmatmul.f32.gmra.mxu0 %v5846
  %v5874 = vpop.f32.mrf.mxu0
  %v5875 = vadd.f32 0.0, %v5874
  %5876 = vmatmul.f32.gmra.mxu0 %v5849
  %v5877 = vpop.f32.mrf.mxu0
  %v5878 = vadd.f32 0.0, %v5877
  %5879 = vdwg.mxu0
  %v5881 = vsel %vm302, %v4467, 0
  %v5884 = vsel %vm302, %v4468, 0
  %v5887 = vsel %vm302, %v4469, 0
  %v5890 = vsel %vm302, %v4470, 0
  %5892 = vmatpush.msra.mxu0 0.0
  %5893 = vmatpush.msra.mxu0 0.0
  %5894 = vmatpush.msra.mxu0 0.0
  %5895 = vmatpush.msra.mxu0 0.0
  %5896 = vmatpush.msra.mxu0 0.0
  %5897 = vmatpush.msra.mxu0 0.0
  %5898 = vmatpush.msra.mxu0 0.0
  %5899 = vmatpush.msra.mxu0 0.0
  %5900 = vmatpush.msra.mxu0 0.0
  %5901 = vmatpush.msra.mxu0 0.0
  %5902 = vmatpush.msra.mxu0 0.0
  %5903 = vmatpush.msra.mxu0 0.0
  %5904 = vmatpush.msra.mxu0 0.0
  %5905 = vmatpush.msra.mxu0 0.0
  %5906 = vmatpush.msra.mxu0 0.0
  %5907 = vmatpush.msra.mxu0 %v287
  %5908 = vmatmul.f32.gmra.mxu0 %v5881
  %v5909 = vpop.f32.mrf.mxu0
  %v5910 = vadd.f32 0.0, %v5909
  %5911 = vmatmul.f32.gmra.mxu0 %v5884
  %v5912 = vpop.f32.mrf.mxu0
  %v5913 = vadd.f32 0.0, %v5912
  %5914 = vmatmul.f32.gmra.mxu0 %v5887
  %v5915 = vpop.f32.mrf.mxu0
  %v5916 = vadd.f32 0.0, %v5915
  %5917 = vmatmul.f32.gmra.mxu0 %v5890
  %v5918 = vpop.f32.mrf.mxu0
  %v5919 = vadd.f32 0.0, %v5918
  %5920 = vdwg.mxu0
  %v5922 = vsel %vm302, %v4471, 0
  %v5925 = vsel %vm302, %v4472, 0
  %v5928 = vsel %vm302, %v4473, 0
  %v5931 = vsel %vm302, %v4474, 0
  %5933 = vmatpush.msra.mxu0 0.0
  %5934 = vmatpush.msra.mxu0 0.0
  %5935 = vmatpush.msra.mxu0 0.0
  %5936 = vmatpush.msra.mxu0 0.0
  %5937 = vmatpush.msra.mxu0 0.0
  %5938 = vmatpush.msra.mxu0 0.0
  %5939 = vmatpush.msra.mxu0 0.0
  %5940 = vmatpush.msra.mxu0 0.0
  %5941 = vmatpush.msra.mxu0 0.0
  %5942 = vmatpush.msra.mxu0 0.0
  %5943 = vmatpush.msra.mxu0 0.0
  %5944 = vmatpush.msra.mxu0 0.0
  %5945 = vmatpush.msra.mxu0 0.0
  %5946 = vmatpush.msra.mxu0 0.0
  %5947 = vmatpush.msra.mxu0 0.0
  %5948 = vmatpush.msra.mxu0 %v288
  %5949 = vmatmul.f32.gmra.mxu0 %v5922
  %v5950 = vpop.f32.mrf.mxu0
  %v5951 = vadd.f32 0.0, %v5950
  %5952 = vmatmul.f32.gmra.mxu0 %v5925
  %v5953 = vpop.f32.mrf.mxu0
  %v5954 = vadd.f32 0.0, %v5953
  %5955 = vmatmul.f32.gmra.mxu0 %v5928
  %v5956 = vpop.f32.mrf.mxu0
  %v5957 = vadd.f32 0.0, %v5956
  %5958 = vmatmul.f32.gmra.mxu0 %v5931
  %v5959 = vpop.f32.mrf.mxu0
  %v5960 = vadd.f32 0.0, %v5959
  %5961 = vdwg.mxu0
  %v5963 = vsel %vm302, %v4475, 0
  %v5966 = vsel %vm302, %v4476, 0
  %v5969 = vsel %vm302, %v4477, 0
  %v5972 = vsel %vm302, %v4478, 0
  %5974 = vmatpush.msra.mxu0 0.0
  %5975 = vmatpush.msra.mxu0 0.0
  %5976 = vmatpush.msra.mxu0 0.0
  %5977 = vmatpush.msra.mxu0 0.0
  %5978 = vmatpush.msra.mxu0 0.0
  %5979 = vmatpush.msra.mxu0 0.0
  %5980 = vmatpush.msra.mxu0 0.0
  %5981 = vmatpush.msra.mxu0 0.0
  %5982 = vmatpush.msra.mxu0 0.0
  %5983 = vmatpush.msra.mxu0 0.0
  %5984 = vmatpush.msra.mxu0 0.0
  %5985 = vmatpush.msra.mxu0 0.0
  %5986 = vmatpush.msra.mxu0 0.0
  %5987 = vmatpush.msra.mxu0 0.0
  %5988 = vmatpush.msra.mxu0 0.0
  %5989 = vmatpush.msra.mxu0 %v289
  %5990 = vmatmul.f32.gmra.mxu0 %v5963
  %v5991 = vpop.f32.mrf.mxu0
  %v5992 = vadd.f32 0.0, %v5991
  %5993 = vmatmul.f32.gmra.mxu0 %v5966
  %v5994 = vpop.f32.mrf.mxu0
  %v5995 = vadd.f32 0.0, %v5994
  %5996 = vmatmul.f32.gmra.mxu0 %v5969
  %v5997 = vpop.f32.mrf.mxu0
  %v5998 = vadd.f32 0.0, %v5997
  %5999 = vmatmul.f32.gmra.mxu0 %v5972
  %v6000 = vpop.f32.mrf.mxu0
  %v6001 = vadd.f32 0.0, %v6000
  %6002 = vdwg.mxu0
  %v6004 = vsel %vm302, %v4479, 0
  %v6007 = vsel %vm302, %v4480, 0
  %v6010 = vsel %vm302, %v4481, 0
  %v6013 = vsel %vm302, %v4482, 0
  %6015 = vmatpush.msra.mxu0 0.0
  %6016 = vmatpush.msra.mxu0 0.0
  %6017 = vmatpush.msra.mxu0 0.0
  %6018 = vmatpush.msra.mxu0 0.0
  %6019 = vmatpush.msra.mxu0 0.0
  %6020 = vmatpush.msra.mxu0 0.0
  %6021 = vmatpush.msra.mxu0 0.0
  %6022 = vmatpush.msra.mxu0 0.0
  %6023 = vmatpush.msra.mxu0 0.0
  %6024 = vmatpush.msra.mxu0 0.0
  %6025 = vmatpush.msra.mxu0 0.0
  %6026 = vmatpush.msra.mxu0 0.0
  %6027 = vmatpush.msra.mxu0 0.0
  %6028 = vmatpush.msra.mxu0 0.0
  %6029 = vmatpush.msra.mxu0 0.0
  %6030 = vmatpush.msra.mxu0 %v290
  %6031 = vmatmul.f32.gmra.mxu0 %v6004
  %v6032 = vpop.f32.mrf.mxu0
  %v6033 = vadd.f32 0.0, %v6032
  %6034 = vmatmul.f32.gmra.mxu0 %v6007
  %v6035 = vpop.f32.mrf.mxu0
  %v6036 = vadd.f32 0.0, %v6035
  %6037 = vmatmul.f32.gmra.mxu0 %v6010
  %v6038 = vpop.f32.mrf.mxu0
  %v6039 = vadd.f32 0.0, %v6038
  %6040 = vmatmul.f32.gmra.mxu0 %v6013
  %v6041 = vpop.f32.mrf.mxu0
  %v6042 = vadd.f32 0.0, %v6041
  %6043 = vdwg.mxu0
  %v6045 = vsel %vm302, %v4483, 0
  %v6048 = vsel %vm302, %v4484, 0
  %v6051 = vsel %vm302, %v4485, 0
  %v6054 = vsel %vm302, %v4486, 0
  %6056 = vmatpush.msra.mxu0 0.0
  %6057 = vmatpush.msra.mxu0 0.0
  %6058 = vmatpush.msra.mxu0 0.0
  %6059 = vmatpush.msra.mxu0 0.0
  %6060 = vmatpush.msra.mxu0 0.0
  %6061 = vmatpush.msra.mxu0 0.0
  %6062 = vmatpush.msra.mxu0 0.0
  %6063 = vmatpush.msra.mxu0 0.0
  %6064 = vmatpush.msra.mxu0 0.0
  %6065 = vmatpush.msra.mxu0 0.0
  %6066 = vmatpush.msra.mxu0 0.0
  %6067 = vmatpush.msra.mxu0 0.0
  %6068 = vmatpush.msra.mxu0 0.0
  %6069 = vmatpush.msra.mxu0 0.0
  %6070 = vmatpush.msra.mxu0 0.0
  %6071 = vmatpush.msra.mxu0 %v291
  %6072 = vmatmul.f32.gmra.mxu0 %v6045
  %v6073 = vpop.f32.mrf.mxu0
  %v6074 = vadd.f32 0.0, %v6073
  %6075 = vmatmul.f32.gmra.mxu0 %v6048
  %v6076 = vpop.f32.mrf.mxu0
  %v6077 = vadd.f32 0.0, %v6076
  %6078 = vmatmul.f32.gmra.mxu0 %v6051
  %v6079 = vpop.f32.mrf.mxu0
  %v6080 = vadd.f32 0.0, %v6079
  %6081 = vmatmul.f32.gmra.mxu0 %v6054
  %v6082 = vpop.f32.mrf.mxu0
  %v6083 = vadd.f32 0.0, %v6082
  %6084 = vdwg.mxu0
  %v6086 = vsel %vm302, %v4487, 0
  %v6089 = vsel %vm302, %v4488, 0
  %v6092 = vsel %vm302, %v4489, 0
  %v6095 = vsel %vm302, %v4490, 0
  %6097 = vmatpush.msra.mxu0 0.0
  %6098 = vmatpush.msra.mxu0 0.0
  %6099 = vmatpush.msra.mxu0 0.0
  %6100 = vmatpush.msra.mxu0 0.0
  %6101 = vmatpush.msra.mxu0 0.0
  %6102 = vmatpush.msra.mxu0 0.0
  %6103 = vmatpush.msra.mxu0 0.0
  %6104 = vmatpush.msra.mxu0 0.0
  %6105 = vmatpush.msra.mxu0 0.0
  %6106 = vmatpush.msra.mxu0 0.0
  %6107 = vmatpush.msra.mxu0 0.0
  %6108 = vmatpush.msra.mxu0 0.0
  %6109 = vmatpush.msra.mxu0 0.0
  %6110 = vmatpush.msra.mxu0 0.0
  %6111 = vmatpush.msra.mxu0 0.0
  %6112 = vmatpush.msra.mxu0 %v292
  %6113 = vmatmul.f32.gmra.mxu0 %v6086
  %v6114 = vpop.f32.mrf.mxu0
  %v6115 = vadd.f32 0.0, %v6114
  %6116 = vmatmul.f32.gmra.mxu0 %v6089
  %v6117 = vpop.f32.mrf.mxu0
  %v6118 = vadd.f32 0.0, %v6117
  %6119 = vmatmul.f32.gmra.mxu0 %v6092
  %v6120 = vpop.f32.mrf.mxu0
  %v6121 = vadd.f32 0.0, %v6120
  %6122 = vmatmul.f32.gmra.mxu0 %v6095
  %v6123 = vpop.f32.mrf.mxu0
  %v6124 = vadd.f32 0.0, %v6123
  %6125 = vdwg.mxu0
  %v6127 = vsel %vm302, %v4491, 0
  %v6130 = vsel %vm302, %v4492, 0
  %v6133 = vsel %vm302, %v4493, 0
  %v6136 = vsel %vm302, %v4494, 0
  %6138 = vmatpush.msra.mxu0 0.0
  %6139 = vmatpush.msra.mxu0 0.0
  %6140 = vmatpush.msra.mxu0 0.0
  %6141 = vmatpush.msra.mxu0 0.0
  %6142 = vmatpush.msra.mxu0 0.0
  %6143 = vmatpush.msra.mxu0 0.0
  %6144 = vmatpush.msra.mxu0 0.0
  %6145 = vmatpush.msra.mxu0 0.0
  %6146 = vmatpush.msra.mxu0 0.0
  %6147 = vmatpush.msra.mxu0 0.0
  %6148 = vmatpush.msra.mxu0 0.0
  %6149 = vmatpush.msra.mxu0 0.0
  %6150 = vmatpush.msra.mxu0 0.0
  %6151 = vmatpush.msra.mxu0 0.0
  %6152 = vmatpush.msra.mxu0 0.0
  %6153 = vmatpush.msra.mxu0 %v293
  %6154 = vmatmul.f32.gmra.mxu0 %v6127
  %v6155 = vpop.f32.mrf.mxu0
  %v6156 = vadd.f32 0.0, %v6155
  %6157 = vmatmul.f32.gmra.mxu0 %v6130
  %v6158 = vpop.f32.mrf.mxu0
  %v6159 = vadd.f32 0.0, %v6158
  %6160 = vmatmul.f32.gmra.mxu0 %v6133
  %v6161 = vpop.f32.mrf.mxu0
  %v6162 = vadd.f32 0.0, %v6161
  %6163 = vmatmul.f32.gmra.mxu0 %v6136
  %v6164 = vpop.f32.mrf.mxu0
  %v6165 = vadd.f32 0.0, %v6164
  %6166 = vdwg.mxu0
  %v6168 = vsel %vm302, %v4495, 0
  %v6171 = vsel %vm302, %v4496, 0
  %v6174 = vsel %vm302, %v4497, 0
  %v6177 = vsel %vm302, %v4498, 0
  %6179 = vmatpush.msra.mxu0 0.0
  %6180 = vmatpush.msra.mxu0 0.0
  %6181 = vmatpush.msra.mxu0 0.0
  %6182 = vmatpush.msra.mxu0 0.0
  %6183 = vmatpush.msra.mxu0 0.0
  %6184 = vmatpush.msra.mxu0 0.0
  %6185 = vmatpush.msra.mxu0 0.0
  %6186 = vmatpush.msra.mxu0 0.0
  %6187 = vmatpush.msra.mxu0 0.0
  %6188 = vmatpush.msra.mxu0 0.0
  %6189 = vmatpush.msra.mxu0 0.0
  %6190 = vmatpush.msra.mxu0 0.0
  %6191 = vmatpush.msra.mxu0 0.0
  %6192 = vmatpush.msra.mxu0 0.0
  %6193 = vmatpush.msra.mxu0 0.0
  %6194 = vmatpush.msra.mxu0 %v294
  %6195 = vmatmul.f32.gmra.mxu0 %v6168
  %v6196 = vpop.f32.mrf.mxu0
  %v6197 = vadd.f32 0.0, %v6196
  %6198 = vmatmul.f32.gmra.mxu0 %v6171
  %v6199 = vpop.f32.mrf.mxu0
  %v6200 = vadd.f32 0.0, %v6199
  %6201 = vmatmul.f32.gmra.mxu0 %v6174
  %v6202 = vpop.f32.mrf.mxu0
  %v6203 = vadd.f32 0.0, %v6202
  %6204 = vmatmul.f32.gmra.mxu0 %v6177
  %v6205 = vpop.f32.mrf.mxu0
  %v6206 = vadd.f32 0.0, %v6205
  %6207 = vdwg.mxu0
  %v6209 = vsel %vm302, %v4499, 0
  %v6212 = vsel %vm302, %v4500, 0
  %v6215 = vsel %vm302, %v4501, 0
  %v6218 = vsel %vm302, %v4502, 0
  %6220 = vmatpush.msra.mxu0 0.0
  %6221 = vmatpush.msra.mxu0 0.0
  %6222 = vmatpush.msra.mxu0 0.0
  %6223 = vmatpush.msra.mxu0 0.0
  %6224 = vmatpush.msra.mxu0 0.0
  %6225 = vmatpush.msra.mxu0 0.0
  %6226 = vmatpush.msra.mxu0 0.0
  %6227 = vmatpush.msra.mxu0 0.0
  %6228 = vmatpush.msra.mxu0 0.0
  %6229 = vmatpush.msra.mxu0 0.0
  %6230 = vmatpush.msra.mxu0 0.0
  %6231 = vmatpush.msra.mxu0 0.0
  %6232 = vmatpush.msra.mxu0 0.0
  %6233 = vmatpush.msra.mxu0 0.0
  %6234 = vmatpush.msra.mxu0 0.0
  %6235 = vmatpush.msra.mxu0 %v295
  %6236 = vmatmul.f32.gmra.mxu0 %v6209
  %v6237 = vpop.f32.mrf.mxu0
  %v6238 = vadd.f32 0.0, %v6237
  %6239 = vmatmul.f32.gmra.mxu0 %v6212
  %v6240 = vpop.f32.mrf.mxu0
  %v6241 = vadd.f32 0.0, %v6240
  %6242 = vmatmul.f32.gmra.mxu0 %v6215
  %v6243 = vpop.f32.mrf.mxu0
  %v6244 = vadd.f32 0.0, %v6243
  %6245 = vmatmul.f32.gmra.mxu0 %v6218
  %v6246 = vpop.f32.mrf.mxu0
  %v6247 = vadd.f32 0.0, %v6246
  %6248 = vdwg.mxu0
  %v6250 = vsel %vm302, %v4503, 0
  %v6253 = vsel %vm302, %v4504, 0
  %v6256 = vsel %vm302, %v4505, 0
  %v6259 = vsel %vm302, %v4506, 0
  %6261 = vmatpush.msra.mxu0 0.0
  %6262 = vmatpush.msra.mxu0 0.0
  %6263 = vmatpush.msra.mxu0 0.0
  %6264 = vmatpush.msra.mxu0 0.0
  %6265 = vmatpush.msra.mxu0 0.0
  %6266 = vmatpush.msra.mxu0 0.0
  %6267 = vmatpush.msra.mxu0 0.0
  %6268 = vmatpush.msra.mxu0 0.0
  %6269 = vmatpush.msra.mxu0 0.0
  %6270 = vmatpush.msra.mxu0 0.0
  %6271 = vmatpush.msra.mxu0 0.0
  %6272 = vmatpush.msra.mxu0 0.0
  %6273 = vmatpush.msra.mxu0 0.0
  %6274 = vmatpush.msra.mxu0 0.0
  %6275 = vmatpush.msra.mxu0 0.0
  %6276 = vmatpush.msra.mxu0 %v296
  %6277 = vmatmul.f32.gmra.mxu0 %v6250
  %v6278 = vpop.f32.mrf.mxu0
  %v6279 = vadd.f32 0.0, %v6278
  %6280 = vmatmul.f32.gmra.mxu0 %v6253
  %v6281 = vpop.f32.mrf.mxu0
  %v6282 = vadd.f32 0.0, %v6281
  %6283 = vmatmul.f32.gmra.mxu0 %v6256
  %v6284 = vpop.f32.mrf.mxu0
  %v6285 = vadd.f32 0.0, %v6284
  %6286 = vmatmul.f32.gmra.mxu0 %v6259
  %v6287 = vpop.f32.mrf.mxu0
  %v6288 = vadd.f32 0.0, %v6287
  %6289 = vdwg.mxu0
  %v6291 = vsel %vm302, %v4507, 0
  %v6294 = vsel %vm302, %v4508, 0
  %v6297 = vsel %vm302, %v4509, 0
  %v6300 = vsel %vm302, %v4510, 0
  %6302 = vmatpush.msra.mxu0 0.0
  %6303 = vmatpush.msra.mxu0 0.0
  %6304 = vmatpush.msra.mxu0 0.0
  %6305 = vmatpush.msra.mxu0 0.0
  %6306 = vmatpush.msra.mxu0 0.0
  %6307 = vmatpush.msra.mxu0 0.0
  %6308 = vmatpush.msra.mxu0 0.0
  %6309 = vmatpush.msra.mxu0 0.0
  %6310 = vmatpush.msra.mxu0 0.0
  %6311 = vmatpush.msra.mxu0 0.0
  %6312 = vmatpush.msra.mxu0 0.0
  %6313 = vmatpush.msra.mxu0 0.0
  %6314 = vmatpush.msra.mxu0 0.0
  %6315 = vmatpush.msra.mxu0 0.0
  %6316 = vmatpush.msra.mxu0 0.0
  %6317 = vmatpush.msra.mxu0 %v297
  %6318 = vmatmul.f32.gmra.mxu0 %v6291
  %v6319 = vpop.f32.mrf.mxu0
  %v6320 = vadd.f32 0.0, %v6319
  %6321 = vmatmul.f32.gmra.mxu0 %v6294
  %v6322 = vpop.f32.mrf.mxu0
  %v6323 = vadd.f32 0.0, %v6322
  %6324 = vmatmul.f32.gmra.mxu0 %v6297
  %v6325 = vpop.f32.mrf.mxu0
  %v6326 = vadd.f32 0.0, %v6325
  %6327 = vmatmul.f32.gmra.mxu0 %v6300
  %v6328 = vpop.f32.mrf.mxu0
  %v6329 = vadd.f32 0.0, %v6328
  %6330 = vdwg.mxu0
  %v6332 = vsel %vm302, %v4511, 0
  %v6335 = vsel %vm302, %v4512, 0
  %v6338 = vsel %vm302, %v4513, 0
  %v6341 = vsel %vm302, %v4514, 0
  %6343 = vmatpush.msra.mxu0 0.0
  %6344 = vmatpush.msra.mxu0 0.0
  %6345 = vmatpush.msra.mxu0 0.0
  %6346 = vmatpush.msra.mxu0 0.0
  %6347 = vmatpush.msra.mxu0 0.0
  %6348 = vmatpush.msra.mxu0 0.0
  %6349 = vmatpush.msra.mxu0 0.0
  %6350 = vmatpush.msra.mxu0 0.0
  %6351 = vmatpush.msra.mxu0 0.0
  %6352 = vmatpush.msra.mxu0 0.0
  %6353 = vmatpush.msra.mxu0 0.0
  %6354 = vmatpush.msra.mxu0 0.0
  %6355 = vmatpush.msra.mxu0 0.0
  %6356 = vmatpush.msra.mxu0 0.0
  %6357 = vmatpush.msra.mxu0 0.0
  %6358 = vmatpush.msra.mxu0 %v298
  %6359 = vmatmul.f32.gmra.mxu0 %v6332
  %v6360 = vpop.f32.mrf.mxu0
  %v6361 = vadd.f32 0.0, %v6360
  %6362 = vmatmul.f32.gmra.mxu0 %v6335
  %v6363 = vpop.f32.mrf.mxu0
  %v6364 = vadd.f32 0.0, %v6363
  %6365 = vmatmul.f32.gmra.mxu0 %v6338
  %v6366 = vpop.f32.mrf.mxu0
  %v6367 = vadd.f32 0.0, %v6366
  %6368 = vmatmul.f32.gmra.mxu0 %v6341
  %v6369 = vpop.f32.mrf.mxu0
  %v6370 = vadd.f32 0.0, %v6369
  %6371 = vdwg.mxu0
  %v6373 = vsel %vm302, %v4515, 0
  %v6376 = vsel %vm302, %v4516, 0
  %v6379 = vsel %vm302, %v4517, 0
  %v6382 = vsel %vm302, %v4518, 0
  %6384 = vmatpush.msra.mxu0 0.0
  %6385 = vmatpush.msra.mxu0 0.0
  %6386 = vmatpush.msra.mxu0 0.0
  %6387 = vmatpush.msra.mxu0 0.0
  %6388 = vmatpush.msra.mxu0 0.0
  %6389 = vmatpush.msra.mxu0 0.0
  %6390 = vmatpush.msra.mxu0 0.0
  %6391 = vmatpush.msra.mxu0 0.0
  %6392 = vmatpush.msra.mxu0 0.0
  %6393 = vmatpush.msra.mxu0 0.0
  %6394 = vmatpush.msra.mxu0 0.0
  %6395 = vmatpush.msra.mxu0 0.0
  %6396 = vmatpush.msra.mxu0 0.0
  %6397 = vmatpush.msra.mxu0 0.0
  %6398 = vmatpush.msra.mxu0 0.0
  %6399 = vmatpush.msra.mxu0 %v299
  %6400 = vmatmul.f32.gmra.mxu0 %v6373
  %v6401 = vpop.f32.mrf.mxu0
  %v6402 = vadd.f32 0.0, %v6401
  %6403 = vmatmul.f32.gmra.mxu0 %v6376
  %v6404 = vpop.f32.mrf.mxu0
  %v6405 = vadd.f32 0.0, %v6404
  %6406 = vmatmul.f32.gmra.mxu0 %v6379
  %v6407 = vpop.f32.mrf.mxu0
  %v6408 = vadd.f32 0.0, %v6407
  %6409 = vmatmul.f32.gmra.mxu0 %v6382
  %v6410 = vpop.f32.mrf.mxu0
  %v6411 = vadd.f32 0.0, %v6410
  %6412 = vdwg.mxu0
  %v6414 = vsel %vm302, %v4519, 0
  %v6417 = vsel %vm302, %v4520, 0
  %v6420 = vsel %vm302, %v4521, 0
  %v6423 = vsel %vm302, %v4522, 0
  %6425 = vmatpush.msra.mxu0 0.0
  %6426 = vmatpush.msra.mxu0 0.0
  %6427 = vmatpush.msra.mxu0 0.0
  %6428 = vmatpush.msra.mxu0 0.0
  %6429 = vmatpush.msra.mxu0 0.0
  %6430 = vmatpush.msra.mxu0 0.0
  %6431 = vmatpush.msra.mxu0 0.0
  %6432 = vmatpush.msra.mxu0 0.0
  %6433 = vmatpush.msra.mxu0 0.0
  %6434 = vmatpush.msra.mxu0 0.0
  %6435 = vmatpush.msra.mxu0 0.0
  %6436 = vmatpush.msra.mxu0 0.0
  %6437 = vmatpush.msra.mxu0 0.0
  %6438 = vmatpush.msra.mxu0 0.0
  %6439 = vmatpush.msra.mxu0 0.0
  %6440 = vmatpush.msra.mxu0 %v300
  %6441 = vmatmul.f32.gmra.mxu0 %v6414
  %v6442 = vpop.f32.mrf.mxu0
  %v6443 = vadd.f32 0.0, %v6442
  %6444 = vmatmul.f32.gmra.mxu0 %v6417
  %v6445 = vpop.f32.mrf.mxu0
  %v6446 = vadd.f32 0.0, %v6445
  %6447 = vmatmul.f32.gmra.mxu0 %v6420
  %v6448 = vpop.f32.mrf.mxu0
  %v6449 = vadd.f32 0.0, %v6448
  %6450 = vmatmul.f32.gmra.mxu0 %v6423
  %v6451 = vpop.f32.mrf.mxu0
  %v6452 = vadd.f32 0.0, %v6451
  %6453 = vdwg.mxu0
  %v6455 = vsel %vm302, %v4523, 0
  %v6458 = vsel %vm302, %v4524, 0
  %v6461 = vsel %vm302, %v4525, 0
  %v6464 = vsel %vm302, %v4526, 0
  %6466 = vmatpush.msra.mxu0 0.0
  %6467 = vmatpush.msra.mxu0 0.0
  %6468 = vmatpush.msra.mxu0 0.0
  %6469 = vmatpush.msra.mxu0 0.0
  %6470 = vmatpush.msra.mxu0 0.0
  %6471 = vmatpush.msra.mxu0 0.0
  %6472 = vmatpush.msra.mxu0 0.0
  %6473 = vmatpush.msra.mxu0 0.0
  %6474 = vmatpush.msra.mxu0 0.0
  %6475 = vmatpush.msra.mxu0 0.0
  %6476 = vmatpush.msra.mxu0 0.0
  %6477 = vmatpush.msra.mxu0 0.0
  %6478 = vmatpush.msra.mxu0 0.0
  %6479 = vmatpush.msra.mxu0 0.0
  %6480 = vmatpush.msra.mxu0 0.0
  %6481 = vmatpush.msra.mxu0 %v301
  %6482 = vmatmul.f32.gmra.mxu0 %v6455
  %v6483 = vpop.f32.mrf.mxu0
  %v6484 = vadd.f32 0.0, %v6483
  %6485 = vmatmul.f32.gmra.mxu0 %v6458
  %v6486 = vpop.f32.mrf.mxu0
  %v6487 = vadd.f32 0.0, %v6486
  %6488 = vmatmul.f32.gmra.mxu0 %v6461
  %v6489 = vpop.f32.mrf.mxu0
  %v6490 = vadd.f32 0.0, %v6489
  %6491 = vmatmul.f32.gmra.mxu0 %v6464
  %v6492 = vpop.f32.mrf.mxu0
  %v6493 = vadd.f32 0.0, %v6492
  %6494 = vdwg.mxu0
  %6495 = vst.msk [vmem:[%s3] sm:$0xff] %vm302, %v4557
  %6496 = vst.msk [vmem:[%s3 + $0x8] sm:$0xff] %vm302, %v4560
  %6497 = vst.msk [vmem:[%s3 + $0x10] sm:$0xff] %vm302, %v4563
  %6498 = vst.msk [vmem:[%s3 + $0x18] sm:$0xff] %vm302, %v4566
  %6499 = vst.msk [vmem:[%s3 + $0x20] sm:$0xff] %vm302, %v4598
  %6500 = vst.msk [vmem:[%s3 + $0x28] sm:$0xff] %vm302, %v4601
  %6501 = vst.msk [vmem:[%s3 + $0x30] sm:$0xff] %vm302, %v4604
  %6502 = vst.msk [vmem:[%s3 + $0x38] sm:$0xff] %vm302, %v4607
  %6503 = vst.msk [vmem:[%s3 + $0x40] sm:$0xff] %vm302, %v4639
  %6504 = vst.msk [vmem:[%s3 + $0x48] sm:$0xff] %vm302, %v4642
  %6505 = vst.msk [vmem:[%s3 + $0x50] sm:$0xff] %vm302, %v4645
  %6506 = vst.msk [vmem:[%s3 + $0x58] sm:$0xff] %vm302, %v4648
  %6507 = vst.msk [vmem:[%s3 + $0x60] sm:$0xff] %vm302, %v4680
  %6508 = vst.msk [vmem:[%s3 + $0x68] sm:$0xff] %vm302, %v4683
  %6509 = vst.msk [vmem:[%s3 + $0x70] sm:$0xff] %vm302, %v4686
  %6510 = vst.msk [vmem:[%s3 + $0x78] sm:$0xff] %vm302, %v4689
  %6511 = vst.msk [vmem:[%s3 + $0x80] sm:$0xff] %vm302, %v4721
  %6512 = vst.msk [vmem:[%s3 + $0x88] sm:$0xff] %vm302, %v4724
  %6513 = vst.msk [vmem:[%s3 + $0x90] sm:$0xff] %vm302, %v4727
  %6514 = vst.msk [vmem:[%s3 + $0x98] sm:$0xff] %vm302, %v4730
  %6515 = vst.msk [vmem:[%s3 + $0xa0] sm:$0xff] %vm302, %v4762
  %6516 = vst.msk [vmem:[%s3 + $0xa8] sm:$0xff] %vm302, %v4765
  %6517 = vst.msk [vmem:[%s3 + $0xb0] sm:$0xff] %vm302, %v4768
  %6518 = vst.msk [vmem:[%s3 + $0xb8] sm:$0xff] %vm302, %v4771
  %6519 = vst.msk [vmem:[%s3 + $0xc0] sm:$0xff] %vm302, %v4803
  %6520 = vst.msk [vmem:[%s3 + $0xc8] sm:$0xff] %vm302, %v4806
  %6521 = vst.msk [vmem:[%s3 + $0xd0] sm:$0xff] %vm302, %v4809
  %6522 = vst.msk [vmem:[%s3 + $0xd8] sm:$0xff] %vm302, %v4812
  %6523 = vst.msk [vmem:[%s3 + $0xe0] sm:$0xff] %vm302, %v4844
  %6524 = vst.msk [vmem:[%s3 + $0xe8] sm:$0xff] %vm302, %v4847
  %6525 = vst.msk [vmem:[%s3 + $0xf0] sm:$0xff] %vm302, %v4850
  %6526 = vst.msk [vmem:[%s3 + $0xf8] sm:$0xff] %vm302, %v4853
  %6527 = vst.msk [vmem:[%s3 + $0x100] sm:$0xff] %vm302, %v4885
  %6528 = vst.msk [vmem:[%s3 + $0x108] sm:$0xff] %vm302, %v4888
  %6529 = vst.msk [vmem:[%s3 + $0x110] sm:$0xff] %vm302, %v4891
  %6530 = vst.msk [vmem:[%s3 + $0x118] sm:$0xff] %vm302, %v4894
  %6531 = vst.msk [vmem:[%s3 + $0x120] sm:$0xff] %vm302, %v4926
  %6532 = vst.msk [vmem:[%s3 + $0x128] sm:$0xff] %vm302, %v4929
  %6533 = vst.msk [vmem:[%s3 + $0x130] sm:$0xff] %vm302, %v4932
  %6534 = vst.msk [vmem:[%s3 + $0x138] sm:$0xff] %vm302, %v4935
  %6535 = vst.msk [vmem:[%s3 + $0x140] sm:$0xff] %vm302, %v4967
  %6536 = vst.msk [vmem:[%s3 + $0x148] sm:$0xff] %vm302, %v4970
  %6537 = vst.msk [vmem:[%s3 + $0x150] sm:$0xff] %vm302, %v4973
  %6538 = vst.msk [vmem:[%s3 + $0x158] sm:$0xff] %vm302, %v4976
  %6539 = vst.msk [vmem:[%s3 + $0x160] sm:$0xff] %vm302, %v5008
  %6540 = vst.msk [vmem:[%s3 + $0x168] sm:$0xff] %vm302, %v5011
  %6541 = vst.msk [vmem:[%s3 + $0x170] sm:$0xff] %vm302, %v5014
  %6542 = vst.msk [vmem:[%s3 + $0x178] sm:$0xff] %vm302, %v5017
  %6543 = vst.msk [vmem:[%s3 + $0x180] sm:$0xff] %vm302, %v5049
  %6544 = vst.msk [vmem:[%s3 + $0x188] sm:$0xff] %vm302, %v5052
  %6545 = vst.msk [vmem:[%s3 + $0x190] sm:$0xff] %vm302, %v5055
  %6546 = vst.msk [vmem:[%s3 + $0x198] sm:$0xff] %vm302, %v5058
  %6547 = vst.msk [vmem:[%s3 + $0x1a0] sm:$0xff] %vm302, %v5090
  %6548 = vst.msk [vmem:[%s3 + $0x1a8] sm:$0xff] %vm302, %v5093
  %6549 = vst.msk [vmem:[%s3 + $0x1b0] sm:$0xff] %vm302, %v5096
  %6550 = vst.msk [vmem:[%s3 + $0x1b8] sm:$0xff] %vm302, %v5099
  %6551 = vst.msk [vmem:[%s3 + $0x1c0] sm:$0xff] %vm302, %v5131
  %6552 = vst.msk [vmem:[%s3 + $0x1c8] sm:$0xff] %vm302, %v5134
  %6553 = vst.msk [vmem:[%s3 + $0x1d0] sm:$0xff] %vm302, %v5137
  %6554 = vst.msk [vmem:[%s3 + $0x1d8] sm:$0xff] %vm302, %v5140
  %6555 = vst.msk [vmem:[%s3 + $0x1e0] sm:$0xff] %vm302, %v5172
  %6556 = vst.msk [vmem:[%s3 + $0x1e8] sm:$0xff] %vm302, %v5175
  %6557 = vst.msk [vmem:[%s3 + $0x1f0] sm:$0xff] %vm302, %v5178
  %6558 = vst.msk [vmem:[%s3 + $0x1f8] sm:$0xff] %vm302, %v5181
  %6559 = vst.msk [vmem:[%s3 + $0x200] sm:$0xff] %vm302, %v5213
  %6560 = vst.msk [vmem:[%s3 + $0x208] sm:$0xff] %vm302, %v5216
  %6561 = vst.msk [vmem:[%s3 + $0x210] sm:$0xff] %vm302, %v5219
  %6562 = vst.msk [vmem:[%s3 + $0x218] sm:$0xff] %vm302, %v5222
  %6563 = vst.msk [vmem:[%s3 + $0x220] sm:$0xff] %vm302, %v5254
  %6564 = vst.msk [vmem:[%s3 + $0x228] sm:$0xff] %vm302, %v5257
  %6565 = vst.msk [vmem:[%s3 + $0x230] sm:$0xff] %vm302, %v5260
  %6566 = vst.msk [vmem:[%s3 + $0x238] sm:$0xff] %vm302, %v5263
  %6567 = vst.msk [vmem:[%s3 + $0x240] sm:$0xff] %vm302, %v5295
  %6568 = vst.msk [vmem:[%s3 + $0x248] sm:$0xff] %vm302, %v5298
  %6569 = vst.msk [vmem:[%s3 + $0x250] sm:$0xff] %vm302, %v5301
  %6570 = vst.msk [vmem:[%s3 + $0x258] sm:$0xff] %vm302, %v5304
  %6571 = vst.msk [vmem:[%s3 + $0x260] sm:$0xff] %vm302, %v5336
  %6572 = vst.msk [vmem:[%s3 + $0x268] sm:$0xff] %vm302, %v5339
  %6573 = vst.msk [vmem:[%s3 + $0x270] sm:$0xff] %vm302, %v5342
  %6574 = vst.msk [vmem:[%s3 + $0x278] sm:$0xff] %vm302, %v5345
  %6575 = vst.msk [vmem:[%s3 + $0x280] sm:$0xff] %vm302, %v5377
  %6576 = vst.msk [vmem:[%s3 + $0x288] sm:$0xff] %vm302, %v5380
  %6577 = vst.msk [vmem:[%s3 + $0x290] sm:$0xff] %vm302, %v5383
  %6578 = vst.msk [vmem:[%s3 + $0x298] sm:$0xff] %vm302, %v5386
  %6579 = vst.msk [vmem:[%s3 + $0x2a0] sm:$0xff] %vm302, %v5418
  %6580 = vst.msk [vmem:[%s3 + $0x2a8] sm:$0xff] %vm302, %v5421
  %6581 = vst.msk [vmem:[%s3 + $0x2b0] sm:$0xff] %vm302, %v5424
  %6582 = vst.msk [vmem:[%s3 + $0x2b8] sm:$0xff] %vm302, %v5427
  %6583 = vst.msk [vmem:[%s3 + $0x2c0] sm:$0xff] %vm302, %v5459
  %6584 = vst.msk [vmem:[%s3 + $0x2c8] sm:$0xff] %vm302, %v5462
  %6585 = vst.msk [vmem:[%s3 + $0x2d0] sm:$0xff] %vm302, %v5465
  %6586 = vst.msk [vmem:[%s3 + $0x2d8] sm:$0xff] %vm302, %v5468
  %6587 = vst.msk [vmem:[%s3 + $0x2e0] sm:$0xff] %vm302, %v5500
  %6588 = vst.msk [vmem:[%s3 + $0x2e8] sm:$0xff] %vm302, %v5503
  %6589 = vst.msk [vmem:[%s3 + $0x2f0] sm:$0xff] %vm302, %v5506
  %6590 = vst.msk [vmem:[%s3 + $0x2f8] sm:$0xff] %vm302, %v5509
  %6591 = vst.msk [vmem:[%s3 + $0x300] sm:$0xff] %vm302, %v5541
  %6592 = vst.msk [vmem:[%s3 + $0x308] sm:$0xff] %vm302, %v5544
  %6593 = vst.msk [vmem:[%s3 + $0x310] sm:$0xff] %vm302, %v5547
  %6594 = vst.msk [vmem:[%s3 + $0x318] sm:$0xff] %vm302, %v5550
  %6595 = vst.msk [vmem:[%s3 + $0x320] sm:$0xff] %vm302, %v5582
  %6596 = vst.msk [vmem:[%s3 + $0x328] sm:$0xff] %vm302, %v5585
  %6597 = vst.msk [vmem:[%s3 + $0x330] sm:$0xff] %vm302, %v5588
  %6598 = vst.msk [vmem:[%s3 + $0x338] sm:$0xff] %vm302, %v5591
  %6599 = vst.msk [vmem:[%s3 + $0x340] sm:$0xff] %vm302, %v5623
  %6600 = vst.msk [vmem:[%s3 + $0x348] sm:$0xff] %vm302, %v5626
  %6601 = vst.msk [vmem:[%s3 + $0x350] sm:$0xff] %vm302, %v5629
  %6602 = vst.msk [vmem:[%s3 + $0x358] sm:$0xff] %vm302, %v5632
  %6603 = vst.msk [vmem:[%s3 + $0x360] sm:$0xff] %vm302, %v5664
  %6604 = vst.msk [vmem:[%s3 + $0x368] sm:$0xff] %vm302, %v5667
  %6605 = vst.msk [vmem:[%s3 + $0x370] sm:$0xff] %vm302, %v5670
  %6606 = vst.msk [vmem:[%s3 + $0x378] sm:$0xff] %vm302, %v5673
  %6607 = vst.msk [vmem:[%s3 + $0x380] sm:$0xff] %vm302, %v5705
  %6608 = vst.msk [vmem:[%s3 + $0x388] sm:$0xff] %vm302, %v5708
  %6609 = vst.msk [vmem:[%s3 + $0x390] sm:$0xff] %vm302, %v5711
  %6610 = vst.msk [vmem:[%s3 + $0x398] sm:$0xff] %vm302, %v5714
  %6611 = vst.msk [vmem:[%s3 + $0x3a0] sm:$0xff] %vm302, %v5746
  %6612 = vst.msk [vmem:[%s3 + $0x3a8] sm:$0xff] %vm302, %v5749
  %6613 = vst.msk [vmem:[%s3 + $0x3b0] sm:$0xff] %vm302, %v5752
  %6614 = vst.msk [vmem:[%s3 + $0x3b8] sm:$0xff] %vm302, %v5755
  %6615 = vst.msk [vmem:[%s3 + $0x3c0] sm:$0xff] %vm302, %v5787
  %6616 = vst.msk [vmem:[%s3 + $0x3c8] sm:$0xff] %vm302, %v5790
  %6617 = vst.msk [vmem:[%s3 + $0x3d0] sm:$0xff] %vm302, %v5793
  %6618 = vst.msk [vmem:[%s3 + $0x3d8] sm:$0xff] %vm302, %v5796
  %6619 = vst.msk [vmem:[%s3 + $0x3e0] sm:$0xff] %vm302, %v5828
  %6620 = vst.msk [vmem:[%s3 + $0x3e8] sm:$0xff] %vm302, %v5831
  %6621 = vst.msk [vmem:[%s3 + $0x3f0] sm:$0xff] %vm302, %v5834
  %6622 = vst.msk [vmem:[%s3 + $0x3f8] sm:$0xff] %vm302, %v5837
  %6623 = vst.msk [vmem:[%s3 + $0x400] sm:$0xff] %vm302, %v5869
  %6624 = vst.msk [vmem:[%s3 + $0x408] sm:$0xff] %vm302, %v5872
  %6625 = vst.msk [vmem:[%s3 + $0x410] sm:$0xff] %vm302, %v5875
  %6626 = vst.msk [vmem:[%s3 + $0x418] sm:$0xff] %vm302, %v5878
  %6627 = vst.msk [vmem:[%s3 + $0x420] sm:$0xff] %vm302, %v5910
  %6628 = vst.msk [vmem:[%s3 + $0x428] sm:$0xff] %vm302, %v5913
  %6629 = vst.msk [vmem:[%s3 + $0x430] sm:$0xff] %vm302, %v5916
  %6630 = vst.msk [vmem:[%s3 + $0x438] sm:$0xff] %vm302, %v5919
  %6631 = vst.msk [vmem:[%s3 + $0x440] sm:$0xff] %vm302, %v5951
  %6632 = vst.msk [vmem:[%s3 + $0x448] sm:$0xff] %vm302, %v5954
  %6633 = vst.msk [vmem:[%s3 + $0x450] sm:$0xff] %vm302, %v5957
  %6634 = vst.msk [vmem:[%s3 + $0x458] sm:$0xff] %vm302, %v5960
  %6635 = vst.msk [vmem:[%s3 + $0x460] sm:$0xff] %vm302, %v5992
  %6636 = vst.msk [vmem:[%s3 + $0x468] sm:$0xff] %vm302, %v5995
  %6637 = vst.msk [vmem:[%s3 + $0x470] sm:$0xff] %vm302, %v5998
  %6638 = vst.msk [vmem:[%s3 + $0x478] sm:$0xff] %vm302, %v6001
  %6639 = vst.msk [vmem:[%s3 + $0x480] sm:$0xff] %vm302, %v6033
  %6640 = vst.msk [vmem:[%s3 + $0x488] sm:$0xff] %vm302, %v6036
  %6641 = vst.msk [vmem:[%s3 + $0x490] sm:$0xff] %vm302, %v6039
  %6642 = vst.msk [vmem:[%s3 + $0x498] sm:$0xff] %vm302, %v6042
  %6643 = vst.msk [vmem:[%s3 + $0x4a0] sm:$0xff] %vm302, %v6074
  %6644 = vst.msk [vmem:[%s3 + $0x4a8] sm:$0xff] %vm302, %v6077
  %6645 = vst.msk [vmem:[%s3 + $0x4b0] sm:$0xff] %vm302, %v6080
  %6646 = vst.msk [vmem:[%s3 + $0x4b8] sm:$0xff] %vm302, %v6083
  %6647 = vst.msk [vmem:[%s3 + $0x4c0] sm:$0xff] %vm302, %v6115
  %6648 = vst.msk [vmem:[%s3 + $0x4c8] sm:$0xff] %vm302, %v6118
  %6649 = vst.msk [vmem:[%s3 + $0x4d0] sm:$0xff] %vm302, %v6121
  %6650 = vst.msk [vmem:[%s3 + $0x4d8] sm:$0xff] %vm302, %v6124
  %6651 = vst.msk [vmem:[%s3 + $0x4e0] sm:$0xff] %vm302, %v6156
  %6652 = vst.msk [vmem:[%s3 + $0x4e8] sm:$0xff] %vm302, %v6159
  %6653 = vst.msk [vmem:[%s3 + $0x4f0] sm:$0xff] %vm302, %v6162
  %6654 = vst.msk [vmem:[%s3 + $0x4f8] sm:$0xff] %vm302, %v6165
  %6655 = vst.msk [vmem:[%s3 + $0x500] sm:$0xff] %vm302, %v6197
  %6656 = vst.msk [vmem:[%s3 + $0x508] sm:$0xff] %vm302, %v6200
  %6657 = vst.msk [vmem:[%s3 + $0x510] sm:$0xff] %vm302, %v6203
  %6658 = vst.msk [vmem:[%s3 + $0x518] sm:$0xff] %vm302, %v6206
  %6659 = vst.msk [vmem:[%s3 + $0x520] sm:$0xff] %vm302, %v6238
  %6660 = vst.msk [vmem:[%s3 + $0x528] sm:$0xff] %vm302, %v6241
  %6661 = vst.msk [vmem:[%s3 + $0x530] sm:$0xff] %vm302, %v6244
  %6662 = vst.msk [vmem:[%s3 + $0x538] sm:$0xff] %vm302, %v6247
  %6663 = vst.msk [vmem:[%s3 + $0x540] sm:$0xff] %vm302, %v6279
  %6664 = vst.msk [vmem:[%s3 + $0x548] sm:$0xff] %vm302, %v6282
  %6665 = vst.msk [vmem:[%s3 + $0x550] sm:$0xff] %vm302, %v6285
  %6666 = vst.msk [vmem:[%s3 + $0x558] sm:$0xff] %vm302, %v6288
  %6667 = vst.msk [vmem:[%s3 + $0x560] sm:$0xff] %vm302, %v6320
  %6668 = vst.msk [vmem:[%s3 + $0x568] sm:$0xff] %vm302, %v6323
  %6669 = vst.msk [vmem:[%s3 + $0x570] sm:$0xff] %vm302, %v6326
  %6670 = vst.msk [vmem:[%s3 + $0x578] sm:$0xff] %vm302, %v6329
  %6671 = vst.msk [vmem:[%s3 + $0x580] sm:$0xff] %vm302, %v6361
  %6672 = vst.msk [vmem:[%s3 + $0x588] sm:$0xff] %vm302, %v6364
  %6673 = vst.msk [vmem:[%s3 + $0x590] sm:$0xff] %vm302, %v6367
  %6674 = vst.msk [vmem:[%s3 + $0x598] sm:$0xff] %vm302, %v6370
  %6675 = vst.msk [vmem:[%s3 + $0x5a0] sm:$0xff] %vm302, %v6402
  %6676 = vst.msk [vmem:[%s3 + $0x5a8] sm:$0xff] %vm302, %v6405
  %6677 = vst.msk [vmem:[%s3 + $0x5b0] sm:$0xff] %vm302, %v6408
  %6678 = vst.msk [vmem:[%s3 + $0x5b8] sm:$0xff] %vm302, %v6411
  %6679 = vst.msk [vmem:[%s3 + $0x5c0] sm:$0xff] %vm302, %v6443
  %6680 = vst.msk [vmem:[%s3 + $0x5c8] sm:$0xff] %vm302, %v6446
  %6681 = vst.msk [vmem:[%s3 + $0x5d0] sm:$0xff] %vm302, %v6449
  %6682 = vst.msk [vmem:[%s3 + $0x5d8] sm:$0xff] %vm302, %v6452
  %6683 = vst.msk [vmem:[%s3 + $0x5e0] sm:$0xff] %vm302, %v6484
  %6684 = vst.msk [vmem:[%s3 + $0x5e8] sm:$0xff] %vm302, %v6487
  %6685 = vst.msk [vmem:[%s3 + $0x5f0] sm:$0xff] %vm302, %v6490
  %6686 = vst.msk [vmem:[%s3 + $0x5f8] sm:$0xff] %vm302, %v6493
  // Predicated region
  $region14: #{_lambda_.9} parent=0 // pred_check
    _
  $region15: #{_lambda_.9} parent=0 // pred_check_branch
    %6688 = sbr.rel (0) target = $region17
  $region16: #{_lambda_.9} parent=0 // pred_region
    _
  $region17: #{_lambda_.9} parent=0 // pred_fallthru
    _
  // Predicated region
  $region18: #{_lambda_.9} parent=0 // pred_check
    _
  $region19: #{_lambda_.9} parent=0 // pred_check_branch
    %6690 = sbr.rel (0) target = $region21
  $region20: #{_lambda_.9} parent=0 // pred_region
    _
  $region21: #{_lambda_.9} parent=0 // pred_fallthru
    _

// kernel: _lambda_.11
$region0: #{_lambda_.11}
  #allocation0 [shape = 'u32[]', space=smem, size = 0x4, offset = 0x4, fixed_abs, tag = 'smem constant byte address 0x4 - core index']
  #allocation1 [shape = 'u32[72,128]{1,0:T(1,128)}', space=vmem, size = 0x9000, scoped, tag = 'internal scratch']
  %s0 = inlined_call_operand.vmem [shape: f32[32,1152], index: 0, kind: input, shape index: {}]
  %s1 = inlined_call_operand.vmem [shape: f32[128,1152], index: 1, kind: input, shape index: {}]
  %s2 = inlined_call_operand.vmem [shape: f32[32,128], index: 2, kind: output, shape index: {}]
  %s3 = sld [smem:[#allocation0]]
  $region18: #{_lambda_.11} parent=0
    _
  %s5 = ssub.s32 1, %s3
  %s6 = scalar_select 0, %s5, %s3
  // Predicated region
  $region2: #{_lambda_.11} parent=0 // pred_check
    _
  $region3: #{_lambda_.11} parent=0 // pred_check_branch
    %8 = sbr.rel (0) target = $region5
  $region4: #{_lambda_.11} parent=0 // pred_region
    _
  $region5: #{_lambda_.11} parent=0 // pred_fallthru
    _
  // Predicated region
  $region6: #{_lambda_.11} parent=0 // pred_check
    _
  $region7: #{_lambda_.11} parent=0 // pred_check_branch
    %10 = sbr.rel (0) target = $region9
  $region8: #{_lambda_.11} parent=0 // pred_region
    _
  $region9: #{_lambda_.11} parent=0 // pred_fallthru
    _
  %v11 = vld [vmem:[%s0] sm:$0xff]
  %v12 = vld [vmem:[%s0 + $0x8] sm:$0xff]
  %v13 = vld [vmem:[%s0 + $0x10] sm:$0xff]
  %v14 = vld [vmem:[%s0 + $0x18] sm:$0xff]
  %v15 = vld [vmem:[%s0 + $0x20] sm:$0xff]
  %v16 = vld [vmem:[%s0 + $0x28] sm:$0xff]
  %v17 = vld [vmem:[%s0 + $0x30] sm:$0xff]
  %v18 = vld [vmem:[%s0 + $0x38] sm:$0xff]
  %v19 = vld [vmem:[%s0 + $0x40] sm:$0xff]
  %v20 = vld [vmem:[%s0 + $0x48] sm:$0xff]
  %v21 = vld [vmem:[%s0 + $0x50] sm:$0xff]
  %v22 = vld [vmem:[%s0 + $0x58] sm:$0xff]
  %v23 = vld [vmem:[%s0 + $0x60] sm:$0xff]
  %v24 = vld [vmem:[%s0 + $0x68] sm:$0xff]
  %v25 = vld [vmem:[%s0 + $0x70] sm:$0xff]
  %v26 = vld [vmem:[%s0 + $0x78] sm:$0xff]
  %v27 = vld [vmem:[%s0 + $0x80] sm:$0xff]
  %v28 = vld [vmem:[%s0 + $0x88] sm:$0xff]
  %v29 = vld [vmem:[%s0 + $0x90] sm:$0xff]
  %v30 = vld [vmem:[%s0 + $0x98] sm:$0xff]
  %v31 = vld [vmem:[%s0 + $0xa0] sm:$0xff]
  %v32 = vld [vmem:[%s0 + $0xa8] sm:$0xff]
  %v33 = vld [vmem:[%s0 + $0xb0] sm:$0xff]
  %v34 = vld [vmem:[%s0 + $0xb8] sm:$0xff]
  %v35 = vld [vmem:[%s0 + $0xc0] sm:$0xff]
  %v36 = vld [vmem:[%s0 + $0xc8] sm:$0xff]
  %v37 = vld [vmem:[%s0 + $0xd0] sm:$0xff]
  %v38 = vld [vmem:[%s0 + $0xd8] sm:$0xff]
  %v39 = vld [vmem:[%s0 + $0xe0] sm:$0xff]
  %v40 = vld [vmem:[%s0 + $0xe8] sm:$0xff]
  %v41 = vld [vmem:[%s0 + $0xf0] sm:$0xff]
  %v42 = vld [vmem:[%s0 + $0xf8] sm:$0xff]
  %v43 = vld [vmem:[%s0 + $0x100] sm:$0xff]
  %v44 = vld [vmem:[%s0 + $0x108] sm:$0xff]
  %v45 = vld [vmem:[%s0 + $0x110] sm:$0xff]
  %v46 = vld [vmem:[%s0 + $0x118] sm:$0xff]
  %v47 = vld [vmem:[%s1] sm:$0xff]
  %v48 = vld [vmem:[%s1 + $0x8] sm:$0xff]
  %v49 = vld [vmem:[%s1 + $0x10] sm:$0xff]
  %v50 = vld [vmem:[%s1 + $0x18] sm:$0xff]
  %v51 = vld [vmem:[%s1 + $0x20] sm:$0xff]
  %v52 = vld [vmem:[%s1 + $0x28] sm:$0xff]
  %v53 = vld [vmem:[%s1 + $0x30] sm:$0xff]
  %v54 = vld [vmem:[%s1 + $0x38] sm:$0xff]
  %v55 = vld [vmem:[%s1 + $0x40] sm:$0xff]
  %v56 = vld [vmem:[%s1 + $0x48] sm:$0xff]
  %v57 = vld [vmem:[%s1 + $0x50] sm:$0xff]
  %v58 = vld [vmem:[%s1 + $0x58] sm:$0xff]
  %v59 = vld [vmem:[%s1 + $0x60] sm:$0xff]
  %v60 = vld [vmem:[%s1 + $0x68] sm:$0xff]
  %v61 = vld [vmem:[%s1 + $0x70] sm:$0xff]
  %v62 = vld [vmem:[%s1 + $0x78] sm:$0xff]
  %v63 = vld [vmem:[%s1 + $0x80] sm:$0xff]
  %v64 = vld [vmem:[%s1 + $0x88] sm:$0xff]
  %v65 = vld [vmem:[%s1 + $0x90] sm:$0xff]
  %v66 = vld [vmem:[%s1 + $0x98] sm:$0xff]
  %v67 = vld [vmem:[%s1 + $0xa0] sm:$0xff]
  %v68 = vld [vmem:[%s1 + $0xa8] sm:$0xff]
  %v69 = vld [vmem:[%s1 + $0xb0] sm:$0xff]
  %v70 = vld [vmem:[%s1 + $0xb8] sm:$0xff]
  %v71 = vld [vmem:[%s1 + $0xc0] sm:$0xff]
  %v72 = vld [vmem:[%s1 + $0xc8] sm:$0xff]
  %v73 = vld [vmem:[%s1 + $0xd0] sm:$0xff]
  %v74 = vld [vmem:[%s1 + $0xd8] sm:$0xff]
  %v75 = vld [vmem:[%s1 + $0xe0] sm:$0xff]
  %v76 = vld [vmem:[%s1 + $0xe8] sm:$0xff]
  %v77 = vld [vmem:[%s1 + $0xf0] sm:$0xff]
  %v78 = vld [vmem:[%s1 + $0xf8] sm:$0xff]
  %v79 = vld [vmem:[%s1 + $0x100] sm:$0xff]
  %v80 = vld [vmem:[%s1 + $0x108] sm:$0xff]
  %v81 = vld [vmem:[%s1 + $0x110] sm:$0xff]
  %v82 = vld [vmem:[%s1 + $0x118] sm:$0xff]
  %v83 = vld [vmem:[%s1 + $0x120] sm:$0xff]
  %v84 = vld [vmem:[%s1 + $0x128] sm:$0xff]
  %v85 = vld [vmem:[%s1 + $0x130] sm:$0xff]
  %v86 = vld [vmem:[%s1 + $0x138] sm:$0xff]
  %v87 = vld [vmem:[%s1 + $0x140] sm:$0xff]
  %v88 = vld [vmem:[%s1 + $0x148] sm:$0xff]
  %v89 = vld [vmem:[%s1 + $0x150] sm:$0xff]
  %v90 = vld [vmem:[%s1 + $0x158] sm:$0xff]
  %v91 = vld [vmem:[%s1 + $0x160] sm:$0xff]
  %v92 = vld [vmem:[%s1 + $0x168] sm:$0xff]
  %v93 = vld [vmem:[%s1 + $0x170] sm:$0xff]
  %v94 = vld [vmem:[%s1 + $0x178] sm:$0xff]
  %v95 = vld [vmem:[%s1 + $0x180] sm:$0xff]
  %v96 = vld [vmem:[%s1 + $0x188] sm:$0xff]
  %v97 = vld [vmem:[%s1 + $0x190] sm:$0xff]
  %v98 = vld [vmem:[%s1 + $0x198] sm:$0xff]
  %v99 = vld [vmem:[%s1 + $0x1a0] sm:$0xff]
  %v100 = vld [vmem:[%s1 + $0x1a8] sm:$0xff]
  %v101 = vld [vmem:[%s1 + $0x1b0] sm:$0xff]
  %v102 = vld [vmem:[%s1 + $0x1b8] sm:$0xff]
  %v103 = vld [vmem:[%s1 + $0x1c0] sm:$0xff]
  %v104 = vld [vmem:[%s1 + $0x1c8] sm:$0xff]
  %v105 = vld [vmem:[%s1 + $0x1d0] sm:$0xff]
  %v106 = vld [vmem:[%s1 + $0x1d8] sm:$0xff]
  %v107 = vld [vmem:[%s1 + $0x1e0] sm:$0xff]
  %v108 = vld [vmem:[%s1 + $0x1e8] sm:$0xff]
  %v109 = vld [vmem:[%s1 + $0x1f0] sm:$0xff]
  %v110 = vld [vmem:[%s1 + $0x1f8] sm:$0xff]
  %v111 = vld [vmem:[%s1 + $0x200] sm:$0xff]
  %v112 = vld [vmem:[%s1 + $0x208] sm:$0xff]
  %v113 = vld [vmem:[%s1 + $0x210] sm:$0xff]
  %v114 = vld [vmem:[%s1 + $0x218] sm:$0xff]
  %v115 = vld [vmem:[%s1 + $0x220] sm:$0xff]
  %v116 = vld [vmem:[%s1 + $0x228] sm:$0xff]
  %v117 = vld [vmem:[%s1 + $0x230] sm:$0xff]
  %v118 = vld [vmem:[%s1 + $0x238] sm:$0xff]
  %v119 = vld [vmem:[%s1 + $0x240] sm:$0xff]
  %v120 = vld [vmem:[%s1 + $0x248] sm:$0xff]
  %v121 = vld [vmem:[%s1 + $0x250] sm:$0xff]
  %v122 = vld [vmem:[%s1 + $0x258] sm:$0xff]
  %v123 = vld [vmem:[%s1 + $0x260] sm:$0xff]
  %v124 = vld [vmem:[%s1 + $0x268] sm:$0xff]
  %v125 = vld [vmem:[%s1 + $0x270] sm:$0xff]
  %v126 = vld [vmem:[%s1 + $0x278] sm:$0xff]
  %v127 = vld [vmem:[%s1 + $0x280] sm:$0xff]
  %v128 = vld [vmem:[%s1 + $0x288] sm:$0xff]
  %v129 = vld [vmem:[%s1 + $0x290] sm:$0xff]
  %v130 = vld [vmem:[%s1 + $0x298] sm:$0xff]
  %v131 = vld [vmem:[%s1 + $0x2a0] sm:$0xff]
  %v132 = vld [vmem:[%s1 + $0x2a8] sm:$0xff]
  %v133 = vld [vmem:[%s1 + $0x2b0] sm:$0xff]
  %v134 = vld [vmem:[%s1 + $0x2b8] sm:$0xff]
  %v135 = vld [vmem:[%s1 + $0x2c0] sm:$0xff]
  %v136 = vld [vmem:[%s1 + $0x2c8] sm:$0xff]
  %v137 = vld [vmem:[%s1 + $0x2d0] sm:$0xff]
  %v138 = vld [vmem:[%s1 + $0x2d8] sm:$0xff]
  %v139 = vld [vmem:[%s1 + $0x2e0] sm:$0xff]
  %v140 = vld [vmem:[%s1 + $0x2e8] sm:$0xff]
  %v141 = vld [vmem:[%s1 + $0x2f0] sm:$0xff]
  %v142 = vld [vmem:[%s1 + $0x2f8] sm:$0xff]
  %v143 = vld [vmem:[%s1 + $0x300] sm:$0xff]
  %v144 = vld [vmem:[%s1 + $0x308] sm:$0xff]
  %v145 = vld [vmem:[%s1 + $0x310] sm:$0xff]
  %v146 = vld [vmem:[%s1 + $0x318] sm:$0xff]
  %v147 = vld [vmem:[%s1 + $0x320] sm:$0xff]
  %v148 = vld [vmem:[%s1 + $0x328] sm:$0xff]
  %v149 = vld [vmem:[%s1 + $0x330] sm:$0xff]
  %v150 = vld [vmem:[%s1 + $0x338] sm:$0xff]
  %v151 = vld [vmem:[%s1 + $0x340] sm:$0xff]
  %v152 = vld [vmem:[%s1 + $0x348] sm:$0xff]
  %v153 = vld [vmem:[%s1 + $0x350] sm:$0xff]
  %v154 = vld [vmem:[%s1 + $0x358] sm:$0xff]
  %v155 = vld [vmem:[%s1 + $0x360] sm:$0xff]
  %v156 = vld [vmem:[%s1 + $0x368] sm:$0xff]
  %v157 = vld [vmem:[%s1 + $0x370] sm:$0xff]
  %v158 = vld [vmem:[%s1 + $0x378] sm:$0xff]
  %v159 = vld [vmem:[%s1 + $0x380] sm:$0xff]
  %v160 = vld [vmem:[%s1 + $0x388] sm:$0xff]
  %v161 = vld [vmem:[%s1 + $0x390] sm:$0xff]
  %v162 = vld [vmem:[%s1 + $0x398] sm:$0xff]
  %v163 = vld [vmem:[%s1 + $0x3a0] sm:$0xff]
  %v164 = vld [vmem:[%s1 + $0x3a8] sm:$0xff]
  %v165 = vld [vmem:[%s1 + $0x3b0] sm:$0xff]
  %v166 = vld [vmem:[%s1 + $0x3b8] sm:$0xff]
  %v167 = vld [vmem:[%s1 + $0x3c0] sm:$0xff]
  %v168 = vld [vmem:[%s1 + $0x3c8] sm:$0xff]
  %v169 = vld [vmem:[%s1 + $0x3d0] sm:$0xff]
  %v170 = vld [vmem:[%s1 + $0x3d8] sm:$0xff]
  %v171 = vld [vmem:[%s1 + $0x3e0] sm:$0xff]
  %v172 = vld [vmem:[%s1 + $0x3e8] sm:$0xff]
  %v173 = vld [vmem:[%s1 + $0x3f0] sm:$0xff]
  %v174 = vld [vmem:[%s1 + $0x3f8] sm:$0xff]
  %v175 = vld [vmem:[%s1 + $0x400] sm:$0xff]
  %v176 = vld [vmem:[%s1 + $0x408] sm:$0xff]
  %v177 = vld [vmem:[%s1 + $0x410] sm:$0xff]
  %v178 = vld [vmem:[%s1 + $0x418] sm:$0xff]
  %v179 = vld [vmem:[%s1 + $0x420] sm:$0xff]
  %v180 = vld [vmem:[%s1 + $0x428] sm:$0xff]
  %v181 = vld [vmem:[%s1 + $0x430] sm:$0xff]
  %v182 = vld [vmem:[%s1 + $0x438] sm:$0xff]
  %v183 = vld [vmem:[%s1 + $0x440] sm:$0xff]
  %v184 = vld [vmem:[%s1 + $0x448] sm:$0xff]
  %v185 = vld [vmem:[%s1 + $0x450] sm:$0xff]
  %v186 = vld [vmem:[%s1 + $0x458] sm:$0xff]
  %v187 = vld [vmem:[%s1 + $0x460] sm:$0xff]
  %v188 = vld [vmem:[%s1 + $0x468] sm:$0xff]
  %v189 = vld [vmem:[%s1 + $0x470] sm:$0xff]
  %v190 = vld [vmem:[%s1 + $0x478] sm:$0xff]
  %191 = vmatpush.xpose.msra.mxu0 %v182
  %192 = vmatpush.xpose.msra.mxu0 %v173
  %193 = vmatpush.xpose.msra.mxu0 %v164
  %194 = vmatpush.xpose.msra.mxu0 %v155
  %195 = vmatpush.xpose.msra.mxu0 %v146
  %196 = vmatpush.xpose.msra.mxu0 %v137
  %197 = vmatpush.xpose.msra.mxu0 %v128
  %198 = vmatpush.xpose.msra.mxu0 %v119
  %199 = vmatpush.xpose.msra.mxu0 %v110
  %200 = vmatpush.xpose.msra.mxu0 %v101
  %201 = vmatpush.xpose.msra.mxu0 %v92
  %202 = vmatpush.xpose.msra.mxu0 %v83
  %203 = vmatpush.xpose.msra.mxu0 %v74
  %204 = vmatpush.xpose.msra.mxu0 %v65
  %205 = vmatpush.xpose.msra.mxu0 %v56
  %206 = vmatpush.xpose.msra.mxu0 %v47
  %207 = vmatmul.f32.gmra.mxu0 %v11
  %v208 = vpop.f32.mrf.mxu0
  %v209 = vadd.f32 0.0, %v208
  %210 = vmatmul.f32.gmra.mxu0 %v20
  %v211 = vpop.f32.mrf.mxu0
  %v212 = vadd.f32 0.0, %v211
  %213 = vmatmul.f32.gmra.mxu0 %v29
  %v214 = vpop.f32.mrf.mxu0
  %v215 = vadd.f32 0.0, %v214
  %216 = vmatmul.f32.gmra.mxu0 %v38
  %v217 = vpop.f32.mrf.mxu0
  %v218 = vadd.f32 0.0, %v217
  %219 = vdwg.mxu0
  %220 = vmatpush.xpose.msra.mxu0 %v183
  %221 = vmatpush.xpose.msra.mxu0 %v174
  %222 = vmatpush.xpose.msra.mxu0 %v165
  %223 = vmatpush.xpose.msra.mxu0 %v156
  %224 = vmatpush.xpose.msra.mxu0 %v147
  %225 = vmatpush.xpose.msra.mxu0 %v138
  %226 = vmatpush.xpose.msra.mxu0 %v129
  %227 = vmatpush.xpose.msra.mxu0 %v120
  %228 = vmatpush.xpose.msra.mxu0 %v111
  %229 = vmatpush.xpose.msra.mxu0 %v102
  %230 = vmatpush.xpose.msra.mxu0 %v93
  %231 = vmatpush.xpose.msra.mxu0 %v84
  %232 = vmatpush.xpose.msra.mxu0 %v75
  %233 = vmatpush.xpose.msra.mxu0 %v66
  %234 = vmatpush.xpose.msra.mxu0 %v57
  %235 = vmatpush.xpose.msra.mxu0 %v48
  %236 = vmatmul.f32.gmra.mxu0 %v12
  %v237 = vpop.f32.mrf.mxu0
  %v238 = vadd.f32 %v209, %v237
  %239 = vmatmul.f32.gmra.mxu0 %v21
  %v240 = vpop.f32.mrf.mxu0
  %v241 = vadd.f32 %v212, %v240
  %242 = vmatmul.f32.gmra.mxu0 %v30
  %v243 = vpop.f32.mrf.mxu0
  %v244 = vadd.f32 %v215, %v243
  %245 = vmatmul.f32.gmra.mxu0 %v39
  %v246 = vpop.f32.mrf.mxu0
  %v247 = vadd.f32 %v218, %v246
  %248 = vdwg.mxu0
  %249 = vmatpush.xpose.msra.mxu0 %v184
  %250 = vmatpush.xpose.msra.mxu0 %v175
  %251 = vmatpush.xpose.msra.mxu0 %v166
  %252 = vmatpush.xpose.msra.mxu0 %v157
  %253 = vmatpush.xpose.msra.mxu0 %v148
  %254 = vmatpush.xpose.msra.mxu0 %v139
  %255 = vmatpush.xpose.msra.mxu0 %v130
  %256 = vmatpush.xpose.msra.mxu0 %v121
  %257 = vmatpush.xpose.msra.mxu0 %v112
  %258 = vmatpush.xpose.msra.mxu0 %v103
  %259 = vmatpush.xpose.msra.mxu0 %v94
  %260 = vmatpush.xpose.msra.mxu0 %v85
  %261 = vmatpush.xpose.msra.mxu0 %v76
  %262 = vmatpush.xpose.msra.mxu0 %v67
  %263 = vmatpush.xpose.msra.mxu0 %v58
  %264 = vmatpush.xpose.msra.mxu0 %v49
  %265 = vmatmul.f32.gmra.mxu0 %v13
  %v266 = vpop.f32.mrf.mxu0
  %v267 = vadd.f32 %v238, %v266
  %268 = vmatmul.f32.gmra.mxu0 %v22
  %v269 = vpop.f32.mrf.mxu0
  %v270 = vadd.f32 %v241, %v269
  %271 = vmatmul.f32.gmra.mxu0 %v31
  %v272 = vpop.f32.mrf.mxu0
  %v273 = vadd.f32 %v244, %v272
  %274 = vmatmul.f32.gmra.mxu0 %v40
  %v275 = vpop.f32.mrf.mxu0
  %v276 = vadd.f32 %v247, %v275
  %277 = vdwg.mxu0
  %278 = vmatpush.xpose.msra.mxu0 %v185
  %279 = vmatpush.xpose.msra.mxu0 %v176
  %280 = vmatpush.xpose.msra.mxu0 %v167
  %281 = vmatpush.xpose.msra.mxu0 %v158
  %282 = vmatpush.xpose.msra.mxu0 %v149
  %283 = vmatpush.xpose.msra.mxu0 %v140
  %284 = vmatpush.xpose.msra.mxu0 %v131
  %285 = vmatpush.xpose.msra.mxu0 %v122
  %286 = vmatpush.xpose.msra.mxu0 %v113
  %287 = vmatpush.xpose.msra.mxu0 %v104
  %288 = vmatpush.xpose.msra.mxu0 %v95
  %289 = vmatpush.xpose.msra.mxu0 %v86
  %290 = vmatpush.xpose.msra.mxu0 %v77
  %291 = vmatpush.xpose.msra.mxu0 %v68
  %292 = vmatpush.xpose.msra.mxu0 %v59
  %293 = vmatpush.xpose.msra.mxu0 %v50
  %294 = vmatmul.f32.gmra.mxu0 %v14
  %v295 = vpop.f32.mrf.mxu0
  %v296 = vadd.f32 %v267, %v295
  %297 = vmatmul.f32.gmra.mxu0 %v23
  %v298 = vpop.f32.mrf.mxu0
  %v299 = vadd.f32 %v270, %v298
  %300 = vmatmul.f32.gmra.mxu0 %v32
  %v301 = vpop.f32.mrf.mxu0
  %v302 = vadd.f32 %v273, %v301
  %303 = vmatmul.f32.gmra.mxu0 %v41
  %v304 = vpop.f32.mrf.mxu0
  %v305 = vadd.f32 %v276, %v304
  %306 = vdwg.mxu0
  %307 = vmatpush.xpose.msra.mxu0 %v186
  %308 = vmatpush.xpose.msra.mxu0 %v177
  %309 = vmatpush.xpose.msra.mxu0 %v168
  %310 = vmatpush.xpose.msra.mxu0 %v159
  %311 = vmatpush.xpose.msra.mxu0 %v150
  %312 = vmatpush.xpose.msra.mxu0 %v141
  %313 = vmatpush.xpose.msra.mxu0 %v132
  %314 = vmatpush.xpose.msra.mxu0 %v123
  %315 = vmatpush.xpose.msra.mxu0 %v114
  %316 = vmatpush.xpose.msra.mxu0 %v105
  %317 = vmatpush.xpose.msra.mxu0 %v96
  %318 = vmatpush.xpose.msra.mxu0 %v87
  %319 = vmatpush.xpose.msra.mxu0 %v78
  %320 = vmatpush.xpose.msra.mxu0 %v69
  %321 = vmatpush.xpose.msra.mxu0 %v60
  %322 = vmatpush.xpose.msra.mxu0 %v51
  %323 = vmatmul.f32.gmra.mxu0 %v15
  %v324 = vpop.f32.mrf.mxu0
  %v325 = vadd.f32 %v296, %v324
  %326 = vmatmul.f32.gmra.mxu0 %v24
  %v327 = vpop.f32.mrf.mxu0
  %v328 = vadd.f32 %v299, %v327
  %329 = vmatmul.f32.gmra.mxu0 %v33
  %v330 = vpop.f32.mrf.mxu0
  %v331 = vadd.f32 %v302, %v330
  %332 = vmatmul.f32.gmra.mxu0 %v42
  %v333 = vpop.f32.mrf.mxu0
  %v334 = vadd.f32 %v305, %v333
  %335 = vdwg.mxu0
  %336 = vmatpush.xpose.msra.mxu0 %v187
  %337 = vmatpush.xpose.msra.mxu0 %v178
  %338 = vmatpush.xpose.msra.mxu0 %v169
  %339 = vmatpush.xpose.msra.mxu0 %v160
  %340 = vmatpush.xpose.msra.mxu0 %v151
  %341 = vmatpush.xpose.msra.mxu0 %v142
  %342 = vmatpush.xpose.msra.mxu0 %v133
  %343 = vmatpush.xpose.msra.mxu0 %v124
  %344 = vmatpush.xpose.msra.mxu0 %v115
  %345 = vmatpush.xpose.msra.mxu0 %v106
  %346 = vmatpush.xpose.msra.mxu0 %v97
  %347 = vmatpush.xpose.msra.mxu0 %v88
  %348 = vmatpush.xpose.msra.mxu0 %v79
  %349 = vmatpush.xpose.msra.mxu0 %v70
  %350 = vmatpush.xpose.msra.mxu0 %v61
  %351 = vmatpush.xpose.msra.mxu0 %v52
  %352 = vmatmul.f32.gmra.mxu0 %v16
  %v353 = vpop.f32.mrf.mxu0
  %v354 = vadd.f32 %v325, %v353
  %355 = vmatmul.f32.gmra.mxu0 %v25
  %v356 = vpop.f32.mrf.mxu0
  %v357 = vadd.f32 %v328, %v356
  %358 = vmatmul.f32.gmra.mxu0 %v34
  %v359 = vpop.f32.mrf.mxu0
  %v360 = vadd.f32 %v331, %v359
  %361 = vmatmul.f32.gmra.mxu0 %v43
  %v362 = vpop.f32.mrf.mxu0
  %v363 = vadd.f32 %v334, %v362
  %364 = vdwg.mxu0
  %365 = vmatpush.xpose.msra.mxu0 %v188
  %366 = vmatpush.xpose.msra.mxu0 %v179
  %367 = vmatpush.xpose.msra.mxu0 %v170
  %368 = vmatpush.xpose.msra.mxu0 %v161
  %369 = vmatpush.xpose.msra.mxu0 %v152
  %370 = vmatpush.xpose.msra.mxu0 %v143
  %371 = vmatpush.xpose.msra.mxu0 %v134
  %372 = vmatpush.xpose.msra.mxu0 %v125
  %373 = vmatpush.xpose.msra.mxu0 %v116
  %374 = vmatpush.xpose.msra.mxu0 %v107
  %375 = vmatpush.xpose.msra.mxu0 %v98
  %376 = vmatpush.xpose.msra.mxu0 %v89
  %377 = vmatpush.xpose.msra.mxu0 %v80
  %378 = vmatpush.xpose.msra.mxu0 %v71
  %379 = vmatpush.xpose.msra.mxu0 %v62
  %380 = vmatpush.xpose.msra.mxu0 %v53
  %381 = vmatmul.f32.gmra.mxu0 %v17
  %v382 = vpop.f32.mrf.mxu0
  %v383 = vadd.f32 %v354, %v382
  %384 = vmatmul.f32.gmra.mxu0 %v26
  %v385 = vpop.f32.mrf.mxu0
  %v386 = vadd.f32 %v357, %v385
  %387 = vmatmul.f32.gmra.mxu0 %v35
  %v388 = vpop.f32.mrf.mxu0
  %v389 = vadd.f32 %v360, %v388
  %390 = vmatmul.f32.gmra.mxu0 %v44
  %v391 = vpop.f32.mrf.mxu0
  %v392 = vadd.f32 %v363, %v391
  %393 = vdwg.mxu0
  %394 = vmatpush.xpose.msra.mxu0 %v189
  %395 = vmatpush.xpose.msra.mxu0 %v180
  %396 = vmatpush.xpose.msra.mxu0 %v171
  %397 = vmatpush.xpose.msra.mxu0 %v162
  %398 = vmatpush.xpose.msra.mxu0 %v153
  %399 = vmatpush.xpose.msra.mxu0 %v144
  %400 = vmatpush.xpose.msra.mxu0 %v135
  %401 = vmatpush.xpose.msra.mxu0 %v126
  %402 = vmatpush.xpose.msra.mxu0 %v117
  %403 = vmatpush.xpose.msra.mxu0 %v108
  %404 = vmatpush.xpose.msra.mxu0 %v99
  %405 = vmatpush.xpose.msra.mxu0 %v90
  %406 = vmatpush.xpose.msra.mxu0 %v81
  %407 = vmatpush.xpose.msra.mxu0 %v72
  %408 = vmatpush.xpose.msra.mxu0 %v63
  %409 = vmatpush.xpose.msra.mxu0 %v54
  %410 = vmatmul.f32.gmra.mxu0 %v18
  %v411 = vpop.f32.mrf.mxu0
  %v412 = vadd.f32 %v383, %v411
  %413 = vmatmul.f32.gmra.mxu0 %v27
  %v414 = vpop.f32.mrf.mxu0
  %v415 = vadd.f32 %v386, %v414
  %416 = vmatmul.f32.gmra.mxu0 %v36
  %v417 = vpop.f32.mrf.mxu0
  %v418 = vadd.f32 %v389, %v417
  %419 = vmatmul.f32.gmra.mxu0 %v45
  %v420 = vpop.f32.mrf.mxu0
  %v421 = vadd.f32 %v392, %v420
  %422 = vdwg.mxu0
  %423 = vmatpush.xpose.msra.mxu0 %v190
  %424 = vmatpush.xpose.msra.mxu0 %v181
  %425 = vmatpush.xpose.msra.mxu0 %v172
  %426 = vmatpush.xpose.msra.mxu0 %v163
  %427 = vmatpush.xpose.msra.mxu0 %v154
  %428 = vmatpush.xpose.msra.mxu0 %v145
  %429 = vmatpush.xpose.msra.mxu0 %v136
  %430 = vmatpush.xpose.msra.mxu0 %v127
  %431 = vmatpush.xpose.msra.mxu0 %v118
  %432 = vmatpush.xpose.msra.mxu0 %v109
  %433 = vmatpush.xpose.msra.mxu0 %v100
  %434 = vmatpush.xpose.msra.mxu0 %v91
  %435 = vmatpush.xpose.msra.mxu0 %v82
  %436 = vmatpush.xpose.msra.mxu0 %v73
  %437 = vmatpush.xpose.msra.mxu0 %v64
  %438 = vmatpush.xpose.msra.mxu0 %v55
  %439 = vmatmul.f32.gmra.mxu0 %v19
  %v440 = vpop.f32.mrf.mxu0
  %v441 = vadd.f32 %v412, %v440
  %442 = vmatmul.f32.gmra.mxu0 %v28
  %v443 = vpop.f32.mrf.mxu0
  %v444 = vadd.f32 %v415, %v443
  %445 = vmatmul.f32.gmra.mxu0 %v37
  %v446 = vpop.f32.mrf.mxu0
  %v447 = vadd.f32 %v418, %v446
  %448 = vmatmul.f32.gmra.mxu0 %v46
  %v449 = vpop.f32.mrf.mxu0
  %v450 = vadd.f32 %v421, %v449
  %451 = vdwg.mxu0
  %452 = vst [vmem:[%s2] sm:$0xff] %v441
  %453 = vst [vmem:[%s2 + $0x8] sm:$0xff] %v444
  %454 = vst [vmem:[%s2 + $0x10] sm:$0xff] %v447
  %455 = vst [vmem:[%s2 + $0x18] sm:$0xff] %v450
  // Predicated region
  $region10: #{_lambda_.11} parent=0 // pred_check
    _
  $region11: #{_lambda_.11} parent=0 // pred_check_branch
    %457 = sbr.rel (0) target = $region13
  $region12: #{_lambda_.11} parent=0 // pred_region
    _
  $region13: #{_lambda_.11} parent=0 // pred_fallthru
    _
  // Predicated region
  $region14: #{_lambda_.11} parent=0 // pred_check
    _
  $region15: #{_lambda_.11} parent=0 // pred_check_branch
    %459 = sbr.rel (0) target = $region17
  $region16: #{_lambda_.11} parent=0 // pred_region
    _
  $region17: #{_lambda_.11} parent=0 // pred_fallthru
    _

</llo_original>
